<compile_context>
chip_gen: v7x
topology: tpu7x:2x2x1
jax: 0.10.0
libtpu: 0.0.40
codegen_flags: <defaults>
</compile_context>

<pallas_src>
import jax
import jax.numpy as jnp
from jax.experimental import pallas as pl
from jax.experimental.pallas import tpu as pltpu

_BN_EPS = 1e-5
_LRELU_SLOPE = 0.01  # torch nn.LeakyReLU() default


def _vmem():
    # whole-array block resident in VMEM (all tensors here are tiny)
    return pl.BlockSpec(memory_space=pltpu.MemorySpace.VMEM)


def _stage_config(input_dim, depth, filt):
    """Per-stage (cin, cout, H, W), mirroring __C_Encoder__.__init__."""
    c, h, w = input_dim[0], input_dim[1], input_dim[2]
    f = filt
    cfg = []
    for _ in range(depth):
        cfg.append((c, f, h, w))
        c = f
        f *= 2
        h //= 2
        w //= 2
    return cfg, (c, h, w)  # final (channels, h, w) after the last pool


def _make_encoder_kernel(N, stage_cfg, blocks, latent):
    depth = len(stage_cfg)

    def kernel(*refs):
        it = iter(refs)
        # ---- inputs ----
        x_ref = next(it)
        conv_p = [[tuple(next(it) for _ in range(4)) for _ in range(blocks)]
                  for _ in range(depth)]
        wfc_ref = next(it)
        bfc_ref = next(it)
        wh_ref = next(it)
        bh_ref = next(it)
        # ---- outputs ----
        mu_ref = next(it)
        lv_ref = next(it)
        skip_refs = [next(it) for _ in range(depth)]
        # ---- scratch ----
        pad_refs = [[next(it) for _ in range(blocks)] for _ in range(depth)]
        patch_refs = [[next(it) for _ in range(blocks)] for _ in range(depth)]
        ybuf_refs = [next(it) for _ in range(depth)]
        fcin_ref = next(it)

        cur = x_ref[...]  # NHWC activation value, (N, H, W, Cin)

        for d in range(depth):
            cin0, cout, H, W = stage_cfg[d]
            M = N * H * W
            y2d = None
            for j in range(blocks):
                cin = cin0 if j == 0 else cout
                pad_ref = pad_refs[d][j]
                pat_ref = patch_refs[d][j]
                w_ref, b_ref, g_ref, bt_ref = conv_p[d][j]

                # zero-padded input (padding=(1,1)) built in VMEM
                pad_ref[...] = jnp.zeros_like(pad_ref)
                pad_ref[:, 1:H + 1, 1:W + 1, :] = cur

                # im2col patch matrix (M, 9*cin) -> single MXU matmul
                for t in range(9):
                    dy, dx = divmod(t, 3)
                    pat_ref[:, t * cin:(t + 1) * cin] = (
                        pad_ref[:, dy:dy + H, dx:dx + W, :].reshape(M, cin))
                acc = jnp.dot(pat_ref[...], w_ref[...],
                              preferred_element_type=jnp.float32)
                z = acc + b_ref[...]  # conv bias, (1, cout) broadcast

                # BatchNorm2d (training batch stats), one-pass sum / sum-of-squares
                s = jnp.sum(z, axis=0, keepdims=True)
                ss = jnp.sum(z * z, axis=0, keepdims=True)
                mean = s * (1.0 / M)
                var = ss * (1.0 / M) - mean * mean
                y2d = (z - mean) * (g_ref[...] * jax.lax.rsqrt(var + _BN_EPS)) \
                    + bt_ref[...]
                y2d = jnp.maximum(y2d, 0.0)  # ReLU
                cur = y2d.reshape(N, H, W, cout)

            # skip connection: pre-pool activation (NHWC; wrapper emits NCHW view)
            skip_refs[d][...] = cur

            # fused MaxPool2d((2,2)) epilogue
            ybuf = ybuf_refs[d]
            ybuf[...] = y2d                        # rows ordered (n, h, w)
            w_even = ybuf[pl.ds(0, M // 2, 2), :]  # w = 0, 2, 4, ...
            w_odd = ybuf[pl.ds(1, M // 2, 2), :]   # w = 1, 3, 5, ...
            wp = jnp.maximum(w_even, w_odd)        # (M//2, cout), rows (n, h, wo)
            Ho, Wo = H // 2, W // 2
            zz = wp.reshape(N * Ho, 2 * Wo, cout)  # rows (n, ho); [h-parity*Wo + wo]
            pooled = jnp.maximum(zz[:, 0:Wo, :], zz[:, Wo:2 * Wo, :])
            cur = pooled.reshape(N, Ho, Wo, cout)

        # Flatten + Linear + LeakyReLU.  The FC weight rows were permuted at init
        # to (h, w, c) order, so the NHWC features can be packed directly.
        _, Hl, Wl, Cl = cur.shape
        for p in range(Hl * Wl):
            hh, ww = divmod(p, Wl)
            fcin_ref[:, p * Cl:(p + 1) * Cl] = cur[:, hh, ww, :]
        h1 = jnp.dot(fcin_ref[...], wfc_ref[...],
                     preferred_element_type=jnp.float32) + bfc_ref[...]
        h1 = jnp.where(h1 >= 0.0, h1, _LRELU_SLOPE * h1)

        # the two latent heads, merged into a single matmul
        hd = jnp.dot(h1, wh_ref[...], preferred_element_type=jnp.float32) + bh_ref[...]
        mu_ref[...] = hd[:, 0:latent]
        lv_ref[...] = hd[:, latent:2 * latent]

    return kernel


def build_encoder(N, input_dim, hidden_size, latent_dim, depth, blocks, filt):
    stage_cfg, (c_out, h_out, w_out) = _stage_config(input_dim, depth, filt)
    flat = c_out * h_out * w_out

    kernel = _make_encoder_kernel(N, stage_cfg, blocks, latent_dim)

    n_inputs = 1 + depth * blocks * 4 + 4
    in_specs = [_vmem() for _ in range(n_inputs)]

    out_shape = [jax.ShapeDtypeStruct((N, latent_dim), jnp.float32),
                 jax.ShapeDtypeStruct((N, latent_dim), jnp.float32)]
    for (_cin0, cout, H, W) in stage_cfg:
        out_shape.append(jax.ShapeDtypeStruct((N, H, W, cout), jnp.float32))
    out_specs = tuple(_vmem() for _ in out_shape)

    scratch_shapes = []
    for (cin0, cout, H, W) in stage_cfg:          # padded-input scratch, per block
        for j in range(blocks):
            cin = cin0 if j == 0 else cout
            scratch_shapes.append(pltpu.VMEM((N, H + 2, W + 2, cin), jnp.float32))
    for (cin0, cout, H, W) in stage_cfg:          # im2col patch matrices
        for j in range(blocks):
            cin = cin0 if j == 0 else cout
            scratch_shapes.append(pltpu.VMEM((N * H * W, 9 * cin), jnp.float32))
    for (_cin0, cout, H, W) in stage_cfg:         # pooling buffers
        scratch_shapes.append(pltpu.VMEM((N * H * W, cout), jnp.float32))
    scratch_shapes.append(pltpu.VMEM((N, flat), jnp.float32))   # FC input slab

    fused = pl.pallas_call(
        kernel,
        out_shape=tuple(out_shape),
        in_specs=in_specs,
        out_specs=out_specs,
        scratch_shapes=scratch_shapes,
    )

    def forward(kernel_args, x_nchw):
        x_nhwc = jnp.transpose(x_nchw, (0, 2, 3, 1))      # NCHW -> NHWC boundary op
        outs = fused(x_nhwc, *kernel_args)
        mu, logvar = outs[0], outs[1]
        # torch-style NCHW skip connections (tiny boundary transposes)
        skips = tuple(jnp.transpose(s, (0, 3, 1, 2)) for s in outs[2:])
        return mu, logvar, skips

    return jax.jit(forward)


def init_encoder_params(key, input_dim, hidden_size, latent_dim, depth, blocks, filt):
    """Deterministic synthetic parameters, pre-laid-out for the fused kernel:
       conv weights as (9*cin, cout) im2col matrices, FC weight row-permuted from
       torch NCHW-flatten order (c,h,w) to (h,w,c), and the two head weights
       concatenated along the output dim."""
    stage_cfg, (c_out, h_out, w_out) = _stage_config(input_dim, depth, filt)
    flat = c_out * h_out * w_out

    keys = iter(jax.random.split(key, depth * blocks * 2 + 6))

    kernel_args = []
    for (cin0, cout, _H, _W) in stage_cfg:
        for j in range(blocks):
            cin = cin0 if j == 0 else cout
            wconv = 0.1 * jax.random.normal(next(keys), (3, 3, cin, cout), jnp.float32)
            bconv = 0.1 * jax.random.normal(next(keys), (cout,), jnp.float32)
            gamma = jnp.ones((cout,), jnp.float32)   # BatchNorm2d default affine init
            beta = jnp.zeros((cout,), jnp.float32)
            kernel_args += [wconv.reshape(9 * cin, cout),
                            bconv.reshape(1, cout),
                            gamma.reshape(1, cout),
                            beta.reshape(1, cout)]

    # Linear(flat, hidden): rows generated in torch Flatten (c,h,w) order, then
    # permuted once (init-time) to (h,w,c) so the kernel needs no transpose.
    w1_chw = 0.05 * jax.random.normal(next(keys), (flat, hidden_size), jnp.float32)
    b1 = 0.05 * jax.random.normal(next(keys), (hidden_size,), jnp.float32)
    w1_hwc = (w1_chw.reshape(c_out, h_out, w_out, hidden_size)
              .transpose(1, 2, 0, 3).reshape(flat, hidden_size))

    wmu = 0.05 * jax.random.normal(next(keys), (hidden_size, latent_dim), jnp.float32)
    bmu = 0.05 * jax.random.normal(next(keys), (latent_dim,), jnp.float32)
    wlv = 0.05 * jax.random.normal(next(keys), (hidden_size, latent_dim), jnp.float32)
    blv = 0.05 * jax.random.normal(next(keys), (latent_dim,), jnp.float32)
    w_heads = jnp.concatenate([wmu, wlv], axis=1)          # merged-head matmul
    b_heads = jnp.concatenate([bmu, blv]).reshape(1, 2 * latent_dim)

    kernel_args += [w1_hwc, b1.reshape(1, hidden_size), w_heads, b_heads]

    return {"kernel_args": kernel_args, "state_shape": (c_out, h_out, w_out)}


if __name__ == "__main__":
    hidden_size = 32
    input_dim = (4, 16, 16)   # (C, H, W)
    latent_dim = 8
    depth = 2
    blocks = 1
    filt = 8
    batch = 2

    key = jax.random.PRNGKey(0)
    k_param, k_x = jax.random.split(key)

    params = init_encoder_params(k_param, input_dim, hidden_size, latent_dim,
                                 depth, blocks, filt)
    forward = build_encoder(batch, input_dim, hidden_size, latent_dim,
                            depth, blocks, filt)

    x = jax.random.normal(k_x, (batch, *input_dim), jnp.float32)  # NCHW

    mu, logvar, skips = forward(params["kernel_args"], x)
    jax.block_until_ready(mu)
    jax.block_until_ready(logvar)
    for s in skips:
        jax.block_until_ready(s)

    assert mu.shape == (batch, latent_dim)
    assert logvar.shape == (batch, latent_dim)
    assert skips[0].shape == (batch, filt, input_dim[1], input_dim[2])
    assert skips[1].shape == (batch, filt * 2, input_dim[1] // 2, input_dim[2] // 2)
    assert params["state_shape"] == (filt * 2, input_dim[1] // 4, input_dim[2] // 4)
    print("KERNEL_OK")
</pallas_src>

<mosaic_0001>
module attributes {stable_mosaic.version = 11 : i64} {
  func.func @kernel(%arg0: memref<2x16x16x4xf32, #tpu.memory_space<vmem>>, %arg1: memref<36x8xf32, #tpu.memory_space<vmem>>, %arg2: memref<1x8xf32, #tpu.memory_space<vmem>>, %arg3: memref<1x8xf32, #tpu.memory_space<vmem>>, %arg4: memref<1x8xf32, #tpu.memory_space<vmem>>, %arg5: memref<72x16xf32, #tpu.memory_space<vmem>>, %arg6: memref<1x16xf32, #tpu.memory_space<vmem>>, %arg7: memref<1x16xf32, #tpu.memory_space<vmem>>, %arg8: memref<1x16xf32, #tpu.memory_space<vmem>>, %arg9: memref<256x32xf32, #tpu.memory_space<vmem>>, %arg10: memref<1x32xf32, #tpu.memory_space<vmem>>, %arg11: memref<32x16xf32, #tpu.memory_space<vmem>>, %arg12: memref<1x16xf32, #tpu.memory_space<vmem>>, %arg13: memref<2x8xf32, #tpu.memory_space<vmem>>, %arg14: memref<2x8xf32, #tpu.memory_space<vmem>>, %arg15: memref<2x16x16x8xf32, #tpu.memory_space<vmem>>, %arg16: memref<2x8x8x16xf32, #tpu.memory_space<vmem>>, %arg17: memref<2x18x18x4xf32, #tpu.memory_space<vmem>>, %arg18: memref<2x10x10x8xf32, #tpu.memory_space<vmem>>, %arg19: memref<512x36xf32, #tpu.memory_space<vmem>>, %arg20: memref<128x72xf32, #tpu.memory_space<vmem>>, %arg21: memref<512x8xf32, #tpu.memory_space<vmem>>, %arg22: memref<128x16xf32, #tpu.memory_space<vmem>>, %arg23: memref<2x256xf32, #tpu.memory_space<vmem>>) attributes {dimension_semantics = [], scalar_prefetch = 0 : i64, scratch_operands = 7 : i64, tpu.core_type = #tpu.core_type<tc>} {
    %c0 = arith.constant 0 : index
    %c0_0 = arith.constant 0 : index
    %c0_1 = arith.constant 0 : index
    %c0_2 = arith.constant 0 : index
    %0 = vector.load %arg0[%c0, %c0_0, %c0_1, %c0_2] : memref<2x16x16x4xf32, #tpu.memory_space<vmem>>, vector<2x16x16x4xf32>
    %cst = arith.constant 0.000000e+00 : f32
    %1 = vector.broadcast %cst : f32 to vector<2x18x18x4xf32>
    %c0_3 = arith.constant 0 : index
    %c0_4 = arith.constant 0 : index
    %c0_5 = arith.constant 0 : index
    %c0_6 = arith.constant 0 : index
    %2 = vector.load %arg17[%c0_3, %c0_4, %c0_5, %c0_6] : memref<2x18x18x4xf32, #tpu.memory_space<vmem>>, vector<2x18x18x4xf32>
    tpu.vector_store %arg17[%c0_3, %c0_4, %c0_5, %c0_6], %1 {strides = array<i32>} : memref<2x18x18x4xf32, #tpu.memory_space<vmem>>, vector<2x18x18x4xf32>,
    %c0_7 = arith.constant 0 : index
    %c1 = arith.constant 1 : index
    %c1_8 = arith.constant 1 : index
    %c0_9 = arith.constant 0 : index
    %3 = vector.load %arg17[%c0_7, %c1, %c1_8, %c0_9] : memref<2x18x18x4xf32, #tpu.memory_space<vmem>>, vector<2x16x16x4xf32>
    tpu.vector_store %arg17[%c0_7, %c1, %c1_8, %c0_9], %0 {strides = array<i32>} : memref<2x18x18x4xf32, #tpu.memory_space<vmem>>, vector<2x16x16x4xf32>,
    %c0_10 = arith.constant 0 : index
    %c0_11 = arith.constant 0 : index
    %c0_12 = arith.constant 0 : index
    %c0_13 = arith.constant 0 : index
    %4 = vector.load %arg17[%c0_10, %c0_11, %c0_12, %c0_13] : memref<2x18x18x4xf32, #tpu.memory_space<vmem>>, vector<2x16x16x4xf32>
    %5 = vector.shape_cast %4 : vector<2x16x16x4xf32> to vector<512x4xf32>
    %c0_14 = arith.constant 0 : index
    %c0_15 = arith.constant 0 : index
    %6 = vector.load %arg19[%c0_14, %c0_15] : memref<512x36xf32, #tpu.memory_space<vmem>>, vector<512x4xf32>
    tpu.vector_store %arg19[%c0_14, %c0_15], %5 {strides = array<i32>} : memref<512x36xf32, #tpu.memory_space<vmem>>, vector<512x4xf32>,
    %c0_16 = arith.constant 0 : index
    %c0_17 = arith.constant 0 : index
    %c1_18 = arith.constant 1 : index
    %c0_19 = arith.constant 0 : index
    %7 = vector.load %arg17[%c0_16, %c0_17, %c1_18, %c0_19] : memref<2x18x18x4xf32, #tpu.memory_space<vmem>>, vector<2x16x16x4xf32>
    %8 = vector.shape_cast %7 : vector<2x16x16x4xf32> to vector<512x4xf32>
    %c0_20 = arith.constant 0 : index
    %c4 = arith.constant 4 : index
    %9 = vector.load %arg19[%c0_20, %c4] : memref<512x36xf32, #tpu.memory_space<vmem>>, vector<512x4xf32>
    tpu.vector_store %arg19[%c0_20, %c4], %8 {strides = array<i32>} : memref<512x36xf32, #tpu.memory_space<vmem>>, vector<512x4xf32>,
    %c0_21 = arith.constant 0 : index
    %c0_22 = arith.constant 0 : index
    %c2 = arith.constant 2 : index
    %c0_23 = arith.constant 0 : index
    %10 = vector.load %arg17[%c0_21, %c0_22, %c2, %c0_23] : memref<2x18x18x4xf32, #tpu.memory_space<vmem>>, vector<2x16x16x4xf32>
    %11 = vector.shape_cast %10 : vector<2x16x16x4xf32> to vector<512x4xf32>
    %c0_24 = arith.constant 0 : index
    %c8 = arith.constant 8 : index
    %12 = vector.load %arg19[%c0_24, %c8] : memref<512x36xf32, #tpu.memory_space<vmem>>, vector<512x4xf32>
    tpu.vector_store %arg19[%c0_24, %c8], %11 {strides = array<i32>} : memref<512x36xf32, #tpu.memory_space<vmem>>, vector<512x4xf32>,
    %c0_25 = arith.constant 0 : index
    %c1_26 = arith.constant 1 : index
    %c0_27 = arith.constant 0 : index
    %c0_28 = arith.constant 0 : index
    %13 = vector.load %arg17[%c0_25, %c1_26, %c0_27, %c0_28] : memref<2x18x18x4xf32, #tpu.memory_space<vmem>>, vector<2x16x16x4xf32>
    %14 = vector.shape_cast %13 : vector<2x16x16x4xf32> to vector<512x4xf32>
    %c0_29 = arith.constant 0 : index
    %c12 = arith.constant 12 : index
    %15 = vector.load %arg19[%c0_29, %c12] : memref<512x36xf32, #tpu.memory_space<vmem>>, vector<512x4xf32>
    tpu.vector_store %arg19[%c0_29, %c12], %14 {strides = array<i32>} : memref<512x36xf32, #tpu.memory_space<vmem>>, vector<512x4xf32>,
    %c0_30 = arith.constant 0 : index
    %c1_31 = arith.constant 1 : index
    %c1_32 = arith.constant 1 : index
    %c0_33 = arith.constant 0 : index
    %16 = vector.load %arg17[%c0_30, %c1_31, %c1_32, %c0_33] : memref<2x18x18x4xf32, #tpu.memory_space<vmem>>, vector<2x16x16x4xf32>
    %17 = vector.shape_cast %16 : vector<2x16x16x4xf32> to vector<512x4xf32>
    %c0_34 = arith.constant 0 : index
    %c16 = arith.constant 16 : index
    %18 = vector.load %arg19[%c0_34, %c16] : memref<512x36xf32, #tpu.memory_space<vmem>>, vector<512x4xf32>
    tpu.vector_store %arg19[%c0_34, %c16], %17 {strides = array<i32>} : memref<512x36xf32, #tpu.memory_space<vmem>>, vector<512x4xf32>,
    %c0_35 = arith.constant 0 : index
    %c1_36 = arith.constant 1 : index
    %c2_37 = arith.constant 2 : index
    %c0_38 = arith.constant 0 : index
    %19 = vector.load %arg17[%c0_35, %c1_36, %c2_37, %c0_38] : memref<2x18x18x4xf32, #tpu.memory_space<vmem>>, vector<2x16x16x4xf32>
    %20 = vector.shape_cast %19 : vector<2x16x16x4xf32> to vector<512x4xf32>
    %c0_39 = arith.constant 0 : index
    %c20 = arith.constant 20 : index
    %21 = vector.load %arg19[%c0_39, %c20] : memref<512x36xf32, #tpu.memory_space<vmem>>, vector<512x4xf32>
    tpu.vector_store %arg19[%c0_39, %c20], %20 {strides = array<i32>} : memref<512x36xf32, #tpu.memory_space<vmem>>, vector<512x4xf32>,
    %c0_40 = arith.constant 0 : index
    %c2_41 = arith.constant 2 : index
    %c0_42 = arith.constant 0 : index
    %c0_43 = arith.constant 0 : index
    %22 = vector.load %arg17[%c0_40, %c2_41, %c0_42, %c0_43] : memref<2x18x18x4xf32, #tpu.memory_space<vmem>>, vector<2x16x16x4xf32>
    %23 = vector.shape_cast %22 : vector<2x16x16x4xf32> to vector<512x4xf32>
    %c0_44 = arith.constant 0 : index
    %c24 = arith.constant 24 : index
    %24 = vector.load %arg19[%c0_44, %c24] : memref<512x36xf32, #tpu.memory_space<vmem>>, vector<512x4xf32>
    tpu.vector_store %arg19[%c0_44, %c24], %23 {strides = array<i32>} : memref<512x36xf32, #tpu.memory_space<vmem>>, vector<512x4xf32>,
    %c0_45 = arith.constant 0 : index
    %c2_46 = arith.constant 2 : index
    %c1_47 = arith.constant 1 : index
    %c0_48 = arith.constant 0 : index
    %25 = vector.load %arg17[%c0_45, %c2_46, %c1_47, %c0_48] : memref<2x18x18x4xf32, #tpu.memory_space<vmem>>, vector<2x16x16x4xf32>
    %26 = vector.shape_cast %25 : vector<2x16x16x4xf32> to vector<512x4xf32>
    %c0_49 = arith.constant 0 : index
    %c28 = arith.constant 28 : index
    %27 = vector.load %arg19[%c0_49, %c28] : memref<512x36xf32, #tpu.memory_space<vmem>>, vector<512x4xf32>
    tpu.vector_store %arg19[%c0_49, %c28], %26 {strides = array<i32>} : memref<512x36xf32, #tpu.memory_space<vmem>>, vector<512x4xf32>,
    %c0_50 = arith.constant 0 : index
    %c2_51 = arith.constant 2 : index
    %c2_52 = arith.constant 2 : index
    %c0_53 = arith.constant 0 : index
    %28 = vector.load %arg17[%c0_50, %c2_51, %c2_52, %c0_53] : memref<2x18x18x4xf32, #tpu.memory_space<vmem>>, vector<2x16x16x4xf32>
    %29 = vector.shape_cast %28 : vector<2x16x16x4xf32> to vector<512x4xf32>
    %c0_54 = arith.constant 0 : index
    %c32 = arith.constant 32 : index
    %30 = vector.load %arg19[%c0_54, %c32] : memref<512x36xf32, #tpu.memory_space<vmem>>, vector<512x4xf32>
    tpu.vector_store %arg19[%c0_54, %c32], %29 {strides = array<i32>} : memref<512x36xf32, #tpu.memory_space<vmem>>, vector<512x4xf32>,
    %c0_55 = arith.constant 0 : index
    %c0_56 = arith.constant 0 : index
    %31 = vector.load %arg19[%c0_55, %c0_56] : memref<512x36xf32, #tpu.memory_space<vmem>>, vector<512x36xf32>
    %c0_57 = arith.constant 0 : index
    %c0_58 = arith.constant 0 : index
    %32 = vector.load %arg1[%c0_57, %c0_58] : memref<36x8xf32, #tpu.memory_space<vmem>>, vector<36x8xf32>
    %cst_59 = arith.constant dense<0.000000e+00> : vector<512x8xf32>
    %33 = tpu.matmul %31, %32, %cst_59 {dimension_numbers = #tpu.dot_dimension_numbers<[1], [0], [0], [1], [0, 0, 1, 1], [], []>} : vector<512x36xf32>, vector<36x8xf32>, vector<512x8xf32> -> vector<512x8xf32>
    %c0_60 = arith.constant 0 : index
    %c0_61 = arith.constant 0 : index
    %34 = vector.load %arg2[%c0_60, %c0_61] : memref<1x8xf32, #tpu.memory_space<vmem>>, vector<1x8xf32>
    %35 = vector.broadcast %34 : vector<1x8xf32> to vector<512x8xf32>
    %36 = arith.addf %33, %35 : vector<512x8xf32>
    %cst_62 = arith.constant dense<0.000000e+00> : vector<8xf32>
    %37 = vector.multi_reduction <add>, %36, %cst_62 [0] : vector<512x8xf32> to vector<8xf32>
    %38 = vector.shape_cast %37 : vector<8xf32> to vector<1x8xf32>
    %39 = arith.mulf %36, %36 : vector<512x8xf32>
    %cst_63 = arith.constant dense<0.000000e+00> : vector<8xf32>
    %40 = vector.multi_reduction <add>, %39, %cst_63 [0] : vector<512x8xf32> to vector<8xf32>
    %41 = vector.shape_cast %40 : vector<8xf32> to vector<1x8xf32>
    %cst_64 = arith.constant 0.001953125 : f32
    %42 = vector.broadcast %cst_64 : f32 to vector<1x8xf32>
    %43 = arith.mulf %38, %42 : vector<1x8xf32>
    %cst_65 = arith.constant 0.001953125 : f32
    %44 = vector.broadcast %cst_65 : f32 to vector<1x8xf32>
    %45 = arith.mulf %41, %44 : vector<1x8xf32>
    %46 = arith.mulf %43, %43 : vector<1x8xf32>
    %47 = arith.subf %45, %46 : vector<1x8xf32>
    %48 = vector.broadcast %43 : vector<1x8xf32> to vector<512x8xf32>
    %49 = arith.subf %36, %48 : vector<512x8xf32>
    %c0_66 = arith.constant 0 : index
    %c0_67 = arith.constant 0 : index
    %50 = vector.load %arg3[%c0_66, %c0_67] : memref<1x8xf32, #tpu.memory_space<vmem>>, vector<1x8xf32>
    %cst_68 = arith.constant 9.99999974E-6 : f32
    %51 = vector.broadcast %cst_68 : f32 to vector<1x8xf32>
    %52 = arith.addf %47, %51 : vector<1x8xf32>
    %53 = math.rsqrt %52 : vector<1x8xf32>
    %54 = arith.mulf %50, %53 : vector<1x8xf32>
    %55 = vector.broadcast %54 : vector<1x8xf32> to vector<512x8xf32>
    %56 = arith.mulf %49, %55 : vector<512x8xf32>
    %c0_69 = arith.constant 0 : index
    %c0_70 = arith.constant 0 : index
    %57 = vector.load %arg4[%c0_69, %c0_70] : memref<1x8xf32, #tpu.memory_space<vmem>>, vector<1x8xf32>
    %58 = vector.broadcast %57 : vector<1x8xf32> to vector<512x8xf32>
    %59 = arith.addf %56, %58 : vector<512x8xf32>
    %cst_71 = arith.constant 0.000000e+00 : f32
    %60 = vector.broadcast %cst_71 : f32 to vector<512x8xf32>
    %61 = arith.maximumf %59, %60 : vector<512x8xf32>
    %62 = vector.shape_cast %61 : vector<512x8xf32> to vector<2x16x16x8xf32>
    %c0_72 = arith.constant 0 : index
    %c0_73 = arith.constant 0 : index
    %c0_74 = arith.constant 0 : index
    %c0_75 = arith.constant 0 : index
    %63 = vector.load %arg15[%c0_72, %c0_73, %c0_74, %c0_75] : memref<2x16x16x8xf32, #tpu.memory_space<vmem>>, vector<2x16x16x8xf32>
    tpu.vector_store %arg15[%c0_72, %c0_73, %c0_74, %c0_75], %62 {strides = array<i32>} : memref<2x16x16x8xf32, #tpu.memory_space<vmem>>, vector<2x16x16x8xf32>,
    %c0_76 = arith.constant 0 : index
    %c0_77 = arith.constant 0 : index
    %64 = vector.load %arg21[%c0_76, %c0_77] : memref<512x8xf32, #tpu.memory_space<vmem>>, vector<512x8xf32>
    tpu.vector_store %arg21[%c0_76, %c0_77], %61 {strides = array<i32>} : memref<512x8xf32, #tpu.memory_space<vmem>>, vector<512x8xf32>,
    %c0_78 = arith.constant 0 : index
    %c0_79 = arith.constant 0 : index
    %65 = tpu.strided_load %arg21[%c0_78, %c0_79] {strides = array<i32: 2, 1>} : memref<512x8xf32, #tpu.memory_space<vmem>>, vector<256x8xf32>
    %c1_80 = arith.constant 1 : index
    %c0_81 = arith.constant 0 : index
    %66 = tpu.strided_load %arg21[%c1_80, %c0_81] {strides = array<i32: 2, 1>} : memref<512x8xf32, #tpu.memory_space<vmem>>, vector<256x8xf32>
    %67 = arith.maximumf %65, %66 : vector<256x8xf32>
    %68 = vector.shape_cast %67 : vector<256x8xf32> to vector<16x16x8xf32>
    %69 = vector.extract_strided_slice %68 {offsets = [0, 0, 0], sizes = [16, 8, 8], strides = [1, 1, 1]} : vector<16x16x8xf32> to vector<16x8x8xf32>
    %70 = vector.extract_strided_slice %68 {offsets = [0, 8, 0], sizes = [16, 8, 8], strides = [1, 1, 1]} : vector<16x16x8xf32> to vector<16x8x8xf32>
    %71 = arith.maximumf %69, %70 : vector<16x8x8xf32>
    %72 = vector.shape_cast %71 : vector<16x8x8xf32> to vector<2x8x8x8xf32>
    %cst_82 = arith.constant 0.000000e+00 : f32
    %73 = vector.broadcast %cst_82 : f32 to vector<2x10x10x8xf32>
    %c0_83 = arith.constant 0 : index
    %c0_84 = arith.constant 0 : index
    %c0_85 = arith.constant 0 : index
    %c0_86 = arith.constant 0 : index
    %74 = vector.load %arg18[%c0_83, %c0_84, %c0_85, %c0_86] : memref<2x10x10x8xf32, #tpu.memory_space<vmem>>, vector<2x10x10x8xf32>
    tpu.vector_store %arg18[%c0_83, %c0_84, %c0_85, %c0_86], %73 {strides = array<i32>} : memref<2x10x10x8xf32, #tpu.memory_space<vmem>>, vector<2x10x10x8xf32>,
    %c0_87 = arith.constant 0 : index
    %c1_88 = arith.constant 1 : index
    %c1_89 = arith.constant 1 : index
    %c0_90 = arith.constant 0 : index
    %75 = vector.load %arg18[%c0_87, %c1_88, %c1_89, %c0_90] : memref<2x10x10x8xf32, #tpu.memory_space<vmem>>, vector<2x8x8x8xf32>
    tpu.vector_store %arg18[%c0_87, %c1_88, %c1_89, %c0_90], %72 {strides = array<i32>} : memref<2x10x10x8xf32, #tpu.memory_space<vmem>>, vector<2x8x8x8xf32>,
    %c0_91 = arith.constant 0 : index
    %c0_92 = arith.constant 0 : index
    %c0_93 = arith.constant 0 : index
    %c0_94 = arith.constant 0 : index
    %76 = vector.load %arg18[%c0_91, %c0_92, %c0_93, %c0_94] : memref<2x10x10x8xf32, #tpu.memory_space<vmem>>, vector<2x8x8x8xf32>
    %77 = vector.shape_cast %76 : vector<2x8x8x8xf32> to vector<128x8xf32>
    %c0_95 = arith.constant 0 : index
    %c0_96 = arith.constant 0 : index
    %78 = vector.load %arg20[%c0_95, %c0_96] : memref<128x72xf32, #tpu.memory_space<vmem>>, vector<128x8xf32>
    tpu.vector_store %arg20[%c0_95, %c0_96], %77 {strides = array<i32>} : memref<128x72xf32, #tpu.memory_space<vmem>>, vector<128x8xf32>,
    %c0_97 = arith.constant 0 : index
    %c0_98 = arith.constant 0 : index
    %c1_99 = arith.constant 1 : index
    %c0_100 = arith.constant 0 : index
    %79 = vector.load %arg18[%c0_97, %c0_98, %c1_99, %c0_100] : memref<2x10x10x8xf32, #tpu.memory_space<vmem>>, vector<2x8x8x8xf32>
    %80 = vector.shape_cast %79 : vector<2x8x8x8xf32> to vector<128x8xf32>
    %c0_101 = arith.constant 0 : index
    %c8_102 = arith.constant 8 : index
    %81 = vector.load %arg20[%c0_101, %c8_102] : memref<128x72xf32, #tpu.memory_space<vmem>>, vector<128x8xf32>
    tpu.vector_store %arg20[%c0_101, %c8_102], %80 {strides = array<i32>} : memref<128x72xf32, #tpu.memory_space<vmem>>, vector<128x8xf32>,
    %c0_103 = arith.constant 0 : index
    %c0_104 = arith.constant 0 : index
    %c2_105 = arith.constant 2 : index
    %c0_106 = arith.constant 0 : index
    %82 = vector.load %arg18[%c0_103, %c0_104, %c2_105, %c0_106] : memref<2x10x10x8xf32, #tpu.memory_space<vmem>>, vector<2x8x8x8xf32>
    %83 = vector.shape_cast %82 : vector<2x8x8x8xf32> to vector<128x8xf32>
    %c0_107 = arith.constant 0 : index
    %c16_108 = arith.constant 16 : index
    %84 = vector.load %arg20[%c0_107, %c16_108] : memref<128x72xf32, #tpu.memory_space<vmem>>, vector<128x8xf32>
    tpu.vector_store %arg20[%c0_107, %c16_108], %83 {strides = array<i32>} : memref<128x72xf32, #tpu.memory_space<vmem>>, vector<128x8xf32>,
    %c0_109 = arith.constant 0 : index
    %c1_110 = arith.constant 1 : index
    %c0_111 = arith.constant 0 : index
    %c0_112 = arith.constant 0 : index
    %85 = vector.load %arg18[%c0_109, %c1_110, %c0_111, %c0_112] : memref<2x10x10x8xf32, #tpu.memory_space<vmem>>, vector<2x8x8x8xf32>
    %86 = vector.shape_cast %85 : vector<2x8x8x8xf32> to vector<128x8xf32>
    %c0_113 = arith.constant 0 : index
    %c24_114 = arith.constant 24 : index
    %87 = vector.load %arg20[%c0_113, %c24_114] : memref<128x72xf32, #tpu.memory_space<vmem>>, vector<128x8xf32>
    tpu.vector_store %arg20[%c0_113, %c24_114], %86 {strides = array<i32>} : memref<128x72xf32, #tpu.memory_space<vmem>>, vector<128x8xf32>,
    %c0_115 = arith.constant 0 : index
    %c1_116 = arith.constant 1 : index
    %c1_117 = arith.constant 1 : index
    %c0_118 = arith.constant 0 : index
    %88 = vector.load %arg18[%c0_115, %c1_116, %c1_117, %c0_118] : memref<2x10x10x8xf32, #tpu.memory_space<vmem>>, vector<2x8x8x8xf32>
    %89 = vector.shape_cast %88 : vector<2x8x8x8xf32> to vector<128x8xf32>
    %c0_119 = arith.constant 0 : index
    %c32_120 = arith.constant 32 : index
    %90 = vector.load %arg20[%c0_119, %c32_120] : memref<128x72xf32, #tpu.memory_space<vmem>>, vector<128x8xf32>
    tpu.vector_store %arg20[%c0_119, %c32_120], %89 {strides = array<i32>} : memref<128x72xf32, #tpu.memory_space<vmem>>, vector<128x8xf32>,
    %c0_121 = arith.constant 0 : index
    %c1_122 = arith.constant 1 : index
    %c2_123 = arith.constant 2 : index
    %c0_124 = arith.constant 0 : index
    %91 = vector.load %arg18[%c0_121, %c1_122, %c2_123, %c0_124] : memref<2x10x10x8xf32, #tpu.memory_space<vmem>>, vector<2x8x8x8xf32>
    %92 = vector.shape_cast %91 : vector<2x8x8x8xf32> to vector<128x8xf32>
    %c0_125 = arith.constant 0 : index
    %c40 = arith.constant 40 : index
    %93 = vector.load %arg20[%c0_125, %c40] : memref<128x72xf32, #tpu.memory_space<vmem>>, vector<128x8xf32>
    tpu.vector_store %arg20[%c0_125, %c40], %92 {strides = array<i32>} : memref<128x72xf32, #tpu.memory_space<vmem>>, vector<128x8xf32>,
    %c0_126 = arith.constant 0 : index
    %c2_127 = arith.constant 2 : index
    %c0_128 = arith.constant 0 : index
    %c0_129 = arith.constant 0 : index
    %94 = vector.load %arg18[%c0_126, %c2_127, %c0_128, %c0_129] : memref<2x10x10x8xf32, #tpu.memory_space<vmem>>, vector<2x8x8x8xf32>
    %95 = vector.shape_cast %94 : vector<2x8x8x8xf32> to vector<128x8xf32>
    %c0_130 = arith.constant 0 : index
    %c48 = arith.constant 48 : index
    %96 = vector.load %arg20[%c0_130, %c48] : memref<128x72xf32, #tpu.memory_space<vmem>>, vector<128x8xf32>
    tpu.vector_store %arg20[%c0_130, %c48], %95 {strides = array<i32>} : memref<128x72xf32, #tpu.memory_space<vmem>>, vector<128x8xf32>,
    %c0_131 = arith.constant 0 : index
    %c2_132 = arith.constant 2 : index
    %c1_133 = arith.constant 1 : index
    %c0_134 = arith.constant 0 : index
    %97 = vector.load %arg18[%c0_131, %c2_132, %c1_133, %c0_134] : memref<2x10x10x8xf32, #tpu.memory_space<vmem>>, vector<2x8x8x8xf32>
    %98 = vector.shape_cast %97 : vector<2x8x8x8xf32> to vector<128x8xf32>
    %c0_135 = arith.constant 0 : index
    %c56 = arith.constant 56 : index
    %99 = vector.load %arg20[%c0_135, %c56] : memref<128x72xf32, #tpu.memory_space<vmem>>, vector<128x8xf32>
    tpu.vector_store %arg20[%c0_135, %c56], %98 {strides = array<i32>} : memref<128x72xf32, #tpu.memory_space<vmem>>, vector<128x8xf32>,
    %c0_136 = arith.constant 0 : index
    %c2_137 = arith.constant 2 : index
    %c2_138 = arith.constant 2 : index
    %c0_139 = arith.constant 0 : index
    %100 = vector.load %arg18[%c0_136, %c2_137, %c2_138, %c0_139] : memref<2x10x10x8xf32, #tpu.memory_space<vmem>>, vector<2x8x8x8xf32>
    %101 = vector.shape_cast %100 : vector<2x8x8x8xf32> to vector<128x8xf32>
    %c0_140 = arith.constant 0 : index
    %c64 = arith.constant 64 : index
    %102 = vector.load %arg20[%c0_140, %c64] : memref<128x72xf32, #tpu.memory_space<vmem>>, vector<128x8xf32>
    tpu.vector_store %arg20[%c0_140, %c64], %101 {strides = array<i32>} : memref<128x72xf32, #tpu.memory_space<vmem>>, vector<128x8xf32>,
    %c0_141 = arith.constant 0 : index
    %c0_142 = arith.constant 0 : index
    %103 = vector.load %arg20[%c0_141, %c0_142] : memref<128x72xf32, #tpu.memory_space<vmem>>, vector<128x72xf32>
    %c0_143 = arith.constant 0 : index
    %c0_144 = arith.constant 0 : index
    %104 = vector.load %arg5[%c0_143, %c0_144] : memref<72x16xf32, #tpu.memory_space<vmem>>, vector<72x16xf32>
    %cst_145 = arith.constant dense<0.000000e+00> : vector<128x16xf32>
    %105 = tpu.matmul %103, %104, %cst_145 {dimension_numbers = #tpu.dot_dimension_numbers<[1], [0], [0], [1], [0, 0, 1, 1], [], []>} : vector<128x72xf32>, vector<72x16xf32>, vector<128x16xf32> -> vector<128x16xf32>
    %c0_146 = arith.constant 0 : index
    %c0_147 = arith.constant 0 : index
    %106 = vector.load %arg6[%c0_146, %c0_147] : memref<1x16xf32, #tpu.memory_space<vmem>>, vector<1x16xf32>
    %107 = vector.broadcast %106 : vector<1x16xf32> to vector<128x16xf32>
    %108 = arith.addf %105, %107 : vector<128x16xf32>
    %cst_148 = arith.constant dense<0.000000e+00> : vector<16xf32>
    %109 = vector.multi_reduction <add>, %108, %cst_148 [0] : vector<128x16xf32> to vector<16xf32>
    %110 = vector.shape_cast %109 : vector<16xf32> to vector<1x16xf32>
    %111 = arith.mulf %108, %108 : vector<128x16xf32>
    %cst_149 = arith.constant dense<0.000000e+00> : vector<16xf32>
    %112 = vector.multi_reduction <add>, %111, %cst_149 [0] : vector<128x16xf32> to vector<16xf32>
    %113 = vector.shape_cast %112 : vector<16xf32> to vector<1x16xf32>
    %cst_150 = arith.constant 7.812500e-03 : f32
    %114 = vector.broadcast %cst_150 : f32 to vector<1x16xf32>
    %115 = arith.mulf %110, %114 : vector<1x16xf32>
    %cst_151 = arith.constant 7.812500e-03 : f32
    %116 = vector.broadcast %cst_151 : f32 to vector<1x16xf32>
    %117 = arith.mulf %113, %116 : vector<1x16xf32>
    %118 = arith.mulf %115, %115 : vector<1x16xf32>
    %119 = arith.subf %117, %118 : vector<1x16xf32>
    %120 = vector.broadcast %115 : vector<1x16xf32> to vector<128x16xf32>
    %121 = arith.subf %108, %120 : vector<128x16xf32>
    %c0_152 = arith.constant 0 : index
    %c0_153 = arith.constant 0 : index
    %122 = vector.load %arg7[%c0_152, %c0_153] : memref<1x16xf32, #tpu.memory_space<vmem>>, vector<1x16xf32>
    %cst_154 = arith.constant 9.99999974E-6 : f32
    %123 = vector.broadcast %cst_154 : f32 to vector<1x16xf32>
    %124 = arith.addf %119, %123 : vector<1x16xf32>
    %125 = math.rsqrt %124 : vector<1x16xf32>
    %126 = arith.mulf %122, %125 : vector<1x16xf32>
    %127 = vector.broadcast %126 : vector<1x16xf32> to vector<128x16xf32>
    %128 = arith.mulf %121, %127 : vector<128x16xf32>
    %c0_155 = arith.constant 0 : index
    %c0_156 = arith.constant 0 : index
    %129 = vector.load %arg8[%c0_155, %c0_156] : memref<1x16xf32, #tpu.memory_space<vmem>>, vector<1x16xf32>
    %130 = vector.broadcast %129 : vector<1x16xf32> to vector<128x16xf32>
    %131 = arith.addf %128, %130 : vector<128x16xf32>
    %cst_157 = arith.constant 0.000000e+00 : f32
    %132 = vector.broadcast %cst_157 : f32 to vector<128x16xf32>
    %133 = arith.maximumf %131, %132 : vector<128x16xf32>
    %134 = vector.shape_cast %133 : vector<128x16xf32> to vector<2x8x8x16xf32>
    %c0_158 = arith.constant 0 : index
    %c0_159 = arith.constant 0 : index
    %c0_160 = arith.constant 0 : index
    %c0_161 = arith.constant 0 : index
    %135 = vector.load %arg16[%c0_158, %c0_159, %c0_160, %c0_161] : memref<2x8x8x16xf32, #tpu.memory_space<vmem>>, vector<2x8x8x16xf32>
    tpu.vector_store %arg16[%c0_158, %c0_159, %c0_160, %c0_161], %134 {strides = array<i32>} : memref<2x8x8x16xf32, #tpu.memory_space<vmem>>, vector<2x8x8x16xf32>,
    %c0_162 = arith.constant 0 : index
    %c0_163 = arith.constant 0 : index
    %136 = vector.load %arg22[%c0_162, %c0_163] : memref<128x16xf32, #tpu.memory_space<vmem>>, vector<128x16xf32>
    tpu.vector_store %arg22[%c0_162, %c0_163], %133 {strides = array<i32>} : memref<128x16xf32, #tpu.memory_space<vmem>>, vector<128x16xf32>,
    %c0_164 = arith.constant 0 : index
    %c0_165 = arith.constant 0 : index
    %137 = tpu.strided_load %arg22[%c0_164, %c0_165] {strides = array<i32: 2, 1>} : memref<128x16xf32, #tpu.memory_space<vmem>>, vector<64x16xf32>
    %c1_166 = arith.constant 1 : index
    %c0_167 = arith.constant 0 : index
    %138 = tpu.strided_load %arg22[%c1_166, %c0_167] {strides = array<i32: 2, 1>} : memref<128x16xf32, #tpu.memory_space<vmem>>, vector<64x16xf32>
    %139 = arith.maximumf %137, %138 : vector<64x16xf32>
    %140 = vector.shape_cast %139 : vector<64x16xf32> to vector<8x8x16xf32>
    %141 = vector.extract_strided_slice %140 {offsets = [0, 0, 0], sizes = [8, 4, 16], strides = [1, 1, 1]} : vector<8x8x16xf32> to vector<8x4x16xf32>
    %142 = vector.extract_strided_slice %140 {offsets = [0, 4, 0], sizes = [8, 4, 16], strides = [1, 1, 1]} : vector<8x8x16xf32> to vector<8x4x16xf32>
    %143 = arith.maximumf %141, %142 : vector<8x4x16xf32>
    %144 = vector.shape_cast %143 : vector<8x4x16xf32> to vector<2x4x4x16xf32>
    %145 = vector.extract_strided_slice %144 {offsets = [0, 0, 0, 0], sizes = [2, 1, 1, 16], strides = [1, 1, 1, 1]} : vector<2x4x4x16xf32> to vector<2x1x1x16xf32>
    %146 = vector.shape_cast %145 : vector<2x1x1x16xf32> to vector<2x16xf32>
    %c0_168 = arith.constant 0 : index
    %c0_169 = arith.constant 0 : index
    %147 = vector.load %arg23[%c0_168, %c0_169] : memref<2x256xf32, #tpu.memory_space<vmem>>, vector<2x16xf32>
    tpu.vector_store %arg23[%c0_168, %c0_169], %146 {strides = array<i32>} : memref<2x256xf32, #tpu.memory_space<vmem>>, vector<2x16xf32>,
    %148 = vector.extract_strided_slice %144 {offsets = [0, 0, 1, 0], sizes = [2, 1, 1, 16], strides = [1, 1, 1, 1]} : vector<2x4x4x16xf32> to vector<2x1x1x16xf32>
    %149 = vector.shape_cast %148 : vector<2x1x1x16xf32> to vector<2x16xf32>
    %c0_170 = arith.constant 0 : index
    %c16_171 = arith.constant 16 : index
    %150 = vector.load %arg23[%c0_170, %c16_171] : memref<2x256xf32, #tpu.memory_space<vmem>>, vector<2x16xf32>
    tpu.vector_store %arg23[%c0_170, %c16_171], %149 {strides = array<i32>} : memref<2x256xf32, #tpu.memory_space<vmem>>, vector<2x16xf32>,
    %151 = vector.extract_strided_slice %144 {offsets = [0, 0, 2, 0], sizes = [2, 1, 1, 16], strides = [1, 1, 1, 1]} : vector<2x4x4x16xf32> to vector<2x1x1x16xf32>
    %152 = vector.shape_cast %151 : vector<2x1x1x16xf32> to vector<2x16xf32>
    %c0_172 = arith.constant 0 : index
    %c32_173 = arith.constant 32 : index
    %153 = vector.load %arg23[%c0_172, %c32_173] : memref<2x256xf32, #tpu.memory_space<vmem>>, vector<2x16xf32>
    tpu.vector_store %arg23[%c0_172, %c32_173], %152 {strides = array<i32>} : memref<2x256xf32, #tpu.memory_space<vmem>>, vector<2x16xf32>,
    %154 = vector.extract_strided_slice %144 {offsets = [0, 0, 3, 0], sizes = [2, 1, 1, 16], strides = [1, 1, 1, 1]} : vector<2x4x4x16xf32> to vector<2x1x1x16xf32>
    %155 = vector.shape_cast %154 : vector<2x1x1x16xf32> to vector<2x16xf32>
    %c0_174 = arith.constant 0 : index
    %c48_175 = arith.constant 48 : index
    %156 = vector.load %arg23[%c0_174, %c48_175] : memref<2x256xf32, #tpu.memory_space<vmem>>, vector<2x16xf32>
    tpu.vector_store %arg23[%c0_174, %c48_175], %155 {strides = array<i32>} : memref<2x256xf32, #tpu.memory_space<vmem>>, vector<2x16xf32>,
    %157 = vector.extract_strided_slice %144 {offsets = [0, 1, 0, 0], sizes = [2, 1, 1, 16], strides = [1, 1, 1, 1]} : vector<2x4x4x16xf32> to vector<2x1x1x16xf32>
    %158 = vector.shape_cast %157 : vector<2x1x1x16xf32> to vector<2x16xf32>
    %c0_176 = arith.constant 0 : index
    %c64_177 = arith.constant 64 : index
    %159 = vector.load %arg23[%c0_176, %c64_177] : memref<2x256xf32, #tpu.memory_space<vmem>>, vector<2x16xf32>
    tpu.vector_store %arg23[%c0_176, %c64_177], %158 {strides = array<i32>} : memref<2x256xf32, #tpu.memory_space<vmem>>, vector<2x16xf32>,
    %160 = vector.extract_strided_slice %144 {offsets = [0, 1, 1, 0], sizes = [2, 1, 1, 16], strides = [1, 1, 1, 1]} : vector<2x4x4x16xf32> to vector<2x1x1x16xf32>
    %161 = vector.shape_cast %160 : vector<2x1x1x16xf32> to vector<2x16xf32>
    %c0_178 = arith.constant 0 : index
    %c80 = arith.constant 80 : index
    %162 = vector.load %arg23[%c0_178, %c80] : memref<2x256xf32, #tpu.memory_space<vmem>>, vector<2x16xf32>
    tpu.vector_store %arg23[%c0_178, %c80], %161 {strides = array<i32>} : memref<2x256xf32, #tpu.memory_space<vmem>>, vector<2x16xf32>,
    %163 = vector.extract_strided_slice %144 {offsets = [0, 1, 2, 0], sizes = [2, 1, 1, 16], strides = [1, 1, 1, 1]} : vector<2x4x4x16xf32> to vector<2x1x1x16xf32>
    %164 = vector.shape_cast %163 : vector<2x1x1x16xf32> to vector<2x16xf32>
    %c0_179 = arith.constant 0 : index
    %c96 = arith.constant 96 : index
    %165 = vector.load %arg23[%c0_179, %c96] : memref<2x256xf32, #tpu.memory_space<vmem>>, vector<2x16xf32>
    tpu.vector_store %arg23[%c0_179, %c96], %164 {strides = array<i32>} : memref<2x256xf32, #tpu.memory_space<vmem>>, vector<2x16xf32>,
    %166 = vector.extract_strided_slice %144 {offsets = [0, 1, 3, 0], sizes = [2, 1, 1, 16], strides = [1, 1, 1, 1]} : vector<2x4x4x16xf32> to vector<2x1x1x16xf32>
    %167 = vector.shape_cast %166 : vector<2x1x1x16xf32> to vector<2x16xf32>
    %c0_180 = arith.constant 0 : index
    %c112 = arith.constant 112 : index
    %168 = vector.load %arg23[%c0_180, %c112] : memref<2x256xf32, #tpu.memory_space<vmem>>, vector<2x16xf32>
    tpu.vector_store %arg23[%c0_180, %c112], %167 {strides = array<i32>} : memref<2x256xf32, #tpu.memory_space<vmem>>, vector<2x16xf32>,
    %169 = vector.extract_strided_slice %144 {offsets = [0, 2, 0, 0], sizes = [2, 1, 1, 16], strides = [1, 1, 1, 1]} : vector<2x4x4x16xf32> to vector<2x1x1x16xf32>
    %170 = vector.shape_cast %169 : vector<2x1x1x16xf32> to vector<2x16xf32>
    %c0_181 = arith.constant 0 : index
    %c128 = arith.constant 128 : index
    %171 = vector.load %arg23[%c0_181, %c128] : memref<2x256xf32, #tpu.memory_space<vmem>>, vector<2x16xf32>
    tpu.vector_store %arg23[%c0_181, %c128], %170 {strides = array<i32>} : memref<2x256xf32, #tpu.memory_space<vmem>>, vector<2x16xf32>,
    %172 = vector.extract_strided_slice %144 {offsets = [0, 2, 1, 0], sizes = [2, 1, 1, 16], strides = [1, 1, 1, 1]} : vector<2x4x4x16xf32> to vector<2x1x1x16xf32>
    %173 = vector.shape_cast %172 : vector<2x1x1x16xf32> to vector<2x16xf32>
    %c0_182 = arith.constant 0 : index
    %c144 = arith.constant 144 : index
    %174 = vector.load %arg23[%c0_182, %c144] : memref<2x256xf32, #tpu.memory_space<vmem>>, vector<2x16xf32>
    tpu.vector_store %arg23[%c0_182, %c144], %173 {strides = array<i32>} : memref<2x256xf32, #tpu.memory_space<vmem>>, vector<2x16xf32>,
    %175 = vector.extract_strided_slice %144 {offsets = [0, 2, 2, 0], sizes = [2, 1, 1, 16], strides = [1, 1, 1, 1]} : vector<2x4x4x16xf32> to vector<2x1x1x16xf32>
    %176 = vector.shape_cast %175 : vector<2x1x1x16xf32> to vector<2x16xf32>
    %c0_183 = arith.constant 0 : index
    %c160 = arith.constant 160 : index
    %177 = vector.load %arg23[%c0_183, %c160] : memref<2x256xf32, #tpu.memory_space<vmem>>, vector<2x16xf32>
    tpu.vector_store %arg23[%c0_183, %c160], %176 {strides = array<i32>} : memref<2x256xf32, #tpu.memory_space<vmem>>, vector<2x16xf32>,
    %178 = vector.extract_strided_slice %144 {offsets = [0, 2, 3, 0], sizes = [2, 1, 1, 16], strides = [1, 1, 1, 1]} : vector<2x4x4x16xf32> to vector<2x1x1x16xf32>
    %179 = vector.shape_cast %178 : vector<2x1x1x16xf32> to vector<2x16xf32>
    %c0_184 = arith.constant 0 : index
    %c176 = arith.constant 176 : index
    %180 = vector.load %arg23[%c0_184, %c176] : memref<2x256xf32, #tpu.memory_space<vmem>>, vector<2x16xf32>
    tpu.vector_store %arg23[%c0_184, %c176], %179 {strides = array<i32>} : memref<2x256xf32, #tpu.memory_space<vmem>>, vector<2x16xf32>,
    %181 = vector.extract_strided_slice %144 {offsets = [0, 3, 0, 0], sizes = [2, 1, 1, 16], strides = [1, 1, 1, 1]} : vector<2x4x4x16xf32> to vector<2x1x1x16xf32>
    %182 = vector.shape_cast %181 : vector<2x1x1x16xf32> to vector<2x16xf32>
    %c0_185 = arith.constant 0 : index
    %c192 = arith.constant 192 : index
    %183 = vector.load %arg23[%c0_185, %c192] : memref<2x256xf32, #tpu.memory_space<vmem>>, vector<2x16xf32>
    tpu.vector_store %arg23[%c0_185, %c192], %182 {strides = array<i32>} : memref<2x256xf32, #tpu.memory_space<vmem>>, vector<2x16xf32>,
    %184 = vector.extract_strided_slice %144 {offsets = [0, 3, 1, 0], sizes = [2, 1, 1, 16], strides = [1, 1, 1, 1]} : vector<2x4x4x16xf32> to vector<2x1x1x16xf32>
    %185 = vector.shape_cast %184 : vector<2x1x1x16xf32> to vector<2x16xf32>
    %c0_186 = arith.constant 0 : index
    %c208 = arith.constant 208 : index
    %186 = vector.load %arg23[%c0_186, %c208] : memref<2x256xf32, #tpu.memory_space<vmem>>, vector<2x16xf32>
    tpu.vector_store %arg23[%c0_186, %c208], %185 {strides = array<i32>} : memref<2x256xf32, #tpu.memory_space<vmem>>, vector<2x16xf32>,
    %187 = vector.extract_strided_slice %144 {offsets = [0, 3, 2, 0], sizes = [2, 1, 1, 16], strides = [1, 1, 1, 1]} : vector<2x4x4x16xf32> to vector<2x1x1x16xf32>
    %188 = vector.shape_cast %187 : vector<2x1x1x16xf32> to vector<2x16xf32>
    %c0_187 = arith.constant 0 : index
    %c224 = arith.constant 224 : index
    %189 = vector.load %arg23[%c0_187, %c224] : memref<2x256xf32, #tpu.memory_space<vmem>>, vector<2x16xf32>
    tpu.vector_store %arg23[%c0_187, %c224], %188 {strides = array<i32>} : memref<2x256xf32, #tpu.memory_space<vmem>>, vector<2x16xf32>,
    %190 = vector.extract_strided_slice %144 {offsets = [0, 3, 3, 0], sizes = [2, 1, 1, 16], strides = [1, 1, 1, 1]} : vector<2x4x4x16xf32> to vector<2x1x1x16xf32>
    %191 = vector.shape_cast %190 : vector<2x1x1x16xf32> to vector<2x16xf32>
    %c0_188 = arith.constant 0 : index
    %c240 = arith.constant 240 : index
    %192 = vector.load %arg23[%c0_188, %c240] : memref<2x256xf32, #tpu.memory_space<vmem>>, vector<2x16xf32>
    tpu.vector_store %arg23[%c0_188, %c240], %191 {strides = array<i32>} : memref<2x256xf32, #tpu.memory_space<vmem>>, vector<2x16xf32>,
    %c0_189 = arith.constant 0 : index
    %c0_190 = arith.constant 0 : index
    %193 = vector.load %arg23[%c0_189, %c0_190] : memref<2x256xf32, #tpu.memory_space<vmem>>, vector<2x256xf32>
    %c0_191 = arith.constant 0 : index
    %c0_192 = arith.constant 0 : index
    %194 = vector.load %arg9[%c0_191, %c0_192] : memref<256x32xf32, #tpu.memory_space<vmem>>, vector<256x32xf32>
    %cst_193 = arith.constant dense<0.000000e+00> : vector<2x32xf32>
    %195 = tpu.matmul %193, %194, %cst_193 {dimension_numbers = #tpu.dot_dimension_numbers<[1], [0], [0], [1], [0, 0, 1, 1], [], []>} : vector<2x256xf32>, vector<256x32xf32>, vector<2x32xf32> -> vector<2x32xf32>
    %c0_194 = arith.constant 0 : index
    %c0_195 = arith.constant 0 : index
    %196 = vector.load %arg10[%c0_194, %c0_195] : memref<1x32xf32, #tpu.memory_space<vmem>>, vector<1x32xf32>
    %197 = vector.broadcast %196 : vector<1x32xf32> to vector<2x32xf32>
    %198 = arith.addf %195, %197 : vector<2x32xf32>
    %cst_196 = arith.constant 0.000000e+00 : f32
    %199 = vector.broadcast %cst_196 : f32 to vector<2x32xf32>
    %200 = arith.cmpf oge, %198, %199 : vector<2x32xf32>
    %cst_197 = arith.constant 0.00999999977 : f32
    %201 = vector.broadcast %cst_197 : f32 to vector<2x32xf32>
    %202 = arith.mulf %201, %198 : vector<2x32xf32>
    %203 = arith.select %200, %198, %202 : vector<2x32xi1>, vector<2x32xf32>
    %c0_198 = arith.constant 0 : index
    %c0_199 = arith.constant 0 : index
    %204 = vector.load %arg11[%c0_198, %c0_199] : memref<32x16xf32, #tpu.memory_space<vmem>>, vector<32x16xf32>
    %cst_200 = arith.constant dense<0.000000e+00> : vector<2x16xf32>
    %205 = tpu.matmul %203, %204, %cst_200 {dimension_numbers = #tpu.dot_dimension_numbers<[1], [0], [0], [1], [0, 0, 1, 1], [], []>} : vector<2x32xf32>, vector<32x16xf32>, vector<2x16xf32> -> vector<2x16xf32>
    %c0_201 = arith.constant 0 : index
    %c0_202 = arith.constant 0 : index
    %206 = vector.load %arg12[%c0_201, %c0_202] : memref<1x16xf32, #tpu.memory_space<vmem>>, vector<1x16xf32>
    %207 = vector.broadcast %206 : vector<1x16xf32> to vector<2x16xf32>
    %208 = arith.addf %205, %207 : vector<2x16xf32>
    %209 = vector.extract_strided_slice %208 {offsets = [0, 0], sizes = [2, 8], strides = [1, 1]} : vector<2x16xf32> to vector<2x8xf32>
    %c0_203 = arith.constant 0 : index
    %c0_204 = arith.constant 0 : index
    %210 = vector.load %arg13[%c0_203, %c0_204] : memref<2x8xf32, #tpu.memory_space<vmem>>, vector<2x8xf32>
    tpu.vector_store %arg13[%c0_203, %c0_204], %209 {strides = array<i32>} : memref<2x8xf32, #tpu.memory_space<vmem>>, vector<2x8xf32>,
    %211 = vector.extract_strided_slice %208 {offsets = [0, 8], sizes = [2, 8], strides = [1, 1]} : vector<2x16xf32> to vector<2x8xf32>
    %c0_205 = arith.constant 0 : index
    %c0_206 = arith.constant 0 : index
    %212 = vector.load %arg14[%c0_205, %c0_206] : memref<2x8xf32, #tpu.memory_space<vmem>>, vector<2x8xf32>
    tpu.vector_store %arg14[%c0_205, %c0_206], %211 {strides = array<i32>} : memref<2x8xf32, #tpu.memory_space<vmem>>, vector<2x8xf32>,
    return
  }
}

</mosaic_0001>

<llo_original>
// kernel: forward.1
$region0: #{forward.1}
  #allocation0 [shape = 'u32[]', space=smem, size = 0x4, offset = 0x4, fixed_abs, tag = 'smem constant byte address 0x4 - core index']
  #allocation1 [shape = 'u32[144,128]{1,0:T(1,128)}', space=vmem, size = 0x12000, scoped, tag = 'internal scratch']
  #allocation2 [shape = 'f32[2,18,18,4]{3,2,1,0:T(8,128)}', space=vmem, size = 0x6c000, scoped, tag = 'scratch operand']
  #allocation3 [shape = 'f32[2,10,10,8]{3,2,1,0:T(8,128)}', space=vmem, size = 0x28000, scoped, tag = 'scratch operand']
  #allocation4 [shape = 'f32[512,36]{1,0:T(8,128)}', space=vmem, size = 0x40000, scoped, tag = 'scratch operand']
  #allocation5 [shape = 'f32[128,72]{1,0:T(8,128)}', space=vmem, size = 0x10000, scoped, tag = 'scratch operand']
  #allocation6 [shape = 'f32[512,8]{1,0:T(8,128)}', space=vmem, size = 0x40000, scoped, tag = 'scratch operand']
  #allocation7 [shape = 'f32[128,16]{1,0:T(8,128)}', space=vmem, size = 0x10000, scoped, tag = 'scratch operand']
  #allocation8 [shape = 'f32[2,256]{1,0:T(2,128)}', space=vmem, size = 0x800, scoped, tag = 'scratch operand']
  %s0 = inlined_call_operand.vmem [shape: f32[2,16,16,4], index: 0, kind: input, shape index: {}]
  %s1 = inlined_call_operand.vmem [shape: f32[36,8], index: 1, kind: input, shape index: {}]
  %s2 = inlined_call_operand.vmem [shape: f32[1,8], index: 2, kind: input, shape index: {}]
  %s3 = inlined_call_operand.vmem [shape: f32[1,8], index: 3, kind: input, shape index: {}]
  %s4 = inlined_call_operand.vmem [shape: f32[1,8], index: 4, kind: input, shape index: {}]
  %s5 = inlined_call_operand.vmem [shape: f32[72,16], index: 5, kind: input, shape index: {}]
  %s6 = inlined_call_operand.vmem [shape: f32[1,16], index: 6, kind: input, shape index: {}]
  %s7 = inlined_call_operand.vmem [shape: f32[1,16], index: 7, kind: input, shape index: {}]
  %s8 = inlined_call_operand.vmem [shape: f32[1,16], index: 8, kind: input, shape index: {}]
  %s9 = inlined_call_operand.vmem [shape: f32[256,32], index: 9, kind: input, shape index: {}]
  %s10 = inlined_call_operand.vmem [shape: f32[1,32], index: 10, kind: input, shape index: {}]
  %s11 = inlined_call_operand.vmem [shape: f32[32,16], index: 11, kind: input, shape index: {}]
  %s12 = inlined_call_operand.vmem [shape: f32[1,16], index: 12, kind: input, shape index: {}]
  %s13 = inlined_call_operand.hbm [shape: f32[2,8], index: 13, kind: output, shape index: {0}]
  %s14 = inlined_call_operand.hbm [shape: f32[2,8], index: 14, kind: output, shape index: {1}]
  %s15 = inlined_call_operand.vmem [shape: f32[2,16,16,8], index: 15, kind: output, shape index: {2}]
  %s16 = inlined_call_operand.hbm [shape: f32[2,8,8,16], index: 16, kind: output, shape index: {3}]
  %17 = xla_tuple %s13, %s14, %s15, %s16
  %s18 = sld [smem:[#allocation0]]
  $region86: #{forward.1} parent=0
    _
  %s20 = ssub.s32 1, %s18
  %s21 = scalar_select 0, %s20, %s18
  $region1: #{forward.1} parent=0
    #allocation9 [shape = 'u8[1024]{0}', space=vmem, size = 0x400, scoped, tag = 'output window, operand 0, single buffered']
    #allocation10 [shape = 's32[1]{0}', space=sflag, size = 0x4, scoped, tag = 'scoped memory for forward.1']
    #allocation11 [shape = 'u8[1024]{0}', space=vmem, size = 0x400, scoped, tag = 'output window, operand 1, single buffered']
    #allocation12 [shape = 's32[1]{0}', space=sflag, size = 0x4, scoped, tag = 'scoped memory for forward.1']
    #allocation13 [shape = 'u8[65536]{0}', space=vmem, size = 0x10000, scoped, tag = 'output window, operand 3, single buffered']
    %22 = vsyncpa [#allocation10], 0
    %23 = vsyncpa [#allocation12], 0
    // Predicated region
    $region2: #{forward.1} parent=1 // pred_check
      _
    $region3: #{forward.1} parent=1 // pred_check_branch
      %25 = sbr.rel (0) target = $region5
    $region4: #{forward.1} parent=1 // pred_region
      _
    $region5: #{forward.1} parent=1 // pred_fallthru
      _
    // Predicated region
    $region6: #{forward.1} parent=1 // pred_check
      _
    $region7: #{forward.1} parent=1 // pred_check_branch
      %27 = sbr.rel (0) target = $region9
    $region8: #{forward.1} parent=1 // pred_region
      _
    $region9: #{forward.1} parent=1 // pred_fallthru
      _
    // Predicated region
    $region10: #{forward.1} parent=1 // pred_check
      _
    $region11: #{forward.1} parent=1 // pred_check_branch
      %29 = sbr.rel (0) target = $region13
    $region12: #{forward.1} parent=1 // pred_region
      _
    $region13: #{forward.1} parent=1 // pred_fallthru
      _
    // Predicated region
    $region14: #{forward.1} parent=1 // pred_check
      _
    $region15: #{forward.1} parent=1 // pred_check_branch
      %31 = sbr.rel (0) target = $region17
    $region16: #{forward.1} parent=1 // pred_region
      _
    $region17: #{forward.1} parent=1 // pred_fallthru
      _
    // Predicated region
    $region18: #{forward.1} parent=1 // pred_check
      _
    $region19: #{forward.1} parent=1 // pred_check_branch
      %33 = sbr.rel (0) target = $region21
    $region20: #{forward.1} parent=1 // pred_region
      _
    $region21: #{forward.1} parent=1 // pred_fallthru
      _
    // Predicated region
    $region22: #{forward.1} parent=1 // pred_check
      _
    $region23: #{forward.1} parent=1 // pred_check_branch
      %35 = sbr.rel (0) target = $region25
    $region24: #{forward.1} parent=1 // pred_region
      _
    $region25: #{forward.1} parent=1 // pred_fallthru
      _
    // Predicated region
    $region26: #{forward.1} parent=1 // pred_check
      _
    $region27: #{forward.1} parent=1 // pred_check_branch
      %37 = sbr.rel (0) target = $region29
    $region28: #{forward.1} parent=1 // pred_region
      _
    $region29: #{forward.1} parent=1 // pred_fallthru
      _
    // Predicated region
    $region30: #{forward.1} parent=1 // pred_check
      _
    $region31: #{forward.1} parent=1 // pred_check_branch
      %39 = sbr.rel (0) target = $region33
    $region32: #{forward.1} parent=1 // pred_region
      _
    $region33: #{forward.1} parent=1 // pred_fallthru
      _
    // Predicated region
    $region34: #{forward.1} parent=1 // pred_check
      _
    $region35: #{forward.1} parent=1 // pred_check_branch
      %41 = sbr.rel (0) target = $region37
    $region36: #{forward.1} parent=1 // pred_region
      _
    $region37: #{forward.1} parent=1 // pred_fallthru
      _
    // Predicated region
    $region38: #{forward.1} parent=1 // pred_check
      _
    $region39: #{forward.1} parent=1 // pred_check_branch
      %43 = sbr.rel (0) target = $region41
    $region40: #{forward.1} parent=1 // pred_region
      _
    $region41: #{forward.1} parent=1 // pred_fallthru
      _
    // Predicated region
    $region42: #{forward.1} parent=1 // pred_check
      _
    $region43: #{forward.1} parent=1 // pred_check_branch
      %45 = sbr.rel (0) target = $region45
    $region44: #{forward.1} parent=1 // pred_region
      _
    $region45: #{forward.1} parent=1 // pred_fallthru
      _
    // Predicated region
    $region46: #{forward.1} parent=1 // pred_check
      _
    $region47: #{forward.1} parent=1 // pred_check_branch
      %47 = sbr.rel (0) target = $region49
    $region48: #{forward.1} parent=1 // pred_region
      _
    $region49: #{forward.1} parent=1 // pred_fallthru
      _
    // Predicated region
    $region50: #{forward.1} parent=1 // pred_check
      _
    $region51: #{forward.1} parent=1 // pred_check_branch
      %49 = sbr.rel (0) target = $region53
    $region52: #{forward.1} parent=1 // pred_region
      _
    $region53: #{forward.1} parent=1 // pred_fallthru
      _
    %v50 = vld [vmem:[%s0] sm:$0xff]
    %v51 = vld [vmem:[%s0 + $0x8] sm:$0xff]
    %v52 = vld [vmem:[%s0 + $0x10] sm:$0xff]
    %v53 = vld [vmem:[%s0 + $0x18] sm:$0xff]
    %v54 = vld [vmem:[%s0 + $0x20] sm:$0xff]
    %v55 = vld [vmem:[%s0 + $0x28] sm:$0xff]
    %v56 = vld [vmem:[%s0 + $0x30] sm:$0xff]
    %v57 = vld [vmem:[%s0 + $0x38] sm:$0xff]
    %v58 = vld [vmem:[%s0 + $0x40] sm:$0xff]
    %v59 = vld [vmem:[%s0 + $0x48] sm:$0xff]
    %v60 = vld [vmem:[%s0 + $0x50] sm:$0xff]
    %v61 = vld [vmem:[%s0 + $0x58] sm:$0xff]
    %v62 = vld [vmem:[%s0 + $0x60] sm:$0xff]
    %v63 = vld [vmem:[%s0 + $0x68] sm:$0xff]
    %v64 = vld [vmem:[%s0 + $0x70] sm:$0xff]
    %v65 = vld [vmem:[%s0 + $0x78] sm:$0xff]
    %v66 = vld [vmem:[%s0 + $0x80] sm:$0xff]
    %v67 = vld [vmem:[%s0 + $0x88] sm:$0xff]
    %v68 = vld [vmem:[%s0 + $0x90] sm:$0xff]
    %v69 = vld [vmem:[%s0 + $0x98] sm:$0xff]
    %v70 = vld [vmem:[%s0 + $0xa0] sm:$0xff]
    %v71 = vld [vmem:[%s0 + $0xa8] sm:$0xff]
    %v72 = vld [vmem:[%s0 + $0xb0] sm:$0xff]
    %v73 = vld [vmem:[%s0 + $0xb8] sm:$0xff]
    %v74 = vld [vmem:[%s0 + $0xc0] sm:$0xff]
    %v75 = vld [vmem:[%s0 + $0xc8] sm:$0xff]
    %v76 = vld [vmem:[%s0 + $0xd0] sm:$0xff]
    %v77 = vld [vmem:[%s0 + $0xd8] sm:$0xff]
    %v78 = vld [vmem:[%s0 + $0xe0] sm:$0xff]
    %v79 = vld [vmem:[%s0 + $0xe8] sm:$0xff]
    %v80 = vld [vmem:[%s0 + $0xf0] sm:$0xff]
    %v81 = vld [vmem:[%s0 + $0xf8] sm:$0xff]
    %v82 = vld [vmem:[%s0 + $0x100] sm:$0xff]
    %v83 = vld [vmem:[%s0 + $0x108] sm:$0xff]
    %v84 = vld [vmem:[%s0 + $0x110] sm:$0xff]
    %v85 = vld [vmem:[%s0 + $0x118] sm:$0xff]
    %v86 = vld [vmem:[%s0 + $0x120] sm:$0xff]
    %v87 = vld [vmem:[%s0 + $0x128] sm:$0xff]
    %v88 = vld [vmem:[%s0 + $0x130] sm:$0xff]
    %v89 = vld [vmem:[%s0 + $0x138] sm:$0xff]
    %v90 = vld [vmem:[%s0 + $0x140] sm:$0xff]
    %v91 = vld [vmem:[%s0 + $0x148] sm:$0xff]
    %v92 = vld [vmem:[%s0 + $0x150] sm:$0xff]
    %v93 = vld [vmem:[%s0 + $0x158] sm:$0xff]
    %v94 = vld [vmem:[%s0 + $0x160] sm:$0xff]
    %v95 = vld [vmem:[%s0 + $0x168] sm:$0xff]
    %v96 = vld [vmem:[%s0 + $0x170] sm:$0xff]
    %v97 = vld [vmem:[%s0 + $0x178] sm:$0xff]
    %v98 = vld [vmem:[%s0 + $0x180] sm:$0xff]
    %v99 = vld [vmem:[%s0 + $0x188] sm:$0xff]
    %v100 = vld [vmem:[%s0 + $0x190] sm:$0xff]
    %v101 = vld [vmem:[%s0 + $0x198] sm:$0xff]
    %v102 = vld [vmem:[%s0 + $0x1a0] sm:$0xff]
    %v103 = vld [vmem:[%s0 + $0x1a8] sm:$0xff]
    %v104 = vld [vmem:[%s0 + $0x1b0] sm:$0xff]
    %v105 = vld [vmem:[%s0 + $0x1b8] sm:$0xff]
    %v106 = vld [vmem:[%s0 + $0x1c0] sm:$0xff]
    %v107 = vld [vmem:[%s0 + $0x1c8] sm:$0xff]
    %v108 = vld [vmem:[%s0 + $0x1d0] sm:$0xff]
    %v109 = vld [vmem:[%s0 + $0x1d8] sm:$0xff]
    %v110 = vld [vmem:[%s0 + $0x1e0] sm:$0xff]
    %v111 = vld [vmem:[%s0 + $0x1e8] sm:$0xff]
    %v112 = vld [vmem:[%s0 + $0x1f0] sm:$0xff]
    %v113 = vld [vmem:[%s0 + $0x1f8] sm:$0xff]
    %vm114 = vcmask 31744
    %115 = vst.msk [vmem:[#allocation2] sm:$0xff] %vm114, 0.0
    %116 = vst.msk [vmem:[#allocation2 + $0x8] sm:$0xff] %vm114, 0.0
    %vm117 = vcmask 25600
    %118 = vst.msk [vmem:[#allocation2 + $0x10] sm:$0x3] %vm117, 0.0
    %119 = vst.msk [vmem:[#allocation2 + $0x18] sm:$0xff] %vm114, 0.0
    %120 = vst.msk [vmem:[#allocation2 + $0x20] sm:$0xff] %vm114, 0.0
    %121 = vst.msk [vmem:[#allocation2 + $0x28] sm:$0x3] %vm117, 0.0
    %122 = vst.msk [vmem:[#allocation2 + $0x30] sm:$0xff] %vm114, 0.0
    %123 = vst.msk [vmem:[#allocation2 + $0x38] sm:$0xff] %vm114, 0.0
    %124 = vst.msk [vmem:[#allocation2 + $0x40] sm:$0x3] %vm117, 0.0
    %125 = vst.msk [vmem:[#allocation2 + $0x48] sm:$0xff] %vm114, 0.0
    %126 = vst.msk [vmem:[#allocation2 + $0x50] sm:$0xff] %vm114, 0.0
    %127 = vst.msk [vmem:[#allocation2 + $0x58] sm:$0x3] %vm117, 0.0
    %128 = vst.msk [vmem:[#allocation2 + $0x60] sm:$0xff] %vm114, 0.0
    %129 = vst.msk [vmem:[#allocation2 + $0x68] sm:$0xff] %vm114, 0.0
    %130 = vst.msk [vmem:[#allocation2 + $0x70] sm:$0x3] %vm117, 0.0
    %131 = vst.msk [vmem:[#allocation2 + $0x78] sm:$0xff] %vm114, 0.0
    %132 = vst.msk [vmem:[#allocation2 + $0x80] sm:$0xff] %vm114, 0.0
    %133 = vst.msk [vmem:[#allocation2 + $0x88] sm:$0x3] %vm117, 0.0
    %134 = vst.msk [vmem:[#allocation2 + $0x90] sm:$0xff] %vm114, 0.0
    %135 = vst.msk [vmem:[#allocation2 + $0x98] sm:$0xff] %vm114, 0.0
    %136 = vst.msk [vmem:[#allocation2 + $0xa0] sm:$0x3] %vm117, 0.0
    %137 = vst.msk [vmem:[#allocation2 + $0xa8] sm:$0xff] %vm114, 0.0
    %138 = vst.msk [vmem:[#allocation2 + $0xb0] sm:$0xff] %vm114, 0.0
    %139 = vst.msk [vmem:[#allocation2 + $0xb8] sm:$0x3] %vm117, 0.0
    %140 = vst.msk [vmem:[#allocation2 + $0xc0] sm:$0xff] %vm114, 0.0
    %141 = vst.msk [vmem:[#allocation2 + $0xc8] sm:$0xff] %vm114, 0.0
    %142 = vst.msk [vmem:[#allocation2 + $0xd0] sm:$0x3] %vm117, 0.0
    %143 = vst.msk [vmem:[#allocation2 + $0xd8] sm:$0xff] %vm114, 0.0
    %144 = vst.msk [vmem:[#allocation2 + $0xe0] sm:$0xff] %vm114, 0.0
    %145 = vst.msk [vmem:[#allocation2 + $0xe8] sm:$0x3] %vm117, 0.0
    %146 = vst.msk [vmem:[#allocation2 + $0xf0] sm:$0xff] %vm114, 0.0
    %147 = vst.msk [vmem:[#allocation2 + $0xf8] sm:$0xff] %vm114, 0.0
    %148 = vst.msk [vmem:[#allocation2 + $0x100] sm:$0x3] %vm117, 0.0
    %149 = vst.msk [vmem:[#allocation2 + $0x108] sm:$0xff] %vm114, 0.0
    %150 = vst.msk [vmem:[#allocation2 + $0x110] sm:$0xff] %vm114, 0.0
    %151 = vst.msk [vmem:[#allocation2 + $0x118] sm:$0x3] %vm117, 0.0
    %152 = vst.msk [vmem:[#allocation2 + $0x120] sm:$0xff] %vm114, 0.0
    %153 = vst.msk [vmem:[#allocation2 + $0x128] sm:$0xff] %vm114, 0.0
    %154 = vst.msk [vmem:[#allocation2 + $0x130] sm:$0x3] %vm117, 0.0
    %155 = vst.msk [vmem:[#allocation2 + $0x138] sm:$0xff] %vm114, 0.0
    %156 = vst.msk [vmem:[#allocation2 + $0x140] sm:$0xff] %vm114, 0.0
    %157 = vst.msk [vmem:[#allocation2 + $0x148] sm:$0x3] %vm117, 0.0
    %158 = vst.msk [vmem:[#allocation2 + $0x150] sm:$0xff] %vm114, 0.0
    %159 = vst.msk [vmem:[#allocation2 + $0x158] sm:$0xff] %vm114, 0.0
    %160 = vst.msk [vmem:[#allocation2 + $0x160] sm:$0x3] %vm117, 0.0
    %161 = vst.msk [vmem:[#allocation2 + $0x168] sm:$0xff] %vm114, 0.0
    %162 = vst.msk [vmem:[#allocation2 + $0x170] sm:$0xff] %vm114, 0.0
    %163 = vst.msk [vmem:[#allocation2 + $0x178] sm:$0x3] %vm117, 0.0
    %164 = vst.msk [vmem:[#allocation2 + $0x180] sm:$0xff] %vm114, 0.0
    %165 = vst.msk [vmem:[#allocation2 + $0x188] sm:$0xff] %vm114, 0.0
    %166 = vst.msk [vmem:[#allocation2 + $0x190] sm:$0x3] %vm117, 0.0
    %167 = vst.msk [vmem:[#allocation2 + $0x198] sm:$0xff] %vm114, 0.0
    %168 = vst.msk [vmem:[#allocation2 + $0x1a0] sm:$0xff] %vm114, 0.0
    %169 = vst.msk [vmem:[#allocation2 + $0x1a8] sm:$0x3] %vm117, 0.0
    %170 = vst.msk [vmem:[#allocation2 + $0x1b0] sm:$0xff] %vm114, 0.0
    %171 = vst.msk [vmem:[#allocation2 + $0x1b8] sm:$0xff] %vm114, 0.0
    %172 = vst.msk [vmem:[#allocation2 + $0x1c0] sm:$0x3] %vm117, 0.0
    %173 = vst.msk [vmem:[#allocation2 + $0x1c8] sm:$0xff] %vm114, 0.0
    %174 = vst.msk [vmem:[#allocation2 + $0x1d0] sm:$0xff] %vm114, 0.0
    %175 = vst.msk [vmem:[#allocation2 + $0x1d8] sm:$0x3] %vm117, 0.0
    %176 = vst.msk [vmem:[#allocation2 + $0x1e0] sm:$0xff] %vm114, 0.0
    %177 = vst.msk [vmem:[#allocation2 + $0x1e8] sm:$0xff] %vm114, 0.0
    %178 = vst.msk [vmem:[#allocation2 + $0x1f0] sm:$0x3] %vm117, 0.0
    %179 = vst.msk [vmem:[#allocation2 + $0x1f8] sm:$0xff] %vm114, 0.0
    %180 = vst.msk [vmem:[#allocation2 + $0x200] sm:$0xff] %vm114, 0.0
    %181 = vst.msk [vmem:[#allocation2 + $0x208] sm:$0x3] %vm117, 0.0
    %182 = vst.msk [vmem:[#allocation2 + $0x210] sm:$0xff] %vm114, 0.0
    %183 = vst.msk [vmem:[#allocation2 + $0x218] sm:$0xff] %vm114, 0.0
    %184 = vst.msk [vmem:[#allocation2 + $0x220] sm:$0x3] %vm117, 0.0
    %185 = vst.msk [vmem:[#allocation2 + $0x228] sm:$0xff] %vm114, 0.0
    %186 = vst.msk [vmem:[#allocation2 + $0x230] sm:$0xff] %vm114, 0.0
    %187 = vst.msk [vmem:[#allocation2 + $0x238] sm:$0x3] %vm117, 0.0
    %188 = vst.msk [vmem:[#allocation2 + $0x240] sm:$0xff] %vm114, 0.0
    %189 = vst.msk [vmem:[#allocation2 + $0x248] sm:$0xff] %vm114, 0.0
    %190 = vst.msk [vmem:[#allocation2 + $0x250] sm:$0x3] %vm117, 0.0
    %191 = vst.msk [vmem:[#allocation2 + $0x258] sm:$0xff] %vm114, 0.0
    %192 = vst.msk [vmem:[#allocation2 + $0x260] sm:$0xff] %vm114, 0.0
    %193 = vst.msk [vmem:[#allocation2 + $0x268] sm:$0x3] %vm117, 0.0
    %194 = vst.msk [vmem:[#allocation2 + $0x270] sm:$0xff] %vm114, 0.0
    %195 = vst.msk [vmem:[#allocation2 + $0x278] sm:$0xff] %vm114, 0.0
    %196 = vst.msk [vmem:[#allocation2 + $0x280] sm:$0x3] %vm117, 0.0
    %197 = vst.msk [vmem:[#allocation2 + $0x288] sm:$0xff] %vm114, 0.0
    %198 = vst.msk [vmem:[#allocation2 + $0x290] sm:$0xff] %vm114, 0.0
    %199 = vst.msk [vmem:[#allocation2 + $0x298] sm:$0x3] %vm117, 0.0
    %200 = vst.msk [vmem:[#allocation2 + $0x2a0] sm:$0xff] %vm114, 0.0
    %201 = vst.msk [vmem:[#allocation2 + $0x2a8] sm:$0xff] %vm114, 0.0
    %202 = vst.msk [vmem:[#allocation2 + $0x2b0] sm:$0x3] %vm117, 0.0
    %203 = vst.msk [vmem:[#allocation2 + $0x2b8] sm:$0xff] %vm114, 0.0
    %204 = vst.msk [vmem:[#allocation2 + $0x2c0] sm:$0xff] %vm114, 0.0
    %205 = vst.msk [vmem:[#allocation2 + $0x2c8] sm:$0x3] %vm117, 0.0
    %206 = vst.msk [vmem:[#allocation2 + $0x2d0] sm:$0xff] %vm114, 0.0
    %207 = vst.msk [vmem:[#allocation2 + $0x2d8] sm:$0xff] %vm114, 0.0
    %208 = vst.msk [vmem:[#allocation2 + $0x2e0] sm:$0x3] %vm117, 0.0
    %209 = vst.msk [vmem:[#allocation2 + $0x2e8] sm:$0xff] %vm114, 0.0
    %210 = vst.msk [vmem:[#allocation2 + $0x2f0] sm:$0xff] %vm114, 0.0
    %211 = vst.msk [vmem:[#allocation2 + $0x2f8] sm:$0x3] %vm117, 0.0
    %212 = vst.msk [vmem:[#allocation2 + $0x300] sm:$0xff] %vm114, 0.0
    %213 = vst.msk [vmem:[#allocation2 + $0x308] sm:$0xff] %vm114, 0.0
    %214 = vst.msk [vmem:[#allocation2 + $0x310] sm:$0x3] %vm117, 0.0
    %215 = vst.msk [vmem:[#allocation2 + $0x318] sm:$0xff] %vm114, 0.0
    %216 = vst.msk [vmem:[#allocation2 + $0x320] sm:$0xff] %vm114, 0.0
    %217 = vst.msk [vmem:[#allocation2 + $0x328] sm:$0x3] %vm117, 0.0
    %218 = vst.msk [vmem:[#allocation2 + $0x330] sm:$0xff] %vm114, 0.0
    %219 = vst.msk [vmem:[#allocation2 + $0x338] sm:$0xff] %vm114, 0.0
    %220 = vst.msk [vmem:[#allocation2 + $0x340] sm:$0x3] %vm117, 0.0
    %221 = vst.msk [vmem:[#allocation2 + $0x348] sm:$0xff] %vm114, 0.0
    %222 = vst.msk [vmem:[#allocation2 + $0x350] sm:$0xff] %vm114, 0.0
    %223 = vst.msk [vmem:[#allocation2 + $0x358] sm:$0x3] %vm117, 0.0
    %s224 = scalar_lea.vmem [#allocation2], 24
    %225 = vst.msk [vmem:[%s224 + $0x1] sm:$0xff] %vm114, %v50
    %226 = vst.msk [vmem:[%s224 + $0x9] sm:$0xff] %vm114, %v51
    %227 = vst.msk [vmem:[%s224 + $0x19] sm:$0xff] %vm114, %v52
    %228 = vst.msk [vmem:[%s224 + $0x21] sm:$0xff] %vm114, %v53
    %229 = vst.msk [vmem:[%s224 + $0x31] sm:$0xff] %vm114, %v54
    %230 = vst.msk [vmem:[%s224 + $0x39] sm:$0xff] %vm114, %v55
    %231 = vst.msk [vmem:[%s224 + $0x49] sm:$0xff] %vm114, %v56
    %232 = vst.msk [vmem:[%s224 + $0x51] sm:$0xff] %vm114, %v57
    %233 = vst.msk [vmem:[%s224 + $0x61] sm:$0xff] %vm114, %v58
    %234 = vst.msk [vmem:[%s224 + $0x69] sm:$0xff] %vm114, %v59
    %235 = vst.msk [vmem:[%s224 + $0x79] sm:$0xff] %vm114, %v60
    %236 = vst.msk [vmem:[%s224 + $0x81] sm:$0xff] %vm114, %v61
    %237 = vst.msk [vmem:[%s224 + $0x91] sm:$0xff] %vm114, %v62
    %238 = vst.msk [vmem:[%s224 + $0x99] sm:$0xff] %vm114, %v63
    %239 = vst.msk [vmem:[%s224 + $0xa9] sm:$0xff] %vm114, %v64
    %240 = vst.msk [vmem:[%s224 + $0xb1] sm:$0xff] %vm114, %v65
    %241 = vst.msk [vmem:[%s224 + $0xc1] sm:$0xff] %vm114, %v66
    %242 = vst.msk [vmem:[%s224 + $0xc9] sm:$0xff] %vm114, %v67
    %243 = vst.msk [vmem:[%s224 + $0xd9] sm:$0xff] %vm114, %v68
    %244 = vst.msk [vmem:[%s224 + $0xe1] sm:$0xff] %vm114, %v69
    %245 = vst.msk [vmem:[%s224 + $0xf1] sm:$0xff] %vm114, %v70
    %246 = vst.msk [vmem:[%s224 + $0xf9] sm:$0xff] %vm114, %v71
    %247 = vst.msk [vmem:[%s224 + $0x109] sm:$0xff] %vm114, %v72
    %248 = vst.msk [vmem:[%s224 + $0x111] sm:$0xff] %vm114, %v73
    %249 = vst.msk [vmem:[%s224 + $0x121] sm:$0xff] %vm114, %v74
    %250 = vst.msk [vmem:[%s224 + $0x129] sm:$0xff] %vm114, %v75
    %251 = vst.msk [vmem:[%s224 + $0x139] sm:$0xff] %vm114, %v76
    %252 = vst.msk [vmem:[%s224 + $0x141] sm:$0xff] %vm114, %v77
    %253 = vst.msk [vmem:[%s224 + $0x151] sm:$0xff] %vm114, %v78
    %254 = vst.msk [vmem:[%s224 + $0x159] sm:$0xff] %vm114, %v79
    %255 = vst.msk [vmem:[%s224 + $0x169] sm:$0xff] %vm114, %v80
    %256 = vst.msk [vmem:[%s224 + $0x171] sm:$0xff] %vm114, %v81
    %257 = vst.msk [vmem:[%s224 + $0x1b1] sm:$0xff] %vm114, %v82
    %258 = vst.msk [vmem:[%s224 + $0x1b9] sm:$0xff] %vm114, %v83
    %259 = vst.msk [vmem:[%s224 + $0x1c9] sm:$0xff] %vm114, %v84
    %260 = vst.msk [vmem:[%s224 + $0x1d1] sm:$0xff] %vm114, %v85
    %261 = vst.msk [vmem:[%s224 + $0x1e1] sm:$0xff] %vm114, %v86
    %262 = vst.msk [vmem:[%s224 + $0x1e9] sm:$0xff] %vm114, %v87
    %263 = vst.msk [vmem:[%s224 + $0x1f9] sm:$0xff] %vm114, %v88
    %264 = vst.msk [vmem:[%s224 + $0x201] sm:$0xff] %vm114, %v89
    %265 = vst.msk [vmem:[%s224 + $0x211] sm:$0xff] %vm114, %v90
    %266 = vst.msk [vmem:[%s224 + $0x219] sm:$0xff] %vm114, %v91
    %267 = vst.msk [vmem:[%s224 + $0x229] sm:$0xff] %vm114, %v92
    %268 = vst.msk [vmem:[%s224 + $0x231] sm:$0xff] %vm114, %v93
    %269 = vst.msk [vmem:[%s224 + $0x241] sm:$0xff] %vm114, %v94
    %270 = vst.msk [vmem:[%s224 + $0x249] sm:$0xff] %vm114, %v95
    %271 = vst.msk [vmem:[%s224 + $0x259] sm:$0xff] %vm114, %v96
    %272 = vst.msk [vmem:[%s224 + $0x261] sm:$0xff] %vm114, %v97
    %273 = vst.msk [vmem:[%s224 + $0x271] sm:$0xff] %vm114, %v98
    %274 = vst.msk [vmem:[%s224 + $0x279] sm:$0xff] %vm114, %v99
    %275 = vst.msk [vmem:[%s224 + $0x289] sm:$0xff] %vm114, %v100
    %276 = vst.msk [vmem:[%s224 + $0x291] sm:$0xff] %vm114, %v101
    %277 = vst.msk [vmem:[%s224 + $0x2a1] sm:$0xff] %vm114, %v102
    %278 = vst.msk [vmem:[%s224 + $0x2a9] sm:$0xff] %vm114, %v103
    %279 = vst.msk [vmem:[%s224 + $0x2b9] sm:$0xff] %vm114, %v104
    %280 = vst.msk [vmem:[%s224 + $0x2c1] sm:$0xff] %vm114, %v105
    %281 = vst.msk [vmem:[%s224 + $0x2d1] sm:$0xff] %vm114, %v106
    %282 = vst.msk [vmem:[%s224 + $0x2d9] sm:$0xff] %vm114, %v107
    %283 = vst.msk [vmem:[%s224 + $0x2e9] sm:$0xff] %vm114, %v108
    %284 = vst.msk [vmem:[%s224 + $0x2f1] sm:$0xff] %vm114, %v109
    %285 = vst.msk [vmem:[%s224 + $0x301] sm:$0xff] %vm114, %v110
    %286 = vst.msk [vmem:[%s224 + $0x309] sm:$0xff] %vm114, %v111
    %287 = vst.msk [vmem:[%s224 + $0x319] sm:$0xff] %vm114, %v112
    %288 = vst.msk [vmem:[%s224 + $0x321] sm:$0xff] %vm114, %v113
    %v289 = vld [vmem:[#allocation2] sm:$0xff]
    %v290 = vld [vmem:[#allocation2 + $0x8] sm:$0xff]
    %v291 = vld [vmem:[#allocation2 + $0x18] sm:$0xff]
    %v292 = vld [vmem:[#allocation2 + $0x20] sm:$0xff]
    %v293 = vld [vmem:[#allocation2 + $0x30] sm:$0xff]
    %v294 = vld [vmem:[#allocation2 + $0x38] sm:$0xff]
    %v295 = vld [vmem:[#allocation2 + $0x48] sm:$0xff]
    %v296 = vld [vmem:[#allocation2 + $0x50] sm:$0xff]
    %v297 = vld [vmem:[#allocation2 + $0x60] sm:$0xff]
    %v298 = vld [vmem:[#allocation2 + $0x68] sm:$0xff]
    %v299 = vld [vmem:[#allocation2 + $0x78] sm:$0xff]
    %v300 = vld [vmem:[#allocation2 + $0x80] sm:$0xff]
    %v301 = vld [vmem:[#allocation2 + $0x90] sm:$0xff]
    %v302 = vld [vmem:[#allocation2 + $0x98] sm:$0xff]
    %v303 = vld [vmem:[#allocation2 + $0xa8] sm:$0xff]
    %v304 = vld [vmem:[#allocation2 + $0xb0] sm:$0xff]
    %v305 = vld [vmem:[#allocation2 + $0xc0] sm:$0xff]
    %v306 = vld [vmem:[#allocation2 + $0xc8] sm:$0xff]
    %v307 = vld [vmem:[#allocation2 + $0xd8] sm:$0xff]
    %v308 = vld [vmem:[#allocation2 + $0xe0] sm:$0xff]
    %v309 = vld [vmem:[#allocation2 + $0xf0] sm:$0xff]
    %v310 = vld [vmem:[#allocation2 + $0xf8] sm:$0xff]
    %v311 = vld [vmem:[#allocation2 + $0x108] sm:$0xff]
    %v312 = vld [vmem:[#allocation2 + $0x110] sm:$0xff]
    %v313 = vld [vmem:[#allocation2 + $0x120] sm:$0xff]
    %v314 = vld [vmem:[#allocation2 + $0x128] sm:$0xff]
    %v315 = vld [vmem:[#allocation2 + $0x138] sm:$0xff]
    %v316 = vld [vmem:[#allocation2 + $0x140] sm:$0xff]
    %v317 = vld [vmem:[#allocation2 + $0x150] sm:$0xff]
    %v318 = vld [vmem:[#allocation2 + $0x158] sm:$0xff]
    %v319 = vld [vmem:[#allocation2 + $0x168] sm:$0xff]
    %v320 = vld [vmem:[#allocation2 + $0x170] sm:$0xff]
    %v321 = vld [vmem:[#allocation2 + $0x1b0] sm:$0xff]
    %v322 = vld [vmem:[#allocation2 + $0x1b8] sm:$0xff]
    %v323 = vld [vmem:[#allocation2 + $0x1c8] sm:$0xff]
    %v324 = vld [vmem:[#allocation2 + $0x1d0] sm:$0xff]
    %v325 = vld [vmem:[#allocation2 + $0x1e0] sm:$0xff]
    %v326 = vld [vmem:[#allocation2 + $0x1e8] sm:$0xff]
    %v327 = vld [vmem:[#allocation2 + $0x1f8] sm:$0xff]
    %v328 = vld [vmem:[#allocation2 + $0x200] sm:$0xff]
    %v329 = vld [vmem:[#allocation2 + $0x210] sm:$0xff]
    %v330 = vld [vmem:[#allocation2 + $0x218] sm:$0xff]
    %v331 = vld [vmem:[#allocation2 + $0x228] sm:$0xff]
    %v332 = vld [vmem:[#allocation2 + $0x230] sm:$0xff]
    %v333 = vld [vmem:[#allocation2 + $0x240] sm:$0xff]
    %v334 = vld [vmem:[#allocation2 + $0x248] sm:$0xff]
    %v335 = vld [vmem:[#allocation2 + $0x258] sm:$0xff]
    %v336 = vld [vmem:[#allocation2 + $0x260] sm:$0xff]
    %v337 = vld [vmem:[#allocation2 + $0x270] sm:$0xff]
    %v338 = vld [vmem:[#allocation2 + $0x278] sm:$0xff]
    %v339 = vld [vmem:[#allocation2 + $0x288] sm:$0xff]
    %v340 = vld [vmem:[#allocation2 + $0x290] sm:$0xff]
    %v341 = vld [vmem:[#allocation2 + $0x2a0] sm:$0xff]
    %v342 = vld [vmem:[#allocation2 + $0x2a8] sm:$0xff]
    %v343 = vld [vmem:[#allocation2 + $0x2b8] sm:$0xff]
    %v344 = vld [vmem:[#allocation2 + $0x2c0] sm:$0xff]
    %v345 = vld [vmem:[#allocation2 + $0x2d0] sm:$0xff]
    %v346 = vld [vmem:[#allocation2 + $0x2d8] sm:$0xff]
    %v347 = vld [vmem:[#allocation2 + $0x2e8] sm:$0xff]
    %v348 = vld [vmem:[#allocation2 + $0x2f0] sm:$0xff]
    %v349 = vld [vmem:[#allocation2 + $0x300] sm:$0xff]
    %v350 = vld [vmem:[#allocation2 + $0x308] sm:$0xff]
    %v351 = vld [vmem:[#allocation2 + $0x318] sm:$0xff]
    %v352 = vld [vmem:[#allocation2 + $0x320] sm:$0xff]
    %353 = vst.msk [vmem:[#allocation4] sm:$0xff] %vm114, %v289
    %354 = vst.msk [vmem:[#allocation4 + $0x8] sm:$0xff] %vm114, %v290
    %355 = vst.msk [vmem:[#allocation4 + $0x10] sm:$0xff] %vm114, %v291
    %356 = vst.msk [vmem:[#allocation4 + $0x18] sm:$0xff] %vm114, %v292
    %357 = vst.msk [vmem:[#allocation4 + $0x20] sm:$0xff] %vm114, %v293
    %358 = vst.msk [vmem:[#allocation4 + $0x28] sm:$0xff] %vm114, %v294
    %359 = vst.msk [vmem:[#allocation4 + $0x30] sm:$0xff] %vm114, %v295
    %360 = vst.msk [vmem:[#allocation4 + $0x38] sm:$0xff] %vm114, %v296
    %361 = vst.msk [vmem:[#allocation4 + $0x40] sm:$0xff] %vm114, %v297
    %362 = vst.msk [vmem:[#allocation4 + $0x48] sm:$0xff] %vm114, %v298
    %363 = vst.msk [vmem:[#allocation4 + $0x50] sm:$0xff] %vm114, %v299
    %364 = vst.msk [vmem:[#allocation4 + $0x58] sm:$0xff] %vm114, %v300
    %365 = vst.msk [vmem:[#allocation4 + $0x60] sm:$0xff] %vm114, %v301
    %366 = vst.msk [vmem:[#allocation4 + $0x68] sm:$0xff] %vm114, %v302
    %367 = vst.msk [vmem:[#allocation4 + $0x70] sm:$0xff] %vm114, %v303
    %368 = vst.msk [vmem:[#allocation4 + $0x78] sm:$0xff] %vm114, %v304
    %369 = vst.msk [vmem:[#allocation4 + $0x80] sm:$0xff] %vm114, %v305
    %370 = vst.msk [vmem:[#allocation4 + $0x88] sm:$0xff] %vm114, %v306
    %371 = vst.msk [vmem:[#allocation4 + $0x90] sm:$0xff] %vm114, %v307
    %372 = vst.msk [vmem:[#allocation4 + $0x98] sm:$0xff] %vm114, %v308
    %373 = vst.msk [vmem:[#allocation4 + $0xa0] sm:$0xff] %vm114, %v309
    %374 = vst.msk [vmem:[#allocation4 + $0xa8] sm:$0xff] %vm114, %v310
    %375 = vst.msk [vmem:[#allocation4 + $0xb0] sm:$0xff] %vm114, %v311
    %376 = vst.msk [vmem:[#allocation4 + $0xb8] sm:$0xff] %vm114, %v312
    %377 = vst.msk [vmem:[#allocation4 + $0xc0] sm:$0xff] %vm114, %v313
    %378 = vst.msk [vmem:[#allocation4 + $0xc8] sm:$0xff] %vm114, %v314
    %379 = vst.msk [vmem:[#allocation4 + $0xd0] sm:$0xff] %vm114, %v315
    %380 = vst.msk [vmem:[#allocation4 + $0xd8] sm:$0xff] %vm114, %v316
    %381 = vst.msk [vmem:[#allocation4 + $0xe0] sm:$0xff] %vm114, %v317
    %382 = vst.msk [vmem:[#allocation4 + $0xe8] sm:$0xff] %vm114, %v318
    %383 = vst.msk [vmem:[#allocation4 + $0xf0] sm:$0xff] %vm114, %v319
    %384 = vst.msk [vmem:[#allocation4 + $0xf8] sm:$0xff] %vm114, %v320
    %385 = vst.msk [vmem:[#allocation4 + $0x100] sm:$0xff] %vm114, %v321
    %386 = vst.msk [vmem:[#allocation4 + $0x108] sm:$0xff] %vm114, %v322
    %387 = vst.msk [vmem:[#allocation4 + $0x110] sm:$0xff] %vm114, %v323
    %388 = vst.msk [vmem:[#allocation4 + $0x118] sm:$0xff] %vm114, %v324
    %389 = vst.msk [vmem:[#allocation4 + $0x120] sm:$0xff] %vm114, %v325
    %390 = vst.msk [vmem:[#allocation4 + $0x128] sm:$0xff] %vm114, %v326
    %391 = vst.msk [vmem:[#allocation4 + $0x130] sm:$0xff] %vm114, %v327
    %392 = vst.msk [vmem:[#allocation4 + $0x138] sm:$0xff] %vm114, %v328
    %393 = vst.msk [vmem:[#allocation4 + $0x140] sm:$0xff] %vm114, %v329
    %394 = vst.msk [vmem:[#allocation4 + $0x148] sm:$0xff] %vm114, %v330
    %395 = vst.msk [vmem:[#allocation4 + $0x150] sm:$0xff] %vm114, %v331
    %396 = vst.msk [vmem:[#allocation4 + $0x158] sm:$0xff] %vm114, %v332
    %397 = vst.msk [vmem:[#allocation4 + $0x160] sm:$0xff] %vm114, %v333
    %398 = vst.msk [vmem:[#allocation4 + $0x168] sm:$0xff] %vm114, %v334
    %399 = vst.msk [vmem:[#allocation4 + $0x170] sm:$0xff] %vm114, %v335
    %400 = vst.msk [vmem:[#allocation4 + $0x178] sm:$0xff] %vm114, %v336
    %401 = vst.msk [vmem:[#allocation4 + $0x180] sm:$0xff] %vm114, %v337
    %402 = vst.msk [vmem:[#allocation4 + $0x188] sm:$0xff] %vm114, %v338
    %403 = vst.msk [vmem:[#allocation4 + $0x190] sm:$0xff] %vm114, %v339
    %404 = vst.msk [vmem:[#allocation4 + $0x198] sm:$0xff] %vm114, %v340
    %405 = vst.msk [vmem:[#allocation4 + $0x1a0] sm:$0xff] %vm114, %v341
    %406 = vst.msk [vmem:[#allocation4 + $0x1a8] sm:$0xff] %vm114, %v342
    %407 = vst.msk [vmem:[#allocation4 + $0x1b0] sm:$0xff] %vm114, %v343
    %408 = vst.msk [vmem:[#allocation4 + $0x1b8] sm:$0xff] %vm114, %v344
    %409 = vst.msk [vmem:[#allocation4 + $0x1c0] sm:$0xff] %vm114, %v345
    %410 = vst.msk [vmem:[#allocation4 + $0x1c8] sm:$0xff] %vm114, %v346
    %411 = vst.msk [vmem:[#allocation4 + $0x1d0] sm:$0xff] %vm114, %v347
    %412 = vst.msk [vmem:[#allocation4 + $0x1d8] sm:$0xff] %vm114, %v348
    %413 = vst.msk [vmem:[#allocation4 + $0x1e0] sm:$0xff] %vm114, %v349
    %414 = vst.msk [vmem:[#allocation4 + $0x1e8] sm:$0xff] %vm114, %v350
    %415 = vst.msk [vmem:[#allocation4 + $0x1f0] sm:$0xff] %vm114, %v351
    %416 = vst.msk [vmem:[#allocation4 + $0x1f8] sm:$0xff] %vm114, %v352
    %v417 = vld [vmem:[#allocation2 + $0x1] sm:$0xff]
    %v418 = vld [vmem:[#allocation2 + $0x9] sm:$0xff]
    %v419 = vld [vmem:[#allocation2 + $0x19] sm:$0xff]
    %v420 = vld [vmem:[#allocation2 + $0x21] sm:$0xff]
    %v421 = vld [vmem:[#allocation2 + $0x31] sm:$0xff]
    %v422 = vld [vmem:[#allocation2 + $0x39] sm:$0xff]
    %v423 = vld [vmem:[#allocation2 + $0x49] sm:$0xff]
    %v424 = vld [vmem:[#allocation2 + $0x51] sm:$0xff]
    %v425 = vld [vmem:[#allocation2 + $0x61] sm:$0xff]
    %v426 = vld [vmem:[#allocation2 + $0x69] sm:$0xff]
    %v427 = vld [vmem:[#allocation2 + $0x79] sm:$0xff]
    %v428 = vld [vmem:[#allocation2 + $0x81] sm:$0xff]
    %v429 = vld [vmem:[#allocation2 + $0x91] sm:$0xff]
    %v430 = vld [vmem:[#allocation2 + $0x99] sm:$0xff]
    %v431 = vld [vmem:[#allocation2 + $0xa9] sm:$0xff]
    %v432 = vld [vmem:[#allocation2 + $0xb1] sm:$0xff]
    %v433 = vld [vmem:[#allocation2 + $0xc1] sm:$0xff]
    %v434 = vld [vmem:[#allocation2 + $0xc9] sm:$0xff]
    %v435 = vld [vmem:[#allocation2 + $0xd9] sm:$0xff]
    %v436 = vld [vmem:[#allocation2 + $0xe1] sm:$0xff]
    %v437 = vld [vmem:[#allocation2 + $0xf1] sm:$0xff]
    %v438 = vld [vmem:[#allocation2 + $0xf9] sm:$0xff]
    %v439 = vld [vmem:[#allocation2 + $0x109] sm:$0xff]
    %v440 = vld [vmem:[#allocation2 + $0x111] sm:$0xff]
    %v441 = vld [vmem:[#allocation2 + $0x121] sm:$0xff]
    %v442 = vld [vmem:[#allocation2 + $0x129] sm:$0xff]
    %v443 = vld [vmem:[#allocation2 + $0x139] sm:$0xff]
    %v444 = vld [vmem:[#allocation2 + $0x141] sm:$0xff]
    %v445 = vld [vmem:[#allocation2 + $0x151] sm:$0xff]
    %v446 = vld [vmem:[#allocation2 + $0x159] sm:$0xff]
    %v447 = vld [vmem:[#allocation2 + $0x169] sm:$0xff]
    %v448 = vld [vmem:[#allocation2 + $0x171] sm:$0xff]
    %v449 = vld [vmem:[#allocation2 + $0x1b1] sm:$0xff]
    %v450 = vld [vmem:[#allocation2 + $0x1b9] sm:$0xff]
    %v451 = vld [vmem:[#allocation2 + $0x1c9] sm:$0xff]
    %v452 = vld [vmem:[#allocation2 + $0x1d1] sm:$0xff]
    %v453 = vld [vmem:[#allocation2 + $0x1e1] sm:$0xff]
    %v454 = vld [vmem:[#allocation2 + $0x1e9] sm:$0xff]
    %v455 = vld [vmem:[#allocation2 + $0x1f9] sm:$0xff]
    %v456 = vld [vmem:[#allocation2 + $0x201] sm:$0xff]
    %v457 = vld [vmem:[#allocation2 + $0x211] sm:$0xff]
    %v458 = vld [vmem:[#allocation2 + $0x219] sm:$0xff]
    %v459 = vld [vmem:[#allocation2 + $0x229] sm:$0xff]
    %v460 = vld [vmem:[#allocation2 + $0x231] sm:$0xff]
    %v461 = vld [vmem:[#allocation2 + $0x241] sm:$0xff]
    %v462 = vld [vmem:[#allocation2 + $0x249] sm:$0xff]
    %v463 = vld [vmem:[#allocation2 + $0x259] sm:$0xff]
    %v464 = vld [vmem:[#allocation2 + $0x261] sm:$0xff]
    %v465 = vld [vmem:[#allocation2 + $0x271] sm:$0xff]
    %v466 = vld [vmem:[#allocation2 + $0x279] sm:$0xff]
    %v467 = vld [vmem:[#allocation2 + $0x289] sm:$0xff]
    %v468 = vld [vmem:[#allocation2 + $0x291] sm:$0xff]
    %v469 = vld [vmem:[#allocation2 + $0x2a1] sm:$0xff]
    %v470 = vld [vmem:[#allocation2 + $0x2a9] sm:$0xff]
    %v471 = vld [vmem:[#allocation2 + $0x2b9] sm:$0xff]
    %v472 = vld [vmem:[#allocation2 + $0x2c1] sm:$0xff]
    %v473 = vld [vmem:[#allocation2 + $0x2d1] sm:$0xff]
    %v474 = vld [vmem:[#allocation2 + $0x2d9] sm:$0xff]
    %v475 = vld [vmem:[#allocation2 + $0x2e9] sm:$0xff]
    %v476 = vld [vmem:[#allocation2 + $0x2f1] sm:$0xff]
    %v477 = vld [vmem:[#allocation2 + $0x301] sm:$0xff]
    %v478 = vld [vmem:[#allocation2 + $0x309] sm:$0xff]
    %v479 = vld [vmem:[#allocation2 + $0x319] sm:$0xff]
    %v480 = vld [vmem:[#allocation2 + $0x321] sm:$0xff]
    %545 = vrot.lane.b32.xlu0 %v417, 4
    %v546 = vpop.permute.xlu0 %545
    %547 = vrot.lane.b32.xlu0 %v418, 4
    %v548 = vpop.permute.xlu0 %547
    %549 = vrot.lane.b32.xlu0 %v419, 4
    %v550 = vpop.permute.xlu0 %549
    %551 = vrot.lane.b32.xlu0 %v420, 4
    %v552 = vpop.permute.xlu0 %551
    %553 = vrot.lane.b32.xlu0 %v421, 4
    %v554 = vpop.permute.xlu0 %553
    %555 = vrot.lane.b32.xlu0 %v422, 4
    %v556 = vpop.permute.xlu0 %555
    %557 = vrot.lane.b32.xlu0 %v423, 4
    %v558 = vpop.permute.xlu0 %557
    %559 = vrot.lane.b32.xlu0 %v424, 4
    %v560 = vpop.permute.xlu0 %559
    %561 = vrot.lane.b32.xlu0 %v425, 4
    %v562 = vpop.permute.xlu0 %561
    %563 = vrot.lane.b32.xlu0 %v426, 4
    %v564 = vpop.permute.xlu0 %563
    %565 = vrot.lane.b32.xlu0 %v427, 4
    %v566 = vpop.permute.xlu0 %565
    %567 = vrot.lane.b32.xlu0 %v428, 4
    %v568 = vpop.permute.xlu0 %567
    %569 = vrot.lane.b32.xlu0 %v429, 4
    %v570 = vpop.permute.xlu0 %569
    %571 = vrot.lane.b32.xlu0 %v430, 4
    %v572 = vpop.permute.xlu0 %571
    %573 = vrot.lane.b32.xlu0 %v431, 4
    %v574 = vpop.permute.xlu0 %573
    %575 = vrot.lane.b32.xlu0 %v432, 4
    %v576 = vpop.permute.xlu0 %575
    %577 = vrot.lane.b32.xlu0 %v433, 4
    %v578 = vpop.permute.xlu0 %577
    %579 = vrot.lane.b32.xlu0 %v434, 4
    %v580 = vpop.permute.xlu0 %579
    %581 = vrot.lane.b32.xlu0 %v435, 4
    %v582 = vpop.permute.xlu0 %581
    %583 = vrot.lane.b32.xlu0 %v436, 4
    %v584 = vpop.permute.xlu0 %583
    %585 = vrot.lane.b32.xlu0 %v437, 4
    %v586 = vpop.permute.xlu0 %585
    %587 = vrot.lane.b32.xlu0 %v438, 4
    %v588 = vpop.permute.xlu0 %587
    %589 = vrot.lane.b32.xlu0 %v439, 4
    %v590 = vpop.permute.xlu0 %589
    %591 = vrot.lane.b32.xlu0 %v440, 4
    %v592 = vpop.permute.xlu0 %591
    %593 = vrot.lane.b32.xlu0 %v441, 4
    %v594 = vpop.permute.xlu0 %593
    %595 = vrot.lane.b32.xlu0 %v442, 4
    %v596 = vpop.permute.xlu0 %595
    %597 = vrot.lane.b32.xlu0 %v443, 4
    %v598 = vpop.permute.xlu0 %597
    %599 = vrot.lane.b32.xlu0 %v444, 4
    %v600 = vpop.permute.xlu0 %599
    %601 = vrot.lane.b32.xlu0 %v445, 4
    %v602 = vpop.permute.xlu0 %601
    %603 = vrot.lane.b32.xlu0 %v446, 4
    %v604 = vpop.permute.xlu0 %603
    %605 = vrot.lane.b32.xlu0 %v447, 4
    %v606 = vpop.permute.xlu0 %605
    %607 = vrot.lane.b32.xlu0 %v448, 4
    %v608 = vpop.permute.xlu0 %607
    %609 = vrot.lane.b32.xlu0 %v449, 4
    %v610 = vpop.permute.xlu0 %609
    %611 = vrot.lane.b32.xlu0 %v450, 4
    %v612 = vpop.permute.xlu0 %611
    %613 = vrot.lane.b32.xlu0 %v451, 4
    %v614 = vpop.permute.xlu0 %613
    %615 = vrot.lane.b32.xlu0 %v452, 4
    %v616 = vpop.permute.xlu0 %615
    %617 = vrot.lane.b32.xlu0 %v453, 4
    %v618 = vpop.permute.xlu0 %617
    %619 = vrot.lane.b32.xlu0 %v454, 4
    %v620 = vpop.permute.xlu0 %619
    %621 = vrot.lane.b32.xlu0 %v455, 4
    %v622 = vpop.permute.xlu0 %621
    %623 = vrot.lane.b32.xlu0 %v456, 4
    %v624 = vpop.permute.xlu0 %623
    %625 = vrot.lane.b32.xlu0 %v457, 4
    %v626 = vpop.permute.xlu0 %625
    %627 = vrot.lane.b32.xlu0 %v458, 4
    %v628 = vpop.permute.xlu0 %627
    %629 = vrot.lane.b32.xlu0 %v459, 4
    %v630 = vpop.permute.xlu0 %629
    %631 = vrot.lane.b32.xlu0 %v460, 4
    %v632 = vpop.permute.xlu0 %631
    %633 = vrot.lane.b32.xlu0 %v461, 4
    %v634 = vpop.permute.xlu0 %633
    %635 = vrot.lane.b32.xlu0 %v462, 4
    %v636 = vpop.permute.xlu0 %635
    %637 = vrot.lane.b32.xlu0 %v463, 4
    %v638 = vpop.permute.xlu0 %637
    %639 = vrot.lane.b32.xlu0 %v464, 4
    %v640 = vpop.permute.xlu0 %639
    %641 = vrot.lane.b32.xlu0 %v465, 4
    %v642 = vpop.permute.xlu0 %641
    %643 = vrot.lane.b32.xlu0 %v466, 4
    %v644 = vpop.permute.xlu0 %643
    %645 = vrot.lane.b32.xlu0 %v467, 4
    %v646 = vpop.permute.xlu0 %645
    %647 = vrot.lane.b32.xlu0 %v468, 4
    %v648 = vpop.permute.xlu0 %647
    %649 = vrot.lane.b32.xlu0 %v469, 4
    %v650 = vpop.permute.xlu0 %649
    %651 = vrot.lane.b32.xlu0 %v470, 4
    %v652 = vpop.permute.xlu0 %651
    %653 = vrot.lane.b32.xlu0 %v471, 4
    %v654 = vpop.permute.xlu0 %653
    %655 = vrot.lane.b32.xlu0 %v472, 4
    %v656 = vpop.permute.xlu0 %655
    %657 = vrot.lane.b32.xlu0 %v473, 4
    %v658 = vpop.permute.xlu0 %657
    %659 = vrot.lane.b32.xlu0 %v474, 4
    %v660 = vpop.permute.xlu0 %659
    %661 = vrot.lane.b32.xlu0 %v475, 4
    %v662 = vpop.permute.xlu0 %661
    %663 = vrot.lane.b32.xlu0 %v476, 4
    %v664 = vpop.permute.xlu0 %663
    %665 = vrot.lane.b32.xlu0 %v477, 4
    %v666 = vpop.permute.xlu0 %665
    %667 = vrot.lane.b32.xlu0 %v478, 4
    %v668 = vpop.permute.xlu0 %667
    %669 = vrot.lane.b32.xlu0 %v479, 4
    %v670 = vpop.permute.xlu0 %669
    %671 = vrot.lane.b32.xlu0 %v480, 4
    %v672 = vpop.permute.xlu0 %671
    %vm737 = vcmask 64544
    %738 = vst.msk [vmem:[#allocation4] sm:$0xff] %vm737, %v546
    %739 = vst.msk [vmem:[#allocation4 + $0x8] sm:$0xff] %vm737, %v548
    %740 = vst.msk [vmem:[#allocation4 + $0x10] sm:$0xff] %vm737, %v550
    %741 = vst.msk [vmem:[#allocation4 + $0x18] sm:$0xff] %vm737, %v552
    %742 = vst.msk [vmem:[#allocation4 + $0x20] sm:$0xff] %vm737, %v554
    %743 = vst.msk [vmem:[#allocation4 + $0x28] sm:$0xff] %vm737, %v556
    %744 = vst.msk [vmem:[#allocation4 + $0x30] sm:$0xff] %vm737, %v558
    %745 = vst.msk [vmem:[#allocation4 + $0x38] sm:$0xff] %vm737, %v560
    %746 = vst.msk [vmem:[#allocation4 + $0x40] sm:$0xff] %vm737, %v562
    %747 = vst.msk [vmem:[#allocation4 + $0x48] sm:$0xff] %vm737, %v564
    %748 = vst.msk [vmem:[#allocation4 + $0x50] sm:$0xff] %vm737, %v566
    %749 = vst.msk [vmem:[#allocation4 + $0x58] sm:$0xff] %vm737, %v568
    %750 = vst.msk [vmem:[#allocation4 + $0x60] sm:$0xff] %vm737, %v570
    %751 = vst.msk [vmem:[#allocation4 + $0x68] sm:$0xff] %vm737, %v572
    %752 = vst.msk [vmem:[#allocation4 + $0x70] sm:$0xff] %vm737, %v574
    %753 = vst.msk [vmem:[#allocation4 + $0x78] sm:$0xff] %vm737, %v576
    %754 = vst.msk [vmem:[#allocation4 + $0x80] sm:$0xff] %vm737, %v578
    %755 = vst.msk [vmem:[#allocation4 + $0x88] sm:$0xff] %vm737, %v580
    %756 = vst.msk [vmem:[#allocation4 + $0x90] sm:$0xff] %vm737, %v582
    %757 = vst.msk [vmem:[#allocation4 + $0x98] sm:$0xff] %vm737, %v584
    %758 = vst.msk [vmem:[#allocation4 + $0xa0] sm:$0xff] %vm737, %v586
    %759 = vst.msk [vmem:[#allocation4 + $0xa8] sm:$0xff] %vm737, %v588
    %760 = vst.msk [vmem:[#allocation4 + $0xb0] sm:$0xff] %vm737, %v590
    %761 = vst.msk [vmem:[#allocation4 + $0xb8] sm:$0xff] %vm737, %v592
    %762 = vst.msk [vmem:[#allocation4 + $0xc0] sm:$0xff] %vm737, %v594
    %763 = vst.msk [vmem:[#allocation4 + $0xc8] sm:$0xff] %vm737, %v596
    %764 = vst.msk [vmem:[#allocation4 + $0xd0] sm:$0xff] %vm737, %v598
    %765 = vst.msk [vmem:[#allocation4 + $0xd8] sm:$0xff] %vm737, %v600
    %766 = vst.msk [vmem:[#allocation4 + $0xe0] sm:$0xff] %vm737, %v602
    %767 = vst.msk [vmem:[#allocation4 + $0xe8] sm:$0xff] %vm737, %v604
    %768 = vst.msk [vmem:[#allocation4 + $0xf0] sm:$0xff] %vm737, %v606
    %769 = vst.msk [vmem:[#allocation4 + $0xf8] sm:$0xff] %vm737, %v608
    %770 = vst.msk [vmem:[#allocation4 + $0x100] sm:$0xff] %vm737, %v610
    %771 = vst.msk [vmem:[#allocation4 + $0x108] sm:$0xff] %vm737, %v612
    %772 = vst.msk [vmem:[#allocation4 + $0x110] sm:$0xff] %vm737, %v614
    %773 = vst.msk [vmem:[#allocation4 + $0x118] sm:$0xff] %vm737, %v616
    %774 = vst.msk [vmem:[#allocation4 + $0x120] sm:$0xff] %vm737, %v618
    %775 = vst.msk [vmem:[#allocation4 + $0x128] sm:$0xff] %vm737, %v620
    %776 = vst.msk [vmem:[#allocation4 + $0x130] sm:$0xff] %vm737, %v622
    %777 = vst.msk [vmem:[#allocation4 + $0x138] sm:$0xff] %vm737, %v624
    %778 = vst.msk [vmem:[#allocation4 + $0x140] sm:$0xff] %vm737, %v626
    %779 = vst.msk [vmem:[#allocation4 + $0x148] sm:$0xff] %vm737, %v628
    %780 = vst.msk [vmem:[#allocation4 + $0x150] sm:$0xff] %vm737, %v630
    %781 = vst.msk [vmem:[#allocation4 + $0x158] sm:$0xff] %vm737, %v632
    %782 = vst.msk [vmem:[#allocation4 + $0x160] sm:$0xff] %vm737, %v634
    %783 = vst.msk [vmem:[#allocation4 + $0x168] sm:$0xff] %vm737, %v636
    %784 = vst.msk [vmem:[#allocation4 + $0x170] sm:$0xff] %vm737, %v638
    %785 = vst.msk [vmem:[#allocation4 + $0x178] sm:$0xff] %vm737, %v640
    %786 = vst.msk [vmem:[#allocation4 + $0x180] sm:$0xff] %vm737, %v642
    %787 = vst.msk [vmem:[#allocation4 + $0x188] sm:$0xff] %vm737, %v644
    %788 = vst.msk [vmem:[#allocation4 + $0x190] sm:$0xff] %vm737, %v646
    %789 = vst.msk [vmem:[#allocation4 + $0x198] sm:$0xff] %vm737, %v648
    %790 = vst.msk [vmem:[#allocation4 + $0x1a0] sm:$0xff] %vm737, %v650
    %791 = vst.msk [vmem:[#allocation4 + $0x1a8] sm:$0xff] %vm737, %v652
    %792 = vst.msk [vmem:[#allocation4 + $0x1b0] sm:$0xff] %vm737, %v654
    %793 = vst.msk [vmem:[#allocation4 + $0x1b8] sm:$0xff] %vm737, %v656
    %794 = vst.msk [vmem:[#allocation4 + $0x1c0] sm:$0xff] %vm737, %v658
    %795 = vst.msk [vmem:[#allocation4 + $0x1c8] sm:$0xff] %vm737, %v660
    %796 = vst.msk [vmem:[#allocation4 + $0x1d0] sm:$0xff] %vm737, %v662
    %797 = vst.msk [vmem:[#allocation4 + $0x1d8] sm:$0xff] %vm737, %v664
    %798 = vst.msk [vmem:[#allocation4 + $0x1e0] sm:$0xff] %vm737, %v666
    %799 = vst.msk [vmem:[#allocation4 + $0x1e8] sm:$0xff] %vm737, %v668
    %800 = vst.msk [vmem:[#allocation4 + $0x1f0] sm:$0xff] %vm737, %v670
    %801 = vst.msk [vmem:[#allocation4 + $0x1f8] sm:$0xff] %vm737, %v672
    %v802 = vld [vmem:[#allocation2 + $0x2] sm:$0xff]
    %v803 = vld [vmem:[#allocation2 + $0xa] sm:$0xff]
    %v804 = vld [vmem:[#allocation2 + $0x1a] sm:$0xff]
    %v805 = vld [vmem:[#allocation2 + $0x22] sm:$0xff]
    %v806 = vld [vmem:[#allocation2 + $0x32] sm:$0xff]
    %v807 = vld [vmem:[#allocation2 + $0x3a] sm:$0xff]
    %v808 = vld [vmem:[#allocation2 + $0x4a] sm:$0xff]
    %v809 = vld [vmem:[#allocation2 + $0x52] sm:$0xff]
    %v810 = vld [vmem:[#allocation2 + $0x62] sm:$0xff]
    %v811 = vld [vmem:[#allocation2 + $0x6a] sm:$0xff]
    %v812 = vld [vmem:[#allocation2 + $0x7a] sm:$0xff]
    %v813 = vld [vmem:[#allocation2 + $0x82] sm:$0xff]
    %v814 = vld [vmem:[#allocation2 + $0x92] sm:$0xff]
    %v815 = vld [vmem:[#allocation2 + $0x9a] sm:$0xff]
    %v816 = vld [vmem:[#allocation2 + $0xaa] sm:$0xff]
    %v817 = vld [vmem:[#allocation2 + $0xb2] sm:$0xff]
    %v818 = vld [vmem:[#allocation2 + $0xc2] sm:$0xff]
    %v819 = vld [vmem:[#allocation2 + $0xca] sm:$0xff]
    %v820 = vld [vmem:[#allocation2 + $0xda] sm:$0xff]
    %v821 = vld [vmem:[#allocation2 + $0xe2] sm:$0xff]
    %v822 = vld [vmem:[#allocation2 + $0xf2] sm:$0xff]
    %v823 = vld [vmem:[#allocation2 + $0xfa] sm:$0xff]
    %v824 = vld [vmem:[#allocation2 + $0x10a] sm:$0xff]
    %v825 = vld [vmem:[#allocation2 + $0x112] sm:$0xff]
    %v826 = vld [vmem:[#allocation2 + $0x122] sm:$0xff]
    %v827 = vld [vmem:[#allocation2 + $0x12a] sm:$0xff]
    %v828 = vld [vmem:[#allocation2 + $0x13a] sm:$0xff]
    %v829 = vld [vmem:[#allocation2 + $0x142] sm:$0xff]
    %v830 = vld [vmem:[#allocation2 + $0x152] sm:$0xff]
    %v831 = vld [vmem:[#allocation2 + $0x15a] sm:$0xff]
    %v832 = vld [vmem:[#allocation2 + $0x16a] sm:$0xff]
    %v833 = vld [vmem:[#allocation2 + $0x172] sm:$0xff]
    %v834 = vld [vmem:[#allocation2 + $0x1b2] sm:$0xff]
    %v835 = vld [vmem:[#allocation2 + $0x1ba] sm:$0xff]
    %v836 = vld [vmem:[#allocation2 + $0x1ca] sm:$0xff]
    %v837 = vld [vmem:[#allocation2 + $0x1d2] sm:$0xff]
    %v838 = vld [vmem:[#allocation2 + $0x1e2] sm:$0xff]
    %v839 = vld [vmem:[#allocation2 + $0x1ea] sm:$0xff]
    %v840 = vld [vmem:[#allocation2 + $0x1fa] sm:$0xff]
    %v841 = vld [vmem:[#allocation2 + $0x202] sm:$0xff]
    %v842 = vld [vmem:[#allocation2 + $0x212] sm:$0xff]
    %v843 = vld [vmem:[#allocation2 + $0x21a] sm:$0xff]
    %v844 = vld [vmem:[#allocation2 + $0x22a] sm:$0xff]
    %v845 = vld [vmem:[#allocation2 + $0x232] sm:$0xff]
    %v846 = vld [vmem:[#allocation2 + $0x242] sm:$0xff]
    %v847 = vld [vmem:[#allocation2 + $0x24a] sm:$0xff]
    %v848 = vld [vmem:[#allocation2 + $0x25a] sm:$0xff]
    %v849 = vld [vmem:[#allocation2 + $0x262] sm:$0xff]
    %v850 = vld [vmem:[#allocation2 + $0x272] sm:$0xff]
    %v851 = vld [vmem:[#allocation2 + $0x27a] sm:$0xff]
    %v852 = vld [vmem:[#allocation2 + $0x28a] sm:$0xff]
    %v853 = vld [vmem:[#allocation2 + $0x292] sm:$0xff]
    %v854 = vld [vmem:[#allocation2 + $0x2a2] sm:$0xff]
    %v855 = vld [vmem:[#allocation2 + $0x2aa] sm:$0xff]
    %v856 = vld [vmem:[#allocation2 + $0x2ba] sm:$0xff]
    %v857 = vld [vmem:[#allocation2 + $0x2c2] sm:$0xff]
    %v858 = vld [vmem:[#allocation2 + $0x2d2] sm:$0xff]
    %v859 = vld [vmem:[#allocation2 + $0x2da] sm:$0xff]
    %v860 = vld [vmem:[#allocation2 + $0x2ea] sm:$0xff]
    %v861 = vld [vmem:[#allocation2 + $0x2f2] sm:$0xff]
    %v862 = vld [vmem:[#allocation2 + $0x302] sm:$0xff]
    %v863 = vld [vmem:[#allocation2 + $0x30a] sm:$0xff]
    %v864 = vld [vmem:[#allocation2 + $0x31a] sm:$0xff]
    %v865 = vld [vmem:[#allocation2 + $0x322] sm:$0xff]
    %930 = vrot.lane.b32.xlu0 %v802, 8
    %v931 = vpop.permute.xlu0 %930
    %932 = vrot.lane.b32.xlu0 %v803, 8
    %v933 = vpop.permute.xlu0 %932
    %934 = vrot.lane.b32.xlu0 %v804, 8
    %v935 = vpop.permute.xlu0 %934
    %936 = vrot.lane.b32.xlu0 %v805, 8
    %v937 = vpop.permute.xlu0 %936
    %938 = vrot.lane.b32.xlu0 %v806, 8
    %v939 = vpop.permute.xlu0 %938
    %940 = vrot.lane.b32.xlu0 %v807, 8
    %v941 = vpop.permute.xlu0 %940
    %942 = vrot.lane.b32.xlu0 %v808, 8
    %v943 = vpop.permute.xlu0 %942
    %944 = vrot.lane.b32.xlu0 %v809, 8
    %v945 = vpop.permute.xlu0 %944
    %946 = vrot.lane.b32.xlu0 %v810, 8
    %v947 = vpop.permute.xlu0 %946
    %948 = vrot.lane.b32.xlu0 %v811, 8
    %v949 = vpop.permute.xlu0 %948
    %950 = vrot.lane.b32.xlu0 %v812, 8
    %v951 = vpop.permute.xlu0 %950
    %952 = vrot.lane.b32.xlu0 %v813, 8
    %v953 = vpop.permute.xlu0 %952
    %954 = vrot.lane.b32.xlu0 %v814, 8
    %v955 = vpop.permute.xlu0 %954
    %956 = vrot.lane.b32.xlu0 %v815, 8
    %v957 = vpop.permute.xlu0 %956
    %958 = vrot.lane.b32.xlu0 %v816, 8
    %v959 = vpop.permute.xlu0 %958
    %960 = vrot.lane.b32.xlu0 %v817, 8
    %v961 = vpop.permute.xlu0 %960
    %962 = vrot.lane.b32.xlu0 %v818, 8
    %v963 = vpop.permute.xlu0 %962
    %964 = vrot.lane.b32.xlu0 %v819, 8
    %v965 = vpop.permute.xlu0 %964
    %966 = vrot.lane.b32.xlu0 %v820, 8
    %v967 = vpop.permute.xlu0 %966
    %968 = vrot.lane.b32.xlu0 %v821, 8
    %v969 = vpop.permute.xlu0 %968
    %970 = vrot.lane.b32.xlu0 %v822, 8
    %v971 = vpop.permute.xlu0 %970
    %972 = vrot.lane.b32.xlu0 %v823, 8
    %v973 = vpop.permute.xlu0 %972
    %974 = vrot.lane.b32.xlu0 %v824, 8
    %v975 = vpop.permute.xlu0 %974
    %976 = vrot.lane.b32.xlu0 %v825, 8
    %v977 = vpop.permute.xlu0 %976
    %978 = vrot.lane.b32.xlu0 %v826, 8
    %v979 = vpop.permute.xlu0 %978
    %980 = vrot.lane.b32.xlu0 %v827, 8
    %v981 = vpop.permute.xlu0 %980
    %982 = vrot.lane.b32.xlu0 %v828, 8
    %v983 = vpop.permute.xlu0 %982
    %984 = vrot.lane.b32.xlu0 %v829, 8
    %v985 = vpop.permute.xlu0 %984
    %986 = vrot.lane.b32.xlu0 %v830, 8
    %v987 = vpop.permute.xlu0 %986
    %988 = vrot.lane.b32.xlu0 %v831, 8
    %v989 = vpop.permute.xlu0 %988
    %990 = vrot.lane.b32.xlu0 %v832, 8
    %v991 = vpop.permute.xlu0 %990
    %992 = vrot.lane.b32.xlu0 %v833, 8
    %v993 = vpop.permute.xlu0 %992
    %994 = vrot.lane.b32.xlu0 %v834, 8
    %v995 = vpop.permute.xlu0 %994
    %996 = vrot.lane.b32.xlu0 %v835, 8
    %v997 = vpop.permute.xlu0 %996
    %998 = vrot.lane.b32.xlu0 %v836, 8
    %v999 = vpop.permute.xlu0 %998
    %1000 = vrot.lane.b32.xlu0 %v837, 8
    %v1001 = vpop.permute.xlu0 %1000
    %1002 = vrot.lane.b32.xlu0 %v838, 8
    %v1003 = vpop.permute.xlu0 %1002
    %1004 = vrot.lane.b32.xlu0 %v839, 8
    %v1005 = vpop.permute.xlu0 %1004
    %1006 = vrot.lane.b32.xlu0 %v840, 8
    %v1007 = vpop.permute.xlu0 %1006
    %1008 = vrot.lane.b32.xlu0 %v841, 8
    %v1009 = vpop.permute.xlu0 %1008
    %1010 = vrot.lane.b32.xlu0 %v842, 8
    %v1011 = vpop.permute.xlu0 %1010
    %1012 = vrot.lane.b32.xlu0 %v843, 8
    %v1013 = vpop.permute.xlu0 %1012
    %1014 = vrot.lane.b32.xlu0 %v844, 8
    %v1015 = vpop.permute.xlu0 %1014
    %1016 = vrot.lane.b32.xlu0 %v845, 8
    %v1017 = vpop.permute.xlu0 %1016
    %1018 = vrot.lane.b32.xlu0 %v846, 8
    %v1019 = vpop.permute.xlu0 %1018
    %1020 = vrot.lane.b32.xlu0 %v847, 8
    %v1021 = vpop.permute.xlu0 %1020
    %1022 = vrot.lane.b32.xlu0 %v848, 8
    %v1023 = vpop.permute.xlu0 %1022
    %1024 = vrot.lane.b32.xlu0 %v849, 8
    %v1025 = vpop.permute.xlu0 %1024
    %1026 = vrot.lane.b32.xlu0 %v850, 8
    %v1027 = vpop.permute.xlu0 %1026
    %1028 = vrot.lane.b32.xlu0 %v851, 8
    %v1029 = vpop.permute.xlu0 %1028
    %1030 = vrot.lane.b32.xlu0 %v852, 8
    %v1031 = vpop.permute.xlu0 %1030
    %1032 = vrot.lane.b32.xlu0 %v853, 8
    %v1033 = vpop.permute.xlu0 %1032
    %1034 = vrot.lane.b32.xlu0 %v854, 8
    %v1035 = vpop.permute.xlu0 %1034
    %1036 = vrot.lane.b32.xlu0 %v855, 8
    %v1037 = vpop.permute.xlu0 %1036
    %1038 = vrot.lane.b32.xlu0 %v856, 8
    %v1039 = vpop.permute.xlu0 %1038
    %1040 = vrot.lane.b32.xlu0 %v857, 8
    %v1041 = vpop.permute.xlu0 %1040
    %1042 = vrot.lane.b32.xlu0 %v858, 8
    %v1043 = vpop.permute.xlu0 %1042
    %1044 = vrot.lane.b32.xlu0 %v859, 8
    %v1045 = vpop.permute.xlu0 %1044
    %1046 = vrot.lane.b32.xlu0 %v860, 8
    %v1047 = vpop.permute.xlu0 %1046
    %1048 = vrot.lane.b32.xlu0 %v861, 8
    %v1049 = vpop.permute.xlu0 %1048
    %1050 = vrot.lane.b32.xlu0 %v862, 8
    %v1051 = vpop.permute.xlu0 %1050
    %1052 = vrot.lane.b32.xlu0 %v863, 8
    %v1053 = vpop.permute.xlu0 %1052
    %1054 = vrot.lane.b32.xlu0 %v864, 8
    %v1055 = vpop.permute.xlu0 %1054
    %1056 = vrot.lane.b32.xlu0 %v865, 8
    %v1057 = vpop.permute.xlu0 %1056
    %vm1122 = vcmask 97344
    %1123 = vst.msk [vmem:[#allocation4] sm:$0xff] %vm1122, %v931
    %1124 = vst.msk [vmem:[#allocation4 + $0x8] sm:$0xff] %vm1122, %v933
    %1125 = vst.msk [vmem:[#allocation4 + $0x10] sm:$0xff] %vm1122, %v935
    %1126 = vst.msk [vmem:[#allocation4 + $0x18] sm:$0xff] %vm1122, %v937
    %1127 = vst.msk [vmem:[#allocation4 + $0x20] sm:$0xff] %vm1122, %v939
    %1128 = vst.msk [vmem:[#allocation4 + $0x28] sm:$0xff] %vm1122, %v941
    %1129 = vst.msk [vmem:[#allocation4 + $0x30] sm:$0xff] %vm1122, %v943
    %1130 = vst.msk [vmem:[#allocation4 + $0x38] sm:$0xff] %vm1122, %v945
    %1131 = vst.msk [vmem:[#allocation4 + $0x40] sm:$0xff] %vm1122, %v947
    %1132 = vst.msk [vmem:[#allocation4 + $0x48] sm:$0xff] %vm1122, %v949
    %1133 = vst.msk [vmem:[#allocation4 + $0x50] sm:$0xff] %vm1122, %v951
    %1134 = vst.msk [vmem:[#allocation4 + $0x58] sm:$0xff] %vm1122, %v953
    %1135 = vst.msk [vmem:[#allocation4 + $0x60] sm:$0xff] %vm1122, %v955
    %1136 = vst.msk [vmem:[#allocation4 + $0x68] sm:$0xff] %vm1122, %v957
    %1137 = vst.msk [vmem:[#allocation4 + $0x70] sm:$0xff] %vm1122, %v959
    %1138 = vst.msk [vmem:[#allocation4 + $0x78] sm:$0xff] %vm1122, %v961
    %1139 = vst.msk [vmem:[#allocation4 + $0x80] sm:$0xff] %vm1122, %v963
    %1140 = vst.msk [vmem:[#allocation4 + $0x88] sm:$0xff] %vm1122, %v965
    %1141 = vst.msk [vmem:[#allocation4 + $0x90] sm:$0xff] %vm1122, %v967
    %1142 = vst.msk [vmem:[#allocation4 + $0x98] sm:$0xff] %vm1122, %v969
    %1143 = vst.msk [vmem:[#allocation4 + $0xa0] sm:$0xff] %vm1122, %v971
    %1144 = vst.msk [vmem:[#allocation4 + $0xa8] sm:$0xff] %vm1122, %v973
    %1145 = vst.msk [vmem:[#allocation4 + $0xb0] sm:$0xff] %vm1122, %v975
    %1146 = vst.msk [vmem:[#allocation4 + $0xb8] sm:$0xff] %vm1122, %v977
    %1147 = vst.msk [vmem:[#allocation4 + $0xc0] sm:$0xff] %vm1122, %v979
    %1148 = vst.msk [vmem:[#allocation4 + $0xc8] sm:$0xff] %vm1122, %v981
    %1149 = vst.msk [vmem:[#allocation4 + $0xd0] sm:$0xff] %vm1122, %v983
    %1150 = vst.msk [vmem:[#allocation4 + $0xd8] sm:$0xff] %vm1122, %v985
    %1151 = vst.msk [vmem:[#allocation4 + $0xe0] sm:$0xff] %vm1122, %v987
    %1152 = vst.msk [vmem:[#allocation4 + $0xe8] sm:$0xff] %vm1122, %v989
    %1153 = vst.msk [vmem:[#allocation4 + $0xf0] sm:$0xff] %vm1122, %v991
    %1154 = vst.msk [vmem:[#allocation4 + $0xf8] sm:$0xff] %vm1122, %v993
    %1155 = vst.msk [vmem:[#allocation4 + $0x100] sm:$0xff] %vm1122, %v995
    %1156 = vst.msk [vmem:[#allocation4 + $0x108] sm:$0xff] %vm1122, %v997
    %1157 = vst.msk [vmem:[#allocation4 + $0x110] sm:$0xff] %vm1122, %v999
    %1158 = vst.msk [vmem:[#allocation4 + $0x118] sm:$0xff] %vm1122, %v1001
    %1159 = vst.msk [vmem:[#allocation4 + $0x120] sm:$0xff] %vm1122, %v1003
    %1160 = vst.msk [vmem:[#allocation4 + $0x128] sm:$0xff] %vm1122, %v1005
    %1161 = vst.msk [vmem:[#allocation4 + $0x130] sm:$0xff] %vm1122, %v1007
    %1162 = vst.msk [vmem:[#allocation4 + $0x138] sm:$0xff] %vm1122, %v1009
    %1163 = vst.msk [vmem:[#allocation4 + $0x140] sm:$0xff] %vm1122, %v1011
    %1164 = vst.msk [vmem:[#allocation4 + $0x148] sm:$0xff] %vm1122, %v1013
    %1165 = vst.msk [vmem:[#allocation4 + $0x150] sm:$0xff] %vm1122, %v1015
    %1166 = vst.msk [vmem:[#allocation4 + $0x158] sm:$0xff] %vm1122, %v1017
    %1167 = vst.msk [vmem:[#allocation4 + $0x160] sm:$0xff] %vm1122, %v1019
    %1168 = vst.msk [vmem:[#allocation4 + $0x168] sm:$0xff] %vm1122, %v1021
    %1169 = vst.msk [vmem:[#allocation4 + $0x170] sm:$0xff] %vm1122, %v1023
    %1170 = vst.msk [vmem:[#allocation4 + $0x178] sm:$0xff] %vm1122, %v1025
    %1171 = vst.msk [vmem:[#allocation4 + $0x180] sm:$0xff] %vm1122, %v1027
    %1172 = vst.msk [vmem:[#allocation4 + $0x188] sm:$0xff] %vm1122, %v1029
    %1173 = vst.msk [vmem:[#allocation4 + $0x190] sm:$0xff] %vm1122, %v1031
    %1174 = vst.msk [vmem:[#allocation4 + $0x198] sm:$0xff] %vm1122, %v1033
    %1175 = vst.msk [vmem:[#allocation4 + $0x1a0] sm:$0xff] %vm1122, %v1035
    %1176 = vst.msk [vmem:[#allocation4 + $0x1a8] sm:$0xff] %vm1122, %v1037
    %1177 = vst.msk [vmem:[#allocation4 + $0x1b0] sm:$0xff] %vm1122, %v1039
    %1178 = vst.msk [vmem:[#allocation4 + $0x1b8] sm:$0xff] %vm1122, %v1041
    %1179 = vst.msk [vmem:[#allocation4 + $0x1c0] sm:$0xff] %vm1122, %v1043
    %1180 = vst.msk [vmem:[#allocation4 + $0x1c8] sm:$0xff] %vm1122, %v1045
    %1181 = vst.msk [vmem:[#allocation4 + $0x1d0] sm:$0xff] %vm1122, %v1047
    %1182 = vst.msk [vmem:[#allocation4 + $0x1d8] sm:$0xff] %vm1122, %v1049
    %1183 = vst.msk [vmem:[#allocation4 + $0x1e0] sm:$0xff] %vm1122, %v1051
    %1184 = vst.msk [vmem:[#allocation4 + $0x1e8] sm:$0xff] %vm1122, %v1053
    %1185 = vst.msk [vmem:[#allocation4 + $0x1f0] sm:$0xff] %vm1122, %v1055
    %1186 = vst.msk [vmem:[#allocation4 + $0x1f8] sm:$0xff] %vm1122, %v1057
    %v1187 = vld [vmem:[%s224] sm:$0xff]
    %v1188 = vld [vmem:[%s224 + $0x8] sm:$0xff]
    %v1189 = vld [vmem:[%s224 + $0x18] sm:$0xff]
    %v1190 = vld [vmem:[%s224 + $0x20] sm:$0xff]
    %v1191 = vld [vmem:[%s224 + $0x30] sm:$0xff]
    %v1192 = vld [vmem:[%s224 + $0x38] sm:$0xff]
    %v1193 = vld [vmem:[%s224 + $0x48] sm:$0xff]
    %v1194 = vld [vmem:[%s224 + $0x50] sm:$0xff]
    %v1195 = vld [vmem:[%s224 + $0x60] sm:$0xff]
    %v1196 = vld [vmem:[%s224 + $0x68] sm:$0xff]
    %v1197 = vld [vmem:[%s224 + $0x78] sm:$0xff]
    %v1198 = vld [vmem:[%s224 + $0x80] sm:$0xff]
    %v1199 = vld [vmem:[%s224 + $0x90] sm:$0xff]
    %v1200 = vld [vmem:[%s224 + $0x98] sm:$0xff]
    %v1201 = vld [vmem:[%s224 + $0xa8] sm:$0xff]
    %v1202 = vld [vmem:[%s224 + $0xb0] sm:$0xff]
    %v1203 = vld [vmem:[%s224 + $0xc0] sm:$0xff]
    %v1204 = vld [vmem:[%s224 + $0xc8] sm:$0xff]
    %v1205 = vld [vmem:[%s224 + $0xd8] sm:$0xff]
    %v1206 = vld [vmem:[%s224 + $0xe0] sm:$0xff]
    %v1207 = vld [vmem:[%s224 + $0xf0] sm:$0xff]
    %v1208 = vld [vmem:[%s224 + $0xf8] sm:$0xff]
    %v1209 = vld [vmem:[%s224 + $0x108] sm:$0xff]
    %v1210 = vld [vmem:[%s224 + $0x110] sm:$0xff]
    %v1211 = vld [vmem:[%s224 + $0x120] sm:$0xff]
    %v1212 = vld [vmem:[%s224 + $0x128] sm:$0xff]
    %v1213 = vld [vmem:[%s224 + $0x138] sm:$0xff]
    %v1214 = vld [vmem:[%s224 + $0x140] sm:$0xff]
    %v1215 = vld [vmem:[%s224 + $0x150] sm:$0xff]
    %v1216 = vld [vmem:[%s224 + $0x158] sm:$0xff]
    %v1217 = vld [vmem:[%s224 + $0x168] sm:$0xff]
    %v1218 = vld [vmem:[%s224 + $0x170] sm:$0xff]
    %v1219 = vld [vmem:[%s224 + $0x1b0] sm:$0xff]
    %v1220 = vld [vmem:[%s224 + $0x1b8] sm:$0xff]
    %v1221 = vld [vmem:[%s224 + $0x1c8] sm:$0xff]
    %v1222 = vld [vmem:[%s224 + $0x1d0] sm:$0xff]
    %v1223 = vld [vmem:[%s224 + $0x1e0] sm:$0xff]
    %v1224 = vld [vmem:[%s224 + $0x1e8] sm:$0xff]
    %v1225 = vld [vmem:[%s224 + $0x1f8] sm:$0xff]
    %v1226 = vld [vmem:[%s224 + $0x200] sm:$0xff]
    %v1227 = vld [vmem:[%s224 + $0x210] sm:$0xff]
    %v1228 = vld [vmem:[%s224 + $0x218] sm:$0xff]
    %v1229 = vld [vmem:[%s224 + $0x228] sm:$0xff]
    %v1230 = vld [vmem:[%s224 + $0x230] sm:$0xff]
    %v1231 = vld [vmem:[%s224 + $0x240] sm:$0xff]
    %v1232 = vld [vmem:[%s224 + $0x248] sm:$0xff]
    %v1233 = vld [vmem:[%s224 + $0x258] sm:$0xff]
    %v1234 = vld [vmem:[%s224 + $0x260] sm:$0xff]
    %v1235 = vld [vmem:[%s224 + $0x270] sm:$0xff]
    %v1236 = vld [vmem:[%s224 + $0x278] sm:$0xff]
    %v1237 = vld [vmem:[%s224 + $0x288] sm:$0xff]
    %v1238 = vld [vmem:[%s224 + $0x290] sm:$0xff]
    %v1239 = vld [vmem:[%s224 + $0x2a0] sm:$0xff]
    %v1240 = vld [vmem:[%s224 + $0x2a8] sm:$0xff]
    %v1241 = vld [vmem:[%s224 + $0x2b8] sm:$0xff]
    %v1242 = vld [vmem:[%s224 + $0x2c0] sm:$0xff]
    %v1243 = vld [vmem:[%s224 + $0x2d0] sm:$0xff]
    %v1244 = vld [vmem:[%s224 + $0x2d8] sm:$0xff]
    %v1245 = vld [vmem:[%s224 + $0x2e8] sm:$0xff]
    %v1246 = vld [vmem:[%s224 + $0x2f0] sm:$0xff]
    %v1247 = vld [vmem:[%s224 + $0x300] sm:$0xff]
    %v1248 = vld [vmem:[%s224 + $0x308] sm:$0xff]
    %v1249 = vld [vmem:[%s224 + $0x318] sm:$0xff]
    %v1250 = vld [vmem:[%s224 + $0x320] sm:$0xff]
    %1315 = vrot.lane.b32.xlu0 %v1187, 12
    %v1316 = vpop.permute.xlu0 %1315
    %1317 = vrot.lane.b32.xlu0 %v1188, 12
    %v1318 = vpop.permute.xlu0 %1317
    %1319 = vrot.lane.b32.xlu0 %v1189, 12
    %v1320 = vpop.permute.xlu0 %1319
    %1321 = vrot.lane.b32.xlu0 %v1190, 12
    %v1322 = vpop.permute.xlu0 %1321
    %1323 = vrot.lane.b32.xlu0 %v1191, 12
    %v1324 = vpop.permute.xlu0 %1323
    %1325 = vrot.lane.b32.xlu0 %v1192, 12
    %v1326 = vpop.permute.xlu0 %1325
    %1327 = vrot.lane.b32.xlu0 %v1193, 12
    %v1328 = vpop.permute.xlu0 %1327
    %1329 = vrot.lane.b32.xlu0 %v1194, 12
    %v1330 = vpop.permute.xlu0 %1329
    %1331 = vrot.lane.b32.xlu0 %v1195, 12
    %v1332 = vpop.permute.xlu0 %1331
    %1333 = vrot.lane.b32.xlu0 %v1196, 12
    %v1334 = vpop.permute.xlu0 %1333
    %1335 = vrot.lane.b32.xlu0 %v1197, 12
    %v1336 = vpop.permute.xlu0 %1335
    %1337 = vrot.lane.b32.xlu0 %v1198, 12
    %v1338 = vpop.permute.xlu0 %1337
    %1339 = vrot.lane.b32.xlu0 %v1199, 12
    %v1340 = vpop.permute.xlu0 %1339
    %1341 = vrot.lane.b32.xlu0 %v1200, 12
    %v1342 = vpop.permute.xlu0 %1341
    %1343 = vrot.lane.b32.xlu0 %v1201, 12
    %v1344 = vpop.permute.xlu0 %1343
    %1345 = vrot.lane.b32.xlu0 %v1202, 12
    %v1346 = vpop.permute.xlu0 %1345
    %1347 = vrot.lane.b32.xlu0 %v1203, 12
    %v1348 = vpop.permute.xlu0 %1347
    %1349 = vrot.lane.b32.xlu0 %v1204, 12
    %v1350 = vpop.permute.xlu0 %1349
    %1351 = vrot.lane.b32.xlu0 %v1205, 12
    %v1352 = vpop.permute.xlu0 %1351
    %1353 = vrot.lane.b32.xlu0 %v1206, 12
    %v1354 = vpop.permute.xlu0 %1353
    %1355 = vrot.lane.b32.xlu0 %v1207, 12
    %v1356 = vpop.permute.xlu0 %1355
    %1357 = vrot.lane.b32.xlu0 %v1208, 12
    %v1358 = vpop.permute.xlu0 %1357
    %1359 = vrot.lane.b32.xlu0 %v1209, 12
    %v1360 = vpop.permute.xlu0 %1359
    %1361 = vrot.lane.b32.xlu0 %v1210, 12
    %v1362 = vpop.permute.xlu0 %1361
    %1363 = vrot.lane.b32.xlu0 %v1211, 12
    %v1364 = vpop.permute.xlu0 %1363
    %1365 = vrot.lane.b32.xlu0 %v1212, 12
    %v1366 = vpop.permute.xlu0 %1365
    %1367 = vrot.lane.b32.xlu0 %v1213, 12
    %v1368 = vpop.permute.xlu0 %1367
    %1369 = vrot.lane.b32.xlu0 %v1214, 12
    %v1370 = vpop.permute.xlu0 %1369
    %1371 = vrot.lane.b32.xlu0 %v1215, 12
    %v1372 = vpop.permute.xlu0 %1371
    %1373 = vrot.lane.b32.xlu0 %v1216, 12
    %v1374 = vpop.permute.xlu0 %1373
    %1375 = vrot.lane.b32.xlu0 %v1217, 12
    %v1376 = vpop.permute.xlu0 %1375
    %1377 = vrot.lane.b32.xlu0 %v1218, 12
    %v1378 = vpop.permute.xlu0 %1377
    %1379 = vrot.lane.b32.xlu0 %v1219, 12
    %v1380 = vpop.permute.xlu0 %1379
    %1381 = vrot.lane.b32.xlu0 %v1220, 12
    %v1382 = vpop.permute.xlu0 %1381
    %1383 = vrot.lane.b32.xlu0 %v1221, 12
    %v1384 = vpop.permute.xlu0 %1383
    %1385 = vrot.lane.b32.xlu0 %v1222, 12
    %v1386 = vpop.permute.xlu0 %1385
    %1387 = vrot.lane.b32.xlu0 %v1223, 12
    %v1388 = vpop.permute.xlu0 %1387
    %1389 = vrot.lane.b32.xlu0 %v1224, 12
    %v1390 = vpop.permute.xlu0 %1389
    %1391 = vrot.lane.b32.xlu0 %v1225, 12
    %v1392 = vpop.permute.xlu0 %1391
    %1393 = vrot.lane.b32.xlu0 %v1226, 12
    %v1394 = vpop.permute.xlu0 %1393
    %1395 = vrot.lane.b32.xlu0 %v1227, 12
    %v1396 = vpop.permute.xlu0 %1395
    %1397 = vrot.lane.b32.xlu0 %v1228, 12
    %v1398 = vpop.permute.xlu0 %1397
    %1399 = vrot.lane.b32.xlu0 %v1229, 12
    %v1400 = vpop.permute.xlu0 %1399
    %1401 = vrot.lane.b32.xlu0 %v1230, 12
    %v1402 = vpop.permute.xlu0 %1401
    %1403 = vrot.lane.b32.xlu0 %v1231, 12
    %v1404 = vpop.permute.xlu0 %1403
    %1405 = vrot.lane.b32.xlu0 %v1232, 12
    %v1406 = vpop.permute.xlu0 %1405
    %1407 = vrot.lane.b32.xlu0 %v1233, 12
    %v1408 = vpop.permute.xlu0 %1407
    %1409 = vrot.lane.b32.xlu0 %v1234, 12
    %v1410 = vpop.permute.xlu0 %1409
    %1411 = vrot.lane.b32.xlu0 %v1235, 12
    %v1412 = vpop.permute.xlu0 %1411
    %1413 = vrot.lane.b32.xlu0 %v1236, 12
    %v1414 = vpop.permute.xlu0 %1413
    %1415 = vrot.lane.b32.xlu0 %v1237, 12
    %v1416 = vpop.permute.xlu0 %1415
    %1417 = vrot.lane.b32.xlu0 %v1238, 12
    %v1418 = vpop.permute.xlu0 %1417
    %1419 = vrot.lane.b32.xlu0 %v1239, 12
    %v1420 = vpop.permute.xlu0 %1419
    %1421 = vrot.lane.b32.xlu0 %v1240, 12
    %v1422 = vpop.permute.xlu0 %1421
    %1423 = vrot.lane.b32.xlu0 %v1241, 12
    %v1424 = vpop.permute.xlu0 %1423
    %1425 = vrot.lane.b32.xlu0 %v1242, 12
    %v1426 = vpop.permute.xlu0 %1425
    %1427 = vrot.lane.b32.xlu0 %v1243, 12
    %v1428 = vpop.permute.xlu0 %1427
    %1429 = vrot.lane.b32.xlu0 %v1244, 12
    %v1430 = vpop.permute.xlu0 %1429
    %1431 = vrot.lane.b32.xlu0 %v1245, 12
    %v1432 = vpop.permute.xlu0 %1431
    %1433 = vrot.lane.b32.xlu0 %v1246, 12
    %v1434 = vpop.permute.xlu0 %1433
    %1435 = vrot.lane.b32.xlu0 %v1247, 12
    %v1436 = vpop.permute.xlu0 %1435
    %1437 = vrot.lane.b32.xlu0 %v1248, 12
    %v1438 = vpop.permute.xlu0 %1437
    %1439 = vrot.lane.b32.xlu0 %v1249, 12
    %v1440 = vpop.permute.xlu0 %1439
    %1441 = vrot.lane.b32.xlu0 %v1250, 12
    %v1442 = vpop.permute.xlu0 %1441
    %vm1507 = vcmask 130144
    %1508 = vst.msk [vmem:[#allocation4] sm:$0xff] %vm1507, %v1316
    %1509 = vst.msk [vmem:[#allocation4 + $0x8] sm:$0xff] %vm1507, %v1318
    %1510 = vst.msk [vmem:[#allocation4 + $0x10] sm:$0xff] %vm1507, %v1320
    %1511 = vst.msk [vmem:[#allocation4 + $0x18] sm:$0xff] %vm1507, %v1322
    %1512 = vst.msk [vmem:[#allocation4 + $0x20] sm:$0xff] %vm1507, %v1324
    %1513 = vst.msk [vmem:[#allocation4 + $0x28] sm:$0xff] %vm1507, %v1326
    %1514 = vst.msk [vmem:[#allocation4 + $0x30] sm:$0xff] %vm1507, %v1328
    %1515 = vst.msk [vmem:[#allocation4 + $0x38] sm:$0xff] %vm1507, %v1330
    %1516 = vst.msk [vmem:[#allocation4 + $0x40] sm:$0xff] %vm1507, %v1332
    %1517 = vst.msk [vmem:[#allocation4 + $0x48] sm:$0xff] %vm1507, %v1334
    %1518 = vst.msk [vmem:[#allocation4 + $0x50] sm:$0xff] %vm1507, %v1336
    %1519 = vst.msk [vmem:[#allocation4 + $0x58] sm:$0xff] %vm1507, %v1338
    %1520 = vst.msk [vmem:[#allocation4 + $0x60] sm:$0xff] %vm1507, %v1340
    %1521 = vst.msk [vmem:[#allocation4 + $0x68] sm:$0xff] %vm1507, %v1342
    %1522 = vst.msk [vmem:[#allocation4 + $0x70] sm:$0xff] %vm1507, %v1344
    %1523 = vst.msk [vmem:[#allocation4 + $0x78] sm:$0xff] %vm1507, %v1346
    %1524 = vst.msk [vmem:[#allocation4 + $0x80] sm:$0xff] %vm1507, %v1348
    %1525 = vst.msk [vmem:[#allocation4 + $0x88] sm:$0xff] %vm1507, %v1350
    %1526 = vst.msk [vmem:[#allocation4 + $0x90] sm:$0xff] %vm1507, %v1352
    %1527 = vst.msk [vmem:[#allocation4 + $0x98] sm:$0xff] %vm1507, %v1354
    %1528 = vst.msk [vmem:[#allocation4 + $0xa0] sm:$0xff] %vm1507, %v1356
    %1529 = vst.msk [vmem:[#allocation4 + $0xa8] sm:$0xff] %vm1507, %v1358
    %1530 = vst.msk [vmem:[#allocation4 + $0xb0] sm:$0xff] %vm1507, %v1360
    %1531 = vst.msk [vmem:[#allocation4 + $0xb8] sm:$0xff] %vm1507, %v1362
    %1532 = vst.msk [vmem:[#allocation4 + $0xc0] sm:$0xff] %vm1507, %v1364
    %1533 = vst.msk [vmem:[#allocation4 + $0xc8] sm:$0xff] %vm1507, %v1366
    %1534 = vst.msk [vmem:[#allocation4 + $0xd0] sm:$0xff] %vm1507, %v1368
    %1535 = vst.msk [vmem:[#allocation4 + $0xd8] sm:$0xff] %vm1507, %v1370
    %1536 = vst.msk [vmem:[#allocation4 + $0xe0] sm:$0xff] %vm1507, %v1372
    %1537 = vst.msk [vmem:[#allocation4 + $0xe8] sm:$0xff] %vm1507, %v1374
    %1538 = vst.msk [vmem:[#allocation4 + $0xf0] sm:$0xff] %vm1507, %v1376
    %1539 = vst.msk [vmem:[#allocation4 + $0xf8] sm:$0xff] %vm1507, %v1378
    %1540 = vst.msk [vmem:[#allocation4 + $0x100] sm:$0xff] %vm1507, %v1380
    %1541 = vst.msk [vmem:[#allocation4 + $0x108] sm:$0xff] %vm1507, %v1382
    %1542 = vst.msk [vmem:[#allocation4 + $0x110] sm:$0xff] %vm1507, %v1384
    %1543 = vst.msk [vmem:[#allocation4 + $0x118] sm:$0xff] %vm1507, %v1386
    %1544 = vst.msk [vmem:[#allocation4 + $0x120] sm:$0xff] %vm1507, %v1388
    %1545 = vst.msk [vmem:[#allocation4 + $0x128] sm:$0xff] %vm1507, %v1390
    %1546 = vst.msk [vmem:[#allocation4 + $0x130] sm:$0xff] %vm1507, %v1392
    %1547 = vst.msk [vmem:[#allocation4 + $0x138] sm:$0xff] %vm1507, %v1394
    %1548 = vst.msk [vmem:[#allocation4 + $0x140] sm:$0xff] %vm1507, %v1396
    %1549 = vst.msk [vmem:[#allocation4 + $0x148] sm:$0xff] %vm1507, %v1398
    %1550 = vst.msk [vmem:[#allocation4 + $0x150] sm:$0xff] %vm1507, %v1400
    %1551 = vst.msk [vmem:[#allocation4 + $0x158] sm:$0xff] %vm1507, %v1402
    %1552 = vst.msk [vmem:[#allocation4 + $0x160] sm:$0xff] %vm1507, %v1404
    %1553 = vst.msk [vmem:[#allocation4 + $0x168] sm:$0xff] %vm1507, %v1406
    %1554 = vst.msk [vmem:[#allocation4 + $0x170] sm:$0xff] %vm1507, %v1408
    %1555 = vst.msk [vmem:[#allocation4 + $0x178] sm:$0xff] %vm1507, %v1410
    %1556 = vst.msk [vmem:[#allocation4 + $0x180] sm:$0xff] %vm1507, %v1412
    %1557 = vst.msk [vmem:[#allocation4 + $0x188] sm:$0xff] %vm1507, %v1414
    %1558 = vst.msk [vmem:[#allocation4 + $0x190] sm:$0xff] %vm1507, %v1416
    %1559 = vst.msk [vmem:[#allocation4 + $0x198] sm:$0xff] %vm1507, %v1418
    %1560 = vst.msk [vmem:[#allocation4 + $0x1a0] sm:$0xff] %vm1507, %v1420
    %1561 = vst.msk [vmem:[#allocation4 + $0x1a8] sm:$0xff] %vm1507, %v1422
    %1562 = vst.msk [vmem:[#allocation4 + $0x1b0] sm:$0xff] %vm1507, %v1424
    %1563 = vst.msk [vmem:[#allocation4 + $0x1b8] sm:$0xff] %vm1507, %v1426
    %1564 = vst.msk [vmem:[#allocation4 + $0x1c0] sm:$0xff] %vm1507, %v1428
    %1565 = vst.msk [vmem:[#allocation4 + $0x1c8] sm:$0xff] %vm1507, %v1430
    %1566 = vst.msk [vmem:[#allocation4 + $0x1d0] sm:$0xff] %vm1507, %v1432
    %1567 = vst.msk [vmem:[#allocation4 + $0x1d8] sm:$0xff] %vm1507, %v1434
    %1568 = vst.msk [vmem:[#allocation4 + $0x1e0] sm:$0xff] %vm1507, %v1436
    %1569 = vst.msk [vmem:[#allocation4 + $0x1e8] sm:$0xff] %vm1507, %v1438
    %1570 = vst.msk [vmem:[#allocation4 + $0x1f0] sm:$0xff] %vm1507, %v1440
    %1571 = vst.msk [vmem:[#allocation4 + $0x1f8] sm:$0xff] %vm1507, %v1442
    %v1572 = vld [vmem:[%s224 + $0x1] sm:$0xff]
    %v1573 = vld [vmem:[%s224 + $0x9] sm:$0xff]
    %v1574 = vld [vmem:[%s224 + $0x19] sm:$0xff]
    %v1575 = vld [vmem:[%s224 + $0x21] sm:$0xff]
    %v1576 = vld [vmem:[%s224 + $0x31] sm:$0xff]
    %v1577 = vld [vmem:[%s224 + $0x39] sm:$0xff]
    %v1578 = vld [vmem:[%s224 + $0x49] sm:$0xff]
    %v1579 = vld [vmem:[%s224 + $0x51] sm:$0xff]
    %v1580 = vld [vmem:[%s224 + $0x61] sm:$0xff]
    %v1581 = vld [vmem:[%s224 + $0x69] sm:$0xff]
    %v1582 = vld [vmem:[%s224 + $0x79] sm:$0xff]
    %v1583 = vld [vmem:[%s224 + $0x81] sm:$0xff]
    %v1584 = vld [vmem:[%s224 + $0x91] sm:$0xff]
    %v1585 = vld [vmem:[%s224 + $0x99] sm:$0xff]
    %v1586 = vld [vmem:[%s224 + $0xa9] sm:$0xff]
    %v1587 = vld [vmem:[%s224 + $0xb1] sm:$0xff]
    %v1588 = vld [vmem:[%s224 + $0xc1] sm:$0xff]
    %v1589 = vld [vmem:[%s224 + $0xc9] sm:$0xff]
    %v1590 = vld [vmem:[%s224 + $0xd9] sm:$0xff]
    %v1591 = vld [vmem:[%s224 + $0xe1] sm:$0xff]
    %v1592 = vld [vmem:[%s224 + $0xf1] sm:$0xff]
    %v1593 = vld [vmem:[%s224 + $0xf9] sm:$0xff]
    %v1594 = vld [vmem:[%s224 + $0x109] sm:$0xff]
    %v1595 = vld [vmem:[%s224 + $0x111] sm:$0xff]
    %v1596 = vld [vmem:[%s224 + $0x121] sm:$0xff]
    %v1597 = vld [vmem:[%s224 + $0x129] sm:$0xff]
    %v1598 = vld [vmem:[%s224 + $0x139] sm:$0xff]
    %v1599 = vld [vmem:[%s224 + $0x141] sm:$0xff]
    %v1600 = vld [vmem:[%s224 + $0x151] sm:$0xff]
    %v1601 = vld [vmem:[%s224 + $0x159] sm:$0xff]
    %v1602 = vld [vmem:[%s224 + $0x169] sm:$0xff]
    %v1603 = vld [vmem:[%s224 + $0x171] sm:$0xff]
    %v1604 = vld [vmem:[%s224 + $0x1b1] sm:$0xff]
    %v1605 = vld [vmem:[%s224 + $0x1b9] sm:$0xff]
    %v1606 = vld [vmem:[%s224 + $0x1c9] sm:$0xff]
    %v1607 = vld [vmem:[%s224 + $0x1d1] sm:$0xff]
    %v1608 = vld [vmem:[%s224 + $0x1e1] sm:$0xff]
    %v1609 = vld [vmem:[%s224 + $0x1e9] sm:$0xff]
    %v1610 = vld [vmem:[%s224 + $0x1f9] sm:$0xff]
    %v1611 = vld [vmem:[%s224 + $0x201] sm:$0xff]
    %v1612 = vld [vmem:[%s224 + $0x211] sm:$0xff]
    %v1613 = vld [vmem:[%s224 + $0x219] sm:$0xff]
    %v1614 = vld [vmem:[%s224 + $0x229] sm:$0xff]
    %v1615 = vld [vmem:[%s224 + $0x231] sm:$0xff]
    %v1616 = vld [vmem:[%s224 + $0x241] sm:$0xff]
    %v1617 = vld [vmem:[%s224 + $0x249] sm:$0xff]
    %v1618 = vld [vmem:[%s224 + $0x259] sm:$0xff]
    %v1619 = vld [vmem:[%s224 + $0x261] sm:$0xff]
    %v1620 = vld [vmem:[%s224 + $0x271] sm:$0xff]
    %v1621 = vld [vmem:[%s224 + $0x279] sm:$0xff]
    %v1622 = vld [vmem:[%s224 + $0x289] sm:$0xff]
    %v1623 = vld [vmem:[%s224 + $0x291] sm:$0xff]
    %v1624 = vld [vmem:[%s224 + $0x2a1] sm:$0xff]
    %v1625 = vld [vmem:[%s224 + $0x2a9] sm:$0xff]
    %v1626 = vld [vmem:[%s224 + $0x2b9] sm:$0xff]
    %v1627 = vld [vmem:[%s224 + $0x2c1] sm:$0xff]
    %v1628 = vld [vmem:[%s224 + $0x2d1] sm:$0xff]
    %v1629 = vld [vmem:[%s224 + $0x2d9] sm:$0xff]
    %v1630 = vld [vmem:[%s224 + $0x2e9] sm:$0xff]
    %v1631 = vld [vmem:[%s224 + $0x2f1] sm:$0xff]
    %v1632 = vld [vmem:[%s224 + $0x301] sm:$0xff]
    %v1633 = vld [vmem:[%s224 + $0x309] sm:$0xff]
    %v1634 = vld [vmem:[%s224 + $0x319] sm:$0xff]
    %v1635 = vld [vmem:[%s224 + $0x321] sm:$0xff]
    %1700 = vrot.lane.b32.xlu0 %v1572, 16
    %v1701 = vpop.permute.xlu0 %1700
    %1702 = vrot.lane.b32.xlu0 %v1573, 16
    %v1703 = vpop.permute.xlu0 %1702
    %1704 = vrot.lane.b32.xlu0 %v1574, 16
    %v1705 = vpop.permute.xlu0 %1704
    %1706 = vrot.lane.b32.xlu0 %v1575, 16
    %v1707 = vpop.permute.xlu0 %1706
    %1708 = vrot.lane.b32.xlu0 %v1576, 16
    %v1709 = vpop.permute.xlu0 %1708
    %1710 = vrot.lane.b32.xlu0 %v1577, 16
    %v1711 = vpop.permute.xlu0 %1710
    %1712 = vrot.lane.b32.xlu0 %v1578, 16
    %v1713 = vpop.permute.xlu0 %1712
    %1714 = vrot.lane.b32.xlu0 %v1579, 16
    %v1715 = vpop.permute.xlu0 %1714
    %1716 = vrot.lane.b32.xlu0 %v1580, 16
    %v1717 = vpop.permute.xlu0 %1716
    %1718 = vrot.lane.b32.xlu0 %v1581, 16
    %v1719 = vpop.permute.xlu0 %1718
    %1720 = vrot.lane.b32.xlu0 %v1582, 16
    %v1721 = vpop.permute.xlu0 %1720
    %1722 = vrot.lane.b32.xlu0 %v1583, 16
    %v1723 = vpop.permute.xlu0 %1722
    %1724 = vrot.lane.b32.xlu0 %v1584, 16
    %v1725 = vpop.permute.xlu0 %1724
    %1726 = vrot.lane.b32.xlu0 %v1585, 16
    %v1727 = vpop.permute.xlu0 %1726
    %1728 = vrot.lane.b32.xlu0 %v1586, 16
    %v1729 = vpop.permute.xlu0 %1728
    %1730 = vrot.lane.b32.xlu0 %v1587, 16
    %v1731 = vpop.permute.xlu0 %1730
    %1732 = vrot.lane.b32.xlu0 %v1588, 16
    %v1733 = vpop.permute.xlu0 %1732
    %1734 = vrot.lane.b32.xlu0 %v1589, 16
    %v1735 = vpop.permute.xlu0 %1734
    %1736 = vrot.lane.b32.xlu0 %v1590, 16
    %v1737 = vpop.permute.xlu0 %1736
    %1738 = vrot.lane.b32.xlu0 %v1591, 16
    %v1739 = vpop.permute.xlu0 %1738
    %1740 = vrot.lane.b32.xlu0 %v1592, 16
    %v1741 = vpop.permute.xlu0 %1740
    %1742 = vrot.lane.b32.xlu0 %v1593, 16
    %v1743 = vpop.permute.xlu0 %1742
    %1744 = vrot.lane.b32.xlu0 %v1594, 16
    %v1745 = vpop.permute.xlu0 %1744
    %1746 = vrot.lane.b32.xlu0 %v1595, 16
    %v1747 = vpop.permute.xlu0 %1746
    %1748 = vrot.lane.b32.xlu0 %v1596, 16
    %v1749 = vpop.permute.xlu0 %1748
    %1750 = vrot.lane.b32.xlu0 %v1597, 16
    %v1751 = vpop.permute.xlu0 %1750
    %1752 = vrot.lane.b32.xlu0 %v1598, 16
    %v1753 = vpop.permute.xlu0 %1752
    %1754 = vrot.lane.b32.xlu0 %v1599, 16
    %v1755 = vpop.permute.xlu0 %1754
    %1756 = vrot.lane.b32.xlu0 %v1600, 16
    %v1757 = vpop.permute.xlu0 %1756
    %1758 = vrot.lane.b32.xlu0 %v1601, 16
    %v1759 = vpop.permute.xlu0 %1758
    %1760 = vrot.lane.b32.xlu0 %v1602, 16
    %v1761 = vpop.permute.xlu0 %1760
    %1762 = vrot.lane.b32.xlu0 %v1603, 16
    %v1763 = vpop.permute.xlu0 %1762
    %1764 = vrot.lane.b32.xlu0 %v1604, 16
    %v1765 = vpop.permute.xlu0 %1764
    %1766 = vrot.lane.b32.xlu0 %v1605, 16
    %v1767 = vpop.permute.xlu0 %1766
    %1768 = vrot.lane.b32.xlu0 %v1606, 16
    %v1769 = vpop.permute.xlu0 %1768
    %1770 = vrot.lane.b32.xlu0 %v1607, 16
    %v1771 = vpop.permute.xlu0 %1770
    %1772 = vrot.lane.b32.xlu0 %v1608, 16
    %v1773 = vpop.permute.xlu0 %1772
    %1774 = vrot.lane.b32.xlu0 %v1609, 16
    %v1775 = vpop.permute.xlu0 %1774
    %1776 = vrot.lane.b32.xlu0 %v1610, 16
    %v1777 = vpop.permute.xlu0 %1776
    %1778 = vrot.lane.b32.xlu0 %v1611, 16
    %v1779 = vpop.permute.xlu0 %1778
    %1780 = vrot.lane.b32.xlu0 %v1612, 16
    %v1781 = vpop.permute.xlu0 %1780
    %1782 = vrot.lane.b32.xlu0 %v1613, 16
    %v1783 = vpop.permute.xlu0 %1782
    %1784 = vrot.lane.b32.xlu0 %v1614, 16
    %v1785 = vpop.permute.xlu0 %1784
    %1786 = vrot.lane.b32.xlu0 %v1615, 16
    %v1787 = vpop.permute.xlu0 %1786
    %1788 = vrot.lane.b32.xlu0 %v1616, 16
    %v1789 = vpop.permute.xlu0 %1788
    %1790 = vrot.lane.b32.xlu0 %v1617, 16
    %v1791 = vpop.permute.xlu0 %1790
    %1792 = vrot.lane.b32.xlu0 %v1618, 16
    %v1793 = vpop.permute.xlu0 %1792
    %1794 = vrot.lane.b32.xlu0 %v1619, 16
    %v1795 = vpop.permute.xlu0 %1794
    %1796 = vrot.lane.b32.xlu0 %v1620, 16
    %v1797 = vpop.permute.xlu0 %1796
    %1798 = vrot.lane.b32.xlu0 %v1621, 16
    %v1799 = vpop.permute.xlu0 %1798
    %1800 = vrot.lane.b32.xlu0 %v1622, 16
    %v1801 = vpop.permute.xlu0 %1800
    %1802 = vrot.lane.b32.xlu0 %v1623, 16
    %v1803 = vpop.permute.xlu0 %1802
    %1804 = vrot.lane.b32.xlu0 %v1624, 16
    %v1805 = vpop.permute.xlu0 %1804
    %1806 = vrot.lane.b32.xlu0 %v1625, 16
    %v1807 = vpop.permute.xlu0 %1806
    %1808 = vrot.lane.b32.xlu0 %v1626, 16
    %v1809 = vpop.permute.xlu0 %1808
    %1810 = vrot.lane.b32.xlu0 %v1627, 16
    %v1811 = vpop.permute.xlu0 %1810
    %1812 = vrot.lane.b32.xlu0 %v1628, 16
    %v1813 = vpop.permute.xlu0 %1812
    %1814 = vrot.lane.b32.xlu0 %v1629, 16
    %v1815 = vpop.permute.xlu0 %1814
    %1816 = vrot.lane.b32.xlu0 %v1630, 16
    %v1817 = vpop.permute.xlu0 %1816
    %1818 = vrot.lane.b32.xlu0 %v1631, 16
    %v1819 = vpop.permute.xlu0 %1818
    %1820 = vrot.lane.b32.xlu0 %v1632, 16
    %v1821 = vpop.permute.xlu0 %1820
    %1822 = vrot.lane.b32.xlu0 %v1633, 16
    %v1823 = vpop.permute.xlu0 %1822
    %1824 = vrot.lane.b32.xlu0 %v1634, 16
    %v1825 = vpop.permute.xlu0 %1824
    %1826 = vrot.lane.b32.xlu0 %v1635, 16
    %v1827 = vpop.permute.xlu0 %1826
    %vm1892 = vcmask 162944
    %1893 = vst.msk [vmem:[#allocation4] sm:$0xff] %vm1892, %v1701
    %1894 = vst.msk [vmem:[#allocation4 + $0x8] sm:$0xff] %vm1892, %v1703
    %1895 = vst.msk [vmem:[#allocation4 + $0x10] sm:$0xff] %vm1892, %v1705
    %1896 = vst.msk [vmem:[#allocation4 + $0x18] sm:$0xff] %vm1892, %v1707
    %1897 = vst.msk [vmem:[#allocation4 + $0x20] sm:$0xff] %vm1892, %v1709
    %1898 = vst.msk [vmem:[#allocation4 + $0x28] sm:$0xff] %vm1892, %v1711
    %1899 = vst.msk [vmem:[#allocation4 + $0x30] sm:$0xff] %vm1892, %v1713
    %1900 = vst.msk [vmem:[#allocation4 + $0x38] sm:$0xff] %vm1892, %v1715
    %1901 = vst.msk [vmem:[#allocation4 + $0x40] sm:$0xff] %vm1892, %v1717
    %1902 = vst.msk [vmem:[#allocation4 + $0x48] sm:$0xff] %vm1892, %v1719
    %1903 = vst.msk [vmem:[#allocation4 + $0x50] sm:$0xff] %vm1892, %v1721
    %1904 = vst.msk [vmem:[#allocation4 + $0x58] sm:$0xff] %vm1892, %v1723
    %1905 = vst.msk [vmem:[#allocation4 + $0x60] sm:$0xff] %vm1892, %v1725
    %1906 = vst.msk [vmem:[#allocation4 + $0x68] sm:$0xff] %vm1892, %v1727
    %1907 = vst.msk [vmem:[#allocation4 + $0x70] sm:$0xff] %vm1892, %v1729
    %1908 = vst.msk [vmem:[#allocation4 + $0x78] sm:$0xff] %vm1892, %v1731
    %1909 = vst.msk [vmem:[#allocation4 + $0x80] sm:$0xff] %vm1892, %v1733
    %1910 = vst.msk [vmem:[#allocation4 + $0x88] sm:$0xff] %vm1892, %v1735
    %1911 = vst.msk [vmem:[#allocation4 + $0x90] sm:$0xff] %vm1892, %v1737
    %1912 = vst.msk [vmem:[#allocation4 + $0x98] sm:$0xff] %vm1892, %v1739
    %1913 = vst.msk [vmem:[#allocation4 + $0xa0] sm:$0xff] %vm1892, %v1741
    %1914 = vst.msk [vmem:[#allocation4 + $0xa8] sm:$0xff] %vm1892, %v1743
    %1915 = vst.msk [vmem:[#allocation4 + $0xb0] sm:$0xff] %vm1892, %v1745
    %1916 = vst.msk [vmem:[#allocation4 + $0xb8] sm:$0xff] %vm1892, %v1747
    %1917 = vst.msk [vmem:[#allocation4 + $0xc0] sm:$0xff] %vm1892, %v1749
    %1918 = vst.msk [vmem:[#allocation4 + $0xc8] sm:$0xff] %vm1892, %v1751
    %1919 = vst.msk [vmem:[#allocation4 + $0xd0] sm:$0xff] %vm1892, %v1753
    %1920 = vst.msk [vmem:[#allocation4 + $0xd8] sm:$0xff] %vm1892, %v1755
    %1921 = vst.msk [vmem:[#allocation4 + $0xe0] sm:$0xff] %vm1892, %v1757
    %1922 = vst.msk [vmem:[#allocation4 + $0xe8] sm:$0xff] %vm1892, %v1759
    %1923 = vst.msk [vmem:[#allocation4 + $0xf0] sm:$0xff] %vm1892, %v1761
    %1924 = vst.msk [vmem:[#allocation4 + $0xf8] sm:$0xff] %vm1892, %v1763
    %1925 = vst.msk [vmem:[#allocation4 + $0x100] sm:$0xff] %vm1892, %v1765
    %1926 = vst.msk [vmem:[#allocation4 + $0x108] sm:$0xff] %vm1892, %v1767
    %1927 = vst.msk [vmem:[#allocation4 + $0x110] sm:$0xff] %vm1892, %v1769
    %1928 = vst.msk [vmem:[#allocation4 + $0x118] sm:$0xff] %vm1892, %v1771
    %1929 = vst.msk [vmem:[#allocation4 + $0x120] sm:$0xff] %vm1892, %v1773
    %1930 = vst.msk [vmem:[#allocation4 + $0x128] sm:$0xff] %vm1892, %v1775
    %1931 = vst.msk [vmem:[#allocation4 + $0x130] sm:$0xff] %vm1892, %v1777
    %1932 = vst.msk [vmem:[#allocation4 + $0x138] sm:$0xff] %vm1892, %v1779
    %1933 = vst.msk [vmem:[#allocation4 + $0x140] sm:$0xff] %vm1892, %v1781
    %1934 = vst.msk [vmem:[#allocation4 + $0x148] sm:$0xff] %vm1892, %v1783
    %1935 = vst.msk [vmem:[#allocation4 + $0x150] sm:$0xff] %vm1892, %v1785
    %1936 = vst.msk [vmem:[#allocation4 + $0x158] sm:$0xff] %vm1892, %v1787
    %1937 = vst.msk [vmem:[#allocation4 + $0x160] sm:$0xff] %vm1892, %v1789
    %1938 = vst.msk [vmem:[#allocation4 + $0x168] sm:$0xff] %vm1892, %v1791
    %1939 = vst.msk [vmem:[#allocation4 + $0x170] sm:$0xff] %vm1892, %v1793
    %1940 = vst.msk [vmem:[#allocation4 + $0x178] sm:$0xff] %vm1892, %v1795
    %1941 = vst.msk [vmem:[#allocation4 + $0x180] sm:$0xff] %vm1892, %v1797
    %1942 = vst.msk [vmem:[#allocation4 + $0x188] sm:$0xff] %vm1892, %v1799
    %1943 = vst.msk [vmem:[#allocation4 + $0x190] sm:$0xff] %vm1892, %v1801
    %1944 = vst.msk [vmem:[#allocation4 + $0x198] sm:$0xff] %vm1892, %v1803
    %1945 = vst.msk [vmem:[#allocation4 + $0x1a0] sm:$0xff] %vm1892, %v1805
    %1946 = vst.msk [vmem:[#allocation4 + $0x1a8] sm:$0xff] %vm1892, %v1807
    %1947 = vst.msk [vmem:[#allocation4 + $0x1b0] sm:$0xff] %vm1892, %v1809
    %1948 = vst.msk [vmem:[#allocation4 + $0x1b8] sm:$0xff] %vm1892, %v1811
    %1949 = vst.msk [vmem:[#allocation4 + $0x1c0] sm:$0xff] %vm1892, %v1813
    %1950 = vst.msk [vmem:[#allocation4 + $0x1c8] sm:$0xff] %vm1892, %v1815
    %1951 = vst.msk [vmem:[#allocation4 + $0x1d0] sm:$0xff] %vm1892, %v1817
    %1952 = vst.msk [vmem:[#allocation4 + $0x1d8] sm:$0xff] %vm1892, %v1819
    %1953 = vst.msk [vmem:[#allocation4 + $0x1e0] sm:$0xff] %vm1892, %v1821
    %1954 = vst.msk [vmem:[#allocation4 + $0x1e8] sm:$0xff] %vm1892, %v1823
    %1955 = vst.msk [vmem:[#allocation4 + $0x1f0] sm:$0xff] %vm1892, %v1825
    %1956 = vst.msk [vmem:[#allocation4 + $0x1f8] sm:$0xff] %vm1892, %v1827
    %v1957 = vld [vmem:[%s224 + $0x2] sm:$0xff]
    %v1958 = vld [vmem:[%s224 + $0xa] sm:$0xff]
    %v1959 = vld [vmem:[%s224 + $0x1a] sm:$0xff]
    %v1960 = vld [vmem:[%s224 + $0x22] sm:$0xff]
    %v1961 = vld [vmem:[%s224 + $0x32] sm:$0xff]
    %v1962 = vld [vmem:[%s224 + $0x3a] sm:$0xff]
    %v1963 = vld [vmem:[%s224 + $0x4a] sm:$0xff]
    %v1964 = vld [vmem:[%s224 + $0x52] sm:$0xff]
    %v1965 = vld [vmem:[%s224 + $0x62] sm:$0xff]
    %v1966 = vld [vmem:[%s224 + $0x6a] sm:$0xff]
    %v1967 = vld [vmem:[%s224 + $0x7a] sm:$0xff]
    %v1968 = vld [vmem:[%s224 + $0x82] sm:$0xff]
    %v1969 = vld [vmem:[%s224 + $0x92] sm:$0xff]
    %v1970 = vld [vmem:[%s224 + $0x9a] sm:$0xff]
    %v1971 = vld [vmem:[%s224 + $0xaa] sm:$0xff]
    %v1972 = vld [vmem:[%s224 + $0xb2] sm:$0xff]
    %v1973 = vld [vmem:[%s224 + $0xc2] sm:$0xff]
    %v1974 = vld [vmem:[%s224 + $0xca] sm:$0xff]
    %v1975 = vld [vmem:[%s224 + $0xda] sm:$0xff]
    %v1976 = vld [vmem:[%s224 + $0xe2] sm:$0xff]
    %v1977 = vld [vmem:[%s224 + $0xf2] sm:$0xff]
    %v1978 = vld [vmem:[%s224 + $0xfa] sm:$0xff]
    %v1979 = vld [vmem:[%s224 + $0x10a] sm:$0xff]
    %v1980 = vld [vmem:[%s224 + $0x112] sm:$0xff]
    %v1981 = vld [vmem:[%s224 + $0x122] sm:$0xff]
    %v1982 = vld [vmem:[%s224 + $0x12a] sm:$0xff]
    %v1983 = vld [vmem:[%s224 + $0x13a] sm:$0xff]
    %v1984 = vld [vmem:[%s224 + $0x142] sm:$0xff]
    %v1985 = vld [vmem:[%s224 + $0x152] sm:$0xff]
    %v1986 = vld [vmem:[%s224 + $0x15a] sm:$0xff]
    %v1987 = vld [vmem:[%s224 + $0x16a] sm:$0xff]
    %v1988 = vld [vmem:[%s224 + $0x172] sm:$0xff]
    %v1989 = vld [vmem:[%s224 + $0x1b2] sm:$0xff]
    %v1990 = vld [vmem:[%s224 + $0x1ba] sm:$0xff]
    %v1991 = vld [vmem:[%s224 + $0x1ca] sm:$0xff]
    %v1992 = vld [vmem:[%s224 + $0x1d2] sm:$0xff]
    %v1993 = vld [vmem:[%s224 + $0x1e2] sm:$0xff]
    %v1994 = vld [vmem:[%s224 + $0x1ea] sm:$0xff]
    %v1995 = vld [vmem:[%s224 + $0x1fa] sm:$0xff]
    %v1996 = vld [vmem:[%s224 + $0x202] sm:$0xff]
    %v1997 = vld [vmem:[%s224 + $0x212] sm:$0xff]
    %v1998 = vld [vmem:[%s224 + $0x21a] sm:$0xff]
    %v1999 = vld [vmem:[%s224 + $0x22a] sm:$0xff]
    %v2000 = vld [vmem:[%s224 + $0x232] sm:$0xff]
    %v2001 = vld [vmem:[%s224 + $0x242] sm:$0xff]
    %v2002 = vld [vmem:[%s224 + $0x24a] sm:$0xff]
    %v2003 = vld [vmem:[%s224 + $0x25a] sm:$0xff]
    %v2004 = vld [vmem:[%s224 + $0x262] sm:$0xff]
    %v2005 = vld [vmem:[%s224 + $0x272] sm:$0xff]
    %v2006 = vld [vmem:[%s224 + $0x27a] sm:$0xff]
    %v2007 = vld [vmem:[%s224 + $0x28a] sm:$0xff]
    %v2008 = vld [vmem:[%s224 + $0x292] sm:$0xff]
    %v2009 = vld [vmem:[%s224 + $0x2a2] sm:$0xff]
    %v2010 = vld [vmem:[%s224 + $0x2aa] sm:$0xff]
    %v2011 = vld [vmem:[%s224 + $0x2ba] sm:$0xff]
    %v2012 = vld [vmem:[%s224 + $0x2c2] sm:$0xff]
    %v2013 = vld [vmem:[%s224 + $0x2d2] sm:$0xff]
    %v2014 = vld [vmem:[%s224 + $0x2da] sm:$0xff]
    %v2015 = vld [vmem:[%s224 + $0x2ea] sm:$0xff]
    %v2016 = vld [vmem:[%s224 + $0x2f2] sm:$0xff]
    %v2017 = vld [vmem:[%s224 + $0x302] sm:$0xff]
    %v2018 = vld [vmem:[%s224 + $0x30a] sm:$0xff]
    %v2019 = vld [vmem:[%s224 + $0x31a] sm:$0xff]
    %v2020 = vld [vmem:[%s224 + $0x322] sm:$0xff]
    %2085 = vrot.lane.b32.xlu0 %v1957, 20
    %v2086 = vpop.permute.xlu0 %2085
    %2087 = vrot.lane.b32.xlu0 %v1958, 20
    %v2088 = vpop.permute.xlu0 %2087
    %2089 = vrot.lane.b32.xlu0 %v1959, 20
    %v2090 = vpop.permute.xlu0 %2089
    %2091 = vrot.lane.b32.xlu0 %v1960, 20
    %v2092 = vpop.permute.xlu0 %2091
    %2093 = vrot.lane.b32.xlu0 %v1961, 20
    %v2094 = vpop.permute.xlu0 %2093
    %2095 = vrot.lane.b32.xlu0 %v1962, 20
    %v2096 = vpop.permute.xlu0 %2095
    %2097 = vrot.lane.b32.xlu0 %v1963, 20
    %v2098 = vpop.permute.xlu0 %2097
    %2099 = vrot.lane.b32.xlu0 %v1964, 20
    %v2100 = vpop.permute.xlu0 %2099
    %2101 = vrot.lane.b32.xlu0 %v1965, 20
    %v2102 = vpop.permute.xlu0 %2101
    %2103 = vrot.lane.b32.xlu0 %v1966, 20
    %v2104 = vpop.permute.xlu0 %2103
    %2105 = vrot.lane.b32.xlu0 %v1967, 20
    %v2106 = vpop.permute.xlu0 %2105
    %2107 = vrot.lane.b32.xlu0 %v1968, 20
    %v2108 = vpop.permute.xlu0 %2107
    %2109 = vrot.lane.b32.xlu0 %v1969, 20
    %v2110 = vpop.permute.xlu0 %2109
    %2111 = vrot.lane.b32.xlu0 %v1970, 20
    %v2112 = vpop.permute.xlu0 %2111
    %2113 = vrot.lane.b32.xlu0 %v1971, 20
    %v2114 = vpop.permute.xlu0 %2113
    %2115 = vrot.lane.b32.xlu0 %v1972, 20
    %v2116 = vpop.permute.xlu0 %2115
    %2117 = vrot.lane.b32.xlu0 %v1973, 20
    %v2118 = vpop.permute.xlu0 %2117
    %2119 = vrot.lane.b32.xlu0 %v1974, 20
    %v2120 = vpop.permute.xlu0 %2119
    %2121 = vrot.lane.b32.xlu0 %v1975, 20
    %v2122 = vpop.permute.xlu0 %2121
    %2123 = vrot.lane.b32.xlu0 %v1976, 20
    %v2124 = vpop.permute.xlu0 %2123
    %2125 = vrot.lane.b32.xlu0 %v1977, 20
    %v2126 = vpop.permute.xlu0 %2125
    %2127 = vrot.lane.b32.xlu0 %v1978, 20
    %v2128 = vpop.permute.xlu0 %2127
    %2129 = vrot.lane.b32.xlu0 %v1979, 20
    %v2130 = vpop.permute.xlu0 %2129
    %2131 = vrot.lane.b32.xlu0 %v1980, 20
    %v2132 = vpop.permute.xlu0 %2131
    %2133 = vrot.lane.b32.xlu0 %v1981, 20
    %v2134 = vpop.permute.xlu0 %2133
    %2135 = vrot.lane.b32.xlu0 %v1982, 20
    %v2136 = vpop.permute.xlu0 %2135
    %2137 = vrot.lane.b32.xlu0 %v1983, 20
    %v2138 = vpop.permute.xlu0 %2137
    %2139 = vrot.lane.b32.xlu0 %v1984, 20
    %v2140 = vpop.permute.xlu0 %2139
    %2141 = vrot.lane.b32.xlu0 %v1985, 20
    %v2142 = vpop.permute.xlu0 %2141
    %2143 = vrot.lane.b32.xlu0 %v1986, 20
    %v2144 = vpop.permute.xlu0 %2143
    %2145 = vrot.lane.b32.xlu0 %v1987, 20
    %v2146 = vpop.permute.xlu0 %2145
    %2147 = vrot.lane.b32.xlu0 %v1988, 20
    %v2148 = vpop.permute.xlu0 %2147
    %2149 = vrot.lane.b32.xlu0 %v1989, 20
    %v2150 = vpop.permute.xlu0 %2149
    %2151 = vrot.lane.b32.xlu0 %v1990, 20
    %v2152 = vpop.permute.xlu0 %2151
    %2153 = vrot.lane.b32.xlu0 %v1991, 20
    %v2154 = vpop.permute.xlu0 %2153
    %2155 = vrot.lane.b32.xlu0 %v1992, 20
    %v2156 = vpop.permute.xlu0 %2155
    %2157 = vrot.lane.b32.xlu0 %v1993, 20
    %v2158 = vpop.permute.xlu0 %2157
    %2159 = vrot.lane.b32.xlu0 %v1994, 20
    %v2160 = vpop.permute.xlu0 %2159
    %2161 = vrot.lane.b32.xlu0 %v1995, 20
    %v2162 = vpop.permute.xlu0 %2161
    %2163 = vrot.lane.b32.xlu0 %v1996, 20
    %v2164 = vpop.permute.xlu0 %2163
    %2165 = vrot.lane.b32.xlu0 %v1997, 20
    %v2166 = vpop.permute.xlu0 %2165
    %2167 = vrot.lane.b32.xlu0 %v1998, 20
    %v2168 = vpop.permute.xlu0 %2167
    %2169 = vrot.lane.b32.xlu0 %v1999, 20
    %v2170 = vpop.permute.xlu0 %2169
    %2171 = vrot.lane.b32.xlu0 %v2000, 20
    %v2172 = vpop.permute.xlu0 %2171
    %2173 = vrot.lane.b32.xlu0 %v2001, 20
    %v2174 = vpop.permute.xlu0 %2173
    %2175 = vrot.lane.b32.xlu0 %v2002, 20
    %v2176 = vpop.permute.xlu0 %2175
    %2177 = vrot.lane.b32.xlu0 %v2003, 20
    %v2178 = vpop.permute.xlu0 %2177
    %2179 = vrot.lane.b32.xlu0 %v2004, 20
    %v2180 = vpop.permute.xlu0 %2179
    %2181 = vrot.lane.b32.xlu0 %v2005, 20
    %v2182 = vpop.permute.xlu0 %2181
    %2183 = vrot.lane.b32.xlu0 %v2006, 20
    %v2184 = vpop.permute.xlu0 %2183
    %2185 = vrot.lane.b32.xlu0 %v2007, 20
    %v2186 = vpop.permute.xlu0 %2185
    %2187 = vrot.lane.b32.xlu0 %v2008, 20
    %v2188 = vpop.permute.xlu0 %2187
    %2189 = vrot.lane.b32.xlu0 %v2009, 20
    %v2190 = vpop.permute.xlu0 %2189
    %2191 = vrot.lane.b32.xlu0 %v2010, 20
    %v2192 = vpop.permute.xlu0 %2191
    %2193 = vrot.lane.b32.xlu0 %v2011, 20
    %v2194 = vpop.permute.xlu0 %2193
    %2195 = vrot.lane.b32.xlu0 %v2012, 20
    %v2196 = vpop.permute.xlu0 %2195
    %2197 = vrot.lane.b32.xlu0 %v2013, 20
    %v2198 = vpop.permute.xlu0 %2197
    %2199 = vrot.lane.b32.xlu0 %v2014, 20
    %v2200 = vpop.permute.xlu0 %2199
    %2201 = vrot.lane.b32.xlu0 %v2015, 20
    %v2202 = vpop.permute.xlu0 %2201
    %2203 = vrot.lane.b32.xlu0 %v2016, 20
    %v2204 = vpop.permute.xlu0 %2203
    %2205 = vrot.lane.b32.xlu0 %v2017, 20
    %v2206 = vpop.permute.xlu0 %2205
    %2207 = vrot.lane.b32.xlu0 %v2018, 20
    %v2208 = vpop.permute.xlu0 %2207
    %2209 = vrot.lane.b32.xlu0 %v2019, 20
    %v2210 = vpop.permute.xlu0 %2209
    %2211 = vrot.lane.b32.xlu0 %v2020, 20
    %v2212 = vpop.permute.xlu0 %2211
    %vm2277 = vcmask 195744
    %2278 = vst.msk [vmem:[#allocation4] sm:$0xff] %vm2277, %v2086
    %2279 = vst.msk [vmem:[#allocation4 + $0x8] sm:$0xff] %vm2277, %v2088
    %2280 = vst.msk [vmem:[#allocation4 + $0x10] sm:$0xff] %vm2277, %v2090
    %2281 = vst.msk [vmem:[#allocation4 + $0x18] sm:$0xff] %vm2277, %v2092
    %2282 = vst.msk [vmem:[#allocation4 + $0x20] sm:$0xff] %vm2277, %v2094
    %2283 = vst.msk [vmem:[#allocation4 + $0x28] sm:$0xff] %vm2277, %v2096
    %2284 = vst.msk [vmem:[#allocation4 + $0x30] sm:$0xff] %vm2277, %v2098
    %2285 = vst.msk [vmem:[#allocation4 + $0x38] sm:$0xff] %vm2277, %v2100
    %2286 = vst.msk [vmem:[#allocation4 + $0x40] sm:$0xff] %vm2277, %v2102
    %2287 = vst.msk [vmem:[#allocation4 + $0x48] sm:$0xff] %vm2277, %v2104
    %2288 = vst.msk [vmem:[#allocation4 + $0x50] sm:$0xff] %vm2277, %v2106
    %2289 = vst.msk [vmem:[#allocation4 + $0x58] sm:$0xff] %vm2277, %v2108
    %2290 = vst.msk [vmem:[#allocation4 + $0x60] sm:$0xff] %vm2277, %v2110
    %2291 = vst.msk [vmem:[#allocation4 + $0x68] sm:$0xff] %vm2277, %v2112
    %2292 = vst.msk [vmem:[#allocation4 + $0x70] sm:$0xff] %vm2277, %v2114
    %2293 = vst.msk [vmem:[#allocation4 + $0x78] sm:$0xff] %vm2277, %v2116
    %2294 = vst.msk [vmem:[#allocation4 + $0x80] sm:$0xff] %vm2277, %v2118
    %2295 = vst.msk [vmem:[#allocation4 + $0x88] sm:$0xff] %vm2277, %v2120
    %2296 = vst.msk [vmem:[#allocation4 + $0x90] sm:$0xff] %vm2277, %v2122
    %2297 = vst.msk [vmem:[#allocation4 + $0x98] sm:$0xff] %vm2277, %v2124
    %2298 = vst.msk [vmem:[#allocation4 + $0xa0] sm:$0xff] %vm2277, %v2126
    %2299 = vst.msk [vmem:[#allocation4 + $0xa8] sm:$0xff] %vm2277, %v2128
    %2300 = vst.msk [vmem:[#allocation4 + $0xb0] sm:$0xff] %vm2277, %v2130
    %2301 = vst.msk [vmem:[#allocation4 + $0xb8] sm:$0xff] %vm2277, %v2132
    %2302 = vst.msk [vmem:[#allocation4 + $0xc0] sm:$0xff] %vm2277, %v2134
    %2303 = vst.msk [vmem:[#allocation4 + $0xc8] sm:$0xff] %vm2277, %v2136
    %2304 = vst.msk [vmem:[#allocation4 + $0xd0] sm:$0xff] %vm2277, %v2138
    %2305 = vst.msk [vmem:[#allocation4 + $0xd8] sm:$0xff] %vm2277, %v2140
    %2306 = vst.msk [vmem:[#allocation4 + $0xe0] sm:$0xff] %vm2277, %v2142
    %2307 = vst.msk [vmem:[#allocation4 + $0xe8] sm:$0xff] %vm2277, %v2144
    %2308 = vst.msk [vmem:[#allocation4 + $0xf0] sm:$0xff] %vm2277, %v2146
    %2309 = vst.msk [vmem:[#allocation4 + $0xf8] sm:$0xff] %vm2277, %v2148
    %2310 = vst.msk [vmem:[#allocation4 + $0x100] sm:$0xff] %vm2277, %v2150
    %2311 = vst.msk [vmem:[#allocation4 + $0x108] sm:$0xff] %vm2277, %v2152
    %2312 = vst.msk [vmem:[#allocation4 + $0x110] sm:$0xff] %vm2277, %v2154
    %2313 = vst.msk [vmem:[#allocation4 + $0x118] sm:$0xff] %vm2277, %v2156
    %2314 = vst.msk [vmem:[#allocation4 + $0x120] sm:$0xff] %vm2277, %v2158
    %2315 = vst.msk [vmem:[#allocation4 + $0x128] sm:$0xff] %vm2277, %v2160
    %2316 = vst.msk [vmem:[#allocation4 + $0x130] sm:$0xff] %vm2277, %v2162
    %2317 = vst.msk [vmem:[#allocation4 + $0x138] sm:$0xff] %vm2277, %v2164
    %2318 = vst.msk [vmem:[#allocation4 + $0x140] sm:$0xff] %vm2277, %v2166
    %2319 = vst.msk [vmem:[#allocation4 + $0x148] sm:$0xff] %vm2277, %v2168
    %2320 = vst.msk [vmem:[#allocation4 + $0x150] sm:$0xff] %vm2277, %v2170
    %2321 = vst.msk [vmem:[#allocation4 + $0x158] sm:$0xff] %vm2277, %v2172
    %2322 = vst.msk [vmem:[#allocation4 + $0x160] sm:$0xff] %vm2277, %v2174
    %2323 = vst.msk [vmem:[#allocation4 + $0x168] sm:$0xff] %vm2277, %v2176
    %2324 = vst.msk [vmem:[#allocation4 + $0x170] sm:$0xff] %vm2277, %v2178
    %2325 = vst.msk [vmem:[#allocation4 + $0x178] sm:$0xff] %vm2277, %v2180
    %2326 = vst.msk [vmem:[#allocation4 + $0x180] sm:$0xff] %vm2277, %v2182
    %2327 = vst.msk [vmem:[#allocation4 + $0x188] sm:$0xff] %vm2277, %v2184
    %2328 = vst.msk [vmem:[#allocation4 + $0x190] sm:$0xff] %vm2277, %v2186
    %2329 = vst.msk [vmem:[#allocation4 + $0x198] sm:$0xff] %vm2277, %v2188
    %2330 = vst.msk [vmem:[#allocation4 + $0x1a0] sm:$0xff] %vm2277, %v2190
    %2331 = vst.msk [vmem:[#allocation4 + $0x1a8] sm:$0xff] %vm2277, %v2192
    %2332 = vst.msk [vmem:[#allocation4 + $0x1b0] sm:$0xff] %vm2277, %v2194
    %2333 = vst.msk [vmem:[#allocation4 + $0x1b8] sm:$0xff] %vm2277, %v2196
    %2334 = vst.msk [vmem:[#allocation4 + $0x1c0] sm:$0xff] %vm2277, %v2198
    %2335 = vst.msk [vmem:[#allocation4 + $0x1c8] sm:$0xff] %vm2277, %v2200
    %2336 = vst.msk [vmem:[#allocation4 + $0x1d0] sm:$0xff] %vm2277, %v2202
    %2337 = vst.msk [vmem:[#allocation4 + $0x1d8] sm:$0xff] %vm2277, %v2204
    %2338 = vst.msk [vmem:[#allocation4 + $0x1e0] sm:$0xff] %vm2277, %v2206
    %2339 = vst.msk [vmem:[#allocation4 + $0x1e8] sm:$0xff] %vm2277, %v2208
    %2340 = vst.msk [vmem:[#allocation4 + $0x1f0] sm:$0xff] %vm2277, %v2210
    %2341 = vst.msk [vmem:[#allocation4 + $0x1f8] sm:$0xff] %vm2277, %v2212
    %s2342 = scalar_lea.vmem [#allocation2], 48
    %v2343 = vld [vmem:[%s2342] sm:$0xff]
    %v2344 = vld [vmem:[%s2342 + $0x8] sm:$0xff]
    %v2345 = vld [vmem:[%s2342 + $0x18] sm:$0xff]
    %v2346 = vld [vmem:[%s2342 + $0x20] sm:$0xff]
    %v2347 = vld [vmem:[%s2342 + $0x30] sm:$0xff]
    %v2348 = vld [vmem:[%s2342 + $0x38] sm:$0xff]
    %v2349 = vld [vmem:[%s2342 + $0x48] sm:$0xff]
    %v2350 = vld [vmem:[%s2342 + $0x50] sm:$0xff]
    %v2351 = vld [vmem:[%s2342 + $0x60] sm:$0xff]
    %v2352 = vld [vmem:[%s2342 + $0x68] sm:$0xff]
    %v2353 = vld [vmem:[%s2342 + $0x78] sm:$0xff]
    %v2354 = vld [vmem:[%s2342 + $0x80] sm:$0xff]
    %v2355 = vld [vmem:[%s2342 + $0x90] sm:$0xff]
    %v2356 = vld [vmem:[%s2342 + $0x98] sm:$0xff]
    %v2357 = vld [vmem:[%s2342 + $0xa8] sm:$0xff]
    %v2358 = vld [vmem:[%s2342 + $0xb0] sm:$0xff]
    %v2359 = vld [vmem:[%s2342 + $0xc0] sm:$0xff]
    %v2360 = vld [vmem:[%s2342 + $0xc8] sm:$0xff]
    %v2361 = vld [vmem:[%s2342 + $0xd8] sm:$0xff]
    %v2362 = vld [vmem:[%s2342 + $0xe0] sm:$0xff]
    %v2363 = vld [vmem:[%s2342 + $0xf0] sm:$0xff]
    %v2364 = vld [vmem:[%s2342 + $0xf8] sm:$0xff]
    %v2365 = vld [vmem:[%s2342 + $0x108] sm:$0xff]
    %v2366 = vld [vmem:[%s2342 + $0x110] sm:$0xff]
    %v2367 = vld [vmem:[%s2342 + $0x120] sm:$0xff]
    %v2368 = vld [vmem:[%s2342 + $0x128] sm:$0xff]
    %v2369 = vld [vmem:[%s2342 + $0x138] sm:$0xff]
    %v2370 = vld [vmem:[%s2342 + $0x140] sm:$0xff]
    %v2371 = vld [vmem:[%s2342 + $0x150] sm:$0xff]
    %v2372 = vld [vmem:[%s2342 + $0x158] sm:$0xff]
    %v2373 = vld [vmem:[%s2342 + $0x168] sm:$0xff]
    %v2374 = vld [vmem:[%s2342 + $0x170] sm:$0xff]
    %v2375 = vld [vmem:[%s2342 + $0x1b0] sm:$0xff]
    %v2376 = vld [vmem:[%s2342 + $0x1b8] sm:$0xff]
    %v2377 = vld [vmem:[%s2342 + $0x1c8] sm:$0xff]
    %v2378 = vld [vmem:[%s2342 + $0x1d0] sm:$0xff]
    %v2379 = vld [vmem:[%s2342 + $0x1e0] sm:$0xff]
    %v2380 = vld [vmem:[%s2342 + $0x1e8] sm:$0xff]
    %v2381 = vld [vmem:[%s2342 + $0x1f8] sm:$0xff]
    %v2382 = vld [vmem:[%s2342 + $0x200] sm:$0xff]
    %v2383 = vld [vmem:[%s2342 + $0x210] sm:$0xff]
    %v2384 = vld [vmem:[%s2342 + $0x218] sm:$0xff]
    %v2385 = vld [vmem:[%s2342 + $0x228] sm:$0xff]
    %v2386 = vld [vmem:[%s2342 + $0x230] sm:$0xff]
    %v2387 = vld [vmem:[%s2342 + $0x240] sm:$0xff]
    %v2388 = vld [vmem:[%s2342 + $0x248] sm:$0xff]
    %v2389 = vld [vmem:[%s2342 + $0x258] sm:$0xff]
    %v2390 = vld [vmem:[%s2342 + $0x260] sm:$0xff]
    %v2391 = vld [vmem:[%s2342 + $0x270] sm:$0xff]
    %v2392 = vld [vmem:[%s2342 + $0x278] sm:$0xff]
    %v2393 = vld [vmem:[%s2342 + $0x288] sm:$0xff]
    %v2394 = vld [vmem:[%s2342 + $0x290] sm:$0xff]
    %v2395 = vld [vmem:[%s2342 + $0x2a0] sm:$0xff]
    %v2396 = vld [vmem:[%s2342 + $0x2a8] sm:$0xff]
    %v2397 = vld [vmem:[%s2342 + $0x2b8] sm:$0xff]
    %v2398 = vld [vmem:[%s2342 + $0x2c0] sm:$0xff]
    %v2399 = vld [vmem:[%s2342 + $0x2d0] sm:$0xff]
    %v2400 = vld [vmem:[%s2342 + $0x2d8] sm:$0xff]
    %v2401 = vld [vmem:[%s2342 + $0x2e8] sm:$0xff]
    %v2402 = vld [vmem:[%s2342 + $0x2f0] sm:$0xff]
    %v2403 = vld [vmem:[%s2342 + $0x300] sm:$0xff]
    %v2404 = vld [vmem:[%s2342 + $0x308] sm:$0xff]
    %v2405 = vld [vmem:[%s2342 + $0x318] sm:$0xff]
    %v2406 = vld [vmem:[%s2342 + $0x320] sm:$0xff]
    %2471 = vrot.lane.b32.xlu0 %v2343, 24
    %v2472 = vpop.permute.xlu0 %2471
    %2473 = vrot.lane.b32.xlu0 %v2344, 24
    %v2474 = vpop.permute.xlu0 %2473
    %2475 = vrot.lane.b32.xlu0 %v2345, 24
    %v2476 = vpop.permute.xlu0 %2475
    %2477 = vrot.lane.b32.xlu0 %v2346, 24
    %v2478 = vpop.permute.xlu0 %2477
    %2479 = vrot.lane.b32.xlu0 %v2347, 24
    %v2480 = vpop.permute.xlu0 %2479
    %2481 = vrot.lane.b32.xlu0 %v2348, 24
    %v2482 = vpop.permute.xlu0 %2481
    %2483 = vrot.lane.b32.xlu0 %v2349, 24
    %v2484 = vpop.permute.xlu0 %2483
    %2485 = vrot.lane.b32.xlu0 %v2350, 24
    %v2486 = vpop.permute.xlu0 %2485
    %2487 = vrot.lane.b32.xlu0 %v2351, 24
    %v2488 = vpop.permute.xlu0 %2487
    %2489 = vrot.lane.b32.xlu0 %v2352, 24
    %v2490 = vpop.permute.xlu0 %2489
    %2491 = vrot.lane.b32.xlu0 %v2353, 24
    %v2492 = vpop.permute.xlu0 %2491
    %2493 = vrot.lane.b32.xlu0 %v2354, 24
    %v2494 = vpop.permute.xlu0 %2493
    %2495 = vrot.lane.b32.xlu0 %v2355, 24
    %v2496 = vpop.permute.xlu0 %2495
    %2497 = vrot.lane.b32.xlu0 %v2356, 24
    %v2498 = vpop.permute.xlu0 %2497
    %2499 = vrot.lane.b32.xlu0 %v2357, 24
    %v2500 = vpop.permute.xlu0 %2499
    %2501 = vrot.lane.b32.xlu0 %v2358, 24
    %v2502 = vpop.permute.xlu0 %2501
    %2503 = vrot.lane.b32.xlu0 %v2359, 24
    %v2504 = vpop.permute.xlu0 %2503
    %2505 = vrot.lane.b32.xlu0 %v2360, 24
    %v2506 = vpop.permute.xlu0 %2505
    %2507 = vrot.lane.b32.xlu0 %v2361, 24
    %v2508 = vpop.permute.xlu0 %2507
    %2509 = vrot.lane.b32.xlu0 %v2362, 24
    %v2510 = vpop.permute.xlu0 %2509
    %2511 = vrot.lane.b32.xlu0 %v2363, 24
    %v2512 = vpop.permute.xlu0 %2511
    %2513 = vrot.lane.b32.xlu0 %v2364, 24
    %v2514 = vpop.permute.xlu0 %2513
    %2515 = vrot.lane.b32.xlu0 %v2365, 24
    %v2516 = vpop.permute.xlu0 %2515
    %2517 = vrot.lane.b32.xlu0 %v2366, 24
    %v2518 = vpop.permute.xlu0 %2517
    %2519 = vrot.lane.b32.xlu0 %v2367, 24
    %v2520 = vpop.permute.xlu0 %2519
    %2521 = vrot.lane.b32.xlu0 %v2368, 24
    %v2522 = vpop.permute.xlu0 %2521
    %2523 = vrot.lane.b32.xlu0 %v2369, 24
    %v2524 = vpop.permute.xlu0 %2523
    %2525 = vrot.lane.b32.xlu0 %v2370, 24
    %v2526 = vpop.permute.xlu0 %2525
    %2527 = vrot.lane.b32.xlu0 %v2371, 24
    %v2528 = vpop.permute.xlu0 %2527
    %2529 = vrot.lane.b32.xlu0 %v2372, 24
    %v2530 = vpop.permute.xlu0 %2529
    %2531 = vrot.lane.b32.xlu0 %v2373, 24
    %v2532 = vpop.permute.xlu0 %2531
    %2533 = vrot.lane.b32.xlu0 %v2374, 24
    %v2534 = vpop.permute.xlu0 %2533
    %2535 = vrot.lane.b32.xlu0 %v2375, 24
    %v2536 = vpop.permute.xlu0 %2535
    %2537 = vrot.lane.b32.xlu0 %v2376, 24
    %v2538 = vpop.permute.xlu0 %2537
    %2539 = vrot.lane.b32.xlu0 %v2377, 24
    %v2540 = vpop.permute.xlu0 %2539
    %2541 = vrot.lane.b32.xlu0 %v2378, 24
    %v2542 = vpop.permute.xlu0 %2541
    %2543 = vrot.lane.b32.xlu0 %v2379, 24
    %v2544 = vpop.permute.xlu0 %2543
    %2545 = vrot.lane.b32.xlu0 %v2380, 24
    %v2546 = vpop.permute.xlu0 %2545
    %2547 = vrot.lane.b32.xlu0 %v2381, 24
    %v2548 = vpop.permute.xlu0 %2547
    %2549 = vrot.lane.b32.xlu0 %v2382, 24
    %v2550 = vpop.permute.xlu0 %2549
    %2551 = vrot.lane.b32.xlu0 %v2383, 24
    %v2552 = vpop.permute.xlu0 %2551
    %2553 = vrot.lane.b32.xlu0 %v2384, 24
    %v2554 = vpop.permute.xlu0 %2553
    %2555 = vrot.lane.b32.xlu0 %v2385, 24
    %v2556 = vpop.permute.xlu0 %2555
    %2557 = vrot.lane.b32.xlu0 %v2386, 24
    %v2558 = vpop.permute.xlu0 %2557
    %2559 = vrot.lane.b32.xlu0 %v2387, 24
    %v2560 = vpop.permute.xlu0 %2559
    %2561 = vrot.lane.b32.xlu0 %v2388, 24
    %v2562 = vpop.permute.xlu0 %2561
    %2563 = vrot.lane.b32.xlu0 %v2389, 24
    %v2564 = vpop.permute.xlu0 %2563
    %2565 = vrot.lane.b32.xlu0 %v2390, 24
    %v2566 = vpop.permute.xlu0 %2565
    %2567 = vrot.lane.b32.xlu0 %v2391, 24
    %v2568 = vpop.permute.xlu0 %2567
    %2569 = vrot.lane.b32.xlu0 %v2392, 24
    %v2570 = vpop.permute.xlu0 %2569
    %2571 = vrot.lane.b32.xlu0 %v2393, 24
    %v2572 = vpop.permute.xlu0 %2571
    %2573 = vrot.lane.b32.xlu0 %v2394, 24
    %v2574 = vpop.permute.xlu0 %2573
    %2575 = vrot.lane.b32.xlu0 %v2395, 24
    %v2576 = vpop.permute.xlu0 %2575
    %2577 = vrot.lane.b32.xlu0 %v2396, 24
    %v2578 = vpop.permute.xlu0 %2577
    %2579 = vrot.lane.b32.xlu0 %v2397, 24
    %v2580 = vpop.permute.xlu0 %2579
    %2581 = vrot.lane.b32.xlu0 %v2398, 24
    %v2582 = vpop.permute.xlu0 %2581
    %2583 = vrot.lane.b32.xlu0 %v2399, 24
    %v2584 = vpop.permute.xlu0 %2583
    %2585 = vrot.lane.b32.xlu0 %v2400, 24
    %v2586 = vpop.permute.xlu0 %2585
    %2587 = vrot.lane.b32.xlu0 %v2401, 24
    %v2588 = vpop.permute.xlu0 %2587
    %2589 = vrot.lane.b32.xlu0 %v2402, 24
    %v2590 = vpop.permute.xlu0 %2589
    %2591 = vrot.lane.b32.xlu0 %v2403, 24
    %v2592 = vpop.permute.xlu0 %2591
    %2593 = vrot.lane.b32.xlu0 %v2404, 24
    %v2594 = vpop.permute.xlu0 %2593
    %2595 = vrot.lane.b32.xlu0 %v2405, 24
    %v2596 = vpop.permute.xlu0 %2595
    %2597 = vrot.lane.b32.xlu0 %v2406, 24
    %v2598 = vpop.permute.xlu0 %2597
    %vm2663 = vcmask 228544
    %2664 = vst.msk [vmem:[#allocation4] sm:$0xff] %vm2663, %v2472
    %2665 = vst.msk [vmem:[#allocation4 + $0x8] sm:$0xff] %vm2663, %v2474
    %2666 = vst.msk [vmem:[#allocation4 + $0x10] sm:$0xff] %vm2663, %v2476
    %2667 = vst.msk [vmem:[#allocation4 + $0x18] sm:$0xff] %vm2663, %v2478
    %2668 = vst.msk [vmem:[#allocation4 + $0x20] sm:$0xff] %vm2663, %v2480
    %2669 = vst.msk [vmem:[#allocation4 + $0x28] sm:$0xff] %vm2663, %v2482
    %2670 = vst.msk [vmem:[#allocation4 + $0x30] sm:$0xff] %vm2663, %v2484
    %2671 = vst.msk [vmem:[#allocation4 + $0x38] sm:$0xff] %vm2663, %v2486
    %2672 = vst.msk [vmem:[#allocation4 + $0x40] sm:$0xff] %vm2663, %v2488
    %2673 = vst.msk [vmem:[#allocation4 + $0x48] sm:$0xff] %vm2663, %v2490
    %2674 = vst.msk [vmem:[#allocation4 + $0x50] sm:$0xff] %vm2663, %v2492
    %2675 = vst.msk [vmem:[#allocation4 + $0x58] sm:$0xff] %vm2663, %v2494
    %2676 = vst.msk [vmem:[#allocation4 + $0x60] sm:$0xff] %vm2663, %v2496
    %2677 = vst.msk [vmem:[#allocation4 + $0x68] sm:$0xff] %vm2663, %v2498
    %2678 = vst.msk [vmem:[#allocation4 + $0x70] sm:$0xff] %vm2663, %v2500
    %2679 = vst.msk [vmem:[#allocation4 + $0x78] sm:$0xff] %vm2663, %v2502
    %2680 = vst.msk [vmem:[#allocation4 + $0x80] sm:$0xff] %vm2663, %v2504
    %2681 = vst.msk [vmem:[#allocation4 + $0x88] sm:$0xff] %vm2663, %v2506
    %2682 = vst.msk [vmem:[#allocation4 + $0x90] sm:$0xff] %vm2663, %v2508
    %2683 = vst.msk [vmem:[#allocation4 + $0x98] sm:$0xff] %vm2663, %v2510
    %2684 = vst.msk [vmem:[#allocation4 + $0xa0] sm:$0xff] %vm2663, %v2512
    %2685 = vst.msk [vmem:[#allocation4 + $0xa8] sm:$0xff] %vm2663, %v2514
    %2686 = vst.msk [vmem:[#allocation4 + $0xb0] sm:$0xff] %vm2663, %v2516
    %2687 = vst.msk [vmem:[#allocation4 + $0xb8] sm:$0xff] %vm2663, %v2518
    %2688 = vst.msk [vmem:[#allocation4 + $0xc0] sm:$0xff] %vm2663, %v2520
    %2689 = vst.msk [vmem:[#allocation4 + $0xc8] sm:$0xff] %vm2663, %v2522
    %2690 = vst.msk [vmem:[#allocation4 + $0xd0] sm:$0xff] %vm2663, %v2524
    %2691 = vst.msk [vmem:[#allocation4 + $0xd8] sm:$0xff] %vm2663, %v2526
    %2692 = vst.msk [vmem:[#allocation4 + $0xe0] sm:$0xff] %vm2663, %v2528
    %2693 = vst.msk [vmem:[#allocation4 + $0xe8] sm:$0xff] %vm2663, %v2530
    %2694 = vst.msk [vmem:[#allocation4 + $0xf0] sm:$0xff] %vm2663, %v2532
    %2695 = vst.msk [vmem:[#allocation4 + $0xf8] sm:$0xff] %vm2663, %v2534
    %2696 = vst.msk [vmem:[#allocation4 + $0x100] sm:$0xff] %vm2663, %v2536
    %2697 = vst.msk [vmem:[#allocation4 + $0x108] sm:$0xff] %vm2663, %v2538
    %2698 = vst.msk [vmem:[#allocation4 + $0x110] sm:$0xff] %vm2663, %v2540
    %2699 = vst.msk [vmem:[#allocation4 + $0x118] sm:$0xff] %vm2663, %v2542
    %2700 = vst.msk [vmem:[#allocation4 + $0x120] sm:$0xff] %vm2663, %v2544
    %2701 = vst.msk [vmem:[#allocation4 + $0x128] sm:$0xff] %vm2663, %v2546
    %2702 = vst.msk [vmem:[#allocation4 + $0x130] sm:$0xff] %vm2663, %v2548
    %2703 = vst.msk [vmem:[#allocation4 + $0x138] sm:$0xff] %vm2663, %v2550
    %2704 = vst.msk [vmem:[#allocation4 + $0x140] sm:$0xff] %vm2663, %v2552
    %2705 = vst.msk [vmem:[#allocation4 + $0x148] sm:$0xff] %vm2663, %v2554
    %2706 = vst.msk [vmem:[#allocation4 + $0x150] sm:$0xff] %vm2663, %v2556
    %2707 = vst.msk [vmem:[#allocation4 + $0x158] sm:$0xff] %vm2663, %v2558
    %2708 = vst.msk [vmem:[#allocation4 + $0x160] sm:$0xff] %vm2663, %v2560
    %2709 = vst.msk [vmem:[#allocation4 + $0x168] sm:$0xff] %vm2663, %v2562
    %2710 = vst.msk [vmem:[#allocation4 + $0x170] sm:$0xff] %vm2663, %v2564
    %2711 = vst.msk [vmem:[#allocation4 + $0x178] sm:$0xff] %vm2663, %v2566
    %2712 = vst.msk [vmem:[#allocation4 + $0x180] sm:$0xff] %vm2663, %v2568
    %2713 = vst.msk [vmem:[#allocation4 + $0x188] sm:$0xff] %vm2663, %v2570
    %2714 = vst.msk [vmem:[#allocation4 + $0x190] sm:$0xff] %vm2663, %v2572
    %2715 = vst.msk [vmem:[#allocation4 + $0x198] sm:$0xff] %vm2663, %v2574
    %2716 = vst.msk [vmem:[#allocation4 + $0x1a0] sm:$0xff] %vm2663, %v2576
    %2717 = vst.msk [vmem:[#allocation4 + $0x1a8] sm:$0xff] %vm2663, %v2578
    %2718 = vst.msk [vmem:[#allocation4 + $0x1b0] sm:$0xff] %vm2663, %v2580
    %2719 = vst.msk [vmem:[#allocation4 + $0x1b8] sm:$0xff] %vm2663, %v2582
    %2720 = vst.msk [vmem:[#allocation4 + $0x1c0] sm:$0xff] %vm2663, %v2584
    %2721 = vst.msk [vmem:[#allocation4 + $0x1c8] sm:$0xff] %vm2663, %v2586
    %2722 = vst.msk [vmem:[#allocation4 + $0x1d0] sm:$0xff] %vm2663, %v2588
    %2723 = vst.msk [vmem:[#allocation4 + $0x1d8] sm:$0xff] %vm2663, %v2590
    %2724 = vst.msk [vmem:[#allocation4 + $0x1e0] sm:$0xff] %vm2663, %v2592
    %2725 = vst.msk [vmem:[#allocation4 + $0x1e8] sm:$0xff] %vm2663, %v2594
    %2726 = vst.msk [vmem:[#allocation4 + $0x1f0] sm:$0xff] %vm2663, %v2596
    %2727 = vst.msk [vmem:[#allocation4 + $0x1f8] sm:$0xff] %vm2663, %v2598
    %v2728 = vld [vmem:[%s2342 + $0x1] sm:$0xff]
    %v2729 = vld [vmem:[%s2342 + $0x9] sm:$0xff]
    %v2730 = vld [vmem:[%s2342 + $0x19] sm:$0xff]
    %v2731 = vld [vmem:[%s2342 + $0x21] sm:$0xff]
    %v2732 = vld [vmem:[%s2342 + $0x31] sm:$0xff]
    %v2733 = vld [vmem:[%s2342 + $0x39] sm:$0xff]
    %v2734 = vld [vmem:[%s2342 + $0x49] sm:$0xff]
    %v2735 = vld [vmem:[%s2342 + $0x51] sm:$0xff]
    %v2736 = vld [vmem:[%s2342 + $0x61] sm:$0xff]
    %v2737 = vld [vmem:[%s2342 + $0x69] sm:$0xff]
    %v2738 = vld [vmem:[%s2342 + $0x79] sm:$0xff]
    %v2739 = vld [vmem:[%s2342 + $0x81] sm:$0xff]
    %v2740 = vld [vmem:[%s2342 + $0x91] sm:$0xff]
    %v2741 = vld [vmem:[%s2342 + $0x99] sm:$0xff]
    %v2742 = vld [vmem:[%s2342 + $0xa9] sm:$0xff]
    %v2743 = vld [vmem:[%s2342 + $0xb1] sm:$0xff]
    %v2744 = vld [vmem:[%s2342 + $0xc1] sm:$0xff]
    %v2745 = vld [vmem:[%s2342 + $0xc9] sm:$0xff]
    %v2746 = vld [vmem:[%s2342 + $0xd9] sm:$0xff]
    %v2747 = vld [vmem:[%s2342 + $0xe1] sm:$0xff]
    %v2748 = vld [vmem:[%s2342 + $0xf1] sm:$0xff]
    %v2749 = vld [vmem:[%s2342 + $0xf9] sm:$0xff]
    %v2750 = vld [vmem:[%s2342 + $0x109] sm:$0xff]
    %v2751 = vld [vmem:[%s2342 + $0x111] sm:$0xff]
    %v2752 = vld [vmem:[%s2342 + $0x121] sm:$0xff]
    %v2753 = vld [vmem:[%s2342 + $0x129] sm:$0xff]
    %v2754 = vld [vmem:[%s2342 + $0x139] sm:$0xff]
    %v2755 = vld [vmem:[%s2342 + $0x141] sm:$0xff]
    %v2756 = vld [vmem:[%s2342 + $0x151] sm:$0xff]
    %v2757 = vld [vmem:[%s2342 + $0x159] sm:$0xff]
    %v2758 = vld [vmem:[%s2342 + $0x169] sm:$0xff]
    %v2759 = vld [vmem:[%s2342 + $0x171] sm:$0xff]
    %v2760 = vld [vmem:[%s2342 + $0x1b1] sm:$0xff]
    %v2761 = vld [vmem:[%s2342 + $0x1b9] sm:$0xff]
    %v2762 = vld [vmem:[%s2342 + $0x1c9] sm:$0xff]
    %v2763 = vld [vmem:[%s2342 + $0x1d1] sm:$0xff]
    %v2764 = vld [vmem:[%s2342 + $0x1e1] sm:$0xff]
    %v2765 = vld [vmem:[%s2342 + $0x1e9] sm:$0xff]
    %v2766 = vld [vmem:[%s2342 + $0x1f9] sm:$0xff]
    %v2767 = vld [vmem:[%s2342 + $0x201] sm:$0xff]
    %v2768 = vld [vmem:[%s2342 + $0x211] sm:$0xff]
    %v2769 = vld [vmem:[%s2342 + $0x219] sm:$0xff]
    %v2770 = vld [vmem:[%s2342 + $0x229] sm:$0xff]
    %v2771 = vld [vmem:[%s2342 + $0x231] sm:$0xff]
    %v2772 = vld [vmem:[%s2342 + $0x241] sm:$0xff]
    %v2773 = vld [vmem:[%s2342 + $0x249] sm:$0xff]
    %v2774 = vld [vmem:[%s2342 + $0x259] sm:$0xff]
    %v2775 = vld [vmem:[%s2342 + $0x261] sm:$0xff]
    %v2776 = vld [vmem:[%s2342 + $0x271] sm:$0xff]
    %v2777 = vld [vmem:[%s2342 + $0x279] sm:$0xff]
    %v2778 = vld [vmem:[%s2342 + $0x289] sm:$0xff]
    %v2779 = vld [vmem:[%s2342 + $0x291] sm:$0xff]
    %v2780 = vld [vmem:[%s2342 + $0x2a1] sm:$0xff]
    %v2781 = vld [vmem:[%s2342 + $0x2a9] sm:$0xff]
    %v2782 = vld [vmem:[%s2342 + $0x2b9] sm:$0xff]
    %v2783 = vld [vmem:[%s2342 + $0x2c1] sm:$0xff]
    %v2784 = vld [vmem:[%s2342 + $0x2d1] sm:$0xff]
    %v2785 = vld [vmem:[%s2342 + $0x2d9] sm:$0xff]
    %v2786 = vld [vmem:[%s2342 + $0x2e9] sm:$0xff]
    %v2787 = vld [vmem:[%s2342 + $0x2f1] sm:$0xff]
    %v2788 = vld [vmem:[%s2342 + $0x301] sm:$0xff]
    %v2789 = vld [vmem:[%s2342 + $0x309] sm:$0xff]
    %v2790 = vld [vmem:[%s2342 + $0x319] sm:$0xff]
    %v2791 = vld [vmem:[%s2342 + $0x321] sm:$0xff]
    %2856 = vrot.lane.b32.xlu0 %v2728, 28
    %v2857 = vpop.permute.xlu0 %2856
    %2858 = vrot.lane.b32.xlu0 %v2729, 28
    %v2859 = vpop.permute.xlu0 %2858
    %2860 = vrot.lane.b32.xlu0 %v2730, 28
    %v2861 = vpop.permute.xlu0 %2860
    %2862 = vrot.lane.b32.xlu0 %v2731, 28
    %v2863 = vpop.permute.xlu0 %2862
    %2864 = vrot.lane.b32.xlu0 %v2732, 28
    %v2865 = vpop.permute.xlu0 %2864
    %2866 = vrot.lane.b32.xlu0 %v2733, 28
    %v2867 = vpop.permute.xlu0 %2866
    %2868 = vrot.lane.b32.xlu0 %v2734, 28
    %v2869 = vpop.permute.xlu0 %2868
    %2870 = vrot.lane.b32.xlu0 %v2735, 28
    %v2871 = vpop.permute.xlu0 %2870
    %2872 = vrot.lane.b32.xlu0 %v2736, 28
    %v2873 = vpop.permute.xlu0 %2872
    %2874 = vrot.lane.b32.xlu0 %v2737, 28
    %v2875 = vpop.permute.xlu0 %2874
    %2876 = vrot.lane.b32.xlu0 %v2738, 28
    %v2877 = vpop.permute.xlu0 %2876
    %2878 = vrot.lane.b32.xlu0 %v2739, 28
    %v2879 = vpop.permute.xlu0 %2878
    %2880 = vrot.lane.b32.xlu0 %v2740, 28
    %v2881 = vpop.permute.xlu0 %2880
    %2882 = vrot.lane.b32.xlu0 %v2741, 28
    %v2883 = vpop.permute.xlu0 %2882
    %2884 = vrot.lane.b32.xlu0 %v2742, 28
    %v2885 = vpop.permute.xlu0 %2884
    %2886 = vrot.lane.b32.xlu0 %v2743, 28
    %v2887 = vpop.permute.xlu0 %2886
    %2888 = vrot.lane.b32.xlu0 %v2744, 28
    %v2889 = vpop.permute.xlu0 %2888
    %2890 = vrot.lane.b32.xlu0 %v2745, 28
    %v2891 = vpop.permute.xlu0 %2890
    %2892 = vrot.lane.b32.xlu0 %v2746, 28
    %v2893 = vpop.permute.xlu0 %2892
    %2894 = vrot.lane.b32.xlu0 %v2747, 28
    %v2895 = vpop.permute.xlu0 %2894
    %2896 = vrot.lane.b32.xlu0 %v2748, 28
    %v2897 = vpop.permute.xlu0 %2896
    %2898 = vrot.lane.b32.xlu0 %v2749, 28
    %v2899 = vpop.permute.xlu0 %2898
    %2900 = vrot.lane.b32.xlu0 %v2750, 28
    %v2901 = vpop.permute.xlu0 %2900
    %2902 = vrot.lane.b32.xlu0 %v2751, 28
    %v2903 = vpop.permute.xlu0 %2902
    %2904 = vrot.lane.b32.xlu0 %v2752, 28
    %v2905 = vpop.permute.xlu0 %2904
    %2906 = vrot.lane.b32.xlu0 %v2753, 28
    %v2907 = vpop.permute.xlu0 %2906
    %2908 = vrot.lane.b32.xlu0 %v2754, 28
    %v2909 = vpop.permute.xlu0 %2908
    %2910 = vrot.lane.b32.xlu0 %v2755, 28
    %v2911 = vpop.permute.xlu0 %2910
    %2912 = vrot.lane.b32.xlu0 %v2756, 28
    %v2913 = vpop.permute.xlu0 %2912
    %2914 = vrot.lane.b32.xlu0 %v2757, 28
    %v2915 = vpop.permute.xlu0 %2914
    %2916 = vrot.lane.b32.xlu0 %v2758, 28
    %v2917 = vpop.permute.xlu0 %2916
    %2918 = vrot.lane.b32.xlu0 %v2759, 28
    %v2919 = vpop.permute.xlu0 %2918
    %2920 = vrot.lane.b32.xlu0 %v2760, 28
    %v2921 = vpop.permute.xlu0 %2920
    %2922 = vrot.lane.b32.xlu0 %v2761, 28
    %v2923 = vpop.permute.xlu0 %2922
    %2924 = vrot.lane.b32.xlu0 %v2762, 28
    %v2925 = vpop.permute.xlu0 %2924
    %2926 = vrot.lane.b32.xlu0 %v2763, 28
    %v2927 = vpop.permute.xlu0 %2926
    %2928 = vrot.lane.b32.xlu0 %v2764, 28
    %v2929 = vpop.permute.xlu0 %2928
    %2930 = vrot.lane.b32.xlu0 %v2765, 28
    %v2931 = vpop.permute.xlu0 %2930
    %2932 = vrot.lane.b32.xlu0 %v2766, 28
    %v2933 = vpop.permute.xlu0 %2932
    %2934 = vrot.lane.b32.xlu0 %v2767, 28
    %v2935 = vpop.permute.xlu0 %2934
    %2936 = vrot.lane.b32.xlu0 %v2768, 28
    %v2937 = vpop.permute.xlu0 %2936
    %2938 = vrot.lane.b32.xlu0 %v2769, 28
    %v2939 = vpop.permute.xlu0 %2938
    %2940 = vrot.lane.b32.xlu0 %v2770, 28
    %v2941 = vpop.permute.xlu0 %2940
    %2942 = vrot.lane.b32.xlu0 %v2771, 28
    %v2943 = vpop.permute.xlu0 %2942
    %2944 = vrot.lane.b32.xlu0 %v2772, 28
    %v2945 = vpop.permute.xlu0 %2944
    %2946 = vrot.lane.b32.xlu0 %v2773, 28
    %v2947 = vpop.permute.xlu0 %2946
    %2948 = vrot.lane.b32.xlu0 %v2774, 28
    %v2949 = vpop.permute.xlu0 %2948
    %2950 = vrot.lane.b32.xlu0 %v2775, 28
    %v2951 = vpop.permute.xlu0 %2950
    %2952 = vrot.lane.b32.xlu0 %v2776, 28
    %v2953 = vpop.permute.xlu0 %2952
    %2954 = vrot.lane.b32.xlu0 %v2777, 28
    %v2955 = vpop.permute.xlu0 %2954
    %2956 = vrot.lane.b32.xlu0 %v2778, 28
    %v2957 = vpop.permute.xlu0 %2956
    %2958 = vrot.lane.b32.xlu0 %v2779, 28
    %v2959 = vpop.permute.xlu0 %2958
    %2960 = vrot.lane.b32.xlu0 %v2780, 28
    %v2961 = vpop.permute.xlu0 %2960
    %2962 = vrot.lane.b32.xlu0 %v2781, 28
    %v2963 = vpop.permute.xlu0 %2962
    %2964 = vrot.lane.b32.xlu0 %v2782, 28
    %v2965 = vpop.permute.xlu0 %2964
    %2966 = vrot.lane.b32.xlu0 %v2783, 28
    %v2967 = vpop.permute.xlu0 %2966
    %2968 = vrot.lane.b32.xlu0 %v2784, 28
    %v2969 = vpop.permute.xlu0 %2968
    %2970 = vrot.lane.b32.xlu0 %v2785, 28
    %v2971 = vpop.permute.xlu0 %2970
    %2972 = vrot.lane.b32.xlu0 %v2786, 28
    %v2973 = vpop.permute.xlu0 %2972
    %2974 = vrot.lane.b32.xlu0 %v2787, 28
    %v2975 = vpop.permute.xlu0 %2974
    %2976 = vrot.lane.b32.xlu0 %v2788, 28
    %v2977 = vpop.permute.xlu0 %2976
    %2978 = vrot.lane.b32.xlu0 %v2789, 28
    %v2979 = vpop.permute.xlu0 %2978
    %2980 = vrot.lane.b32.xlu0 %v2790, 28
    %v2981 = vpop.permute.xlu0 %2980
    %2982 = vrot.lane.b32.xlu0 %v2791, 28
    %v2983 = vpop.permute.xlu0 %2982
    %vm3048 = vcmask 261344
    %3049 = vst.msk [vmem:[#allocation4] sm:$0xff] %vm3048, %v2857
    %3050 = vst.msk [vmem:[#allocation4 + $0x8] sm:$0xff] %vm3048, %v2859
    %3051 = vst.msk [vmem:[#allocation4 + $0x10] sm:$0xff] %vm3048, %v2861
    %3052 = vst.msk [vmem:[#allocation4 + $0x18] sm:$0xff] %vm3048, %v2863
    %3053 = vst.msk [vmem:[#allocation4 + $0x20] sm:$0xff] %vm3048, %v2865
    %3054 = vst.msk [vmem:[#allocation4 + $0x28] sm:$0xff] %vm3048, %v2867
    %3055 = vst.msk [vmem:[#allocation4 + $0x30] sm:$0xff] %vm3048, %v2869
    %3056 = vst.msk [vmem:[#allocation4 + $0x38] sm:$0xff] %vm3048, %v2871
    %3057 = vst.msk [vmem:[#allocation4 + $0x40] sm:$0xff] %vm3048, %v2873
    %3058 = vst.msk [vmem:[#allocation4 + $0x48] sm:$0xff] %vm3048, %v2875
    %3059 = vst.msk [vmem:[#allocation4 + $0x50] sm:$0xff] %vm3048, %v2877
    %3060 = vst.msk [vmem:[#allocation4 + $0x58] sm:$0xff] %vm3048, %v2879
    %3061 = vst.msk [vmem:[#allocation4 + $0x60] sm:$0xff] %vm3048, %v2881
    %3062 = vst.msk [vmem:[#allocation4 + $0x68] sm:$0xff] %vm3048, %v2883
    %3063 = vst.msk [vmem:[#allocation4 + $0x70] sm:$0xff] %vm3048, %v2885
    %3064 = vst.msk [vmem:[#allocation4 + $0x78] sm:$0xff] %vm3048, %v2887
    %3065 = vst.msk [vmem:[#allocation4 + $0x80] sm:$0xff] %vm3048, %v2889
    %3066 = vst.msk [vmem:[#allocation4 + $0x88] sm:$0xff] %vm3048, %v2891
    %3067 = vst.msk [vmem:[#allocation4 + $0x90] sm:$0xff] %vm3048, %v2893
    %3068 = vst.msk [vmem:[#allocation4 + $0x98] sm:$0xff] %vm3048, %v2895
    %3069 = vst.msk [vmem:[#allocation4 + $0xa0] sm:$0xff] %vm3048, %v2897
    %3070 = vst.msk [vmem:[#allocation4 + $0xa8] sm:$0xff] %vm3048, %v2899
    %3071 = vst.msk [vmem:[#allocation4 + $0xb0] sm:$0xff] %vm3048, %v2901
    %3072 = vst.msk [vmem:[#allocation4 + $0xb8] sm:$0xff] %vm3048, %v2903
    %3073 = vst.msk [vmem:[#allocation4 + $0xc0] sm:$0xff] %vm3048, %v2905
    %3074 = vst.msk [vmem:[#allocation4 + $0xc8] sm:$0xff] %vm3048, %v2907
    %3075 = vst.msk [vmem:[#allocation4 + $0xd0] sm:$0xff] %vm3048, %v2909
    %3076 = vst.msk [vmem:[#allocation4 + $0xd8] sm:$0xff] %vm3048, %v2911
    %3077 = vst.msk [vmem:[#allocation4 + $0xe0] sm:$0xff] %vm3048, %v2913
    %3078 = vst.msk [vmem:[#allocation4 + $0xe8] sm:$0xff] %vm3048, %v2915
    %3079 = vst.msk [vmem:[#allocation4 + $0xf0] sm:$0xff] %vm3048, %v2917
    %3080 = vst.msk [vmem:[#allocation4 + $0xf8] sm:$0xff] %vm3048, %v2919
    %3081 = vst.msk [vmem:[#allocation4 + $0x100] sm:$0xff] %vm3048, %v2921
    %3082 = vst.msk [vmem:[#allocation4 + $0x108] sm:$0xff] %vm3048, %v2923
    %3083 = vst.msk [vmem:[#allocation4 + $0x110] sm:$0xff] %vm3048, %v2925
    %3084 = vst.msk [vmem:[#allocation4 + $0x118] sm:$0xff] %vm3048, %v2927
    %3085 = vst.msk [vmem:[#allocation4 + $0x120] sm:$0xff] %vm3048, %v2929
    %3086 = vst.msk [vmem:[#allocation4 + $0x128] sm:$0xff] %vm3048, %v2931
    %3087 = vst.msk [vmem:[#allocation4 + $0x130] sm:$0xff] %vm3048, %v2933
    %3088 = vst.msk [vmem:[#allocation4 + $0x138] sm:$0xff] %vm3048, %v2935
    %3089 = vst.msk [vmem:[#allocation4 + $0x140] sm:$0xff] %vm3048, %v2937
    %3090 = vst.msk [vmem:[#allocation4 + $0x148] sm:$0xff] %vm3048, %v2939
    %3091 = vst.msk [vmem:[#allocation4 + $0x150] sm:$0xff] %vm3048, %v2941
    %3092 = vst.msk [vmem:[#allocation4 + $0x158] sm:$0xff] %vm3048, %v2943
    %3093 = vst.msk [vmem:[#allocation4 + $0x160] sm:$0xff] %vm3048, %v2945
    %3094 = vst.msk [vmem:[#allocation4 + $0x168] sm:$0xff] %vm3048, %v2947
    %3095 = vst.msk [vmem:[#allocation4 + $0x170] sm:$0xff] %vm3048, %v2949
    %3096 = vst.msk [vmem:[#allocation4 + $0x178] sm:$0xff] %vm3048, %v2951
    %3097 = vst.msk [vmem:[#allocation4 + $0x180] sm:$0xff] %vm3048, %v2953
    %3098 = vst.msk [vmem:[#allocation4 + $0x188] sm:$0xff] %vm3048, %v2955
    %3099 = vst.msk [vmem:[#allocation4 + $0x190] sm:$0xff] %vm3048, %v2957
    %3100 = vst.msk [vmem:[#allocation4 + $0x198] sm:$0xff] %vm3048, %v2959
    %3101 = vst.msk [vmem:[#allocation4 + $0x1a0] sm:$0xff] %vm3048, %v2961
    %3102 = vst.msk [vmem:[#allocation4 + $0x1a8] sm:$0xff] %vm3048, %v2963
    %3103 = vst.msk [vmem:[#allocation4 + $0x1b0] sm:$0xff] %vm3048, %v2965
    %3104 = vst.msk [vmem:[#allocation4 + $0x1b8] sm:$0xff] %vm3048, %v2967
    %3105 = vst.msk [vmem:[#allocation4 + $0x1c0] sm:$0xff] %vm3048, %v2969
    %3106 = vst.msk [vmem:[#allocation4 + $0x1c8] sm:$0xff] %vm3048, %v2971
    %3107 = vst.msk [vmem:[#allocation4 + $0x1d0] sm:$0xff] %vm3048, %v2973
    %3108 = vst.msk [vmem:[#allocation4 + $0x1d8] sm:$0xff] %vm3048, %v2975
    %3109 = vst.msk [vmem:[#allocation4 + $0x1e0] sm:$0xff] %vm3048, %v2977
    %3110 = vst.msk [vmem:[#allocation4 + $0x1e8] sm:$0xff] %vm3048, %v2979
    %3111 = vst.msk [vmem:[#allocation4 + $0x1f0] sm:$0xff] %vm3048, %v2981
    %3112 = vst.msk [vmem:[#allocation4 + $0x1f8] sm:$0xff] %vm3048, %v2983
    %v3113 = vld [vmem:[%s2342 + $0x2] sm:$0xff]
    %v3114 = vld [vmem:[%s2342 + $0xa] sm:$0xff]
    %v3115 = vld [vmem:[%s2342 + $0x1a] sm:$0xff]
    %v3116 = vld [vmem:[%s2342 + $0x22] sm:$0xff]
    %v3117 = vld [vmem:[%s2342 + $0x32] sm:$0xff]
    %v3118 = vld [vmem:[%s2342 + $0x3a] sm:$0xff]
    %v3119 = vld [vmem:[%s2342 + $0x4a] sm:$0xff]
    %v3120 = vld [vmem:[%s2342 + $0x52] sm:$0xff]
    %v3121 = vld [vmem:[%s2342 + $0x62] sm:$0xff]
    %v3122 = vld [vmem:[%s2342 + $0x6a] sm:$0xff]
    %v3123 = vld [vmem:[%s2342 + $0x7a] sm:$0xff]
    %v3124 = vld [vmem:[%s2342 + $0x82] sm:$0xff]
    %v3125 = vld [vmem:[%s2342 + $0x92] sm:$0xff]
    %v3126 = vld [vmem:[%s2342 + $0x9a] sm:$0xff]
    %v3127 = vld [vmem:[%s2342 + $0xaa] sm:$0xff]
    %v3128 = vld [vmem:[%s2342 + $0xb2] sm:$0xff]
    %v3129 = vld [vmem:[%s2342 + $0xc2] sm:$0xff]
    %v3130 = vld [vmem:[%s2342 + $0xca] sm:$0xff]
    %v3131 = vld [vmem:[%s2342 + $0xda] sm:$0xff]
    %v3132 = vld [vmem:[%s2342 + $0xe2] sm:$0xff]
    %v3133 = vld [vmem:[%s2342 + $0xf2] sm:$0xff]
    %v3134 = vld [vmem:[%s2342 + $0xfa] sm:$0xff]
    %v3135 = vld [vmem:[%s2342 + $0x10a] sm:$0xff]
    %v3136 = vld [vmem:[%s2342 + $0x112] sm:$0xff]
    %v3137 = vld [vmem:[%s2342 + $0x122] sm:$0xff]
    %v3138 = vld [vmem:[%s2342 + $0x12a] sm:$0xff]
    %v3139 = vld [vmem:[%s2342 + $0x13a] sm:$0xff]
    %v3140 = vld [vmem:[%s2342 + $0x142] sm:$0xff]
    %v3141 = vld [vmem:[%s2342 + $0x152] sm:$0xff]
    %v3142 = vld [vmem:[%s2342 + $0x15a] sm:$0xff]
    %v3143 = vld [vmem:[%s2342 + $0x16a] sm:$0xff]
    %v3144 = vld [vmem:[%s2342 + $0x172] sm:$0xff]
    %v3145 = vld [vmem:[%s2342 + $0x1b2] sm:$0xff]
    %v3146 = vld [vmem:[%s2342 + $0x1ba] sm:$0xff]
    %v3147 = vld [vmem:[%s2342 + $0x1ca] sm:$0xff]
    %v3148 = vld [vmem:[%s2342 + $0x1d2] sm:$0xff]
    %v3149 = vld [vmem:[%s2342 + $0x1e2] sm:$0xff]
    %v3150 = vld [vmem:[%s2342 + $0x1ea] sm:$0xff]
    %v3151 = vld [vmem:[%s2342 + $0x1fa] sm:$0xff]
    %v3152 = vld [vmem:[%s2342 + $0x202] sm:$0xff]
    %v3153 = vld [vmem:[%s2342 + $0x212] sm:$0xff]
    %v3154 = vld [vmem:[%s2342 + $0x21a] sm:$0xff]
    %v3155 = vld [vmem:[%s2342 + $0x22a] sm:$0xff]
    %v3156 = vld [vmem:[%s2342 + $0x232] sm:$0xff]
    %v3157 = vld [vmem:[%s2342 + $0x242] sm:$0xff]
    %v3158 = vld [vmem:[%s2342 + $0x24a] sm:$0xff]
    %v3159 = vld [vmem:[%s2342 + $0x25a] sm:$0xff]
    %v3160 = vld [vmem:[%s2342 + $0x262] sm:$0xff]
    %v3161 = vld [vmem:[%s2342 + $0x272] sm:$0xff]
    %v3162 = vld [vmem:[%s2342 + $0x27a] sm:$0xff]
    %v3163 = vld [vmem:[%s2342 + $0x28a] sm:$0xff]
    %v3164 = vld [vmem:[%s2342 + $0x292] sm:$0xff]
    %v3165 = vld [vmem:[%s2342 + $0x2a2] sm:$0xff]
    %v3166 = vld [vmem:[%s2342 + $0x2aa] sm:$0xff]
    %v3167 = vld [vmem:[%s2342 + $0x2ba] sm:$0xff]
    %v3168 = vld [vmem:[%s2342 + $0x2c2] sm:$0xff]
    %v3169 = vld [vmem:[%s2342 + $0x2d2] sm:$0xff]
    %v3170 = vld [vmem:[%s2342 + $0x2da] sm:$0xff]
    %v3171 = vld [vmem:[%s2342 + $0x2ea] sm:$0xff]
    %v3172 = vld [vmem:[%s2342 + $0x2f2] sm:$0xff]
    %v3173 = vld [vmem:[%s2342 + $0x302] sm:$0xff]
    %v3174 = vld [vmem:[%s2342 + $0x30a] sm:$0xff]
    %v3175 = vld [vmem:[%s2342 + $0x31a] sm:$0xff]
    %v3176 = vld [vmem:[%s2342 + $0x322] sm:$0xff]
    %3241 = vrot.lane.b32.xlu0 %v3113, 32
    %v3242 = vpop.permute.xlu0 %3241
    %3243 = vrot.lane.b32.xlu0 %v3114, 32
    %v3244 = vpop.permute.xlu0 %3243
    %3245 = vrot.lane.b32.xlu0 %v3115, 32
    %v3246 = vpop.permute.xlu0 %3245
    %3247 = vrot.lane.b32.xlu0 %v3116, 32
    %v3248 = vpop.permute.xlu0 %3247
    %3249 = vrot.lane.b32.xlu0 %v3117, 32
    %v3250 = vpop.permute.xlu0 %3249
    %3251 = vrot.lane.b32.xlu0 %v3118, 32
    %v3252 = vpop.permute.xlu0 %3251
    %3253 = vrot.lane.b32.xlu0 %v3119, 32
    %v3254 = vpop.permute.xlu0 %3253
    %3255 = vrot.lane.b32.xlu0 %v3120, 32
    %v3256 = vpop.permute.xlu0 %3255
    %3257 = vrot.lane.b32.xlu0 %v3121, 32
    %v3258 = vpop.permute.xlu0 %3257
    %3259 = vrot.lane.b32.xlu0 %v3122, 32
    %v3260 = vpop.permute.xlu0 %3259
    %3261 = vrot.lane.b32.xlu0 %v3123, 32
    %v3262 = vpop.permute.xlu0 %3261
    %3263 = vrot.lane.b32.xlu0 %v3124, 32
    %v3264 = vpop.permute.xlu0 %3263
    %3265 = vrot.lane.b32.xlu0 %v3125, 32
    %v3266 = vpop.permute.xlu0 %3265
    %3267 = vrot.lane.b32.xlu0 %v3126, 32
    %v3268 = vpop.permute.xlu0 %3267
    %3269 = vrot.lane.b32.xlu0 %v3127, 32
    %v3270 = vpop.permute.xlu0 %3269
    %3271 = vrot.lane.b32.xlu0 %v3128, 32
    %v3272 = vpop.permute.xlu0 %3271
    %3273 = vrot.lane.b32.xlu0 %v3129, 32
    %v3274 = vpop.permute.xlu0 %3273
    %3275 = vrot.lane.b32.xlu0 %v3130, 32
    %v3276 = vpop.permute.xlu0 %3275
    %3277 = vrot.lane.b32.xlu0 %v3131, 32
    %v3278 = vpop.permute.xlu0 %3277
    %3279 = vrot.lane.b32.xlu0 %v3132, 32
    %v3280 = vpop.permute.xlu0 %3279
    %3281 = vrot.lane.b32.xlu0 %v3133, 32
    %v3282 = vpop.permute.xlu0 %3281
    %3283 = vrot.lane.b32.xlu0 %v3134, 32
    %v3284 = vpop.permute.xlu0 %3283
    %3285 = vrot.lane.b32.xlu0 %v3135, 32
    %v3286 = vpop.permute.xlu0 %3285
    %3287 = vrot.lane.b32.xlu0 %v3136, 32
    %v3288 = vpop.permute.xlu0 %3287
    %3289 = vrot.lane.b32.xlu0 %v3137, 32
    %v3290 = vpop.permute.xlu0 %3289
    %3291 = vrot.lane.b32.xlu0 %v3138, 32
    %v3292 = vpop.permute.xlu0 %3291
    %3293 = vrot.lane.b32.xlu0 %v3139, 32
    %v3294 = vpop.permute.xlu0 %3293
    %3295 = vrot.lane.b32.xlu0 %v3140, 32
    %v3296 = vpop.permute.xlu0 %3295
    %3297 = vrot.lane.b32.xlu0 %v3141, 32
    %v3298 = vpop.permute.xlu0 %3297
    %3299 = vrot.lane.b32.xlu0 %v3142, 32
    %v3300 = vpop.permute.xlu0 %3299
    %3301 = vrot.lane.b32.xlu0 %v3143, 32
    %v3302 = vpop.permute.xlu0 %3301
    %3303 = vrot.lane.b32.xlu0 %v3144, 32
    %v3304 = vpop.permute.xlu0 %3303
    %3305 = vrot.lane.b32.xlu0 %v3145, 32
    %v3306 = vpop.permute.xlu0 %3305
    %3307 = vrot.lane.b32.xlu0 %v3146, 32
    %v3308 = vpop.permute.xlu0 %3307
    %3309 = vrot.lane.b32.xlu0 %v3147, 32
    %v3310 = vpop.permute.xlu0 %3309
    %3311 = vrot.lane.b32.xlu0 %v3148, 32
    %v3312 = vpop.permute.xlu0 %3311
    %3313 = vrot.lane.b32.xlu0 %v3149, 32
    %v3314 = vpop.permute.xlu0 %3313
    %3315 = vrot.lane.b32.xlu0 %v3150, 32
    %v3316 = vpop.permute.xlu0 %3315
    %3317 = vrot.lane.b32.xlu0 %v3151, 32
    %v3318 = vpop.permute.xlu0 %3317
    %3319 = vrot.lane.b32.xlu0 %v3152, 32
    %v3320 = vpop.permute.xlu0 %3319
    %3321 = vrot.lane.b32.xlu0 %v3153, 32
    %v3322 = vpop.permute.xlu0 %3321
    %3323 = vrot.lane.b32.xlu0 %v3154, 32
    %v3324 = vpop.permute.xlu0 %3323
    %3325 = vrot.lane.b32.xlu0 %v3155, 32
    %v3326 = vpop.permute.xlu0 %3325
    %3327 = vrot.lane.b32.xlu0 %v3156, 32
    %v3328 = vpop.permute.xlu0 %3327
    %3329 = vrot.lane.b32.xlu0 %v3157, 32
    %v3330 = vpop.permute.xlu0 %3329
    %3331 = vrot.lane.b32.xlu0 %v3158, 32
    %v3332 = vpop.permute.xlu0 %3331
    %3333 = vrot.lane.b32.xlu0 %v3159, 32
    %v3334 = vpop.permute.xlu0 %3333
    %3335 = vrot.lane.b32.xlu0 %v3160, 32
    %v3336 = vpop.permute.xlu0 %3335
    %3337 = vrot.lane.b32.xlu0 %v3161, 32
    %v3338 = vpop.permute.xlu0 %3337
    %3339 = vrot.lane.b32.xlu0 %v3162, 32
    %v3340 = vpop.permute.xlu0 %3339
    %3341 = vrot.lane.b32.xlu0 %v3163, 32
    %v3342 = vpop.permute.xlu0 %3341
    %3343 = vrot.lane.b32.xlu0 %v3164, 32
    %v3344 = vpop.permute.xlu0 %3343
    %3345 = vrot.lane.b32.xlu0 %v3165, 32
    %v3346 = vpop.permute.xlu0 %3345
    %3347 = vrot.lane.b32.xlu0 %v3166, 32
    %v3348 = vpop.permute.xlu0 %3347
    %3349 = vrot.lane.b32.xlu0 %v3167, 32
    %v3350 = vpop.permute.xlu0 %3349
    %3351 = vrot.lane.b32.xlu0 %v3168, 32
    %v3352 = vpop.permute.xlu0 %3351
    %3353 = vrot.lane.b32.xlu0 %v3169, 32
    %v3354 = vpop.permute.xlu0 %3353
    %3355 = vrot.lane.b32.xlu0 %v3170, 32
    %v3356 = vpop.permute.xlu0 %3355
    %3357 = vrot.lane.b32.xlu0 %v3171, 32
    %v3358 = vpop.permute.xlu0 %3357
    %3359 = vrot.lane.b32.xlu0 %v3172, 32
    %v3360 = vpop.permute.xlu0 %3359
    %3361 = vrot.lane.b32.xlu0 %v3173, 32
    %v3362 = vpop.permute.xlu0 %3361
    %3363 = vrot.lane.b32.xlu0 %v3174, 32
    %v3364 = vpop.permute.xlu0 %3363
    %3365 = vrot.lane.b32.xlu0 %v3175, 32
    %v3366 = vpop.permute.xlu0 %3365
    %3367 = vrot.lane.b32.xlu0 %v3176, 32
    %v3368 = vpop.permute.xlu0 %3367
    %vm3433 = vcmask 294144
    %3434 = vst.msk [vmem:[#allocation4] sm:$0xff] %vm3433, %v3242
    %3435 = vst.msk [vmem:[#allocation4 + $0x8] sm:$0xff] %vm3433, %v3244
    %3436 = vst.msk [vmem:[#allocation4 + $0x10] sm:$0xff] %vm3433, %v3246
    %3437 = vst.msk [vmem:[#allocation4 + $0x18] sm:$0xff] %vm3433, %v3248
    %3438 = vst.msk [vmem:[#allocation4 + $0x20] sm:$0xff] %vm3433, %v3250
    %3439 = vst.msk [vmem:[#allocation4 + $0x28] sm:$0xff] %vm3433, %v3252
    %3440 = vst.msk [vmem:[#allocation4 + $0x30] sm:$0xff] %vm3433, %v3254
    %3441 = vst.msk [vmem:[#allocation4 + $0x38] sm:$0xff] %vm3433, %v3256
    %3442 = vst.msk [vmem:[#allocation4 + $0x40] sm:$0xff] %vm3433, %v3258
    %3443 = vst.msk [vmem:[#allocation4 + $0x48] sm:$0xff] %vm3433, %v3260
    %3444 = vst.msk [vmem:[#allocation4 + $0x50] sm:$0xff] %vm3433, %v3262
    %3445 = vst.msk [vmem:[#allocation4 + $0x58] sm:$0xff] %vm3433, %v3264
    %3446 = vst.msk [vmem:[#allocation4 + $0x60] sm:$0xff] %vm3433, %v3266
    %3447 = vst.msk [vmem:[#allocation4 + $0x68] sm:$0xff] %vm3433, %v3268
    %3448 = vst.msk [vmem:[#allocation4 + $0x70] sm:$0xff] %vm3433, %v3270
    %3449 = vst.msk [vmem:[#allocation4 + $0x78] sm:$0xff] %vm3433, %v3272
    %3450 = vst.msk [vmem:[#allocation4 + $0x80] sm:$0xff] %vm3433, %v3274
    %3451 = vst.msk [vmem:[#allocation4 + $0x88] sm:$0xff] %vm3433, %v3276
    %3452 = vst.msk [vmem:[#allocation4 + $0x90] sm:$0xff] %vm3433, %v3278
    %3453 = vst.msk [vmem:[#allocation4 + $0x98] sm:$0xff] %vm3433, %v3280
    %3454 = vst.msk [vmem:[#allocation4 + $0xa0] sm:$0xff] %vm3433, %v3282
    %3455 = vst.msk [vmem:[#allocation4 + $0xa8] sm:$0xff] %vm3433, %v3284
    %3456 = vst.msk [vmem:[#allocation4 + $0xb0] sm:$0xff] %vm3433, %v3286
    %3457 = vst.msk [vmem:[#allocation4 + $0xb8] sm:$0xff] %vm3433, %v3288
    %3458 = vst.msk [vmem:[#allocation4 + $0xc0] sm:$0xff] %vm3433, %v3290
    %3459 = vst.msk [vmem:[#allocation4 + $0xc8] sm:$0xff] %vm3433, %v3292
    %3460 = vst.msk [vmem:[#allocation4 + $0xd0] sm:$0xff] %vm3433, %v3294
    %3461 = vst.msk [vmem:[#allocation4 + $0xd8] sm:$0xff] %vm3433, %v3296
    %3462 = vst.msk [vmem:[#allocation4 + $0xe0] sm:$0xff] %vm3433, %v3298
    %3463 = vst.msk [vmem:[#allocation4 + $0xe8] sm:$0xff] %vm3433, %v3300
    %3464 = vst.msk [vmem:[#allocation4 + $0xf0] sm:$0xff] %vm3433, %v3302
    %3465 = vst.msk [vmem:[#allocation4 + $0xf8] sm:$0xff] %vm3433, %v3304
    %3466 = vst.msk [vmem:[#allocation4 + $0x100] sm:$0xff] %vm3433, %v3306
    %3467 = vst.msk [vmem:[#allocation4 + $0x108] sm:$0xff] %vm3433, %v3308
    %3468 = vst.msk [vmem:[#allocation4 + $0x110] sm:$0xff] %vm3433, %v3310
    %3469 = vst.msk [vmem:[#allocation4 + $0x118] sm:$0xff] %vm3433, %v3312
    %3470 = vst.msk [vmem:[#allocation4 + $0x120] sm:$0xff] %vm3433, %v3314
    %3471 = vst.msk [vmem:[#allocation4 + $0x128] sm:$0xff] %vm3433, %v3316
    %3472 = vst.msk [vmem:[#allocation4 + $0x130] sm:$0xff] %vm3433, %v3318
    %3473 = vst.msk [vmem:[#allocation4 + $0x138] sm:$0xff] %vm3433, %v3320
    %3474 = vst.msk [vmem:[#allocation4 + $0x140] sm:$0xff] %vm3433, %v3322
    %3475 = vst.msk [vmem:[#allocation4 + $0x148] sm:$0xff] %vm3433, %v3324
    %3476 = vst.msk [vmem:[#allocation4 + $0x150] sm:$0xff] %vm3433, %v3326
    %3477 = vst.msk [vmem:[#allocation4 + $0x158] sm:$0xff] %vm3433, %v3328
    %3478 = vst.msk [vmem:[#allocation4 + $0x160] sm:$0xff] %vm3433, %v3330
    %3479 = vst.msk [vmem:[#allocation4 + $0x168] sm:$0xff] %vm3433, %v3332
    %3480 = vst.msk [vmem:[#allocation4 + $0x170] sm:$0xff] %vm3433, %v3334
    %3481 = vst.msk [vmem:[#allocation4 + $0x178] sm:$0xff] %vm3433, %v3336
    %3482 = vst.msk [vmem:[#allocation4 + $0x180] sm:$0xff] %vm3433, %v3338
    %3483 = vst.msk [vmem:[#allocation4 + $0x188] sm:$0xff] %vm3433, %v3340
    %3484 = vst.msk [vmem:[#allocation4 + $0x190] sm:$0xff] %vm3433, %v3342
    %3485 = vst.msk [vmem:[#allocation4 + $0x198] sm:$0xff] %vm3433, %v3344
    %3486 = vst.msk [vmem:[#allocation4 + $0x1a0] sm:$0xff] %vm3433, %v3346
    %3487 = vst.msk [vmem:[#allocation4 + $0x1a8] sm:$0xff] %vm3433, %v3348
    %3488 = vst.msk [vmem:[#allocation4 + $0x1b0] sm:$0xff] %vm3433, %v3350
    %3489 = vst.msk [vmem:[#allocation4 + $0x1b8] sm:$0xff] %vm3433, %v3352
    %3490 = vst.msk [vmem:[#allocation4 + $0x1c0] sm:$0xff] %vm3433, %v3354
    %3491 = vst.msk [vmem:[#allocation4 + $0x1c8] sm:$0xff] %vm3433, %v3356
    %3492 = vst.msk [vmem:[#allocation4 + $0x1d0] sm:$0xff] %vm3433, %v3358
    %3493 = vst.msk [vmem:[#allocation4 + $0x1d8] sm:$0xff] %vm3433, %v3360
    %3494 = vst.msk [vmem:[#allocation4 + $0x1e0] sm:$0xff] %vm3433, %v3362
    %3495 = vst.msk [vmem:[#allocation4 + $0x1e8] sm:$0xff] %vm3433, %v3364
    %3496 = vst.msk [vmem:[#allocation4 + $0x1f0] sm:$0xff] %vm3433, %v3366
    %3497 = vst.msk [vmem:[#allocation4 + $0x1f8] sm:$0xff] %vm3433, %v3368
    %v3498 = vld [vmem:[#allocation4] sm:$0xff]
    %v3499 = vld [vmem:[#allocation4 + $0x8] sm:$0xff]
    %v3500 = vld [vmem:[#allocation4 + $0x10] sm:$0xff]
    %v3501 = vld [vmem:[#allocation4 + $0x18] sm:$0xff]
    %v3502 = vld [vmem:[#allocation4 + $0x20] sm:$0xff]
    %v3503 = vld [vmem:[#allocation4 + $0x28] sm:$0xff]
    %v3504 = vld [vmem:[#allocation4 + $0x30] sm:$0xff]
    %v3505 = vld [vmem:[#allocation4 + $0x38] sm:$0xff]
    %v3506 = vld [vmem:[#allocation4 + $0x40] sm:$0xff]
    %v3507 = vld [vmem:[#allocation4 + $0x48] sm:$0xff]
    %v3508 = vld [vmem:[#allocation4 + $0x50] sm:$0xff]
    %v3509 = vld [vmem:[#allocation4 + $0x58] sm:$0xff]
    %v3510 = vld [vmem:[#allocation4 + $0x60] sm:$0xff]
    %v3511 = vld [vmem:[#allocation4 + $0x68] sm:$0xff]
    %v3512 = vld [vmem:[#allocation4 + $0x70] sm:$0xff]
    %v3513 = vld [vmem:[#allocation4 + $0x78] sm:$0xff]
    %v3514 = vld [vmem:[#allocation4 + $0x80] sm:$0xff]
    %v3515 = vld [vmem:[#allocation4 + $0x88] sm:$0xff]
    %v3516 = vld [vmem:[#allocation4 + $0x90] sm:$0xff]
    %v3517 = vld [vmem:[#allocation4 + $0x98] sm:$0xff]
    %v3518 = vld [vmem:[#allocation4 + $0xa0] sm:$0xff]
    %v3519 = vld [vmem:[#allocation4 + $0xa8] sm:$0xff]
    %v3520 = vld [vmem:[#allocation4 + $0xb0] sm:$0xff]
    %v3521 = vld [vmem:[#allocation4 + $0xb8] sm:$0xff]
    %v3522 = vld [vmem:[#allocation4 + $0xc0] sm:$0xff]
    %v3523 = vld [vmem:[#allocation4 + $0xc8] sm:$0xff]
    %v3524 = vld [vmem:[#allocation4 + $0xd0] sm:$0xff]
    %v3525 = vld [vmem:[#allocation4 + $0xd8] sm:$0xff]
    %v3526 = vld [vmem:[#allocation4 + $0xe0] sm:$0xff]
    %v3527 = vld [vmem:[#allocation4 + $0xe8] sm:$0xff]
    %v3528 = vld [vmem:[#allocation4 + $0xf0] sm:$0xff]
    %v3529 = vld [vmem:[#allocation4 + $0xf8] sm:$0xff]
    %v3530 = vld [vmem:[#allocation4 + $0x100] sm:$0xff]
    %v3531 = vld [vmem:[#allocation4 + $0x108] sm:$0xff]
    %v3532 = vld [vmem:[#allocation4 + $0x110] sm:$0xff]
    %v3533 = vld [vmem:[#allocation4 + $0x118] sm:$0xff]
    %v3534 = vld [vmem:[#allocation4 + $0x120] sm:$0xff]
    %v3535 = vld [vmem:[#allocation4 + $0x128] sm:$0xff]
    %v3536 = vld [vmem:[#allocation4 + $0x130] sm:$0xff]
    %v3537 = vld [vmem:[#allocation4 + $0x138] sm:$0xff]
    %v3538 = vld [vmem:[#allocation4 + $0x140] sm:$0xff]
    %v3539 = vld [vmem:[#allocation4 + $0x148] sm:$0xff]
    %v3540 = vld [vmem:[#allocation4 + $0x150] sm:$0xff]
    %v3541 = vld [vmem:[#allocation4 + $0x158] sm:$0xff]
    %v3542 = vld [vmem:[#allocation4 + $0x160] sm:$0xff]
    %v3543 = vld [vmem:[#allocation4 + $0x168] sm:$0xff]
    %v3544 = vld [vmem:[#allocation4 + $0x170] sm:$0xff]
    %v3545 = vld [vmem:[#allocation4 + $0x178] sm:$0xff]
    %v3546 = vld [vmem:[#allocation4 + $0x180] sm:$0xff]
    %v3547 = vld [vmem:[#allocation4 + $0x188] sm:$0xff]
    %v3548 = vld [vmem:[#allocation4 + $0x190] sm:$0xff]
    %v3549 = vld [vmem:[#allocation4 + $0x198] sm:$0xff]
    %v3550 = vld [vmem:[#allocation4 + $0x1a0] sm:$0xff]
    %v3551 = vld [vmem:[#allocation4 + $0x1a8] sm:$0xff]
    %v3552 = vld [vmem:[#allocation4 + $0x1b0] sm:$0xff]
    %v3553 = vld [vmem:[#allocation4 + $0x1b8] sm:$0xff]
    %v3554 = vld [vmem:[#allocation4 + $0x1c0] sm:$0xff]
    %v3555 = vld [vmem:[#allocation4 + $0x1c8] sm:$0xff]
    %v3556 = vld [vmem:[#allocation4 + $0x1d0] sm:$0xff]
    %v3557 = vld [vmem:[#allocation4 + $0x1d8] sm:$0xff]
    %v3558 = vld [vmem:[#allocation4 + $0x1e0] sm:$0xff]
    %v3559 = vld [vmem:[#allocation4 + $0x1e8] sm:$0xff]
    %v3560 = vld [vmem:[#allocation4 + $0x1f0] sm:$0xff]
    %v3561 = vld [vmem:[#allocation4 + $0x1f8] sm:$0xff]
    %v3562 = vld [vmem:[%s1] sm:$0xff]
    %v3563 = vld [vmem:[%s1 + $0x8] sm:$0xff]
    %v3564 = vld [vmem:[%s1 + $0x10] sm:$0xff]
    %v3565 = vld [vmem:[%s1 + $0x18] sm:$0xff]
    %v3566 = vld [vmem:[%s1 + $0x20] sm:$0xf]
    %v3567 = vld [vmem:[%s2] sm:$0x1]
    %v3569 = vlaneseq
    %v3570 = vshrl.u32 %v3569, 7
    %v3571 = vsub.s32 0, %v3570
    %v3572 = vrot.slane %v3567, %v3571
    %vm3574 = vcmask 293888
    %v3576 = vsel %vm3574, %v3498, 0
    %v3579 = vsel %vm3574, %v3499, 0
    %v3582 = vsel %vm3574, %v3500, 0
    %v3585 = vsel %vm3574, %v3501, 0
    %v3588 = vsel %vm3574, %v3502, 0
    %v3591 = vsel %vm3574, %v3503, 0
    %v3594 = vsel %vm3574, %v3504, 0
    %v3597 = vsel %vm3574, %v3505, 0
    %v3600 = vsel %vm3574, %v3506, 0
    %v3603 = vsel %vm3574, %v3507, 0
    %v3606 = vsel %vm3574, %v3508, 0
    %v3609 = vsel %vm3574, %v3509, 0
    %v3612 = vsel %vm3574, %v3510, 0
    %v3615 = vsel %vm3574, %v3511, 0
    %v3618 = vsel %vm3574, %v3512, 0
    %v3621 = vsel %vm3574, %v3513, 0
    %v3624 = vsel %vm3574, %v3514, 0
    %v3627 = vsel %vm3574, %v3515, 0
    %v3630 = vsel %vm3574, %v3516, 0
    %v3633 = vsel %vm3574, %v3517, 0
    %v3636 = vsel %vm3574, %v3518, 0
    %v3639 = vsel %vm3574, %v3519, 0
    %v3642 = vsel %vm3574, %v3520, 0
    %v3645 = vsel %vm3574, %v3521, 0
    %v3648 = vsel %vm3574, %v3522, 0
    %v3651 = vsel %vm3574, %v3523, 0
    %v3654 = vsel %vm3574, %v3524, 0
    %v3657 = vsel %vm3574, %v3525, 0
    %v3660 = vsel %vm3574, %v3526, 0
    %v3663 = vsel %vm3574, %v3527, 0
    %v3666 = vsel %vm3574, %v3528, 0
    %v3669 = vsel %vm3574, %v3529, 0
    %v3672 = vsel %vm3574, %v3530, 0
    %v3675 = vsel %vm3574, %v3531, 0
    %v3678 = vsel %vm3574, %v3532, 0
    %v3681 = vsel %vm3574, %v3533, 0
    %v3684 = vsel %vm3574, %v3534, 0
    %v3687 = vsel %vm3574, %v3535, 0
    %v3690 = vsel %vm3574, %v3536, 0
    %v3693 = vsel %vm3574, %v3537, 0
    %v3696 = vsel %vm3574, %v3538, 0
    %v3699 = vsel %vm3574, %v3539, 0
    %v3702 = vsel %vm3574, %v3540, 0
    %v3705 = vsel %vm3574, %v3541, 0
    %v3708 = vsel %vm3574, %v3542, 0
    %v3711 = vsel %vm3574, %v3543, 0
    %v3714 = vsel %vm3574, %v3544, 0
    %v3717 = vsel %vm3574, %v3545, 0
    %v3720 = vsel %vm3574, %v3546, 0
    %v3723 = vsel %vm3574, %v3547, 0
    %v3726 = vsel %vm3574, %v3548, 0
    %v3729 = vsel %vm3574, %v3549, 0
    %v3732 = vsel %vm3574, %v3550, 0
    %v3735 = vsel %vm3574, %v3551, 0
    %v3738 = vsel %vm3574, %v3552, 0
    %v3741 = vsel %vm3574, %v3553, 0
    %v3744 = vsel %vm3574, %v3554, 0
    %v3747 = vsel %vm3574, %v3555, 0
    %v3750 = vsel %vm3574, %v3556, 0
    %v3753 = vsel %vm3574, %v3557, 0
    %v3756 = vsel %vm3574, %v3558, 0
    %v3759 = vsel %vm3574, %v3559, 0
    %v3762 = vsel %vm3574, %v3560, 0
    %v3765 = vsel %vm3574, %v3561, 0
    %vm3767 = vcmask 1043456
    %v3769 = vsel %vm3767, %v3566, 0
    %3771 = vmatprep.subr.mxu0 0.0
    %3772 = vmatpush1.msra.mxu0 %v3562
    %3773 = vmatprep.subr.mxu0 0.0
    %3774 = vmatpush1.msra.mxu0 %v3563
    %3775 = vmatprep.subr.mxu0 0.0
    %3776 = vmatpush1.msra.mxu0 %v3564
    %3777 = vmatprep.subr.mxu0 0.0
    %3778 = vmatpush1.msra.mxu0 %v3565
    %3779 = vmatprep.subr.mxu0 0.0
    %3780 = vmatpush1.msra.mxu0 %v3769
    %3781 = vmatprep.subr.mxu0 0.0
    %3782 = vmatpush1.msra.mxu0 0.0
    %3783 = vmatprep.subr.mxu0 0.0
    %3784 = vmatpush1.msra.mxu0 0.0
    %3785 = vmatprep.subr.mxu0 0.0
    %3786 = vmatpush1.msra.mxu0 0.0
    %3787 = vmatprep.subr.mxu0 0.0
    %3788 = vmatpush1.msra.mxu0 0.0
    %3789 = vmatprep.subr.mxu0 0.0
    %3790 = vmatpush1.msra.mxu0 0.0
    %3791 = vmatprep.subr.mxu0 0.0
    %3792 = vmatpush1.msra.mxu0 0.0
    %3793 = vmatprep.subr.mxu0 0.0
    %3794 = vmatpush1.msra.mxu0 0.0
    %3795 = vmatprep.subr.mxu0 0.0
    %3796 = vmatpush1.msra.mxu0 0.0
    %3797 = vmatprep.subr.mxu0 0.0
    %3798 = vmatpush1.msra.mxu0 0.0
    %3799 = vmatprep.subr.mxu0 0.0
    %3800 = vmatpush1.msra.mxu0 0.0
    %3801 = vmatprep.subr.mxu0 0.0
    %3802 = vmatpush1.msra.mxu0 0.0
    %3803 = vmatprep.subr.mxu0 0.0
    %3804 = vmatpush1.msra.mxu0 0.0
    %3805 = vmatprep.subr.mxu0 0.0
    %3806 = vmatpush1.msra.mxu0 0.0
    %3807 = vmatprep.subr.mxu0 0.0
    %3808 = vmatpush1.msra.mxu0 0.0
    %3809 = vmatprep.subr.mxu0 0.0
    %3810 = vmatpush1.msra.mxu0 0.0
    %3811 = vmatprep.subr.mxu0 0.0
    %3812 = vmatpush1.msra.mxu0 0.0
    %3813 = vmatprep.subr.mxu0 0.0
    %3814 = vmatpush1.msra.mxu0 0.0
    %3815 = vmatprep.subr.mxu0 0.0
    %3816 = vmatpush1.msra.mxu0 0.0
    %3817 = vmatprep.subr.mxu0 0.0
    %3818 = vmatpush1.msra.mxu0 0.0
    %3819 = vmatprep.subr.mxu0 0.0
    %3820 = vmatpush1.msra.mxu0 0.0
    %3821 = vmatprep.subr.mxu0 0.0
    %3822 = vmatpush1.msra.mxu0 0.0
    %3823 = vmatprep.subr.mxu0 0.0
    %3824 = vmatpush1.msra.mxu0 0.0
    %3825 = vmatprep.subr.mxu0 0.0
    %3826 = vmatpush1.msra.mxu0 0.0
    %3827 = vmatprep.subr.mxu0 0.0
    %3828 = vmatpush1.msra.mxu0 0.0
    %3829 = vmatprep.subr.mxu0 0.0
    %3830 = vmatpush1.msra.mxu0 0.0
    %3831 = vmatprep.subr.mxu0 0.0
    %3832 = vmatpush1.msra.mxu0 0.0
    %3833 = vmatprep.subr.mxu0 0.0
    %3834 = vmatpush1.msra.mxu0 0.0
    %3835 = vmatprep.mubr.f32.mxu0 0.0
    %3836 = vmatmul.mubr.f32.gmra.mrb[0].mxu0 %v3576
    %v3837 = vpop.f32.mrb[0].mxu0
    %v3838 = vadd.f32 %v3572, %v3837
    %v3839 = vpop.f32.mrb[0].mxu0
    %3840 = vmatprep.mubr.f32.mxu0 0.0
    %3841 = vmatmul.mubr.f32.gmra.mrb[0].mxu0 %v3579
    %v3842 = vpop.f32.mrb[0].mxu0
    %v3843 = vadd.f32 %v3572, %v3842
    %v3844 = vpop.f32.mrb[0].mxu0
    %3845 = vmatprep.mubr.f32.mxu0 0.0
    %3846 = vmatmul.mubr.f32.gmra.mrb[0].mxu0 %v3582
    %v3847 = vpop.f32.mrb[0].mxu0
    %v3848 = vadd.f32 %v3572, %v3847
    %v3849 = vpop.f32.mrb[0].mxu0
    %3850 = vmatprep.mubr.f32.mxu0 0.0
    %3851 = vmatmul.mubr.f32.gmra.mrb[0].mxu0 %v3585
    %v3852 = vpop.f32.mrb[0].mxu0
    %v3853 = vadd.f32 %v3572, %v3852
    %v3854 = vpop.f32.mrb[0].mxu0
    %3855 = vmatprep.mubr.f32.mxu0 0.0
    %3856 = vmatmul.mubr.f32.gmra.mrb[0].mxu0 %v3588
    %v3857 = vpop.f32.mrb[0].mxu0
    %v3858 = vadd.f32 %v3572, %v3857
    %v3859 = vpop.f32.mrb[0].mxu0
    %3860 = vmatprep.mubr.f32.mxu0 0.0
    %3861 = vmatmul.mubr.f32.gmra.mrb[0].mxu0 %v3591
    %v3862 = vpop.f32.mrb[0].mxu0
    %v3863 = vadd.f32 %v3572, %v3862
    %v3864 = vpop.f32.mrb[0].mxu0
    %3865 = vmatprep.mubr.f32.mxu0 0.0
    %3866 = vmatmul.mubr.f32.gmra.mrb[0].mxu0 %v3594
    %v3867 = vpop.f32.mrb[0].mxu0
    %v3868 = vadd.f32 %v3572, %v3867
    %v3869 = vpop.f32.mrb[0].mxu0
    %3870 = vmatprep.mubr.f32.mxu0 0.0
    %3871 = vmatmul.mubr.f32.gmra.mrb[0].mxu0 %v3597
    %v3872 = vpop.f32.mrb[0].mxu0
    %v3873 = vadd.f32 %v3572, %v3872
    %v3874 = vpop.f32.mrb[0].mxu0
    %3875 = vmatprep.mubr.f32.mxu0 0.0
    %3876 = vmatmul.mubr.f32.gmra.mrb[0].mxu0 %v3600
    %v3877 = vpop.f32.mrb[0].mxu0
    %v3878 = vadd.f32 %v3572, %v3877
    %v3879 = vpop.f32.mrb[0].mxu0
    %3880 = vmatprep.mubr.f32.mxu0 0.0
    %3881 = vmatmul.mubr.f32.gmra.mrb[0].mxu0 %v3603
    %v3882 = vpop.f32.mrb[0].mxu0
    %v3883 = vadd.f32 %v3572, %v3882
    %v3884 = vpop.f32.mrb[0].mxu0
    %3885 = vmatprep.mubr.f32.mxu0 0.0
    %3886 = vmatmul.mubr.f32.gmra.mrb[0].mxu0 %v3606
    %v3887 = vpop.f32.mrb[0].mxu0
    %v3888 = vadd.f32 %v3572, %v3887
    %v3889 = vpop.f32.mrb[0].mxu0
    %3890 = vmatprep.mubr.f32.mxu0 0.0
    %3891 = vmatmul.mubr.f32.gmra.mrb[0].mxu0 %v3609
    %v3892 = vpop.f32.mrb[0].mxu0
    %v3893 = vadd.f32 %v3572, %v3892
    %v3894 = vpop.f32.mrb[0].mxu0
    %3895 = vmatprep.mubr.f32.mxu0 0.0
    %3896 = vmatmul.mubr.f32.gmra.mrb[0].mxu0 %v3612
    %v3897 = vpop.f32.mrb[0].mxu0
    %v3898 = vadd.f32 %v3572, %v3897
    %v3899 = vpop.f32.mrb[0].mxu0
    %3900 = vmatprep.mubr.f32.mxu0 0.0
    %3901 = vmatmul.mubr.f32.gmra.mrb[0].mxu0 %v3615
    %v3902 = vpop.f32.mrb[0].mxu0
    %v3903 = vadd.f32 %v3572, %v3902
    %v3904 = vpop.f32.mrb[0].mxu0
    %3905 = vmatprep.mubr.f32.mxu0 0.0
    %3906 = vmatmul.mubr.f32.gmra.mrb[0].mxu0 %v3618
    %v3907 = vpop.f32.mrb[0].mxu0
    %v3908 = vadd.f32 %v3572, %v3907
    %v3909 = vpop.f32.mrb[0].mxu0
    %3910 = vmatprep.mubr.f32.mxu0 0.0
    %3911 = vmatmul.mubr.f32.gmra.mrb[0].mxu0 %v3621
    %v3912 = vpop.f32.mrb[0].mxu0
    %v3913 = vadd.f32 %v3572, %v3912
    %v3914 = vpop.f32.mrb[0].mxu0
    %3915 = vmatprep.mubr.f32.mxu0 0.0
    %3916 = vmatmul.mubr.f32.gmra.mrb[0].mxu0 %v3624
    %v3917 = vpop.f32.mrb[0].mxu0
    %v3918 = vadd.f32 %v3572, %v3917
    %v3919 = vpop.f32.mrb[0].mxu0
    %3920 = vmatprep.mubr.f32.mxu0 0.0
    %3921 = vmatmul.mubr.f32.gmra.mrb[0].mxu0 %v3627
    %v3922 = vpop.f32.mrb[0].mxu0
    %v3923 = vadd.f32 %v3572, %v3922
    %v3924 = vpop.f32.mrb[0].mxu0
    %3925 = vmatprep.mubr.f32.mxu0 0.0
    %3926 = vmatmul.mubr.f32.gmra.mrb[0].mxu0 %v3630
    %v3927 = vpop.f32.mrb[0].mxu0
    %v3928 = vadd.f32 %v3572, %v3927
    %v3929 = vpop.f32.mrb[0].mxu0
    %3930 = vmatprep.mubr.f32.mxu0 0.0
    %3931 = vmatmul.mubr.f32.gmra.mrb[0].mxu0 %v3633
    %v3932 = vpop.f32.mrb[0].mxu0
    %v3933 = vadd.f32 %v3572, %v3932
    %v3934 = vpop.f32.mrb[0].mxu0
    %3935 = vmatprep.mubr.f32.mxu0 0.0
    %3936 = vmatmul.mubr.f32.gmra.mrb[0].mxu0 %v3636
    %v3937 = vpop.f32.mrb[0].mxu0
    %v3938 = vadd.f32 %v3572, %v3937
    %v3939 = vpop.f32.mrb[0].mxu0
    %3940 = vmatprep.mubr.f32.mxu0 0.0
    %3941 = vmatmul.mubr.f32.gmra.mrb[0].mxu0 %v3639
    %v3942 = vpop.f32.mrb[0].mxu0
    %v3943 = vadd.f32 %v3572, %v3942
    %v3944 = vpop.f32.mrb[0].mxu0
    %3945 = vmatprep.mubr.f32.mxu0 0.0
    %3946 = vmatmul.mubr.f32.gmra.mrb[0].mxu0 %v3642
    %v3947 = vpop.f32.mrb[0].mxu0
    %v3948 = vadd.f32 %v3572, %v3947
    %v3949 = vpop.f32.mrb[0].mxu0
    %3950 = vmatprep.mubr.f32.mxu0 0.0
    %3951 = vmatmul.mubr.f32.gmra.mrb[0].mxu0 %v3645
    %v3952 = vpop.f32.mrb[0].mxu0
    %v3953 = vadd.f32 %v3572, %v3952
    %v3954 = vpop.f32.mrb[0].mxu0
    %3955 = vmatprep.mubr.f32.mxu0 0.0
    %3956 = vmatmul.mubr.f32.gmra.mrb[0].mxu0 %v3648
    %v3957 = vpop.f32.mrb[0].mxu0
    %v3958 = vadd.f32 %v3572, %v3957
    %v3959 = vpop.f32.mrb[0].mxu0
    %3960 = vmatprep.mubr.f32.mxu0 0.0
    %3961 = vmatmul.mubr.f32.gmra.mrb[0].mxu0 %v3651
    %v3962 = vpop.f32.mrb[0].mxu0
    %v3963 = vadd.f32 %v3572, %v3962
    %v3964 = vpop.f32.mrb[0].mxu0
    %3965 = vmatprep.mubr.f32.mxu0 0.0
    %3966 = vmatmul.mubr.f32.gmra.mrb[0].mxu0 %v3654
    %v3967 = vpop.f32.mrb[0].mxu0
    %v3968 = vadd.f32 %v3572, %v3967
    %v3969 = vpop.f32.mrb[0].mxu0
    %3970 = vmatprep.mubr.f32.mxu0 0.0
    %3971 = vmatmul.mubr.f32.gmra.mrb[0].mxu0 %v3657
    %v3972 = vpop.f32.mrb[0].mxu0
    %v3973 = vadd.f32 %v3572, %v3972
    %v3974 = vpop.f32.mrb[0].mxu0
    %3975 = vmatprep.mubr.f32.mxu0 0.0
    %3976 = vmatmul.mubr.f32.gmra.mrb[0].mxu0 %v3660
    %v3977 = vpop.f32.mrb[0].mxu0
    %v3978 = vadd.f32 %v3572, %v3977
    %v3979 = vpop.f32.mrb[0].mxu0
    %3980 = vmatprep.mubr.f32.mxu0 0.0
    %3981 = vmatmul.mubr.f32.gmra.mrb[0].mxu0 %v3663
    %v3982 = vpop.f32.mrb[0].mxu0
    %v3983 = vadd.f32 %v3572, %v3982
    %v3984 = vpop.f32.mrb[0].mxu0
    %3985 = vmatprep.mubr.f32.mxu0 0.0
    %3986 = vmatmul.mubr.f32.gmra.mrb[0].mxu0 %v3666
    %v3987 = vpop.f32.mrb[0].mxu0
    %v3988 = vadd.f32 %v3572, %v3987
    %v3989 = vpop.f32.mrb[0].mxu0
    %3990 = vmatprep.mubr.f32.mxu0 0.0
    %3991 = vmatmul.mubr.f32.gmra.mrb[0].mxu0 %v3669
    %v3992 = vpop.f32.mrb[0].mxu0
    %v3993 = vadd.f32 %v3572, %v3992
    %v3994 = vpop.f32.mrb[0].mxu0
    %3995 = vmatprep.mubr.f32.mxu0 0.0
    %3996 = vmatmul.mubr.f32.gmra.mrb[0].mxu0 %v3672
    %v3997 = vpop.f32.mrb[0].mxu0
    %v3998 = vadd.f32 %v3572, %v3997
    %v3999 = vpop.f32.mrb[0].mxu0
    %4000 = vmatprep.mubr.f32.mxu0 0.0
    %4001 = vmatmul.mubr.f32.gmra.mrb[0].mxu0 %v3675
    %v4002 = vpop.f32.mrb[0].mxu0
    %v4003 = vadd.f32 %v3572, %v4002
    %v4004 = vpop.f32.mrb[0].mxu0
    %4005 = vmatprep.mubr.f32.mxu0 0.0
    %4006 = vmatmul.mubr.f32.gmra.mrb[0].mxu0 %v3678
    %v4007 = vpop.f32.mrb[0].mxu0
    %v4008 = vadd.f32 %v3572, %v4007
    %v4009 = vpop.f32.mrb[0].mxu0
    %4010 = vmatprep.mubr.f32.mxu0 0.0
    %4011 = vmatmul.mubr.f32.gmra.mrb[0].mxu0 %v3681
    %v4012 = vpop.f32.mrb[0].mxu0
    %v4013 = vadd.f32 %v3572, %v4012
    %v4014 = vpop.f32.mrb[0].mxu0
    %4015 = vmatprep.mubr.f32.mxu0 0.0
    %4016 = vmatmul.mubr.f32.gmra.mrb[0].mxu0 %v3684
    %v4017 = vpop.f32.mrb[0].mxu0
    %v4018 = vadd.f32 %v3572, %v4017
    %v4019 = vpop.f32.mrb[0].mxu0
    %4020 = vmatprep.mubr.f32.mxu0 0.0
    %4021 = vmatmul.mubr.f32.gmra.mrb[0].mxu0 %v3687
    %v4022 = vpop.f32.mrb[0].mxu0
    %v4023 = vadd.f32 %v3572, %v4022
    %v4024 = vpop.f32.mrb[0].mxu0
    %4025 = vmatprep.mubr.f32.mxu0 0.0
    %4026 = vmatmul.mubr.f32.gmra.mrb[0].mxu0 %v3690
    %v4027 = vpop.f32.mrb[0].mxu0
    %v4028 = vadd.f32 %v3572, %v4027
    %v4029 = vpop.f32.mrb[0].mxu0
    %4030 = vmatprep.mubr.f32.mxu0 0.0
    %4031 = vmatmul.mubr.f32.gmra.mrb[0].mxu0 %v3693
    %v4032 = vpop.f32.mrb[0].mxu0
    %v4033 = vadd.f32 %v3572, %v4032
    %v4034 = vpop.f32.mrb[0].mxu0
    %4035 = vmatprep.mubr.f32.mxu0 0.0
    %4036 = vmatmul.mubr.f32.gmra.mrb[0].mxu0 %v3696
    %v4037 = vpop.f32.mrb[0].mxu0
    %v4038 = vadd.f32 %v3572, %v4037
    %v4039 = vpop.f32.mrb[0].mxu0
    %4040 = vmatprep.mubr.f32.mxu0 0.0
    %4041 = vmatmul.mubr.f32.gmra.mrb[0].mxu0 %v3699
    %v4042 = vpop.f32.mrb[0].mxu0
    %v4043 = vadd.f32 %v3572, %v4042
    %v4044 = vpop.f32.mrb[0].mxu0
    %4045 = vmatprep.mubr.f32.mxu0 0.0
    %4046 = vmatmul.mubr.f32.gmra.mrb[0].mxu0 %v3702
    %v4047 = vpop.f32.mrb[0].mxu0
    %v4048 = vadd.f32 %v3572, %v4047
    %v4049 = vpop.f32.mrb[0].mxu0
    %4050 = vmatprep.mubr.f32.mxu0 0.0
    %4051 = vmatmul.mubr.f32.gmra.mrb[0].mxu0 %v3705
    %v4052 = vpop.f32.mrb[0].mxu0
    %v4053 = vadd.f32 %v3572, %v4052
    %v4054 = vpop.f32.mrb[0].mxu0
    %4055 = vmatprep.mubr.f32.mxu0 0.0
    %4056 = vmatmul.mubr.f32.gmra.mrb[0].mxu0 %v3708
    %v4057 = vpop.f32.mrb[0].mxu0
    %v4058 = vadd.f32 %v3572, %v4057
    %v4059 = vpop.f32.mrb[0].mxu0
    %4060 = vmatprep.mubr.f32.mxu0 0.0
    %4061 = vmatmul.mubr.f32.gmra.mrb[0].mxu0 %v3711
    %v4062 = vpop.f32.mrb[0].mxu0
    %v4063 = vadd.f32 %v3572, %v4062
    %v4064 = vpop.f32.mrb[0].mxu0
    %4065 = vmatprep.mubr.f32.mxu0 0.0
    %4066 = vmatmul.mubr.f32.gmra.mrb[0].mxu0 %v3714
    %v4067 = vpop.f32.mrb[0].mxu0
    %v4068 = vadd.f32 %v3572, %v4067
    %v4069 = vpop.f32.mrb[0].mxu0
    %4070 = vmatprep.mubr.f32.mxu0 0.0
    %4071 = vmatmul.mubr.f32.gmra.mrb[0].mxu0 %v3717
    %v4072 = vpop.f32.mrb[0].mxu0
    %v4073 = vadd.f32 %v3572, %v4072
    %v4074 = vpop.f32.mrb[0].mxu0
    %4075 = vmatprep.mubr.f32.mxu0 0.0
    %4076 = vmatmul.mubr.f32.gmra.mrb[0].mxu0 %v3720
    %v4077 = vpop.f32.mrb[0].mxu0
    %v4078 = vadd.f32 %v3572, %v4077
    %v4079 = vpop.f32.mrb[0].mxu0
    %4080 = vmatprep.mubr.f32.mxu0 0.0
    %4081 = vmatmul.mubr.f32.gmra.mrb[0].mxu0 %v3723
    %v4082 = vpop.f32.mrb[0].mxu0
    %v4083 = vadd.f32 %v3572, %v4082
    %v4084 = vpop.f32.mrb[0].mxu0
    %4085 = vmatprep.mubr.f32.mxu0 0.0
    %4086 = vmatmul.mubr.f32.gmra.mrb[0].mxu0 %v3726
    %v4087 = vpop.f32.mrb[0].mxu0
    %v4088 = vadd.f32 %v3572, %v4087
    %v4089 = vpop.f32.mrb[0].mxu0
    %4090 = vmatprep.mubr.f32.mxu0 0.0
    %4091 = vmatmul.mubr.f32.gmra.mrb[0].mxu0 %v3729
    %v4092 = vpop.f32.mrb[0].mxu0
    %v4093 = vadd.f32 %v3572, %v4092
    %v4094 = vpop.f32.mrb[0].mxu0
    %4095 = vmatprep.mubr.f32.mxu0 0.0
    %4096 = vmatmul.mubr.f32.gmra.mrb[0].mxu0 %v3732
    %v4097 = vpop.f32.mrb[0].mxu0
    %v4098 = vadd.f32 %v3572, %v4097
    %v4099 = vpop.f32.mrb[0].mxu0
    %4100 = vmatprep.mubr.f32.mxu0 0.0
    %4101 = vmatmul.mubr.f32.gmra.mrb[0].mxu0 %v3735
    %v4102 = vpop.f32.mrb[0].mxu0
    %v4103 = vadd.f32 %v3572, %v4102
    %v4104 = vpop.f32.mrb[0].mxu0
    %4105 = vmatprep.mubr.f32.mxu0 0.0
    %4106 = vmatmul.mubr.f32.gmra.mrb[0].mxu0 %v3738
    %v4107 = vpop.f32.mrb[0].mxu0
    %v4108 = vadd.f32 %v3572, %v4107
    %v4109 = vpop.f32.mrb[0].mxu0
    %4110 = vmatprep.mubr.f32.mxu0 0.0
    %4111 = vmatmul.mubr.f32.gmra.mrb[0].mxu0 %v3741
    %v4112 = vpop.f32.mrb[0].mxu0
    %v4113 = vadd.f32 %v3572, %v4112
    %v4114 = vpop.f32.mrb[0].mxu0
    %4115 = vmatprep.mubr.f32.mxu0 0.0
    %4116 = vmatmul.mubr.f32.gmra.mrb[0].mxu0 %v3744
    %v4117 = vpop.f32.mrb[0].mxu0
    %v4118 = vadd.f32 %v3572, %v4117
    %v4119 = vpop.f32.mrb[0].mxu0
    %4120 = vmatprep.mubr.f32.mxu0 0.0
    %4121 = vmatmul.mubr.f32.gmra.mrb[0].mxu0 %v3747
    %v4122 = vpop.f32.mrb[0].mxu0
    %v4123 = vadd.f32 %v3572, %v4122
    %v4124 = vpop.f32.mrb[0].mxu0
    %4125 = vmatprep.mubr.f32.mxu0 0.0
    %4126 = vmatmul.mubr.f32.gmra.mrb[0].mxu0 %v3750
    %v4127 = vpop.f32.mrb[0].mxu0
    %v4128 = vadd.f32 %v3572, %v4127
    %v4129 = vpop.f32.mrb[0].mxu0
    %4130 = vmatprep.mubr.f32.mxu0 0.0
    %4131 = vmatmul.mubr.f32.gmra.mrb[0].mxu0 %v3753
    %v4132 = vpop.f32.mrb[0].mxu0
    %v4133 = vadd.f32 %v3572, %v4132
    %v4134 = vpop.f32.mrb[0].mxu0
    %4135 = vmatprep.mubr.f32.mxu0 0.0
    %4136 = vmatmul.mubr.f32.gmra.mrb[0].mxu0 %v3756
    %v4137 = vpop.f32.mrb[0].mxu0
    %v4138 = vadd.f32 %v3572, %v4137
    %v4139 = vpop.f32.mrb[0].mxu0
    %4140 = vmatprep.mubr.f32.mxu0 0.0
    %4141 = vmatmul.mubr.f32.gmra.mrb[0].mxu0 %v3759
    %v4142 = vpop.f32.mrb[0].mxu0
    %v4143 = vadd.f32 %v3572, %v4142
    %v4144 = vpop.f32.mrb[0].mxu0
    %4145 = vmatprep.mubr.f32.mxu0 0.0
    %4146 = vmatmul.mubr.f32.gmra.mrb[0].mxu0 %v3762
    %v4147 = vpop.f32.mrb[0].mxu0
    %v4148 = vadd.f32 %v3572, %v4147
    %v4149 = vpop.f32.mrb[0].mxu0
    %4150 = vmatprep.mubr.f32.mxu0 0.0
    %4151 = vmatmul.mubr.f32.gmra.mrb[0].mxu0 %v3765
    %v4152 = vpop.f32.mrb[0].mxu0
    %v4153 = vadd.f32 %v3572, %v4152
    %v4154 = vpop.f32.mrb[0].mxu0
    %4155 = vdwg.mxu0
    %vm4156 = vcmask 64512
    %v4157 = vsel %vm4156, %v3838, 0.0
    %v4158 = vsel %vm4156, %v3843, 0.0
    %v4159 = vadd.f32 %v4157, %v4158
    %v4160 = vsel %vm4156, %v3848, 0.0
    %v4161 = vadd.f32 %v4159, %v4160
    %v4162 = vsel %vm4156, %v3853, 0.0
    %v4163 = vadd.f32 %v4161, %v4162
    %v4164 = vsel %vm4156, %v3858, 0.0
    %v4165 = vadd.f32 %v4163, %v4164
    %v4166 = vsel %vm4156, %v3863, 0.0
    %v4167 = vadd.f32 %v4165, %v4166
    %v4168 = vsel %vm4156, %v3868, 0.0
    %v4169 = vadd.f32 %v4167, %v4168
    %v4170 = vsel %vm4156, %v3873, 0.0
    %v4171 = vadd.f32 %v4169, %v4170
    %v4172 = vsel %vm4156, %v3878, 0.0
    %v4173 = vadd.f32 %v4171, %v4172
    %v4174 = vsel %vm4156, %v3883, 0.0
    %v4175 = vadd.f32 %v4173, %v4174
    %v4176 = vsel %vm4156, %v3888, 0.0
    %v4177 = vadd.f32 %v4175, %v4176
    %v4178 = vsel %vm4156, %v3893, 0.0
    %v4179 = vadd.f32 %v4177, %v4178
    %v4180 = vsel %vm4156, %v3898, 0.0
    %v4181 = vadd.f32 %v4179, %v4180
    %v4182 = vsel %vm4156, %v3903, 0.0
    %v4183 = vadd.f32 %v4181, %v4182
    %v4184 = vsel %vm4156, %v3908, 0.0
    %v4185 = vadd.f32 %v4183, %v4184
    %v4186 = vsel %vm4156, %v3913, 0.0
    %v4187 = vadd.f32 %v4185, %v4186
    %v4188 = vsel %vm4156, %v3918, 0.0
    %v4189 = vadd.f32 %v4187, %v4188
    %v4190 = vsel %vm4156, %v3923, 0.0
    %v4191 = vadd.f32 %v4189, %v4190
    %v4192 = vsel %vm4156, %v3928, 0.0
    %v4193 = vadd.f32 %v4191, %v4192
    %v4194 = vsel %vm4156, %v3933, 0.0
    %v4195 = vadd.f32 %v4193, %v4194
    %v4196 = vsel %vm4156, %v3938, 0.0
    %v4197 = vadd.f32 %v4195, %v4196
    %v4198 = vsel %vm4156, %v3943, 0.0
    %v4199 = vadd.f32 %v4197, %v4198
    %v4200 = vsel %vm4156, %v3948, 0.0
    %v4201 = vadd.f32 %v4199, %v4200
    %v4202 = vsel %vm4156, %v3953, 0.0
    %v4203 = vadd.f32 %v4201, %v4202
    %v4204 = vsel %vm4156, %v3958, 0.0
    %v4205 = vadd.f32 %v4203, %v4204
    %v4206 = vsel %vm4156, %v3963, 0.0
    %v4207 = vadd.f32 %v4205, %v4206
    %v4208 = vsel %vm4156, %v3968, 0.0
    %v4209 = vadd.f32 %v4207, %v4208
    %v4210 = vsel %vm4156, %v3973, 0.0
    %v4211 = vadd.f32 %v4209, %v4210
    %v4212 = vsel %vm4156, %v3978, 0.0
    %v4213 = vadd.f32 %v4211, %v4212
    %v4214 = vsel %vm4156, %v3983, 0.0
    %v4215 = vadd.f32 %v4213, %v4214
    %v4216 = vsel %vm4156, %v3988, 0.0
    %v4217 = vadd.f32 %v4215, %v4216
    %v4218 = vsel %vm4156, %v3993, 0.0
    %v4219 = vadd.f32 %v4217, %v4218
    %v4220 = vsel %vm4156, %v3998, 0.0
    %v4221 = vadd.f32 %v4219, %v4220
    %v4222 = vsel %vm4156, %v4003, 0.0
    %v4223 = vadd.f32 %v4221, %v4222
    %v4224 = vsel %vm4156, %v4008, 0.0
    %v4225 = vadd.f32 %v4223, %v4224
    %v4226 = vsel %vm4156, %v4013, 0.0
    %v4227 = vadd.f32 %v4225, %v4226
    %v4228 = vsel %vm4156, %v4018, 0.0
    %v4229 = vadd.f32 %v4227, %v4228
    %v4230 = vsel %vm4156, %v4023, 0.0
    %v4231 = vadd.f32 %v4229, %v4230
    %v4232 = vsel %vm4156, %v4028, 0.0
    %v4233 = vadd.f32 %v4231, %v4232
    %v4234 = vsel %vm4156, %v4033, 0.0
    %v4235 = vadd.f32 %v4233, %v4234
    %v4236 = vsel %vm4156, %v4038, 0.0
    %v4237 = vadd.f32 %v4235, %v4236
    %v4238 = vsel %vm4156, %v4043, 0.0
    %v4239 = vadd.f32 %v4237, %v4238
    %v4240 = vsel %vm4156, %v4048, 0.0
    %v4241 = vadd.f32 %v4239, %v4240
    %v4242 = vsel %vm4156, %v4053, 0.0
    %v4243 = vadd.f32 %v4241, %v4242
    %v4244 = vsel %vm4156, %v4058, 0.0
    %v4245 = vadd.f32 %v4243, %v4244
    %v4246 = vsel %vm4156, %v4063, 0.0
    %v4247 = vadd.f32 %v4245, %v4246
    %v4248 = vsel %vm4156, %v4068, 0.0
    %v4249 = vadd.f32 %v4247, %v4248
    %v4250 = vsel %vm4156, %v4073, 0.0
    %v4251 = vadd.f32 %v4249, %v4250
    %v4252 = vsel %vm4156, %v4078, 0.0
    %v4253 = vadd.f32 %v4251, %v4252
    %v4254 = vsel %vm4156, %v4083, 0.0
    %v4255 = vadd.f32 %v4253, %v4254
    %v4256 = vsel %vm4156, %v4088, 0.0
    %v4257 = vadd.f32 %v4255, %v4256
    %v4258 = vsel %vm4156, %v4093, 0.0
    %v4259 = vadd.f32 %v4257, %v4258
    %v4260 = vsel %vm4156, %v4098, 0.0
    %v4261 = vadd.f32 %v4259, %v4260
    %v4262 = vsel %vm4156, %v4103, 0.0
    %v4263 = vadd.f32 %v4261, %v4262
    %v4264 = vsel %vm4156, %v4108, 0.0
    %v4265 = vadd.f32 %v4263, %v4264
    %v4266 = vsel %vm4156, %v4113, 0.0
    %v4267 = vadd.f32 %v4265, %v4266
    %v4268 = vsel %vm4156, %v4118, 0.0
    %v4269 = vadd.f32 %v4267, %v4268
    %v4270 = vsel %vm4156, %v4123, 0.0
    %v4271 = vadd.f32 %v4269, %v4270
    %v4272 = vsel %vm4156, %v4128, 0.0
    %v4273 = vadd.f32 %v4271, %v4272
    %v4274 = vsel %vm4156, %v4133, 0.0
    %v4275 = vadd.f32 %v4273, %v4274
    %v4276 = vsel %vm4156, %v4138, 0.0
    %v4277 = vadd.f32 %v4275, %v4276
    %v4278 = vsel %vm4156, %v4143, 0.0
    %v4279 = vadd.f32 %v4277, %v4278
    %v4280 = vsel %vm4156, %v4148, 0.0
    %v4281 = vadd.f32 %v4279, %v4280
    %v4282 = vsel %vm4156, %v4153, 0.0
    %v4283 = vadd.f32 %v4281, %v4282
    %v4284 = vrot.slane %v4283, 4
    %v4285 = vadd.f32 %v4283, %v4284
    %v4286 = vrot.slane %v4285, 2
    %v4287 = vadd.f32 %v4285, %v4286
    %v4288 = vrot.slane %v4287, 1
    %v4289 = vadd.f32 %v4287, %v4288
    %v4290 = vmul.f32 %v3838, %v3838
    %v4291 = vmul.f32 %v3843, %v3843
    %v4292 = vmul.f32 %v3848, %v3848
    %v4293 = vmul.f32 %v3853, %v3853
    %v4294 = vmul.f32 %v3858, %v3858
    %v4295 = vmul.f32 %v3863, %v3863
    %v4296 = vmul.f32 %v3868, %v3868
    %v4297 = vmul.f32 %v3873, %v3873
    %v4298 = vmul.f32 %v3878, %v3878
    %v4299 = vmul.f32 %v3883, %v3883
    %v4300 = vmul.f32 %v3888, %v3888
    %v4301 = vmul.f32 %v3893, %v3893
    %v4302 = vmul.f32 %v3898, %v3898
    %v4303 = vmul.f32 %v3903, %v3903
    %v4304 = vmul.f32 %v3908, %v3908
    %v4305 = vmul.f32 %v3913, %v3913
    %v4306 = vmul.f32 %v3918, %v3918
    %v4307 = vmul.f32 %v3923, %v3923
    %v4308 = vmul.f32 %v3928, %v3928
    %v4309 = vmul.f32 %v3933, %v3933
    %v4310 = vmul.f32 %v3938, %v3938
    %v4311 = vmul.f32 %v3943, %v3943
    %v4312 = vmul.f32 %v3948, %v3948
    %v4313 = vmul.f32 %v3953, %v3953
    %v4314 = vmul.f32 %v3958, %v3958
    %v4315 = vmul.f32 %v3963, %v3963
    %v4316 = vmul.f32 %v3968, %v3968
    %v4317 = vmul.f32 %v3973, %v3973
    %v4318 = vmul.f32 %v3978, %v3978
    %v4319 = vmul.f32 %v3983, %v3983
    %v4320 = vmul.f32 %v3988, %v3988
    %v4321 = vmul.f32 %v3993, %v3993
    %v4322 = vmul.f32 %v3998, %v3998
    %v4323 = vmul.f32 %v4003, %v4003
    %v4324 = vmul.f32 %v4008, %v4008
    %v4325 = vmul.f32 %v4013, %v4013
    %v4326 = vmul.f32 %v4018, %v4018
    %v4327 = vmul.f32 %v4023, %v4023
    %v4328 = vmul.f32 %v4028, %v4028
    %v4329 = vmul.f32 %v4033, %v4033
    %v4330 = vmul.f32 %v4038, %v4038
    %v4331 = vmul.f32 %v4043, %v4043
    %v4332 = vmul.f32 %v4048, %v4048
    %v4333 = vmul.f32 %v4053, %v4053
    %v4334 = vmul.f32 %v4058, %v4058
    %v4335 = vmul.f32 %v4063, %v4063
    %v4336 = vmul.f32 %v4068, %v4068
    %v4337 = vmul.f32 %v4073, %v4073
    %v4338 = vmul.f32 %v4078, %v4078
    %v4339 = vmul.f32 %v4083, %v4083
    %v4340 = vmul.f32 %v4088, %v4088
    %v4341 = vmul.f32 %v4093, %v4093
    %v4342 = vmul.f32 %v4098, %v4098
    %v4343 = vmul.f32 %v4103, %v4103
    %v4344 = vmul.f32 %v4108, %v4108
    %v4345 = vmul.f32 %v4113, %v4113
    %v4346 = vmul.f32 %v4118, %v4118
    %v4347 = vmul.f32 %v4123, %v4123
    %v4348 = vmul.f32 %v4128, %v4128
    %v4349 = vmul.f32 %v4133, %v4133
    %v4350 = vmul.f32 %v4138, %v4138
    %v4351 = vmul.f32 %v4143, %v4143
    %v4352 = vmul.f32 %v4148, %v4148
    %v4353 = vmul.f32 %v4153, %v4153
    %v4354 = vsel %vm4156, %v4290, 0.0
    %v4355 = vsel %vm4156, %v4291, 0.0
    %v4356 = vadd.f32 %v4354, %v4355
    %v4357 = vsel %vm4156, %v4292, 0.0
    %v4358 = vadd.f32 %v4356, %v4357
    %v4359 = vsel %vm4156, %v4293, 0.0
    %v4360 = vadd.f32 %v4358, %v4359
    %v4361 = vsel %vm4156, %v4294, 0.0
    %v4362 = vadd.f32 %v4360, %v4361
    %v4363 = vsel %vm4156, %v4295, 0.0
    %v4364 = vadd.f32 %v4362, %v4363
    %v4365 = vsel %vm4156, %v4296, 0.0
    %v4366 = vadd.f32 %v4364, %v4365
    %v4367 = vsel %vm4156, %v4297, 0.0
    %v4368 = vadd.f32 %v4366, %v4367
    %v4369 = vsel %vm4156, %v4298, 0.0
    %v4370 = vadd.f32 %v4368, %v4369
    %v4371 = vsel %vm4156, %v4299, 0.0
    %v4372 = vadd.f32 %v4370, %v4371
    %v4373 = vsel %vm4156, %v4300, 0.0
    %v4374 = vadd.f32 %v4372, %v4373
    %v4375 = vsel %vm4156, %v4301, 0.0
    %v4376 = vadd.f32 %v4374, %v4375
    %v4377 = vsel %vm4156, %v4302, 0.0
    %v4378 = vadd.f32 %v4376, %v4377
    %v4379 = vsel %vm4156, %v4303, 0.0
    %v4380 = vadd.f32 %v4378, %v4379
    %v4381 = vsel %vm4156, %v4304, 0.0
    %v4382 = vadd.f32 %v4380, %v4381
    %v4383 = vsel %vm4156, %v4305, 0.0
    %v4384 = vadd.f32 %v4382, %v4383
    %v4385 = vsel %vm4156, %v4306, 0.0
    %v4386 = vadd.f32 %v4384, %v4385
    %v4387 = vsel %vm4156, %v4307, 0.0
    %v4388 = vadd.f32 %v4386, %v4387
    %v4389 = vsel %vm4156, %v4308, 0.0
    %v4390 = vadd.f32 %v4388, %v4389
    %v4391 = vsel %vm4156, %v4309, 0.0
    %v4392 = vadd.f32 %v4390, %v4391
    %v4393 = vsel %vm4156, %v4310, 0.0
    %v4394 = vadd.f32 %v4392, %v4393
    %v4395 = vsel %vm4156, %v4311, 0.0
    %v4396 = vadd.f32 %v4394, %v4395
    %v4397 = vsel %vm4156, %v4312, 0.0
    %v4398 = vadd.f32 %v4396, %v4397
    %v4399 = vsel %vm4156, %v4313, 0.0
    %v4400 = vadd.f32 %v4398, %v4399
    %v4401 = vsel %vm4156, %v4314, 0.0
    %v4402 = vadd.f32 %v4400, %v4401
    %v4403 = vsel %vm4156, %v4315, 0.0
    %v4404 = vadd.f32 %v4402, %v4403
    %v4405 = vsel %vm4156, %v4316, 0.0
    %v4406 = vadd.f32 %v4404, %v4405
    %v4407 = vsel %vm4156, %v4317, 0.0
    %v4408 = vadd.f32 %v4406, %v4407
    %v4409 = vsel %vm4156, %v4318, 0.0
    %v4410 = vadd.f32 %v4408, %v4409
    %v4411 = vsel %vm4156, %v4319, 0.0
    %v4412 = vadd.f32 %v4410, %v4411
    %v4413 = vsel %vm4156, %v4320, 0.0
    %v4414 = vadd.f32 %v4412, %v4413
    %v4415 = vsel %vm4156, %v4321, 0.0
    %v4416 = vadd.f32 %v4414, %v4415
    %v4417 = vsel %vm4156, %v4322, 0.0
    %v4418 = vadd.f32 %v4416, %v4417
    %v4419 = vsel %vm4156, %v4323, 0.0
    %v4420 = vadd.f32 %v4418, %v4419
    %v4421 = vsel %vm4156, %v4324, 0.0
    %v4422 = vadd.f32 %v4420, %v4421
    %v4423 = vsel %vm4156, %v4325, 0.0
    %v4424 = vadd.f32 %v4422, %v4423
    %v4425 = vsel %vm4156, %v4326, 0.0
    %v4426 = vadd.f32 %v4424, %v4425
    %v4427 = vsel %vm4156, %v4327, 0.0
    %v4428 = vadd.f32 %v4426, %v4427
    %v4429 = vsel %vm4156, %v4328, 0.0
    %v4430 = vadd.f32 %v4428, %v4429
    %v4431 = vsel %vm4156, %v4329, 0.0
    %v4432 = vadd.f32 %v4430, %v4431
    %v4433 = vsel %vm4156, %v4330, 0.0
    %v4434 = vadd.f32 %v4432, %v4433
    %v4435 = vsel %vm4156, %v4331, 0.0
    %v4436 = vadd.f32 %v4434, %v4435
    %v4437 = vsel %vm4156, %v4332, 0.0
    %v4438 = vadd.f32 %v4436, %v4437
    %v4439 = vsel %vm4156, %v4333, 0.0
    %v4440 = vadd.f32 %v4438, %v4439
    %v4441 = vsel %vm4156, %v4334, 0.0
    %v4442 = vadd.f32 %v4440, %v4441
    %v4443 = vsel %vm4156, %v4335, 0.0
    %v4444 = vadd.f32 %v4442, %v4443
    %v4445 = vsel %vm4156, %v4336, 0.0
    %v4446 = vadd.f32 %v4444, %v4445
    %v4447 = vsel %vm4156, %v4337, 0.0
    %v4448 = vadd.f32 %v4446, %v4447
    %v4449 = vsel %vm4156, %v4338, 0.0
    %v4450 = vadd.f32 %v4448, %v4449
    %v4451 = vsel %vm4156, %v4339, 0.0
    %v4452 = vadd.f32 %v4450, %v4451
    %v4453 = vsel %vm4156, %v4340, 0.0
    %v4454 = vadd.f32 %v4452, %v4453
    %v4455 = vsel %vm4156, %v4341, 0.0
    %v4456 = vadd.f32 %v4454, %v4455
    %v4457 = vsel %vm4156, %v4342, 0.0
    %v4458 = vadd.f32 %v4456, %v4457
    %v4459 = vsel %vm4156, %v4343, 0.0
    %v4460 = vadd.f32 %v4458, %v4459
    %v4461 = vsel %vm4156, %v4344, 0.0
    %v4462 = vadd.f32 %v4460, %v4461
    %v4463 = vsel %vm4156, %v4345, 0.0
    %v4464 = vadd.f32 %v4462, %v4463
    %v4465 = vsel %vm4156, %v4346, 0.0
    %v4466 = vadd.f32 %v4464, %v4465
    %v4467 = vsel %vm4156, %v4347, 0.0
    %v4468 = vadd.f32 %v4466, %v4467
    %v4469 = vsel %vm4156, %v4348, 0.0
    %v4470 = vadd.f32 %v4468, %v4469
    %v4471 = vsel %vm4156, %v4349, 0.0
    %v4472 = vadd.f32 %v4470, %v4471
    %v4473 = vsel %vm4156, %v4350, 0.0
    %v4474 = vadd.f32 %v4472, %v4473
    %v4475 = vsel %vm4156, %v4351, 0.0
    %v4476 = vadd.f32 %v4474, %v4475
    %v4477 = vsel %vm4156, %v4352, 0.0
    %v4478 = vadd.f32 %v4476, %v4477
    %v4479 = vsel %vm4156, %v4353, 0.0
    %v4480 = vadd.f32 %v4478, %v4479
    %v4481 = vrot.slane %v4480, 4
    %v4482 = vadd.f32 %v4480, %v4481
    %v4483 = vrot.slane %v4482, 2
    %v4484 = vadd.f32 %v4482, %v4483
    %v4485 = vrot.slane %v4484, 1
    %v4486 = vadd.f32 %v4484, %v4485
    %v4487 = vmul.f32 %v4289, 0.001953125
    %v4488 = vmul.f32 %v4486, 0.001953125
    %v4489 = vmul.f32 %v4487, %v4487
    %v4490 = vsub.f32 %v4488, %v4489
    %v4491 = vsub.f32 %v3838, %v4487
    %v4492 = vsub.f32 %v3843, %v4487
    %v4493 = vsub.f32 %v3848, %v4487
    %v4494 = vsub.f32 %v3853, %v4487
    %v4495 = vsub.f32 %v3858, %v4487
    %v4496 = vsub.f32 %v3863, %v4487
    %v4497 = vsub.f32 %v3868, %v4487
    %v4498 = vsub.f32 %v3873, %v4487
    %v4499 = vsub.f32 %v3878, %v4487
    %v4500 = vsub.f32 %v3883, %v4487
    %v4501 = vsub.f32 %v3888, %v4487
    %v4502 = vsub.f32 %v3893, %v4487
    %v4503 = vsub.f32 %v3898, %v4487
    %v4504 = vsub.f32 %v3903, %v4487
    %v4505 = vsub.f32 %v3908, %v4487
    %v4506 = vsub.f32 %v3913, %v4487
    %v4507 = vsub.f32 %v3918, %v4487
    %v4508 = vsub.f32 %v3923, %v4487
    %v4509 = vsub.f32 %v3928, %v4487
    %v4510 = vsub.f32 %v3933, %v4487
    %v4511 = vsub.f32 %v3938, %v4487
    %v4512 = vsub.f32 %v3943, %v4487
    %v4513 = vsub.f32 %v3948, %v4487
    %v4514 = vsub.f32 %v3953, %v4487
    %v4515 = vsub.f32 %v3958, %v4487
    %v4516 = vsub.f32 %v3963, %v4487
    %v4517 = vsub.f32 %v3968, %v4487
    %v4518 = vsub.f32 %v3973, %v4487
    %v4519 = vsub.f32 %v3978, %v4487
    %v4520 = vsub.f32 %v3983, %v4487
    %v4521 = vsub.f32 %v3988, %v4487
    %v4522 = vsub.f32 %v3993, %v4487
    %v4523 = vsub.f32 %v3998, %v4487
    %v4524 = vsub.f32 %v4003, %v4487
    %v4525 = vsub.f32 %v4008, %v4487
    %v4526 = vsub.f32 %v4013, %v4487
    %v4527 = vsub.f32 %v4018, %v4487
    %v4528 = vsub.f32 %v4023, %v4487
    %v4529 = vsub.f32 %v4028, %v4487
    %v4530 = vsub.f32 %v4033, %v4487
    %v4531 = vsub.f32 %v4038, %v4487
    %v4532 = vsub.f32 %v4043, %v4487
    %v4533 = vsub.f32 %v4048, %v4487
    %v4534 = vsub.f32 %v4053, %v4487
    %v4535 = vsub.f32 %v4058, %v4487
    %v4536 = vsub.f32 %v4063, %v4487
    %v4537 = vsub.f32 %v4068, %v4487
    %v4538 = vsub.f32 %v4073, %v4487
    %v4539 = vsub.f32 %v4078, %v4487
    %v4540 = vsub.f32 %v4083, %v4487
    %v4541 = vsub.f32 %v4088, %v4487
    %v4542 = vsub.f32 %v4093, %v4487
    %v4543 = vsub.f32 %v4098, %v4487
    %v4544 = vsub.f32 %v4103, %v4487
    %v4545 = vsub.f32 %v4108, %v4487
    %v4546 = vsub.f32 %v4113, %v4487
    %v4547 = vsub.f32 %v4118, %v4487
    %v4548 = vsub.f32 %v4123, %v4487
    %v4549 = vsub.f32 %v4128, %v4487
    %v4550 = vsub.f32 %v4133, %v4487
    %v4551 = vsub.f32 %v4138, %v4487
    %v4552 = vsub.f32 %v4143, %v4487
    %v4553 = vsub.f32 %v4148, %v4487
    %v4554 = vsub.f32 %v4153, %v4487
    %v4555 = vld [vmem:[%s3] sm:$0x1]
    %v4556 = vadd.f32 %v4490, 1e-05
    %v4557 = vrsqrt.pop %v4556
    %v4558 = vmul.f32 %v4555, %v4557
    %v4560 = vlaneseq
    %v4561 = vshrl.u32 %v4560, 7
    %v4562 = vsub.s32 0, %v4561
    %v4563 = vrot.slane %v4558, %v4562
    %v4565 = vmul.f32 %v4491, %v4563
    %v4566 = vmul.f32 %v4492, %v4563
    %v4567 = vmul.f32 %v4493, %v4563
    %v4568 = vmul.f32 %v4494, %v4563
    %v4569 = vmul.f32 %v4495, %v4563
    %v4570 = vmul.f32 %v4496, %v4563
    %v4571 = vmul.f32 %v4497, %v4563
    %v4572 = vmul.f32 %v4498, %v4563
    %v4573 = vmul.f32 %v4499, %v4563
    %v4574 = vmul.f32 %v4500, %v4563
    %v4575 = vmul.f32 %v4501, %v4563
    %v4576 = vmul.f32 %v4502, %v4563
    %v4577 = vmul.f32 %v4503, %v4563
    %v4578 = vmul.f32 %v4504, %v4563
    %v4579 = vmul.f32 %v4505, %v4563
    %v4580 = vmul.f32 %v4506, %v4563
    %v4581 = vmul.f32 %v4507, %v4563
    %v4582 = vmul.f32 %v4508, %v4563
    %v4583 = vmul.f32 %v4509, %v4563
    %v4584 = vmul.f32 %v4510, %v4563
    %v4585 = vmul.f32 %v4511, %v4563
    %v4586 = vmul.f32 %v4512, %v4563
    %v4587 = vmul.f32 %v4513, %v4563
    %v4588 = vmul.f32 %v4514, %v4563
    %v4589 = vmul.f32 %v4515, %v4563
    %v4590 = vmul.f32 %v4516, %v4563
    %v4591 = vmul.f32 %v4517, %v4563
    %v4592 = vmul.f32 %v4518, %v4563
    %v4593 = vmul.f32 %v4519, %v4563
    %v4594 = vmul.f32 %v4520, %v4563
    %v4595 = vmul.f32 %v4521, %v4563
    %v4596 = vmul.f32 %v4522, %v4563
    %v4597 = vmul.f32 %v4523, %v4563
    %v4598 = vmul.f32 %v4524, %v4563
    %v4599 = vmul.f32 %v4525, %v4563
    %v4600 = vmul.f32 %v4526, %v4563
    %v4601 = vmul.f32 %v4527, %v4563
    %v4602 = vmul.f32 %v4528, %v4563
    %v4603 = vmul.f32 %v4529, %v4563
    %v4604 = vmul.f32 %v4530, %v4563
    %v4605 = vmul.f32 %v4531, %v4563
    %v4606 = vmul.f32 %v4532, %v4563
    %v4607 = vmul.f32 %v4533, %v4563
    %v4608 = vmul.f32 %v4534, %v4563
    %v4609 = vmul.f32 %v4535, %v4563
    %v4610 = vmul.f32 %v4536, %v4563
    %v4611 = vmul.f32 %v4537, %v4563
    %v4612 = vmul.f32 %v4538, %v4563
    %v4613 = vmul.f32 %v4539, %v4563
    %v4614 = vmul.f32 %v4540, %v4563
    %v4615 = vmul.f32 %v4541, %v4563
    %v4616 = vmul.f32 %v4542, %v4563
    %v4617 = vmul.f32 %v4543, %v4563
    %v4618 = vmul.f32 %v4544, %v4563
    %v4619 = vmul.f32 %v4545, %v4563
    %v4620 = vmul.f32 %v4546, %v4563
    %v4621 = vmul.f32 %v4547, %v4563
    %v4622 = vmul.f32 %v4548, %v4563
    %v4623 = vmul.f32 %v4549, %v4563
    %v4624 = vmul.f32 %v4550, %v4563
    %v4625 = vmul.f32 %v4551, %v4563
    %v4626 = vmul.f32 %v4552, %v4563
    %v4627 = vmul.f32 %v4553, %v4563
    %v4628 = vmul.f32 %v4554, %v4563
    %v4629 = vld [vmem:[%s4] sm:$0x1]
    %v4631 = vlaneseq
    %v4632 = vshrl.u32 %v4631, 7
    %v4633 = vsub.s32 0, %v4632
    %v4634 = vrot.slane %v4629, %v4633
    %v4636 = vadd.f32 %v4565, %v4634
    %v4637 = vadd.f32 %v4566, %v4634
    %v4638 = vadd.f32 %v4567, %v4634
    %v4639 = vadd.f32 %v4568, %v4634
    %v4640 = vadd.f32 %v4569, %v4634
    %v4641 = vadd.f32 %v4570, %v4634
    %v4642 = vadd.f32 %v4571, %v4634
    %v4643 = vadd.f32 %v4572, %v4634
    %v4644 = vadd.f32 %v4573, %v4634
    %v4645 = vadd.f32 %v4574, %v4634
    %v4646 = vadd.f32 %v4575, %v4634
    %v4647 = vadd.f32 %v4576, %v4634
    %v4648 = vadd.f32 %v4577, %v4634
    %v4649 = vadd.f32 %v4578, %v4634
    %v4650 = vadd.f32 %v4579, %v4634
    %v4651 = vadd.f32 %v4580, %v4634
    %v4652 = vadd.f32 %v4581, %v4634
    %v4653 = vadd.f32 %v4582, %v4634
    %v4654 = vadd.f32 %v4583, %v4634
    %v4655 = vadd.f32 %v4584, %v4634
    %v4656 = vadd.f32 %v4585, %v4634
    %v4657 = vadd.f32 %v4586, %v4634
    %v4658 = vadd.f32 %v4587, %v4634
    %v4659 = vadd.f32 %v4588, %v4634
    %v4660 = vadd.f32 %v4589, %v4634
    %v4661 = vadd.f32 %v4590, %v4634
    %v4662 = vadd.f32 %v4591, %v4634
    %v4663 = vadd.f32 %v4592, %v4634
    %v4664 = vadd.f32 %v4593, %v4634
    %v4665 = vadd.f32 %v4594, %v4634
    %v4666 = vadd.f32 %v4595, %v4634
    %v4667 = vadd.f32 %v4596, %v4634
    %v4668 = vadd.f32 %v4597, %v4634
    %v4669 = vadd.f32 %v4598, %v4634
    %v4670 = vadd.f32 %v4599, %v4634
    %v4671 = vadd.f32 %v4600, %v4634
    %v4672 = vadd.f32 %v4601, %v4634
    %v4673 = vadd.f32 %v4602, %v4634
    %v4674 = vadd.f32 %v4603, %v4634
    %v4675 = vadd.f32 %v4604, %v4634
    %v4676 = vadd.f32 %v4605, %v4634
    %v4677 = vadd.f32 %v4606, %v4634
    %v4678 = vadd.f32 %v4607, %v4634
    %v4679 = vadd.f32 %v4608, %v4634
    %v4680 = vadd.f32 %v4609, %v4634
    %v4681 = vadd.f32 %v4610, %v4634
    %v4682 = vadd.f32 %v4611, %v4634
    %v4683 = vadd.f32 %v4612, %v4634
    %v4684 = vadd.f32 %v4613, %v4634
    %v4685 = vadd.f32 %v4614, %v4634
    %v4686 = vadd.f32 %v4615, %v4634
    %v4687 = vadd.f32 %v4616, %v4634
    %v4688 = vadd.f32 %v4617, %v4634
    %v4689 = vadd.f32 %v4618, %v4634
    %v4690 = vadd.f32 %v4619, %v4634
    %v4691 = vadd.f32 %v4620, %v4634
    %v4692 = vadd.f32 %v4621, %v4634
    %v4693 = vadd.f32 %v4622, %v4634
    %v4694 = vadd.f32 %v4623, %v4634
    %v4695 = vadd.f32 %v4624, %v4634
    %v4696 = vadd.f32 %v4625, %v4634
    %v4697 = vadd.f32 %v4626, %v4634
    %v4698 = vadd.f32 %v4627, %v4634
    %v4699 = vadd.f32 %v4628, %v4634
    %v4700 = vmax.f32 %v4636, 0.0
    %v4701 = vmax.f32 %v4637, 0.0
    %v4702 = vmax.f32 %v4638, 0.0
    %v4703 = vmax.f32 %v4639, 0.0
    %v4704 = vmax.f32 %v4640, 0.0
    %v4705 = vmax.f32 %v4641, 0.0
    %v4706 = vmax.f32 %v4642, 0.0
    %v4707 = vmax.f32 %v4643, 0.0
    %v4708 = vmax.f32 %v4644, 0.0
    %v4709 = vmax.f32 %v4645, 0.0
    %v4710 = vmax.f32 %v4646, 0.0
    %v4711 = vmax.f32 %v4647, 0.0
    %v4712 = vmax.f32 %v4648, 0.0
    %v4713 = vmax.f32 %v4649, 0.0
    %v4714 = vmax.f32 %v4650, 0.0
    %v4715 = vmax.f32 %v4651, 0.0
    %v4716 = vmax.f32 %v4652, 0.0
    %v4717 = vmax.f32 %v4653, 0.0
    %v4718 = vmax.f32 %v4654, 0.0
    %v4719 = vmax.f32 %v4655, 0.0
    %v4720 = vmax.f32 %v4656, 0.0
    %v4721 = vmax.f32 %v4657, 0.0
    %v4722 = vmax.f32 %v4658, 0.0
    %v4723 = vmax.f32 %v4659, 0.0
    %v4724 = vmax.f32 %v4660, 0.0
    %v4725 = vmax.f32 %v4661, 0.0
    %v4726 = vmax.f32 %v4662, 0.0
    %v4727 = vmax.f32 %v4663, 0.0
    %v4728 = vmax.f32 %v4664, 0.0
    %v4729 = vmax.f32 %v4665, 0.0
    %v4730 = vmax.f32 %v4666, 0.0
    %v4731 = vmax.f32 %v4667, 0.0
    %v4732 = vmax.f32 %v4668, 0.0
    %v4733 = vmax.f32 %v4669, 0.0
    %v4734 = vmax.f32 %v4670, 0.0
    %v4735 = vmax.f32 %v4671, 0.0
    %v4736 = vmax.f32 %v4672, 0.0
    %v4737 = vmax.f32 %v4673, 0.0
    %v4738 = vmax.f32 %v4674, 0.0
    %v4739 = vmax.f32 %v4675, 0.0
    %v4740 = vmax.f32 %v4676, 0.0
    %v4741 = vmax.f32 %v4677, 0.0
    %v4742 = vmax.f32 %v4678, 0.0
    %v4743 = vmax.f32 %v4679, 0.0
    %v4744 = vmax.f32 %v4680, 0.0
    %v4745 = vmax.f32 %v4681, 0.0
    %v4746 = vmax.f32 %v4682, 0.0
    %v4747 = vmax.f32 %v4683, 0.0
    %v4748 = vmax.f32 %v4684, 0.0
    %v4749 = vmax.f32 %v4685, 0.0
    %v4750 = vmax.f32 %v4686, 0.0
    %v4751 = vmax.f32 %v4687, 0.0
    %v4752 = vmax.f32 %v4688, 0.0
    %v4753 = vmax.f32 %v4689, 0.0
    %v4754 = vmax.f32 %v4690, 0.0
    %v4755 = vmax.f32 %v4691, 0.0
    %v4756 = vmax.f32 %v4692, 0.0
    %v4757 = vmax.f32 %v4693, 0.0
    %v4758 = vmax.f32 %v4694, 0.0
    %v4759 = vmax.f32 %v4695, 0.0
    %v4760 = vmax.f32 %v4696, 0.0
    %v4761 = vmax.f32 %v4697, 0.0
    %v4762 = vmax.f32 %v4698, 0.0
    %v4763 = vmax.f32 %v4699, 0.0
    %4764 = vst.msk [vmem:[%s15] sm:$0xff] %vm4156, %v4700
    %4765 = vst.msk [vmem:[%s15 + $0x8] sm:$0xff] %vm4156, %v4701
    %4766 = vst.msk [vmem:[%s15 + $0x10] sm:$0xff] %vm4156, %v4702
    %4767 = vst.msk [vmem:[%s15 + $0x18] sm:$0xff] %vm4156, %v4703
    %4768 = vst.msk [vmem:[%s15 + $0x20] sm:$0xff] %vm4156, %v4704
    %4769 = vst.msk [vmem:[%s15 + $0x28] sm:$0xff] %vm4156, %v4705
    %4770 = vst.msk [vmem:[%s15 + $0x30] sm:$0xff] %vm4156, %v4706
    %4771 = vst.msk [vmem:[%s15 + $0x38] sm:$0xff] %vm4156, %v4707
    %4772 = vst.msk [vmem:[%s15 + $0x40] sm:$0xff] %vm4156, %v4708
    %4773 = vst.msk [vmem:[%s15 + $0x48] sm:$0xff] %vm4156, %v4709
    %4774 = vst.msk [vmem:[%s15 + $0x50] sm:$0xff] %vm4156, %v4710
    %4775 = vst.msk [vmem:[%s15 + $0x58] sm:$0xff] %vm4156, %v4711
    %4776 = vst.msk [vmem:[%s15 + $0x60] sm:$0xff] %vm4156, %v4712
    %4777 = vst.msk [vmem:[%s15 + $0x68] sm:$0xff] %vm4156, %v4713
    %4778 = vst.msk [vmem:[%s15 + $0x70] sm:$0xff] %vm4156, %v4714
    %4779 = vst.msk [vmem:[%s15 + $0x78] sm:$0xff] %vm4156, %v4715
    %4780 = vst.msk [vmem:[%s15 + $0x80] sm:$0xff] %vm4156, %v4716
    %4781 = vst.msk [vmem:[%s15 + $0x88] sm:$0xff] %vm4156, %v4717
    %4782 = vst.msk [vmem:[%s15 + $0x90] sm:$0xff] %vm4156, %v4718
    %4783 = vst.msk [vmem:[%s15 + $0x98] sm:$0xff] %vm4156, %v4719
    %4784 = vst.msk [vmem:[%s15 + $0xa0] sm:$0xff] %vm4156, %v4720
    %4785 = vst.msk [vmem:[%s15 + $0xa8] sm:$0xff] %vm4156, %v4721
    %4786 = vst.msk [vmem:[%s15 + $0xb0] sm:$0xff] %vm4156, %v4722
    %4787 = vst.msk [vmem:[%s15 + $0xb8] sm:$0xff] %vm4156, %v4723
    %4788 = vst.msk [vmem:[%s15 + $0xc0] sm:$0xff] %vm4156, %v4724
    %4789 = vst.msk [vmem:[%s15 + $0xc8] sm:$0xff] %vm4156, %v4725
    %4790 = vst.msk [vmem:[%s15 + $0xd0] sm:$0xff] %vm4156, %v4726
    %4791 = vst.msk [vmem:[%s15 + $0xd8] sm:$0xff] %vm4156, %v4727
    %4792 = vst.msk [vmem:[%s15 + $0xe0] sm:$0xff] %vm4156, %v4728
    %4793 = vst.msk [vmem:[%s15 + $0xe8] sm:$0xff] %vm4156, %v4729
    %4794 = vst.msk [vmem:[%s15 + $0xf0] sm:$0xff] %vm4156, %v4730
    %4795 = vst.msk [vmem:[%s15 + $0xf8] sm:$0xff] %vm4156, %v4731
    %4796 = vst.msk [vmem:[%s15 + $0x100] sm:$0xff] %vm4156, %v4732
    %4797 = vst.msk [vmem:[%s15 + $0x108] sm:$0xff] %vm4156, %v4733
    %4798 = vst.msk [vmem:[%s15 + $0x110] sm:$0xff] %vm4156, %v4734
    %4799 = vst.msk [vmem:[%s15 + $0x118] sm:$0xff] %vm4156, %v4735
    %4800 = vst.msk [vmem:[%s15 + $0x120] sm:$0xff] %vm4156, %v4736
    %4801 = vst.msk [vmem:[%s15 + $0x128] sm:$0xff] %vm4156, %v4737
    %4802 = vst.msk [vmem:[%s15 + $0x130] sm:$0xff] %vm4156, %v4738
    %4803 = vst.msk [vmem:[%s15 + $0x138] sm:$0xff] %vm4156, %v4739
    %4804 = vst.msk [vmem:[%s15 + $0x140] sm:$0xff] %vm4156, %v4740
    %4805 = vst.msk [vmem:[%s15 + $0x148] sm:$0xff] %vm4156, %v4741
    %4806 = vst.msk [vmem:[%s15 + $0x150] sm:$0xff] %vm4156, %v4742
    %4807 = vst.msk [vmem:[%s15 + $0x158] sm:$0xff] %vm4156, %v4743
    %4808 = vst.msk [vmem:[%s15 + $0x160] sm:$0xff] %vm4156, %v4744
    %4809 = vst.msk [vmem:[%s15 + $0x168] sm:$0xff] %vm4156, %v4745
    %4810 = vst.msk [vmem:[%s15 + $0x170] sm:$0xff] %vm4156, %v4746
    %4811 = vst.msk [vmem:[%s15 + $0x178] sm:$0xff] %vm4156, %v4747
    %4812 = vst.msk [vmem:[%s15 + $0x180] sm:$0xff] %vm4156, %v4748
    %4813 = vst.msk [vmem:[%s15 + $0x188] sm:$0xff] %vm4156, %v4749
    %4814 = vst.msk [vmem:[%s15 + $0x190] sm:$0xff] %vm4156, %v4750
    %4815 = vst.msk [vmem:[%s15 + $0x198] sm:$0xff] %vm4156, %v4751
    %4816 = vst.msk [vmem:[%s15 + $0x1a0] sm:$0xff] %vm4156, %v4752
    %4817 = vst.msk [vmem:[%s15 + $0x1a8] sm:$0xff] %vm4156, %v4753
    %4818 = vst.msk [vmem:[%s15 + $0x1b0] sm:$0xff] %vm4156, %v4754
    %4819 = vst.msk [vmem:[%s15 + $0x1b8] sm:$0xff] %vm4156, %v4755
    %4820 = vst.msk [vmem:[%s15 + $0x1c0] sm:$0xff] %vm4156, %v4756
    %4821 = vst.msk [vmem:[%s15 + $0x1c8] sm:$0xff] %vm4156, %v4757
    %4822 = vst.msk [vmem:[%s15 + $0x1d0] sm:$0xff] %vm4156, %v4758
    %4823 = vst.msk [vmem:[%s15 + $0x1d8] sm:$0xff] %vm4156, %v4759
    %4824 = vst.msk [vmem:[%s15 + $0x1e0] sm:$0xff] %vm4156, %v4760
    %4825 = vst.msk [vmem:[%s15 + $0x1e8] sm:$0xff] %vm4156, %v4761
    %4826 = vst.msk [vmem:[%s15 + $0x1f0] sm:$0xff] %vm4156, %v4762
    %4827 = vst.msk [vmem:[%s15 + $0x1f8] sm:$0xff] %vm4156, %v4763
    %4828 = vst.msk [vmem:[#allocation6] sm:$0xff] %vm4156, %v4700
    %4829 = vst.msk [vmem:[#allocation6 + $0x8] sm:$0xff] %vm4156, %v4701
    %4830 = vst.msk [vmem:[#allocation6 + $0x10] sm:$0xff] %vm4156, %v4702
    %4831 = vst.msk [vmem:[#allocation6 + $0x18] sm:$0xff] %vm4156, %v4703
    %4832 = vst.msk [vmem:[#allocation6 + $0x20] sm:$0xff] %vm4156, %v4704
    %4833 = vst.msk [vmem:[#allocation6 + $0x28] sm:$0xff] %vm4156, %v4705
    %4834 = vst.msk [vmem:[#allocation6 + $0x30] sm:$0xff] %vm4156, %v4706
    %4835 = vst.msk [vmem:[#allocation6 + $0x38] sm:$0xff] %vm4156, %v4707
    %4836 = vst.msk [vmem:[#allocation6 + $0x40] sm:$0xff] %vm4156, %v4708
    %4837 = vst.msk [vmem:[#allocation6 + $0x48] sm:$0xff] %vm4156, %v4709
    %4838 = vst.msk [vmem:[#allocation6 + $0x50] sm:$0xff] %vm4156, %v4710
    %4839 = vst.msk [vmem:[#allocation6 + $0x58] sm:$0xff] %vm4156, %v4711
    %4840 = vst.msk [vmem:[#allocation6 + $0x60] sm:$0xff] %vm4156, %v4712
    %4841 = vst.msk [vmem:[#allocation6 + $0x68] sm:$0xff] %vm4156, %v4713
    %4842 = vst.msk [vmem:[#allocation6 + $0x70] sm:$0xff] %vm4156, %v4714
    %4843 = vst.msk [vmem:[#allocation6 + $0x78] sm:$0xff] %vm4156, %v4715
    %4844 = vst.msk [vmem:[#allocation6 + $0x80] sm:$0xff] %vm4156, %v4716
    %4845 = vst.msk [vmem:[#allocation6 + $0x88] sm:$0xff] %vm4156, %v4717
    %4846 = vst.msk [vmem:[#allocation6 + $0x90] sm:$0xff] %vm4156, %v4718
    %4847 = vst.msk [vmem:[#allocation6 + $0x98] sm:$0xff] %vm4156, %v4719
    %4848 = vst.msk [vmem:[#allocation6 + $0xa0] sm:$0xff] %vm4156, %v4720
    %4849 = vst.msk [vmem:[#allocation6 + $0xa8] sm:$0xff] %vm4156, %v4721
    %4850 = vst.msk [vmem:[#allocation6 + $0xb0] sm:$0xff] %vm4156, %v4722
    %4851 = vst.msk [vmem:[#allocation6 + $0xb8] sm:$0xff] %vm4156, %v4723
    %4852 = vst.msk [vmem:[#allocation6 + $0xc0] sm:$0xff] %vm4156, %v4724
    %4853 = vst.msk [vmem:[#allocation6 + $0xc8] sm:$0xff] %vm4156, %v4725
    %4854 = vst.msk [vmem:[#allocation6 + $0xd0] sm:$0xff] %vm4156, %v4726
    %4855 = vst.msk [vmem:[#allocation6 + $0xd8] sm:$0xff] %vm4156, %v4727
    %4856 = vst.msk [vmem:[#allocation6 + $0xe0] sm:$0xff] %vm4156, %v4728
    %4857 = vst.msk [vmem:[#allocation6 + $0xe8] sm:$0xff] %vm4156, %v4729
    %4858 = vst.msk [vmem:[#allocation6 + $0xf0] sm:$0xff] %vm4156, %v4730
    %4859 = vst.msk [vmem:[#allocation6 + $0xf8] sm:$0xff] %vm4156, %v4731
    %4860 = vst.msk [vmem:[#allocation6 + $0x100] sm:$0xff] %vm4156, %v4732
    %4861 = vst.msk [vmem:[#allocation6 + $0x108] sm:$0xff] %vm4156, %v4733
    %4862 = vst.msk [vmem:[#allocation6 + $0x110] sm:$0xff] %vm4156, %v4734
    %4863 = vst.msk [vmem:[#allocation6 + $0x118] sm:$0xff] %vm4156, %v4735
    %4864 = vst.msk [vmem:[#allocation6 + $0x120] sm:$0xff] %vm4156, %v4736
    %4865 = vst.msk [vmem:[#allocation6 + $0x128] sm:$0xff] %vm4156, %v4737
    %4866 = vst.msk [vmem:[#allocation6 + $0x130] sm:$0xff] %vm4156, %v4738
    %4867 = vst.msk [vmem:[#allocation6 + $0x138] sm:$0xff] %vm4156, %v4739
    %4868 = vst.msk [vmem:[#allocation6 + $0x140] sm:$0xff] %vm4156, %v4740
    %4869 = vst.msk [vmem:[#allocation6 + $0x148] sm:$0xff] %vm4156, %v4741
    %4870 = vst.msk [vmem:[#allocation6 + $0x150] sm:$0xff] %vm4156, %v4742
    %4871 = vst.msk [vmem:[#allocation6 + $0x158] sm:$0xff] %vm4156, %v4743
    %4872 = vst.msk [vmem:[#allocation6 + $0x160] sm:$0xff] %vm4156, %v4744
    %4873 = vst.msk [vmem:[#allocation6 + $0x168] sm:$0xff] %vm4156, %v4745
    %4874 = vst.msk [vmem:[#allocation6 + $0x170] sm:$0xff] %vm4156, %v4746
    %4875 = vst.msk [vmem:[#allocation6 + $0x178] sm:$0xff] %vm4156, %v4747
    %4876 = vst.msk [vmem:[#allocation6 + $0x180] sm:$0xff] %vm4156, %v4748
    %4877 = vst.msk [vmem:[#allocation6 + $0x188] sm:$0xff] %vm4156, %v4749
    %4878 = vst.msk [vmem:[#allocation6 + $0x190] sm:$0xff] %vm4156, %v4750
    %4879 = vst.msk [vmem:[#allocation6 + $0x198] sm:$0xff] %vm4156, %v4751
    %4880 = vst.msk [vmem:[#allocation6 + $0x1a0] sm:$0xff] %vm4156, %v4752
    %4881 = vst.msk [vmem:[#allocation6 + $0x1a8] sm:$0xff] %vm4156, %v4753
    %4882 = vst.msk [vmem:[#allocation6 + $0x1b0] sm:$0xff] %vm4156, %v4754
    %4883 = vst.msk [vmem:[#allocation6 + $0x1b8] sm:$0xff] %vm4156, %v4755
    %4884 = vst.msk [vmem:[#allocation6 + $0x1c0] sm:$0xff] %vm4156, %v4756
    %4885 = vst.msk [vmem:[#allocation6 + $0x1c8] sm:$0xff] %vm4156, %v4757
    %4886 = vst.msk [vmem:[#allocation6 + $0x1d0] sm:$0xff] %vm4156, %v4758
    %4887 = vst.msk [vmem:[#allocation6 + $0x1d8] sm:$0xff] %vm4156, %v4759
    %4888 = vst.msk [vmem:[#allocation6 + $0x1e0] sm:$0xff] %vm4156, %v4760
    %4889 = vst.msk [vmem:[#allocation6 + $0x1e8] sm:$0xff] %vm4156, %v4761
    %4890 = vst.msk [vmem:[#allocation6 + $0x1f0] sm:$0xff] %vm4156, %v4762
    %4891 = vst.msk [vmem:[#allocation6 + $0x1f8] sm:$0xff] %vm4156, %v4763
    %v4892 = vld [vmem:[#allocation6] ss:$2 sm:$0xff]
    %s4893 = scalar_lea.vmem [#allocation6], 16
    %v4894 = vld [vmem:[%s4893] ss:$2 sm:$0xff]
    %s4895 = scalar_lea.vmem [#allocation6], 32
    %v4896 = vld [vmem:[%s4895] ss:$2 sm:$0xff]
    %s4897 = scalar_lea.vmem [#allocation6], 48
    %v4898 = vld [vmem:[%s4897] ss:$2 sm:$0xff]
    %s4899 = scalar_lea.vmem [#allocation6], 64
    %v4900 = vld [vmem:[%s4899] ss:$2 sm:$0xff]
    %s4901 = scalar_lea.vmem [#allocation6], 80
    %v4902 = vld [vmem:[%s4901] ss:$2 sm:$0xff]
    %s4903 = scalar_lea.vmem [#allocation6], 96
    %v4904 = vld [vmem:[%s4903] ss:$2 sm:$0xff]
    %s4905 = scalar_lea.vmem [#allocation6], 112
    %v4906 = vld [vmem:[%s4905] ss:$2 sm:$0xff]
    %s4907 = scalar_lea.vmem [#allocation6], 128
    %v4908 = vld [vmem:[%s4907] ss:$2 sm:$0xff]
    %s4909 = scalar_lea.vmem [#allocation6], 144
    %v4910 = vld [vmem:[%s4909] ss:$2 sm:$0xff]
    %s4911 = scalar_lea.vmem [#allocation6], 160
    %v4912 = vld [vmem:[%s4911] ss:$2 sm:$0xff]
    %s4913 = scalar_lea.vmem [#allocation6], 176
    %v4914 = vld [vmem:[%s4913] ss:$2 sm:$0xff]
    %s4915 = scalar_lea.vmem [#allocation6], 192
    %v4916 = vld [vmem:[%s4915] ss:$2 sm:$0xff]
    %s4917 = scalar_lea.vmem [#allocation6], 208
    %v4918 = vld [vmem:[%s4917] ss:$2 sm:$0xff]
    %s4919 = scalar_lea.vmem [#allocation6], 224
    %v4920 = vld [vmem:[%s4919] ss:$2 sm:$0xff]
    %s4921 = scalar_lea.vmem [#allocation6], 240
    %v4922 = vld [vmem:[%s4921] ss:$2 sm:$0xff]
    %s4923 = scalar_lea.vmem [#allocation6], 256
    %v4924 = vld [vmem:[%s4923] ss:$2 sm:$0xff]
    %s4925 = scalar_lea.vmem [#allocation6], 272
    %v4926 = vld [vmem:[%s4925] ss:$2 sm:$0xff]
    %s4927 = scalar_lea.vmem [#allocation6], 288
    %v4928 = vld [vmem:[%s4927] ss:$2 sm:$0xff]
    %s4929 = scalar_lea.vmem [#allocation6], 304
    %v4930 = vld [vmem:[%s4929] ss:$2 sm:$0xff]
    %s4931 = scalar_lea.vmem [#allocation6], 320
    %v4932 = vld [vmem:[%s4931] ss:$2 sm:$0xff]
    %s4933 = scalar_lea.vmem [#allocation6], 336
    %v4934 = vld [vmem:[%s4933] ss:$2 sm:$0xff]
    %s4935 = scalar_lea.vmem [#allocation6], 352
    %v4936 = vld [vmem:[%s4935] ss:$2 sm:$0xff]
    %s4937 = scalar_lea.vmem [#allocation6], 368
    %v4938 = vld [vmem:[%s4937] ss:$2 sm:$0xff]
    %s4939 = scalar_lea.vmem [#allocation6], 384
    %v4940 = vld [vmem:[%s4939] ss:$2 sm:$0xff]
    %s4941 = scalar_lea.vmem [#allocation6], 400
    %v4942 = vld [vmem:[%s4941] ss:$2 sm:$0xff]
    %s4943 = scalar_lea.vmem [#allocation6], 416
    %v4944 = vld [vmem:[%s4943] ss:$2 sm:$0xff]
    %s4945 = scalar_lea.vmem [#allocation6], 432
    %v4946 = vld [vmem:[%s4945] ss:$2 sm:$0xff]
    %s4947 = scalar_lea.vmem [#allocation6], 448
    %v4948 = vld [vmem:[%s4947] ss:$2 sm:$0xff]
    %s4949 = scalar_lea.vmem [#allocation6], 464
    %v4950 = vld [vmem:[%s4949] ss:$2 sm:$0xff]
    %s4951 = scalar_lea.vmem [#allocation6], 480
    %v4952 = vld [vmem:[%s4951] ss:$2 sm:$0xff]
    %s4953 = scalar_lea.vmem [#allocation6], 496
    %v4954 = vld [vmem:[%s4953] ss:$2 sm:$0xff]
    %s4955 = scalar_lea.vmem [#allocation6], 1
    %v4956 = vld [vmem:[%s4955] ss:$2 sm:$0xff]
    %s4957 = scalar_lea.vmem [#allocation6], 17
    %v4958 = vld [vmem:[%s4957] ss:$2 sm:$0xff]
    %s4959 = scalar_lea.vmem [#allocation6], 33
    %v4960 = vld [vmem:[%s4959] ss:$2 sm:$0xff]
    %s4961 = scalar_lea.vmem [#allocation6], 49
    %v4962 = vld [vmem:[%s4961] ss:$2 sm:$0xff]
    %s4963 = scalar_lea.vmem [#allocation6], 65
    %v4964 = vld [vmem:[%s4963] ss:$2 sm:$0xff]
    %s4965 = scalar_lea.vmem [#allocation6], 81
    %v4966 = vld [vmem:[%s4965] ss:$2 sm:$0xff]
    %s4967 = scalar_lea.vmem [#allocation6], 97
    %v4968 = vld [vmem:[%s4967] ss:$2 sm:$0xff]
    %s4969 = scalar_lea.vmem [#allocation6], 113
    %v4970 = vld [vmem:[%s4969] ss:$2 sm:$0xff]
    %s4971 = scalar_lea.vmem [#allocation6], 129
    %v4972 = vld [vmem:[%s4971] ss:$2 sm:$0xff]
    %s4973 = scalar_lea.vmem [#allocation6], 145
    %v4974 = vld [vmem:[%s4973] ss:$2 sm:$0xff]
    %s4975 = scalar_lea.vmem [#allocation6], 161
    %v4976 = vld [vmem:[%s4975] ss:$2 sm:$0xff]
    %s4977 = scalar_lea.vmem [#allocation6], 177
    %v4978 = vld [vmem:[%s4977] ss:$2 sm:$0xff]
    %s4979 = scalar_lea.vmem [#allocation6], 193
    %v4980 = vld [vmem:[%s4979] ss:$2 sm:$0xff]
    %s4981 = scalar_lea.vmem [#allocation6], 209
    %v4982 = vld [vmem:[%s4981] ss:$2 sm:$0xff]
    %s4983 = scalar_lea.vmem [#allocation6], 225
    %v4984 = vld [vmem:[%s4983] ss:$2 sm:$0xff]
    %s4985 = scalar_lea.vmem [#allocation6], 241
    %v4986 = vld [vmem:[%s4985] ss:$2 sm:$0xff]
    %s4987 = scalar_lea.vmem [#allocation6], 257
    %v4988 = vld [vmem:[%s4987] ss:$2 sm:$0xff]
    %s4989 = scalar_lea.vmem [#allocation6], 273
    %v4990 = vld [vmem:[%s4989] ss:$2 sm:$0xff]
    %s4991 = scalar_lea.vmem [#allocation6], 289
    %v4992 = vld [vmem:[%s4991] ss:$2 sm:$0xff]
    %s4993 = scalar_lea.vmem [#allocation6], 305
    %v4994 = vld [vmem:[%s4993] ss:$2 sm:$0xff]
    %s4995 = scalar_lea.vmem [#allocation6], 321
    %v4996 = vld [vmem:[%s4995] ss:$2 sm:$0xff]
    %s4997 = scalar_lea.vmem [#allocation6], 337
    %v4998 = vld [vmem:[%s4997] ss:$2 sm:$0xff]
    %s4999 = scalar_lea.vmem [#allocation6], 353
    %v5000 = vld [vmem:[%s4999] ss:$2 sm:$0xff]
    %s5001 = scalar_lea.vmem [#allocation6], 369
    %v5002 = vld [vmem:[%s5001] ss:$2 sm:$0xff]
    %s5003 = scalar_lea.vmem [#allocation6], 385
    %v5004 = vld [vmem:[%s5003] ss:$2 sm:$0xff]
    %s5005 = scalar_lea.vmem [#allocation6], 401
    %v5006 = vld [vmem:[%s5005] ss:$2 sm:$0xff]
    %s5007 = scalar_lea.vmem [#allocation6], 417
    %v5008 = vld [vmem:[%s5007] ss:$2 sm:$0xff]
    %s5009 = scalar_lea.vmem [#allocation6], 433
    %v5010 = vld [vmem:[%s5009] ss:$2 sm:$0xff]
    %s5011 = scalar_lea.vmem [#allocation6], 449
    %v5012 = vld [vmem:[%s5011] ss:$2 sm:$0xff]
    %s5013 = scalar_lea.vmem [#allocation6], 465
    %v5014 = vld [vmem:[%s5013] ss:$2 sm:$0xff]
    %s5015 = scalar_lea.vmem [#allocation6], 481
    %v5016 = vld [vmem:[%s5015] ss:$2 sm:$0xff]
    %s5017 = scalar_lea.vmem [#allocation6], 497
    %v5018 = vld [vmem:[%s5017] ss:$2 sm:$0xff]
    %v5019 = vmax.f32 %v4892, %v4956
    %v5020 = vmax.f32 %v4894, %v4958
    %v5021 = vmax.f32 %v4896, %v4960
    %v5022 = vmax.f32 %v4898, %v4962
    %v5023 = vmax.f32 %v4900, %v4964
    %v5024 = vmax.f32 %v4902, %v4966
    %v5025 = vmax.f32 %v4904, %v4968
    %v5026 = vmax.f32 %v4906, %v4970
    %v5027 = vmax.f32 %v4908, %v4972
    %v5028 = vmax.f32 %v4910, %v4974
    %v5029 = vmax.f32 %v4912, %v4976
    %v5030 = vmax.f32 %v4914, %v4978
    %v5031 = vmax.f32 %v4916, %v4980
    %v5032 = vmax.f32 %v4918, %v4982
    %v5033 = vmax.f32 %v4920, %v4984
    %v5034 = vmax.f32 %v4922, %v4986
    %v5035 = vmax.f32 %v4924, %v4988
    %v5036 = vmax.f32 %v4926, %v4990
    %v5037 = vmax.f32 %v4928, %v4992
    %v5038 = vmax.f32 %v4930, %v4994
    %v5039 = vmax.f32 %v4932, %v4996
    %v5040 = vmax.f32 %v4934, %v4998
    %v5041 = vmax.f32 %v4936, %v5000
    %v5042 = vmax.f32 %v4938, %v5002
    %v5043 = vmax.f32 %v4940, %v5004
    %v5044 = vmax.f32 %v4942, %v5006
    %v5045 = vmax.f32 %v4944, %v5008
    %v5046 = vmax.f32 %v4946, %v5010
    %v5047 = vmax.f32 %v4948, %v5012
    %v5048 = vmax.f32 %v4950, %v5014
    %v5049 = vmax.f32 %v4952, %v5016
    %v5050 = vmax.f32 %v4954, %v5018
    %v5051 = vmax.f32 %v5019, %v5020
    %v5052 = vmax.f32 %v5021, %v5022
    %v5053 = vmax.f32 %v5023, %v5024
    %v5054 = vmax.f32 %v5025, %v5026
    %v5055 = vmax.f32 %v5027, %v5028
    %v5056 = vmax.f32 %v5029, %v5030
    %v5057 = vmax.f32 %v5031, %v5032
    %v5058 = vmax.f32 %v5033, %v5034
    %v5059 = vmax.f32 %v5035, %v5036
    %v5060 = vmax.f32 %v5037, %v5038
    %v5061 = vmax.f32 %v5039, %v5040
    %v5062 = vmax.f32 %v5041, %v5042
    %v5063 = vmax.f32 %v5043, %v5044
    %v5064 = vmax.f32 %v5045, %v5046
    %v5065 = vmax.f32 %v5047, %v5048
    %v5066 = vmax.f32 %v5049, %v5050
    %5067 = vst.msk [vmem:[#allocation3] sm:$0xff] %vm4156, 0.0
    %vm5068 = vcmask 58368
    %5069 = vst.msk [vmem:[#allocation3 + $0x8] sm:$0x3] %vm5068, 0.0
    %5070 = vst.msk [vmem:[#allocation3 + $0x10] sm:$0xff] %vm4156, 0.0
    %5071 = vst.msk [vmem:[#allocation3 + $0x18] sm:$0x3] %vm5068, 0.0
    %5072 = vst.msk [vmem:[#allocation3 + $0x20] sm:$0xff] %vm4156, 0.0
    %5073 = vst.msk [vmem:[#allocation3 + $0x28] sm:$0x3] %vm5068, 0.0
    %5074 = vst.msk [vmem:[#allocation3 + $0x30] sm:$0xff] %vm4156, 0.0
    %5075 = vst.msk [vmem:[#allocation3 + $0x38] sm:$0x3] %vm5068, 0.0
    %5076 = vst.msk [vmem:[#allocation3 + $0x40] sm:$0xff] %vm4156, 0.0
    %5077 = vst.msk [vmem:[#allocation3 + $0x48] sm:$0x3] %vm5068, 0.0
    %5078 = vst.msk [vmem:[#allocation3 + $0x50] sm:$0xff] %vm4156, 0.0
    %5079 = vst.msk [vmem:[#allocation3 + $0x58] sm:$0x3] %vm5068, 0.0
    %5080 = vst.msk [vmem:[#allocation3 + $0x60] sm:$0xff] %vm4156, 0.0
    %5081 = vst.msk [vmem:[#allocation3 + $0x68] sm:$0x3] %vm5068, 0.0
    %5082 = vst.msk [vmem:[#allocation3 + $0x70] sm:$0xff] %vm4156, 0.0
    %5083 = vst.msk [vmem:[#allocation3 + $0x78] sm:$0x3] %vm5068, 0.0
    %5084 = vst.msk [vmem:[#allocation3 + $0x80] sm:$0xff] %vm4156, 0.0
    %5085 = vst.msk [vmem:[#allocation3 + $0x88] sm:$0x3] %vm5068, 0.0
    %5086 = vst.msk [vmem:[#allocation3 + $0x90] sm:$0xff] %vm4156, 0.0
    %5087 = vst.msk [vmem:[#allocation3 + $0x98] sm:$0x3] %vm5068, 0.0
    %5088 = vst.msk [vmem:[#allocation3 + $0xa0] sm:$0xff] %vm4156, 0.0
    %5089 = vst.msk [vmem:[#allocation3 + $0xa8] sm:$0x3] %vm5068, 0.0
    %5090 = vst.msk [vmem:[#allocation3 + $0xb0] sm:$0xff] %vm4156, 0.0
    %5091 = vst.msk [vmem:[#allocation3 + $0xb8] sm:$0x3] %vm5068, 0.0
    %5092 = vst.msk [vmem:[#allocation3 + $0xc0] sm:$0xff] %vm4156, 0.0
    %5093 = vst.msk [vmem:[#allocation3 + $0xc8] sm:$0x3] %vm5068, 0.0
    %5094 = vst.msk [vmem:[#allocation3 + $0xd0] sm:$0xff] %vm4156, 0.0
    %5095 = vst.msk [vmem:[#allocation3 + $0xd8] sm:$0x3] %vm5068, 0.0
    %5096 = vst.msk [vmem:[#allocation3 + $0xe0] sm:$0xff] %vm4156, 0.0
    %5097 = vst.msk [vmem:[#allocation3 + $0xe8] sm:$0x3] %vm5068, 0.0
    %5098 = vst.msk [vmem:[#allocation3 + $0xf0] sm:$0xff] %vm4156, 0.0
    %5099 = vst.msk [vmem:[#allocation3 + $0xf8] sm:$0x3] %vm5068, 0.0
    %5100 = vst.msk [vmem:[#allocation3 + $0x100] sm:$0xff] %vm4156, 0.0
    %5101 = vst.msk [vmem:[#allocation3 + $0x108] sm:$0x3] %vm5068, 0.0
    %5102 = vst.msk [vmem:[#allocation3 + $0x110] sm:$0xff] %vm4156, 0.0
    %5103 = vst.msk [vmem:[#allocation3 + $0x118] sm:$0x3] %vm5068, 0.0
    %5104 = vst.msk [vmem:[#allocation3 + $0x120] sm:$0xff] %vm4156, 0.0
    %5105 = vst.msk [vmem:[#allocation3 + $0x128] sm:$0x3] %vm5068, 0.0
    %5106 = vst.msk [vmem:[#allocation3 + $0x130] sm:$0xff] %vm4156, 0.0
    %5107 = vst.msk [vmem:[#allocation3 + $0x138] sm:$0x3] %vm5068, 0.0
    %s5108 = scalar_lea.vmem [#allocation3], 16
    %5109 = vst.msk [vmem:[%s5108 + $0x1] sm:$0xff] %vm4156, %v5051
    %5110 = vst.msk [vmem:[%s5108 + $0x11] sm:$0xff] %vm4156, %v5052
    %5111 = vst.msk [vmem:[%s5108 + $0x21] sm:$0xff] %vm4156, %v5053
    %5112 = vst.msk [vmem:[%s5108 + $0x31] sm:$0xff] %vm4156, %v5054
    %5113 = vst.msk [vmem:[%s5108 + $0x41] sm:$0xff] %vm4156, %v5055
    %5114 = vst.msk [vmem:[%s5108 + $0x51] sm:$0xff] %vm4156, %v5056
    %5115 = vst.msk [vmem:[%s5108 + $0x61] sm:$0xff] %vm4156, %v5057
    %5116 = vst.msk [vmem:[%s5108 + $0x71] sm:$0xff] %vm4156, %v5058
    %5117 = vst.msk [vmem:[%s5108 + $0xa1] sm:$0xff] %vm4156, %v5059
    %5118 = vst.msk [vmem:[%s5108 + $0xb1] sm:$0xff] %vm4156, %v5060
    %5119 = vst.msk [vmem:[%s5108 + $0xc1] sm:$0xff] %vm4156, %v5061
    %5120 = vst.msk [vmem:[%s5108 + $0xd1] sm:$0xff] %vm4156, %v5062
    %5121 = vst.msk [vmem:[%s5108 + $0xe1] sm:$0xff] %vm4156, %v5063
    %5122 = vst.msk [vmem:[%s5108 + $0xf1] sm:$0xff] %vm4156, %v5064
    %5123 = vst.msk [vmem:[%s5108 + $0x101] sm:$0xff] %vm4156, %v5065
    %5124 = vst.msk [vmem:[%s5108 + $0x111] sm:$0xff] %vm4156, %v5066
    %v5125 = vld [vmem:[#allocation3] sm:$0xff]
    %v5126 = vld [vmem:[#allocation3 + $0x10] sm:$0xff]
    %v5127 = vld [vmem:[#allocation3 + $0x20] sm:$0xff]
    %v5128 = vld [vmem:[#allocation3 + $0x30] sm:$0xff]
    %v5129 = vld [vmem:[#allocation3 + $0x40] sm:$0xff]
    %v5130 = vld [vmem:[#allocation3 + $0x50] sm:$0xff]
    %v5131 = vld [vmem:[#allocation3 + $0x60] sm:$0xff]
    %v5132 = vld [vmem:[#allocation3 + $0x70] sm:$0xff]
    %v5133 = vld [vmem:[#allocation3 + $0xa0] sm:$0xff]
    %v5134 = vld [vmem:[#allocation3 + $0xb0] sm:$0xff]
    %v5135 = vld [vmem:[#allocation3 + $0xc0] sm:$0xff]
    %v5136 = vld [vmem:[#allocation3 + $0xd0] sm:$0xff]
    %v5137 = vld [vmem:[#allocation3 + $0xe0] sm:$0xff]
    %v5138 = vld [vmem:[#allocation3 + $0xf0] sm:$0xff]
    %v5139 = vld [vmem:[#allocation3 + $0x100] sm:$0xff]
    %v5140 = vld [vmem:[#allocation3 + $0x110] sm:$0xff]
    %5141 = vst.msk [vmem:[#allocation5] sm:$0xff] %vm4156, %v5125
    %5142 = vst.msk [vmem:[#allocation5 + $0x8] sm:$0xff] %vm4156, %v5126
    %5143 = vst.msk [vmem:[#allocation5 + $0x10] sm:$0xff] %vm4156, %v5127
    %5144 = vst.msk [vmem:[#allocation5 + $0x18] sm:$0xff] %vm4156, %v5128
    %5145 = vst.msk [vmem:[#allocation5 + $0x20] sm:$0xff] %vm4156, %v5129
    %5146 = vst.msk [vmem:[#allocation5 + $0x28] sm:$0xff] %vm4156, %v5130
    %5147 = vst.msk [vmem:[#allocation5 + $0x30] sm:$0xff] %vm4156, %v5131
    %5148 = vst.msk [vmem:[#allocation5 + $0x38] sm:$0xff] %vm4156, %v5132
    %5149 = vst.msk [vmem:[#allocation5 + $0x40] sm:$0xff] %vm4156, %v5133
    %5150 = vst.msk [vmem:[#allocation5 + $0x48] sm:$0xff] %vm4156, %v5134
    %5151 = vst.msk [vmem:[#allocation5 + $0x50] sm:$0xff] %vm4156, %v5135
    %5152 = vst.msk [vmem:[#allocation5 + $0x58] sm:$0xff] %vm4156, %v5136
    %5153 = vst.msk [vmem:[#allocation5 + $0x60] sm:$0xff] %vm4156, %v5137
    %5154 = vst.msk [vmem:[#allocation5 + $0x68] sm:$0xff] %vm4156, %v5138
    %5155 = vst.msk [vmem:[#allocation5 + $0x70] sm:$0xff] %vm4156, %v5139
    %5156 = vst.msk [vmem:[#allocation5 + $0x78] sm:$0xff] %vm4156, %v5140
    %v5157 = vld [vmem:[#allocation3 + $0x1] sm:$0xff]
    %v5158 = vld [vmem:[#allocation3 + $0x11] sm:$0xff]
    %v5159 = vld [vmem:[#allocation3 + $0x21] sm:$0xff]
    %v5160 = vld [vmem:[#allocation3 + $0x31] sm:$0xff]
    %v5161 = vld [vmem:[#allocation3 + $0x41] sm:$0xff]
    %v5162 = vld [vmem:[#allocation3 + $0x51] sm:$0xff]
    %v5163 = vld [vmem:[#allocation3 + $0x61] sm:$0xff]
    %v5164 = vld [vmem:[#allocation3 + $0x71] sm:$0xff]
    %v5165 = vld [vmem:[#allocation3 + $0xa1] sm:$0xff]
    %v5166 = vld [vmem:[#allocation3 + $0xb1] sm:$0xff]
    %v5167 = vld [vmem:[#allocation3 + $0xc1] sm:$0xff]
    %v5168 = vld [vmem:[#allocation3 + $0xd1] sm:$0xff]
    %v5169 = vld [vmem:[#allocation3 + $0xe1] sm:$0xff]
    %v5170 = vld [vmem:[#allocation3 + $0xf1] sm:$0xff]
    %v5171 = vld [vmem:[#allocation3 + $0x101] sm:$0xff]
    %v5172 = vld [vmem:[#allocation3 + $0x111] sm:$0xff]
    %5189 = vrot.lane.b32.xlu0 %v5157, 8
    %v5190 = vpop.permute.xlu0 %5189
    %5191 = vrot.lane.b32.xlu0 %v5158, 8
    %v5192 = vpop.permute.xlu0 %5191
    %5193 = vrot.lane.b32.xlu0 %v5159, 8
    %v5194 = vpop.permute.xlu0 %5193
    %5195 = vrot.lane.b32.xlu0 %v5160, 8
    %v5196 = vpop.permute.xlu0 %5195
    %5197 = vrot.lane.b32.xlu0 %v5161, 8
    %v5198 = vpop.permute.xlu0 %5197
    %5199 = vrot.lane.b32.xlu0 %v5162, 8
    %v5200 = vpop.permute.xlu0 %5199
    %5201 = vrot.lane.b32.xlu0 %v5163, 8
    %v5202 = vpop.permute.xlu0 %5201
    %5203 = vrot.lane.b32.xlu0 %v5164, 8
    %v5204 = vpop.permute.xlu0 %5203
    %5205 = vrot.lane.b32.xlu0 %v5165, 8
    %v5206 = vpop.permute.xlu0 %5205
    %5207 = vrot.lane.b32.xlu0 %v5166, 8
    %v5208 = vpop.permute.xlu0 %5207
    %5209 = vrot.lane.b32.xlu0 %v5167, 8
    %v5210 = vpop.permute.xlu0 %5209
    %5211 = vrot.lane.b32.xlu0 %v5168, 8
    %v5212 = vpop.permute.xlu0 %5211
    %5213 = vrot.lane.b32.xlu0 %v5169, 8
    %v5214 = vpop.permute.xlu0 %5213
    %5215 = vrot.lane.b32.xlu0 %v5170, 8
    %v5216 = vpop.permute.xlu0 %5215
    %5217 = vrot.lane.b32.xlu0 %v5171, 8
    %v5218 = vpop.permute.xlu0 %5217
    %5219 = vrot.lane.b32.xlu0 %v5172, 8
    %v5220 = vpop.permute.xlu0 %5219
    %vm5237 = vcmask 130112
    %5238 = vst.msk [vmem:[#allocation5] sm:$0xff] %vm5237, %v5190
    %5239 = vst.msk [vmem:[#allocation5 + $0x8] sm:$0xff] %vm5237, %v5192
    %5240 = vst.msk [vmem:[#allocation5 + $0x10] sm:$0xff] %vm5237, %v5194
    %5241 = vst.msk [vmem:[#allocation5 + $0x18] sm:$0xff] %vm5237, %v5196
    %5242 = vst.msk [vmem:[#allocation5 + $0x20] sm:$0xff] %vm5237, %v5198
    %5243 = vst.msk [vmem:[#allocation5 + $0x28] sm:$0xff] %vm5237, %v5200
    %5244 = vst.msk [vmem:[#allocation5 + $0x30] sm:$0xff] %vm5237, %v5202
    %5245 = vst.msk [vmem:[#allocation5 + $0x38] sm:$0xff] %vm5237, %v5204
    %5246 = vst.msk [vmem:[#allocation5 + $0x40] sm:$0xff] %vm5237, %v5206
    %5247 = vst.msk [vmem:[#allocation5 + $0x48] sm:$0xff] %vm5237, %v5208
    %5248 = vst.msk [vmem:[#allocation5 + $0x50] sm:$0xff] %vm5237, %v5210
    %5249 = vst.msk [vmem:[#allocation5 + $0x58] sm:$0xff] %vm5237, %v5212
    %5250 = vst.msk [vmem:[#allocation5 + $0x60] sm:$0xff] %vm5237, %v5214
    %5251 = vst.msk [vmem:[#allocation5 + $0x68] sm:$0xff] %vm5237, %v5216
    %5252 = vst.msk [vmem:[#allocation5 + $0x70] sm:$0xff] %vm5237, %v5218
    %5253 = vst.msk [vmem:[#allocation5 + $0x78] sm:$0xff] %vm5237, %v5220
    %v5254 = vld [vmem:[#allocation3 + $0x2] sm:$0xff]
    %v5255 = vld [vmem:[#allocation3 + $0x12] sm:$0xff]
    %v5256 = vld [vmem:[#allocation3 + $0x22] sm:$0xff]
    %v5257 = vld [vmem:[#allocation3 + $0x32] sm:$0xff]
    %v5258 = vld [vmem:[#allocation3 + $0x42] sm:$0xff]
    %v5259 = vld [vmem:[#allocation3 + $0x52] sm:$0xff]
    %v5260 = vld [vmem:[#allocation3 + $0x62] sm:$0xff]
    %v5261 = vld [vmem:[#allocation3 + $0x72] sm:$0xff]
    %v5262 = vld [vmem:[#allocation3 + $0xa2] sm:$0xff]
    %v5263 = vld [vmem:[#allocation3 + $0xb2] sm:$0xff]
    %v5264 = vld [vmem:[#allocation3 + $0xc2] sm:$0xff]
    %v5265 = vld [vmem:[#allocation3 + $0xd2] sm:$0xff]
    %v5266 = vld [vmem:[#allocation3 + $0xe2] sm:$0xff]
    %v5267 = vld [vmem:[#allocation3 + $0xf2] sm:$0xff]
    %v5268 = vld [vmem:[#allocation3 + $0x102] sm:$0xff]
    %v5269 = vld [vmem:[#allocation3 + $0x112] sm:$0xff]
    %5286 = vrot.lane.b32.xlu0 %v5254, 16
    %v5287 = vpop.permute.xlu0 %5286
    %5288 = vrot.lane.b32.xlu0 %v5255, 16
    %v5289 = vpop.permute.xlu0 %5288
    %5290 = vrot.lane.b32.xlu0 %v5256, 16
    %v5291 = vpop.permute.xlu0 %5290
    %5292 = vrot.lane.b32.xlu0 %v5257, 16
    %v5293 = vpop.permute.xlu0 %5292
    %5294 = vrot.lane.b32.xlu0 %v5258, 16
    %v5295 = vpop.permute.xlu0 %5294
    %5296 = vrot.lane.b32.xlu0 %v5259, 16
    %v5297 = vpop.permute.xlu0 %5296
    %5298 = vrot.lane.b32.xlu0 %v5260, 16
    %v5299 = vpop.permute.xlu0 %5298
    %5300 = vrot.lane.b32.xlu0 %v5261, 16
    %v5301 = vpop.permute.xlu0 %5300
    %5302 = vrot.lane.b32.xlu0 %v5262, 16
    %v5303 = vpop.permute.xlu0 %5302
    %5304 = vrot.lane.b32.xlu0 %v5263, 16
    %v5305 = vpop.permute.xlu0 %5304
    %5306 = vrot.lane.b32.xlu0 %v5264, 16
    %v5307 = vpop.permute.xlu0 %5306
    %5308 = vrot.lane.b32.xlu0 %v5265, 16
    %v5309 = vpop.permute.xlu0 %5308
    %5310 = vrot.lane.b32.xlu0 %v5266, 16
    %v5311 = vpop.permute.xlu0 %5310
    %5312 = vrot.lane.b32.xlu0 %v5267, 16
    %v5313 = vpop.permute.xlu0 %5312
    %5314 = vrot.lane.b32.xlu0 %v5268, 16
    %v5315 = vpop.permute.xlu0 %5314
    %5316 = vrot.lane.b32.xlu0 %v5269, 16
    %v5317 = vpop.permute.xlu0 %5316
    %vm5334 = vcmask 195712
    %5335 = vst.msk [vmem:[#allocation5] sm:$0xff] %vm5334, %v5287
    %5336 = vst.msk [vmem:[#allocation5 + $0x8] sm:$0xff] %vm5334, %v5289
    %5337 = vst.msk [vmem:[#allocation5 + $0x10] sm:$0xff] %vm5334, %v5291
    %5338 = vst.msk [vmem:[#allocation5 + $0x18] sm:$0xff] %vm5334, %v5293
    %5339 = vst.msk [vmem:[#allocation5 + $0x20] sm:$0xff] %vm5334, %v5295
    %5340 = vst.msk [vmem:[#allocation5 + $0x28] sm:$0xff] %vm5334, %v5297
    %5341 = vst.msk [vmem:[#allocation5 + $0x30] sm:$0xff] %vm5334, %v5299
    %5342 = vst.msk [vmem:[#allocation5 + $0x38] sm:$0xff] %vm5334, %v5301
    %5343 = vst.msk [vmem:[#allocation5 + $0x40] sm:$0xff] %vm5334, %v5303
    %5344 = vst.msk [vmem:[#allocation5 + $0x48] sm:$0xff] %vm5334, %v5305
    %5345 = vst.msk [vmem:[#allocation5 + $0x50] sm:$0xff] %vm5334, %v5307
    %5346 = vst.msk [vmem:[#allocation5 + $0x58] sm:$0xff] %vm5334, %v5309
    %5347 = vst.msk [vmem:[#allocation5 + $0x60] sm:$0xff] %vm5334, %v5311
    %5348 = vst.msk [vmem:[#allocation5 + $0x68] sm:$0xff] %vm5334, %v5313
    %5349 = vst.msk [vmem:[#allocation5 + $0x70] sm:$0xff] %vm5334, %v5315
    %5350 = vst.msk [vmem:[#allocation5 + $0x78] sm:$0xff] %vm5334, %v5317
    %v5351 = vld [vmem:[%s5108] sm:$0xff]
    %v5352 = vld [vmem:[%s5108 + $0x10] sm:$0xff]
    %v5353 = vld [vmem:[%s5108 + $0x20] sm:$0xff]
    %v5354 = vld [vmem:[%s5108 + $0x30] sm:$0xff]
    %v5355 = vld [vmem:[%s5108 + $0x40] sm:$0xff]
    %v5356 = vld [vmem:[%s5108 + $0x50] sm:$0xff]
    %v5357 = vld [vmem:[%s5108 + $0x60] sm:$0xff]
    %v5358 = vld [vmem:[%s5108 + $0x70] sm:$0xff]
    %v5359 = vld [vmem:[%s5108 + $0xa0] sm:$0xff]
    %v5360 = vld [vmem:[%s5108 + $0xb0] sm:$0xff]
    %v5361 = vld [vmem:[%s5108 + $0xc0] sm:$0xff]
    %v5362 = vld [vmem:[%s5108 + $0xd0] sm:$0xff]
    %v5363 = vld [vmem:[%s5108 + $0xe0] sm:$0xff]
    %v5364 = vld [vmem:[%s5108 + $0xf0] sm:$0xff]
    %v5365 = vld [vmem:[%s5108 + $0x100] sm:$0xff]
    %v5366 = vld [vmem:[%s5108 + $0x110] sm:$0xff]
    %5383 = vrot.lane.b32.xlu0 %v5351, 24
    %v5384 = vpop.permute.xlu0 %5383
    %5385 = vrot.lane.b32.xlu0 %v5352, 24
    %v5386 = vpop.permute.xlu0 %5385
    %5387 = vrot.lane.b32.xlu0 %v5353, 24
    %v5388 = vpop.permute.xlu0 %5387
    %5389 = vrot.lane.b32.xlu0 %v5354, 24
    %v5390 = vpop.permute.xlu0 %5389
    %5391 = vrot.lane.b32.xlu0 %v5355, 24
    %v5392 = vpop.permute.xlu0 %5391
    %5393 = vrot.lane.b32.xlu0 %v5356, 24
    %v5394 = vpop.permute.xlu0 %5393
    %5395 = vrot.lane.b32.xlu0 %v5357, 24
    %v5396 = vpop.permute.xlu0 %5395
    %5397 = vrot.lane.b32.xlu0 %v5358, 24
    %v5398 = vpop.permute.xlu0 %5397
    %5399 = vrot.lane.b32.xlu0 %v5359, 24
    %v5400 = vpop.permute.xlu0 %5399
    %5401 = vrot.lane.b32.xlu0 %v5360, 24
    %v5402 = vpop.permute.xlu0 %5401
    %5403 = vrot.lane.b32.xlu0 %v5361, 24
    %v5404 = vpop.permute.xlu0 %5403
    %5405 = vrot.lane.b32.xlu0 %v5362, 24
    %v5406 = vpop.permute.xlu0 %5405
    %5407 = vrot.lane.b32.xlu0 %v5363, 24
    %v5408 = vpop.permute.xlu0 %5407
    %5409 = vrot.lane.b32.xlu0 %v5364, 24
    %v5410 = vpop.permute.xlu0 %5409
    %5411 = vrot.lane.b32.xlu0 %v5365, 24
    %v5412 = vpop.permute.xlu0 %5411
    %5413 = vrot.lane.b32.xlu0 %v5366, 24
    %v5414 = vpop.permute.xlu0 %5413
    %vm5431 = vcmask 261312
    %5432 = vst.msk [vmem:[#allocation5] sm:$0xff] %vm5431, %v5384
    %5433 = vst.msk [vmem:[#allocation5 + $0x8] sm:$0xff] %vm5431, %v5386
    %5434 = vst.msk [vmem:[#allocation5 + $0x10] sm:$0xff] %vm5431, %v5388
    %5435 = vst.msk [vmem:[#allocation5 + $0x18] sm:$0xff] %vm5431, %v5390
    %5436 = vst.msk [vmem:[#allocation5 + $0x20] sm:$0xff] %vm5431, %v5392
    %5437 = vst.msk [vmem:[#allocation5 + $0x28] sm:$0xff] %vm5431, %v5394
    %5438 = vst.msk [vmem:[#allocation5 + $0x30] sm:$0xff] %vm5431, %v5396
    %5439 = vst.msk [vmem:[#allocation5 + $0x38] sm:$0xff] %vm5431, %v5398
    %5440 = vst.msk [vmem:[#allocation5 + $0x40] sm:$0xff] %vm5431, %v5400
    %5441 = vst.msk [vmem:[#allocation5 + $0x48] sm:$0xff] %vm5431, %v5402
    %5442 = vst.msk [vmem:[#allocation5 + $0x50] sm:$0xff] %vm5431, %v5404
    %5443 = vst.msk [vmem:[#allocation5 + $0x58] sm:$0xff] %vm5431, %v5406
    %5444 = vst.msk [vmem:[#allocation5 + $0x60] sm:$0xff] %vm5431, %v5408
    %5445 = vst.msk [vmem:[#allocation5 + $0x68] sm:$0xff] %vm5431, %v5410
    %5446 = vst.msk [vmem:[#allocation5 + $0x70] sm:$0xff] %vm5431, %v5412
    %5447 = vst.msk [vmem:[#allocation5 + $0x78] sm:$0xff] %vm5431, %v5414
    %v5448 = vld [vmem:[%s5108 + $0x1] sm:$0xff]
    %v5449 = vld [vmem:[%s5108 + $0x11] sm:$0xff]
    %v5450 = vld [vmem:[%s5108 + $0x21] sm:$0xff]
    %v5451 = vld [vmem:[%s5108 + $0x31] sm:$0xff]
    %v5452 = vld [vmem:[%s5108 + $0x41] sm:$0xff]
    %v5453 = vld [vmem:[%s5108 + $0x51] sm:$0xff]
    %v5454 = vld [vmem:[%s5108 + $0x61] sm:$0xff]
    %v5455 = vld [vmem:[%s5108 + $0x71] sm:$0xff]
    %v5456 = vld [vmem:[%s5108 + $0xa1] sm:$0xff]
    %v5457 = vld [vmem:[%s5108 + $0xb1] sm:$0xff]
    %v5458 = vld [vmem:[%s5108 + $0xc1] sm:$0xff]
    %v5459 = vld [vmem:[%s5108 + $0xd1] sm:$0xff]
    %v5460 = vld [vmem:[%s5108 + $0xe1] sm:$0xff]
    %v5461 = vld [vmem:[%s5108 + $0xf1] sm:$0xff]
    %v5462 = vld [vmem:[%s5108 + $0x101] sm:$0xff]
    %v5463 = vld [vmem:[%s5108 + $0x111] sm:$0xff]
    %5480 = vrot.lane.b32.xlu0 %v5448, 32
    %v5481 = vpop.permute.xlu0 %5480
    %5482 = vrot.lane.b32.xlu0 %v5449, 32
    %v5483 = vpop.permute.xlu0 %5482
    %5484 = vrot.lane.b32.xlu0 %v5450, 32
    %v5485 = vpop.permute.xlu0 %5484
    %5486 = vrot.lane.b32.xlu0 %v5451, 32
    %v5487 = vpop.permute.xlu0 %5486
    %5488 = vrot.lane.b32.xlu0 %v5452, 32
    %v5489 = vpop.permute.xlu0 %5488
    %5490 = vrot.lane.b32.xlu0 %v5453, 32
    %v5491 = vpop.permute.xlu0 %5490
    %5492 = vrot.lane.b32.xlu0 %v5454, 32
    %v5493 = vpop.permute.xlu0 %5492
    %5494 = vrot.lane.b32.xlu0 %v5455, 32
    %v5495 = vpop.permute.xlu0 %5494
    %5496 = vrot.lane.b32.xlu0 %v5456, 32
    %v5497 = vpop.permute.xlu0 %5496
    %5498 = vrot.lane.b32.xlu0 %v5457, 32
    %v5499 = vpop.permute.xlu0 %5498
    %5500 = vrot.lane.b32.xlu0 %v5458, 32
    %v5501 = vpop.permute.xlu0 %5500
    %5502 = vrot.lane.b32.xlu0 %v5459, 32
    %v5503 = vpop.permute.xlu0 %5502
    %5504 = vrot.lane.b32.xlu0 %v5460, 32
    %v5505 = vpop.permute.xlu0 %5504
    %5506 = vrot.lane.b32.xlu0 %v5461, 32
    %v5507 = vpop.permute.xlu0 %5506
    %5508 = vrot.lane.b32.xlu0 %v5462, 32
    %v5509 = vpop.permute.xlu0 %5508
    %5510 = vrot.lane.b32.xlu0 %v5463, 32
    %v5511 = vpop.permute.xlu0 %5510
    %vm5528 = vcmask 326912
    %5529 = vst.msk [vmem:[#allocation5] sm:$0xff] %vm5528, %v5481
    %5530 = vst.msk [vmem:[#allocation5 + $0x8] sm:$0xff] %vm5528, %v5483
    %5531 = vst.msk [vmem:[#allocation5 + $0x10] sm:$0xff] %vm5528, %v5485
    %5532 = vst.msk [vmem:[#allocation5 + $0x18] sm:$0xff] %vm5528, %v5487
    %5533 = vst.msk [vmem:[#allocation5 + $0x20] sm:$0xff] %vm5528, %v5489
    %5534 = vst.msk [vmem:[#allocation5 + $0x28] sm:$0xff] %vm5528, %v5491
    %5535 = vst.msk [vmem:[#allocation5 + $0x30] sm:$0xff] %vm5528, %v5493
    %5536 = vst.msk [vmem:[#allocation5 + $0x38] sm:$0xff] %vm5528, %v5495
    %5537 = vst.msk [vmem:[#allocation5 + $0x40] sm:$0xff] %vm5528, %v5497
    %5538 = vst.msk [vmem:[#allocation5 + $0x48] sm:$0xff] %vm5528, %v5499
    %5539 = vst.msk [vmem:[#allocation5 + $0x50] sm:$0xff] %vm5528, %v5501
    %5540 = vst.msk [vmem:[#allocation5 + $0x58] sm:$0xff] %vm5528, %v5503
    %5541 = vst.msk [vmem:[#allocation5 + $0x60] sm:$0xff] %vm5528, %v5505
    %5542 = vst.msk [vmem:[#allocation5 + $0x68] sm:$0xff] %vm5528, %v5507
    %5543 = vst.msk [vmem:[#allocation5 + $0x70] sm:$0xff] %vm5528, %v5509
    %5544 = vst.msk [vmem:[#allocation5 + $0x78] sm:$0xff] %vm5528, %v5511
    %v5545 = vld [vmem:[%s5108 + $0x2] sm:$0xff]
    %v5546 = vld [vmem:[%s5108 + $0x12] sm:$0xff]
    %v5547 = vld [vmem:[%s5108 + $0x22] sm:$0xff]
    %v5548 = vld [vmem:[%s5108 + $0x32] sm:$0xff]
    %v5549 = vld [vmem:[%s5108 + $0x42] sm:$0xff]
    %v5550 = vld [vmem:[%s5108 + $0x52] sm:$0xff]
    %v5551 = vld [vmem:[%s5108 + $0x62] sm:$0xff]
    %v5552 = vld [vmem:[%s5108 + $0x72] sm:$0xff]
    %v5553 = vld [vmem:[%s5108 + $0xa2] sm:$0xff]
    %v5554 = vld [vmem:[%s5108 + $0xb2] sm:$0xff]
    %v5555 = vld [vmem:[%s5108 + $0xc2] sm:$0xff]
    %v5556 = vld [vmem:[%s5108 + $0xd2] sm:$0xff]
    %v5557 = vld [vmem:[%s5108 + $0xe2] sm:$0xff]
    %v5558 = vld [vmem:[%s5108 + $0xf2] sm:$0xff]
    %v5559 = vld [vmem:[%s5108 + $0x102] sm:$0xff]
    %v5560 = vld [vmem:[%s5108 + $0x112] sm:$0xff]
    %5577 = vrot.lane.b32.xlu0 %v5545, 40
    %v5578 = vpop.permute.xlu0 %5577
    %5579 = vrot.lane.b32.xlu0 %v5546, 40
    %v5580 = vpop.permute.xlu0 %5579
    %5581 = vrot.lane.b32.xlu0 %v5547, 40
    %v5582 = vpop.permute.xlu0 %5581
    %5583 = vrot.lane.b32.xlu0 %v5548, 40
    %v5584 = vpop.permute.xlu0 %5583
    %5585 = vrot.lane.b32.xlu0 %v5549, 40
    %v5586 = vpop.permute.xlu0 %5585
    %5587 = vrot.lane.b32.xlu0 %v5550, 40
    %v5588 = vpop.permute.xlu0 %5587
    %5589 = vrot.lane.b32.xlu0 %v5551, 40
    %v5590 = vpop.permute.xlu0 %5589
    %5591 = vrot.lane.b32.xlu0 %v5552, 40
    %v5592 = vpop.permute.xlu0 %5591
    %5593 = vrot.lane.b32.xlu0 %v5553, 40
    %v5594 = vpop.permute.xlu0 %5593
    %5595 = vrot.lane.b32.xlu0 %v5554, 40
    %v5596 = vpop.permute.xlu0 %5595
    %5597 = vrot.lane.b32.xlu0 %v5555, 40
    %v5598 = vpop.permute.xlu0 %5597
    %5599 = vrot.lane.b32.xlu0 %v5556, 40
    %v5600 = vpop.permute.xlu0 %5599
    %5601 = vrot.lane.b32.xlu0 %v5557, 40
    %v5602 = vpop.permute.xlu0 %5601
    %5603 = vrot.lane.b32.xlu0 %v5558, 40
    %v5604 = vpop.permute.xlu0 %5603
    %5605 = vrot.lane.b32.xlu0 %v5559, 40
    %v5606 = vpop.permute.xlu0 %5605
    %5607 = vrot.lane.b32.xlu0 %v5560, 40
    %v5608 = vpop.permute.xlu0 %5607
    %vm5625 = vcmask 392512
    %5626 = vst.msk [vmem:[#allocation5] sm:$0xff] %vm5625, %v5578
    %5627 = vst.msk [vmem:[#allocation5 + $0x8] sm:$0xff] %vm5625, %v5580
    %5628 = vst.msk [vmem:[#allocation5 + $0x10] sm:$0xff] %vm5625, %v5582
    %5629 = vst.msk [vmem:[#allocation5 + $0x18] sm:$0xff] %vm5625, %v5584
    %5630 = vst.msk [vmem:[#allocation5 + $0x20] sm:$0xff] %vm5625, %v5586
    %5631 = vst.msk [vmem:[#allocation5 + $0x28] sm:$0xff] %vm5625, %v5588
    %5632 = vst.msk [vmem:[#allocation5 + $0x30] sm:$0xff] %vm5625, %v5590
    %5633 = vst.msk [vmem:[#allocation5 + $0x38] sm:$0xff] %vm5625, %v5592
    %5634 = vst.msk [vmem:[#allocation5 + $0x40] sm:$0xff] %vm5625, %v5594
    %5635 = vst.msk [vmem:[#allocation5 + $0x48] sm:$0xff] %vm5625, %v5596
    %5636 = vst.msk [vmem:[#allocation5 + $0x50] sm:$0xff] %vm5625, %v5598
    %5637 = vst.msk [vmem:[#allocation5 + $0x58] sm:$0xff] %vm5625, %v5600
    %5638 = vst.msk [vmem:[#allocation5 + $0x60] sm:$0xff] %vm5625, %v5602
    %5639 = vst.msk [vmem:[#allocation5 + $0x68] sm:$0xff] %vm5625, %v5604
    %5640 = vst.msk [vmem:[#allocation5 + $0x70] sm:$0xff] %vm5625, %v5606
    %5641 = vst.msk [vmem:[#allocation5 + $0x78] sm:$0xff] %vm5625, %v5608
    %s5642 = scalar_lea.vmem [#allocation3], 32
    %v5643 = vld [vmem:[%s5642] sm:$0xff]
    %v5644 = vld [vmem:[%s5642 + $0x10] sm:$0xff]
    %v5645 = vld [vmem:[%s5642 + $0x20] sm:$0xff]
    %v5646 = vld [vmem:[%s5642 + $0x30] sm:$0xff]
    %v5647 = vld [vmem:[%s5642 + $0x40] sm:$0xff]
    %v5648 = vld [vmem:[%s5642 + $0x50] sm:$0xff]
    %v5649 = vld [vmem:[%s5642 + $0x60] sm:$0xff]
    %v5650 = vld [vmem:[%s5642 + $0x70] sm:$0xff]
    %v5651 = vld [vmem:[%s5642 + $0xa0] sm:$0xff]
    %v5652 = vld [vmem:[%s5642 + $0xb0] sm:$0xff]
    %v5653 = vld [vmem:[%s5642 + $0xc0] sm:$0xff]
    %v5654 = vld [vmem:[%s5642 + $0xd0] sm:$0xff]
    %v5655 = vld [vmem:[%s5642 + $0xe0] sm:$0xff]
    %v5656 = vld [vmem:[%s5642 + $0xf0] sm:$0xff]
    %v5657 = vld [vmem:[%s5642 + $0x100] sm:$0xff]
    %v5658 = vld [vmem:[%s5642 + $0x110] sm:$0xff]
    %5675 = vrot.lane.b32.xlu0 %v5643, 48
    %v5676 = vpop.permute.xlu0 %5675
    %5677 = vrot.lane.b32.xlu0 %v5644, 48
    %v5678 = vpop.permute.xlu0 %5677
    %5679 = vrot.lane.b32.xlu0 %v5645, 48
    %v5680 = vpop.permute.xlu0 %5679
    %5681 = vrot.lane.b32.xlu0 %v5646, 48
    %v5682 = vpop.permute.xlu0 %5681
    %5683 = vrot.lane.b32.xlu0 %v5647, 48
    %v5684 = vpop.permute.xlu0 %5683
    %5685 = vrot.lane.b32.xlu0 %v5648, 48
    %v5686 = vpop.permute.xlu0 %5685
    %5687 = vrot.lane.b32.xlu0 %v5649, 48
    %v5688 = vpop.permute.xlu0 %5687
    %5689 = vrot.lane.b32.xlu0 %v5650, 48
    %v5690 = vpop.permute.xlu0 %5689
    %5691 = vrot.lane.b32.xlu0 %v5651, 48
    %v5692 = vpop.permute.xlu0 %5691
    %5693 = vrot.lane.b32.xlu0 %v5652, 48
    %v5694 = vpop.permute.xlu0 %5693
    %5695 = vrot.lane.b32.xlu0 %v5653, 48
    %v5696 = vpop.permute.xlu0 %5695
    %5697 = vrot.lane.b32.xlu0 %v5654, 48
    %v5698 = vpop.permute.xlu0 %5697
    %5699 = vrot.lane.b32.xlu0 %v5655, 48
    %v5700 = vpop.permute.xlu0 %5699
    %5701 = vrot.lane.b32.xlu0 %v5656, 48
    %v5702 = vpop.permute.xlu0 %5701
    %5703 = vrot.lane.b32.xlu0 %v5657, 48
    %v5704 = vpop.permute.xlu0 %5703
    %5705 = vrot.lane.b32.xlu0 %v5658, 48
    %v5706 = vpop.permute.xlu0 %5705
    %vm5723 = vcmask 458112
    %5724 = vst.msk [vmem:[#allocation5] sm:$0xff] %vm5723, %v5676
    %5725 = vst.msk [vmem:[#allocation5 + $0x8] sm:$0xff] %vm5723, %v5678
    %5726 = vst.msk [vmem:[#allocation5 + $0x10] sm:$0xff] %vm5723, %v5680
    %5727 = vst.msk [vmem:[#allocation5 + $0x18] sm:$0xff] %vm5723, %v5682
    %5728 = vst.msk [vmem:[#allocation5 + $0x20] sm:$0xff] %vm5723, %v5684
    %5729 = vst.msk [vmem:[#allocation5 + $0x28] sm:$0xff] %vm5723, %v5686
    %5730 = vst.msk [vmem:[#allocation5 + $0x30] sm:$0xff] %vm5723, %v5688
    %5731 = vst.msk [vmem:[#allocation5 + $0x38] sm:$0xff] %vm5723, %v5690
    %5732 = vst.msk [vmem:[#allocation5 + $0x40] sm:$0xff] %vm5723, %v5692
    %5733 = vst.msk [vmem:[#allocation5 + $0x48] sm:$0xff] %vm5723, %v5694
    %5734 = vst.msk [vmem:[#allocation5 + $0x50] sm:$0xff] %vm5723, %v5696
    %5735 = vst.msk [vmem:[#allocation5 + $0x58] sm:$0xff] %vm5723, %v5698
    %5736 = vst.msk [vmem:[#allocation5 + $0x60] sm:$0xff] %vm5723, %v5700
    %5737 = vst.msk [vmem:[#allocation5 + $0x68] sm:$0xff] %vm5723, %v5702
    %5738 = vst.msk [vmem:[#allocation5 + $0x70] sm:$0xff] %vm5723, %v5704
    %5739 = vst.msk [vmem:[#allocation5 + $0x78] sm:$0xff] %vm5723, %v5706
    %v5740 = vld [vmem:[%s5642 + $0x1] sm:$0xff]
    %v5741 = vld [vmem:[%s5642 + $0x11] sm:$0xff]
    %v5742 = vld [vmem:[%s5642 + $0x21] sm:$0xff]
    %v5743 = vld [vmem:[%s5642 + $0x31] sm:$0xff]
    %v5744 = vld [vmem:[%s5642 + $0x41] sm:$0xff]
    %v5745 = vld [vmem:[%s5642 + $0x51] sm:$0xff]
    %v5746 = vld [vmem:[%s5642 + $0x61] sm:$0xff]
    %v5747 = vld [vmem:[%s5642 + $0x71] sm:$0xff]
    %v5748 = vld [vmem:[%s5642 + $0xa1] sm:$0xff]
    %v5749 = vld [vmem:[%s5642 + $0xb1] sm:$0xff]
    %v5750 = vld [vmem:[%s5642 + $0xc1] sm:$0xff]
    %v5751 = vld [vmem:[%s5642 + $0xd1] sm:$0xff]
    %v5752 = vld [vmem:[%s5642 + $0xe1] sm:$0xff]
    %v5753 = vld [vmem:[%s5642 + $0xf1] sm:$0xff]
    %v5754 = vld [vmem:[%s5642 + $0x101] sm:$0xff]
    %v5755 = vld [vmem:[%s5642 + $0x111] sm:$0xff]
    %5772 = vrot.lane.b32.xlu0 %v5740, 56
    %v5773 = vpop.permute.xlu0 %5772
    %5774 = vrot.lane.b32.xlu0 %v5741, 56
    %v5775 = vpop.permute.xlu0 %5774
    %5776 = vrot.lane.b32.xlu0 %v5742, 56
    %v5777 = vpop.permute.xlu0 %5776
    %5778 = vrot.lane.b32.xlu0 %v5743, 56
    %v5779 = vpop.permute.xlu0 %5778
    %5780 = vrot.lane.b32.xlu0 %v5744, 56
    %v5781 = vpop.permute.xlu0 %5780
    %5782 = vrot.lane.b32.xlu0 %v5745, 56
    %v5783 = vpop.permute.xlu0 %5782
    %5784 = vrot.lane.b32.xlu0 %v5746, 56
    %v5785 = vpop.permute.xlu0 %5784
    %5786 = vrot.lane.b32.xlu0 %v5747, 56
    %v5787 = vpop.permute.xlu0 %5786
    %5788 = vrot.lane.b32.xlu0 %v5748, 56
    %v5789 = vpop.permute.xlu0 %5788
    %5790 = vrot.lane.b32.xlu0 %v5749, 56
    %v5791 = vpop.permute.xlu0 %5790
    %5792 = vrot.lane.b32.xlu0 %v5750, 56
    %v5793 = vpop.permute.xlu0 %5792
    %5794 = vrot.lane.b32.xlu0 %v5751, 56
    %v5795 = vpop.permute.xlu0 %5794
    %5796 = vrot.lane.b32.xlu0 %v5752, 56
    %v5797 = vpop.permute.xlu0 %5796
    %5798 = vrot.lane.b32.xlu0 %v5753, 56
    %v5799 = vpop.permute.xlu0 %5798
    %5800 = vrot.lane.b32.xlu0 %v5754, 56
    %v5801 = vpop.permute.xlu0 %5800
    %5802 = vrot.lane.b32.xlu0 %v5755, 56
    %v5803 = vpop.permute.xlu0 %5802
    %vm5820 = vcmask 523712
    %5821 = vst.msk [vmem:[#allocation5] sm:$0xff] %vm5820, %v5773
    %5822 = vst.msk [vmem:[#allocation5 + $0x8] sm:$0xff] %vm5820, %v5775
    %5823 = vst.msk [vmem:[#allocation5 + $0x10] sm:$0xff] %vm5820, %v5777
    %5824 = vst.msk [vmem:[#allocation5 + $0x18] sm:$0xff] %vm5820, %v5779
    %5825 = vst.msk [vmem:[#allocation5 + $0x20] sm:$0xff] %vm5820, %v5781
    %5826 = vst.msk [vmem:[#allocation5 + $0x28] sm:$0xff] %vm5820, %v5783
    %5827 = vst.msk [vmem:[#allocation5 + $0x30] sm:$0xff] %vm5820, %v5785
    %5828 = vst.msk [vmem:[#allocation5 + $0x38] sm:$0xff] %vm5820, %v5787
    %5829 = vst.msk [vmem:[#allocation5 + $0x40] sm:$0xff] %vm5820, %v5789
    %5830 = vst.msk [vmem:[#allocation5 + $0x48] sm:$0xff] %vm5820, %v5791
    %5831 = vst.msk [vmem:[#allocation5 + $0x50] sm:$0xff] %vm5820, %v5793
    %5832 = vst.msk [vmem:[#allocation5 + $0x58] sm:$0xff] %vm5820, %v5795
    %5833 = vst.msk [vmem:[#allocation5 + $0x60] sm:$0xff] %vm5820, %v5797
    %5834 = vst.msk [vmem:[#allocation5 + $0x68] sm:$0xff] %vm5820, %v5799
    %5835 = vst.msk [vmem:[#allocation5 + $0x70] sm:$0xff] %vm5820, %v5801
    %5836 = vst.msk [vmem:[#allocation5 + $0x78] sm:$0xff] %vm5820, %v5803
    %v5837 = vld [vmem:[%s5642 + $0x2] sm:$0xff]
    %v5838 = vld [vmem:[%s5642 + $0x12] sm:$0xff]
    %v5839 = vld [vmem:[%s5642 + $0x22] sm:$0xff]
    %v5840 = vld [vmem:[%s5642 + $0x32] sm:$0xff]
    %v5841 = vld [vmem:[%s5642 + $0x42] sm:$0xff]
    %v5842 = vld [vmem:[%s5642 + $0x52] sm:$0xff]
    %v5843 = vld [vmem:[%s5642 + $0x62] sm:$0xff]
    %v5844 = vld [vmem:[%s5642 + $0x72] sm:$0xff]
    %v5845 = vld [vmem:[%s5642 + $0xa2] sm:$0xff]
    %v5846 = vld [vmem:[%s5642 + $0xb2] sm:$0xff]
    %v5847 = vld [vmem:[%s5642 + $0xc2] sm:$0xff]
    %v5848 = vld [vmem:[%s5642 + $0xd2] sm:$0xff]
    %v5849 = vld [vmem:[%s5642 + $0xe2] sm:$0xff]
    %v5850 = vld [vmem:[%s5642 + $0xf2] sm:$0xff]
    %v5851 = vld [vmem:[%s5642 + $0x102] sm:$0xff]
    %v5852 = vld [vmem:[%s5642 + $0x112] sm:$0xff]
    %5869 = vrot.lane.b32.xlu0 %v5837, 64
    %v5870 = vpop.permute.xlu0 %5869
    %5871 = vrot.lane.b32.xlu0 %v5838, 64
    %v5872 = vpop.permute.xlu0 %5871
    %5873 = vrot.lane.b32.xlu0 %v5839, 64
    %v5874 = vpop.permute.xlu0 %5873
    %5875 = vrot.lane.b32.xlu0 %v5840, 64
    %v5876 = vpop.permute.xlu0 %5875
    %5877 = vrot.lane.b32.xlu0 %v5841, 64
    %v5878 = vpop.permute.xlu0 %5877
    %5879 = vrot.lane.b32.xlu0 %v5842, 64
    %v5880 = vpop.permute.xlu0 %5879
    %5881 = vrot.lane.b32.xlu0 %v5843, 64
    %v5882 = vpop.permute.xlu0 %5881
    %5883 = vrot.lane.b32.xlu0 %v5844, 64
    %v5884 = vpop.permute.xlu0 %5883
    %5885 = vrot.lane.b32.xlu0 %v5845, 64
    %v5886 = vpop.permute.xlu0 %5885
    %5887 = vrot.lane.b32.xlu0 %v5846, 64
    %v5888 = vpop.permute.xlu0 %5887
    %5889 = vrot.lane.b32.xlu0 %v5847, 64
    %v5890 = vpop.permute.xlu0 %5889
    %5891 = vrot.lane.b32.xlu0 %v5848, 64
    %v5892 = vpop.permute.xlu0 %5891
    %5893 = vrot.lane.b32.xlu0 %v5849, 64
    %v5894 = vpop.permute.xlu0 %5893
    %5895 = vrot.lane.b32.xlu0 %v5850, 64
    %v5896 = vpop.permute.xlu0 %5895
    %5897 = vrot.lane.b32.xlu0 %v5851, 64
    %v5898 = vpop.permute.xlu0 %5897
    %5899 = vrot.lane.b32.xlu0 %v5852, 64
    %v5900 = vpop.permute.xlu0 %5899
    %vm5917 = vcmask 589312
    %5918 = vst.msk [vmem:[#allocation5] sm:$0xff] %vm5917, %v5870
    %5919 = vst.msk [vmem:[#allocation5 + $0x8] sm:$0xff] %vm5917, %v5872
    %5920 = vst.msk [vmem:[#allocation5 + $0x10] sm:$0xff] %vm5917, %v5874
    %5921 = vst.msk [vmem:[#allocation5 + $0x18] sm:$0xff] %vm5917, %v5876
    %5922 = vst.msk [vmem:[#allocation5 + $0x20] sm:$0xff] %vm5917, %v5878
    %5923 = vst.msk [vmem:[#allocation5 + $0x28] sm:$0xff] %vm5917, %v5880
    %5924 = vst.msk [vmem:[#allocation5 + $0x30] sm:$0xff] %vm5917, %v5882
    %5925 = vst.msk [vmem:[#allocation5 + $0x38] sm:$0xff] %vm5917, %v5884
    %5926 = vst.msk [vmem:[#allocation5 + $0x40] sm:$0xff] %vm5917, %v5886
    %5927 = vst.msk [vmem:[#allocation5 + $0x48] sm:$0xff] %vm5917, %v5888
    %5928 = vst.msk [vmem:[#allocation5 + $0x50] sm:$0xff] %vm5917, %v5890
    %5929 = vst.msk [vmem:[#allocation5 + $0x58] sm:$0xff] %vm5917, %v5892
    %5930 = vst.msk [vmem:[#allocation5 + $0x60] sm:$0xff] %vm5917, %v5894
    %5931 = vst.msk [vmem:[#allocation5 + $0x68] sm:$0xff] %vm5917, %v5896
    %5932 = vst.msk [vmem:[#allocation5 + $0x70] sm:$0xff] %vm5917, %v5898
    %5933 = vst.msk [vmem:[#allocation5 + $0x78] sm:$0xff] %vm5917, %v5900
    %v5934 = vld [vmem:[#allocation5] sm:$0xff]
    %v5935 = vld [vmem:[#allocation5 + $0x8] sm:$0xff]
    %v5936 = vld [vmem:[#allocation5 + $0x10] sm:$0xff]
    %v5937 = vld [vmem:[#allocation5 + $0x18] sm:$0xff]
    %v5938 = vld [vmem:[#allocation5 + $0x20] sm:$0xff]
    %v5939 = vld [vmem:[#allocation5 + $0x28] sm:$0xff]
    %v5940 = vld [vmem:[#allocation5 + $0x30] sm:$0xff]
    %v5941 = vld [vmem:[#allocation5 + $0x38] sm:$0xff]
    %v5942 = vld [vmem:[#allocation5 + $0x40] sm:$0xff]
    %v5943 = vld [vmem:[#allocation5 + $0x48] sm:$0xff]
    %v5944 = vld [vmem:[#allocation5 + $0x50] sm:$0xff]
    %v5945 = vld [vmem:[#allocation5 + $0x58] sm:$0xff]
    %v5946 = vld [vmem:[#allocation5 + $0x60] sm:$0xff]
    %v5947 = vld [vmem:[#allocation5 + $0x68] sm:$0xff]
    %v5948 = vld [vmem:[#allocation5 + $0x70] sm:$0xff]
    %v5949 = vld [vmem:[#allocation5 + $0x78] sm:$0xff]
    %v5950 = vld [vmem:[%s5] sm:$0xff]
    %v5951 = vld [vmem:[%s5 + $0x8] sm:$0xff]
    %v5952 = vld [vmem:[%s5 + $0x10] sm:$0xff]
    %v5953 = vld [vmem:[%s5 + $0x18] sm:$0xff]
    %v5954 = vld [vmem:[%s5 + $0x20] sm:$0xff]
    %v5955 = vld [vmem:[%s5 + $0x28] sm:$0xff]
    %v5956 = vld [vmem:[%s5 + $0x30] sm:$0xff]
    %v5957 = vld [vmem:[%s5 + $0x38] sm:$0xff]
    %v5958 = vld [vmem:[%s5 + $0x40] sm:$0xff]
    %v5959 = vld [vmem:[%s6] sm:$0x1]
    %v5961 = vlaneseq
    %v5962 = vshrl.u32 %v5961, 7
    %v5963 = vsub.s32 0, %v5962
    %v5964 = vrot.slane %v5959, %v5963
    %vm5966 = vcmask 588800
    %v5968 = vsel %vm5966, %v5934, 0
    %v5971 = vsel %vm5966, %v5935, 0
    %v5974 = vsel %vm5966, %v5936, 0
    %v5977 = vsel %vm5966, %v5937, 0
    %v5980 = vsel %vm5966, %v5938, 0
    %v5983 = vsel %vm5966, %v5939, 0
    %v5986 = vsel %vm5966, %v5940, 0
    %v5989 = vsel %vm5966, %v5941, 0
    %v5992 = vsel %vm5966, %v5942, 0
    %v5995 = vsel %vm5966, %v5943, 0
    %v5998 = vsel %vm5966, %v5944, 0
    %v6001 = vsel %vm5966, %v5945, 0
    %v6004 = vsel %vm5966, %v5946, 0
    %v6007 = vsel %vm5966, %v5947, 0
    %v6010 = vsel %vm5966, %v5948, 0
    %v6013 = vsel %vm5966, %v5949, 0
    %6015 = vmatprep.subr.mxu0 0.0
    %6016 = vmatpush1.msra.mxu0 %v5950
    %6017 = vmatprep.subr.mxu0 0.0
    %6018 = vmatpush1.msra.mxu0 %v5951
    %6019 = vmatprep.subr.mxu0 0.0
    %6020 = vmatpush1.msra.mxu0 %v5952
    %6021 = vmatprep.subr.mxu0 0.0
    %6022 = vmatpush1.msra.mxu0 %v5953
    %6023 = vmatprep.subr.mxu0 0.0
    %6024 = vmatpush1.msra.mxu0 %v5954
    %6025 = vmatprep.subr.mxu0 0.0
    %6026 = vmatpush1.msra.mxu0 %v5955
    %6027 = vmatprep.subr.mxu0 0.0
    %6028 = vmatpush1.msra.mxu0 %v5956
    %6029 = vmatprep.subr.mxu0 0.0
    %6030 = vmatpush1.msra.mxu0 %v5957
    %6031 = vmatprep.subr.mxu0 0.0
    %6032 = vmatpush1.msra.mxu0 %v5958
    %6033 = vmatprep.subr.mxu0 0.0
    %6034 = vmatpush1.msra.mxu0 0.0
    %6035 = vmatprep.subr.mxu0 0.0
    %6036 = vmatpush1.msra.mxu0 0.0
    %6037 = vmatprep.subr.mxu0 0.0
    %6038 = vmatpush1.msra.mxu0 0.0
    %6039 = vmatprep.subr.mxu0 0.0
    %6040 = vmatpush1.msra.mxu0 0.0
    %6041 = vmatprep.subr.mxu0 0.0
    %6042 = vmatpush1.msra.mxu0 0.0
    %6043 = vmatprep.subr.mxu0 0.0
    %6044 = vmatpush1.msra.mxu0 0.0
    %6045 = vmatprep.subr.mxu0 0.0
    %6046 = vmatpush1.msra.mxu0 0.0
    %6047 = vmatprep.subr.mxu0 0.0
    %6048 = vmatpush1.msra.mxu0 0.0
    %6049 = vmatprep.subr.mxu0 0.0
    %6050 = vmatpush1.msra.mxu0 0.0
    %6051 = vmatprep.subr.mxu0 0.0
    %6052 = vmatpush1.msra.mxu0 0.0
    %6053 = vmatprep.subr.mxu0 0.0
    %6054 = vmatpush1.msra.mxu0 0.0
    %6055 = vmatprep.subr.mxu0 0.0
    %6056 = vmatpush1.msra.mxu0 0.0
    %6057 = vmatprep.subr.mxu0 0.0
    %6058 = vmatpush1.msra.mxu0 0.0
    %6059 = vmatprep.subr.mxu0 0.0
    %6060 = vmatpush1.msra.mxu0 0.0
    %6061 = vmatprep.subr.mxu0 0.0
    %6062 = vmatpush1.msra.mxu0 0.0
    %6063 = vmatprep.subr.mxu0 0.0
    %6064 = vmatpush1.msra.mxu0 0.0
    %6065 = vmatprep.subr.mxu0 0.0
    %6066 = vmatpush1.msra.mxu0 0.0
    %6067 = vmatprep.subr.mxu0 0.0
    %6068 = vmatpush1.msra.mxu0 0.0
    %6069 = vmatprep.subr.mxu0 0.0
    %6070 = vmatpush1.msra.mxu0 0.0
    %6071 = vmatprep.subr.mxu0 0.0
    %6072 = vmatpush1.msra.mxu0 0.0
    %6073 = vmatprep.subr.mxu0 0.0
    %6074 = vmatpush1.msra.mxu0 0.0
    %6075 = vmatprep.subr.mxu0 0.0
    %6076 = vmatpush1.msra.mxu0 0.0
    %6077 = vmatprep.subr.mxu0 0.0
    %6078 = vmatpush1.msra.mxu0 0.0
    %6079 = vmatprep.mubr.f32.mxu0 0.0
    %6080 = vmatmul.mubr.f32.gmra.mrb[0].mxu0 %v5968
    %v6081 = vpop.f32.mrb[0].mxu0
    %v6082 = vadd.f32 %v5964, %v6081
    %v6083 = vpop.f32.mrb[0].mxu0
    %6084 = vmatprep.mubr.f32.mxu0 0.0
    %6085 = vmatmul.mubr.f32.gmra.mrb[0].mxu0 %v5971
    %v6086 = vpop.f32.mrb[0].mxu0
    %v6087 = vadd.f32 %v5964, %v6086
    %v6088 = vpop.f32.mrb[0].mxu0
    %6089 = vmatprep.mubr.f32.mxu0 0.0
    %6090 = vmatmul.mubr.f32.gmra.mrb[0].mxu0 %v5974
    %v6091 = vpop.f32.mrb[0].mxu0
    %v6092 = vadd.f32 %v5964, %v6091
    %v6093 = vpop.f32.mrb[0].mxu0
    %6094 = vmatprep.mubr.f32.mxu0 0.0
    %6095 = vmatmul.mubr.f32.gmra.mrb[0].mxu0 %v5977
    %v6096 = vpop.f32.mrb[0].mxu0
    %v6097 = vadd.f32 %v5964, %v6096
    %v6098 = vpop.f32.mrb[0].mxu0
    %6099 = vmatprep.mubr.f32.mxu0 0.0
    %6100 = vmatmul.mubr.f32.gmra.mrb[0].mxu0 %v5980
    %v6101 = vpop.f32.mrb[0].mxu0
    %v6102 = vadd.f32 %v5964, %v6101
    %v6103 = vpop.f32.mrb[0].mxu0
    %6104 = vmatprep.mubr.f32.mxu0 0.0
    %6105 = vmatmul.mubr.f32.gmra.mrb[0].mxu0 %v5983
    %v6106 = vpop.f32.mrb[0].mxu0
    %v6107 = vadd.f32 %v5964, %v6106
    %v6108 = vpop.f32.mrb[0].mxu0
    %6109 = vmatprep.mubr.f32.mxu0 0.0
    %6110 = vmatmul.mubr.f32.gmra.mrb[0].mxu0 %v5986
    %v6111 = vpop.f32.mrb[0].mxu0
    %v6112 = vadd.f32 %v5964, %v6111
    %v6113 = vpop.f32.mrb[0].mxu0
    %6114 = vmatprep.mubr.f32.mxu0 0.0
    %6115 = vmatmul.mubr.f32.gmra.mrb[0].mxu0 %v5989
    %v6116 = vpop.f32.mrb[0].mxu0
    %v6117 = vadd.f32 %v5964, %v6116
    %v6118 = vpop.f32.mrb[0].mxu0
    %6119 = vmatprep.mubr.f32.mxu0 0.0
    %6120 = vmatmul.mubr.f32.gmra.mrb[0].mxu0 %v5992
    %v6121 = vpop.f32.mrb[0].mxu0
    %v6122 = vadd.f32 %v5964, %v6121
    %v6123 = vpop.f32.mrb[0].mxu0
    %6124 = vmatprep.mubr.f32.mxu0 0.0
    %6125 = vmatmul.mubr.f32.gmra.mrb[0].mxu0 %v5995
    %v6126 = vpop.f32.mrb[0].mxu0
    %v6127 = vadd.f32 %v5964, %v6126
    %v6128 = vpop.f32.mrb[0].mxu0
    %6129 = vmatprep.mubr.f32.mxu0 0.0
    %6130 = vmatmul.mubr.f32.gmra.mrb[0].mxu0 %v5998
    %v6131 = vpop.f32.mrb[0].mxu0
    %v6132 = vadd.f32 %v5964, %v6131
    %v6133 = vpop.f32.mrb[0].mxu0
    %6134 = vmatprep.mubr.f32.mxu0 0.0
    %6135 = vmatmul.mubr.f32.gmra.mrb[0].mxu0 %v6001
    %v6136 = vpop.f32.mrb[0].mxu0
    %v6137 = vadd.f32 %v5964, %v6136
    %v6138 = vpop.f32.mrb[0].mxu0
    %6139 = vmatprep.mubr.f32.mxu0 0.0
    %6140 = vmatmul.mubr.f32.gmra.mrb[0].mxu0 %v6004
    %v6141 = vpop.f32.mrb[0].mxu0
    %v6142 = vadd.f32 %v5964, %v6141
    %v6143 = vpop.f32.mrb[0].mxu0
    %6144 = vmatprep.mubr.f32.mxu0 0.0
    %6145 = vmatmul.mubr.f32.gmra.mrb[0].mxu0 %v6007
    %v6146 = vpop.f32.mrb[0].mxu0
    %v6147 = vadd.f32 %v5964, %v6146
    %v6148 = vpop.f32.mrb[0].mxu0
    %6149 = vmatprep.mubr.f32.mxu0 0.0
    %6150 = vmatmul.mubr.f32.gmra.mrb[0].mxu0 %v6010
    %v6151 = vpop.f32.mrb[0].mxu0
    %v6152 = vadd.f32 %v5964, %v6151
    %v6153 = vpop.f32.mrb[0].mxu0
    %6154 = vmatprep.mubr.f32.mxu0 0.0
    %6155 = vmatmul.mubr.f32.gmra.mrb[0].mxu0 %v6013
    %v6156 = vpop.f32.mrb[0].mxu0
    %v6157 = vadd.f32 %v5964, %v6156
    %v6158 = vpop.f32.mrb[0].mxu0
    %6159 = vdwg.mxu0
    %vm6160 = vcmask 130048
    %v6161 = vsel %vm6160, %v6082, 0.0
    %v6162 = vsel %vm6160, %v6087, 0.0
    %v6163 = vadd.f32 %v6161, %v6162
    %v6164 = vsel %vm6160, %v6092, 0.0
    %v6165 = vadd.f32 %v6163, %v6164
    %v6166 = vsel %vm6160, %v6097, 0.0
    %v6167 = vadd.f32 %v6165, %v6166
    %v6168 = vsel %vm6160, %v6102, 0.0
    %v6169 = vadd.f32 %v6167, %v6168
    %v6170 = vsel %vm6160, %v6107, 0.0
    %v6171 = vadd.f32 %v6169, %v6170
    %v6172 = vsel %vm6160, %v6112, 0.0
    %v6173 = vadd.f32 %v6171, %v6172
    %v6174 = vsel %vm6160, %v6117, 0.0
    %v6175 = vadd.f32 %v6173, %v6174
    %v6176 = vsel %vm6160, %v6122, 0.0
    %v6177 = vadd.f32 %v6175, %v6176
    %v6178 = vsel %vm6160, %v6127, 0.0
    %v6179 = vadd.f32 %v6177, %v6178
    %v6180 = vsel %vm6160, %v6132, 0.0
    %v6181 = vadd.f32 %v6179, %v6180
    %v6182 = vsel %vm6160, %v6137, 0.0
    %v6183 = vadd.f32 %v6181, %v6182
    %v6184 = vsel %vm6160, %v6142, 0.0
    %v6185 = vadd.f32 %v6183, %v6184
    %v6186 = vsel %vm6160, %v6147, 0.0
    %v6187 = vadd.f32 %v6185, %v6186
    %v6188 = vsel %vm6160, %v6152, 0.0
    %v6189 = vadd.f32 %v6187, %v6188
    %v6190 = vsel %vm6160, %v6157, 0.0
    %v6191 = vadd.f32 %v6189, %v6190
    %v6192 = vrot.slane %v6191, 4
    %v6193 = vadd.f32 %v6191, %v6192
    %v6194 = vrot.slane %v6193, 2
    %v6195 = vadd.f32 %v6193, %v6194
    %v6196 = vrot.slane %v6195, 1
    %v6197 = vadd.f32 %v6195, %v6196
    %v6198 = vmul.f32 %v6082, %v6082
    %v6199 = vmul.f32 %v6087, %v6087
    %v6200 = vmul.f32 %v6092, %v6092
    %v6201 = vmul.f32 %v6097, %v6097
    %v6202 = vmul.f32 %v6102, %v6102
    %v6203 = vmul.f32 %v6107, %v6107
    %v6204 = vmul.f32 %v6112, %v6112
    %v6205 = vmul.f32 %v6117, %v6117
    %v6206 = vmul.f32 %v6122, %v6122
    %v6207 = vmul.f32 %v6127, %v6127
    %v6208 = vmul.f32 %v6132, %v6132
    %v6209 = vmul.f32 %v6137, %v6137
    %v6210 = vmul.f32 %v6142, %v6142
    %v6211 = vmul.f32 %v6147, %v6147
    %v6212 = vmul.f32 %v6152, %v6152
    %v6213 = vmul.f32 %v6157, %v6157
    %v6214 = vsel %vm6160, %v6198, 0.0
    %v6215 = vsel %vm6160, %v6199, 0.0
    %v6216 = vadd.f32 %v6214, %v6215
    %v6217 = vsel %vm6160, %v6200, 0.0
    %v6218 = vadd.f32 %v6216, %v6217
    %v6219 = vsel %vm6160, %v6201, 0.0
    %v6220 = vadd.f32 %v6218, %v6219
    %v6221 = vsel %vm6160, %v6202, 0.0
    %v6222 = vadd.f32 %v6220, %v6221
    %v6223 = vsel %vm6160, %v6203, 0.0
    %v6224 = vadd.f32 %v6222, %v6223
    %v6225 = vsel %vm6160, %v6204, 0.0
    %v6226 = vadd.f32 %v6224, %v6225
    %v6227 = vsel %vm6160, %v6205, 0.0
    %v6228 = vadd.f32 %v6226, %v6227
    %v6229 = vsel %vm6160, %v6206, 0.0
    %v6230 = vadd.f32 %v6228, %v6229
    %v6231 = vsel %vm6160, %v6207, 0.0
    %v6232 = vadd.f32 %v6230, %v6231
    %v6233 = vsel %vm6160, %v6208, 0.0
    %v6234 = vadd.f32 %v6232, %v6233
    %v6235 = vsel %vm6160, %v6209, 0.0
    %v6236 = vadd.f32 %v6234, %v6235
    %v6237 = vsel %vm6160, %v6210, 0.0
    %v6238 = vadd.f32 %v6236, %v6237
    %v6239 = vsel %vm6160, %v6211, 0.0
    %v6240 = vadd.f32 %v6238, %v6239
    %v6241 = vsel %vm6160, %v6212, 0.0
    %v6242 = vadd.f32 %v6240, %v6241
    %v6243 = vsel %vm6160, %v6213, 0.0
    %v6244 = vadd.f32 %v6242, %v6243
    %v6245 = vrot.slane %v6244, 4
    %v6246 = vadd.f32 %v6244, %v6245
    %v6247 = vrot.slane %v6246, 2
    %v6248 = vadd.f32 %v6246, %v6247
    %v6249 = vrot.slane %v6248, 1
    %v6250 = vadd.f32 %v6248, %v6249
    %v6251 = vmul.f32 %v6197, 0.0078125
    %v6252 = vmul.f32 %v6250, 0.0078125
    %v6253 = vmul.f32 %v6251, %v6251
    %v6254 = vsub.f32 %v6252, %v6253
    %v6255 = vsub.f32 %v6082, %v6251
    %v6256 = vsub.f32 %v6087, %v6251
    %v6257 = vsub.f32 %v6092, %v6251
    %v6258 = vsub.f32 %v6097, %v6251
    %v6259 = vsub.f32 %v6102, %v6251
    %v6260 = vsub.f32 %v6107, %v6251
    %v6261 = vsub.f32 %v6112, %v6251
    %v6262 = vsub.f32 %v6117, %v6251
    %v6263 = vsub.f32 %v6122, %v6251
    %v6264 = vsub.f32 %v6127, %v6251
    %v6265 = vsub.f32 %v6132, %v6251
    %v6266 = vsub.f32 %v6137, %v6251
    %v6267 = vsub.f32 %v6142, %v6251
    %v6268 = vsub.f32 %v6147, %v6251
    %v6269 = vsub.f32 %v6152, %v6251
    %v6270 = vsub.f32 %v6157, %v6251
    %v6271 = vld [vmem:[%s7] sm:$0x1]
    %v6272 = vadd.f32 %v6254, 1e-05
    %v6273 = vrsqrt.pop %v6272
    %v6274 = vmul.f32 %v6271, %v6273
    %v6276 = vlaneseq
    %v6277 = vshrl.u32 %v6276, 7
    %v6278 = vsub.s32 0, %v6277
    %v6279 = vrot.slane %v6274, %v6278
    %v6281 = vmul.f32 %v6255, %v6279
    %v6282 = vmul.f32 %v6256, %v6279
    %v6283 = vmul.f32 %v6257, %v6279
    %v6284 = vmul.f32 %v6258, %v6279
    %v6285 = vmul.f32 %v6259, %v6279
    %v6286 = vmul.f32 %v6260, %v6279
    %v6287 = vmul.f32 %v6261, %v6279
    %v6288 = vmul.f32 %v6262, %v6279
    %v6289 = vmul.f32 %v6263, %v6279
    %v6290 = vmul.f32 %v6264, %v6279
    %v6291 = vmul.f32 %v6265, %v6279
    %v6292 = vmul.f32 %v6266, %v6279
    %v6293 = vmul.f32 %v6267, %v6279
    %v6294 = vmul.f32 %v6268, %v6279
    %v6295 = vmul.f32 %v6269, %v6279
    %v6296 = vmul.f32 %v6270, %v6279
    %v6297 = vld [vmem:[%s8] sm:$0x1]
    %v6299 = vlaneseq
    %v6300 = vshrl.u32 %v6299, 7
    %v6301 = vsub.s32 0, %v6300
    %v6302 = vrot.slane %v6297, %v6301
    %v6304 = vadd.f32 %v6281, %v6302
    %v6305 = vadd.f32 %v6282, %v6302
    %v6306 = vadd.f32 %v6283, %v6302
    %v6307 = vadd.f32 %v6284, %v6302
    %v6308 = vadd.f32 %v6285, %v6302
    %v6309 = vadd.f32 %v6286, %v6302
    %v6310 = vadd.f32 %v6287, %v6302
    %v6311 = vadd.f32 %v6288, %v6302
    %v6312 = vadd.f32 %v6289, %v6302
    %v6313 = vadd.f32 %v6290, %v6302
    %v6314 = vadd.f32 %v6291, %v6302
    %v6315 = vadd.f32 %v6292, %v6302
    %v6316 = vadd.f32 %v6293, %v6302
    %v6317 = vadd.f32 %v6294, %v6302
    %v6318 = vadd.f32 %v6295, %v6302
    %v6319 = vadd.f32 %v6296, %v6302
    %v6320 = vmax.f32 %v6304, 0.0
    %v6321 = vmax.f32 %v6305, 0.0
    %v6322 = vmax.f32 %v6306, 0.0
    %v6323 = vmax.f32 %v6307, 0.0
    %v6324 = vmax.f32 %v6308, 0.0
    %v6325 = vmax.f32 %v6309, 0.0
    %v6326 = vmax.f32 %v6310, 0.0
    %v6327 = vmax.f32 %v6311, 0.0
    %v6328 = vmax.f32 %v6312, 0.0
    %v6329 = vmax.f32 %v6313, 0.0
    %v6330 = vmax.f32 %v6314, 0.0
    %v6331 = vmax.f32 %v6315, 0.0
    %v6332 = vmax.f32 %v6316, 0.0
    %v6333 = vmax.f32 %v6317, 0.0
    %v6334 = vmax.f32 %v6318, 0.0
    %v6335 = vmax.f32 %v6319, 0.0
    %6336 = vst.msk [vmem:[#allocation13] sm:$0xff] %vm6160, %v6320
    %6337 = vst.msk [vmem:[#allocation13 + $0x8] sm:$0xff] %vm6160, %v6321
    %6338 = vst.msk [vmem:[#allocation13 + $0x10] sm:$0xff] %vm6160, %v6322
    %6339 = vst.msk [vmem:[#allocation13 + $0x18] sm:$0xff] %vm6160, %v6323
    %6340 = vst.msk [vmem:[#allocation13 + $0x20] sm:$0xff] %vm6160, %v6324
    %6341 = vst.msk [vmem:[#allocation13 + $0x28] sm:$0xff] %vm6160, %v6325
    %6342 = vst.msk [vmem:[#allocation13 + $0x30] sm:$0xff] %vm6160, %v6326
    %6343 = vst.msk [vmem:[#allocation13 + $0x38] sm:$0xff] %vm6160, %v6327
    %6344 = vst.msk [vmem:[#allocation13 + $0x40] sm:$0xff] %vm6160, %v6328
    %6345 = vst.msk [vmem:[#allocation13 + $0x48] sm:$0xff] %vm6160, %v6329
    %6346 = vst.msk [vmem:[#allocation13 + $0x50] sm:$0xff] %vm6160, %v6330
    %6347 = vst.msk [vmem:[#allocation13 + $0x58] sm:$0xff] %vm6160, %v6331
    %6348 = vst.msk [vmem:[#allocation13 + $0x60] sm:$0xff] %vm6160, %v6332
    %6349 = vst.msk [vmem:[#allocation13 + $0x68] sm:$0xff] %vm6160, %v6333
    %6350 = vst.msk [vmem:[#allocation13 + $0x70] sm:$0xff] %vm6160, %v6334
    %6351 = vst.msk [vmem:[#allocation13 + $0x78] sm:$0xff] %vm6160, %v6335
    %6352 = vst.msk [vmem:[#allocation7] sm:$0xff] %vm6160, %v6320
    %6353 = vst.msk [vmem:[#allocation7 + $0x8] sm:$0xff] %vm6160, %v6321
    %6354 = vst.msk [vmem:[#allocation7 + $0x10] sm:$0xff] %vm6160, %v6322
    %6355 = vst.msk [vmem:[#allocation7 + $0x18] sm:$0xff] %vm6160, %v6323
    %6356 = vst.msk [vmem:[#allocation7 + $0x20] sm:$0xff] %vm6160, %v6324
    %6357 = vst.msk [vmem:[#allocation7 + $0x28] sm:$0xff] %vm6160, %v6325
    %6358 = vst.msk [vmem:[#allocation7 + $0x30] sm:$0xff] %vm6160, %v6326
    %6359 = vst.msk [vmem:[#allocation7 + $0x38] sm:$0xff] %vm6160, %v6327
    %6360 = vst.msk [vmem:[#allocation7 + $0x40] sm:$0xff] %vm6160, %v6328
    %6361 = vst.msk [vmem:[#allocation7 + $0x48] sm:$0xff] %vm6160, %v6329
    %6362 = vst.msk [vmem:[#allocation7 + $0x50] sm:$0xff] %vm6160, %v6330
    %6363 = vst.msk [vmem:[#allocation7 + $0x58] sm:$0xff] %vm6160, %v6331
    %6364 = vst.msk [vmem:[#allocation7 + $0x60] sm:$0xff] %vm6160, %v6332
    %6365 = vst.msk [vmem:[#allocation7 + $0x68] sm:$0xff] %vm6160, %v6333
    %6366 = vst.msk [vmem:[#allocation7 + $0x70] sm:$0xff] %vm6160, %v6334
    %6367 = vst.msk [vmem:[#allocation7 + $0x78] sm:$0xff] %vm6160, %v6335
    %v6368 = vld [vmem:[#allocation7] ss:$2 sm:$0xff]
    %s6369 = scalar_lea.vmem [#allocation7], 16
    %v6370 = vld [vmem:[%s6369] ss:$2 sm:$0xff]
    %s6371 = scalar_lea.vmem [#allocation7], 32
    %v6372 = vld [vmem:[%s6371] ss:$2 sm:$0xff]
    %s6373 = scalar_lea.vmem [#allocation7], 48
    %v6374 = vld [vmem:[%s6373] ss:$2 sm:$0xff]
    %s6375 = scalar_lea.vmem [#allocation7], 64
    %v6376 = vld [vmem:[%s6375] ss:$2 sm:$0xff]
    %s6377 = scalar_lea.vmem [#allocation7], 80
    %v6378 = vld [vmem:[%s6377] ss:$2 sm:$0xff]
    %s6379 = scalar_lea.vmem [#allocation7], 96
    %v6380 = vld [vmem:[%s6379] ss:$2 sm:$0xff]
    %s6381 = scalar_lea.vmem [#allocation7], 112
    %v6382 = vld [vmem:[%s6381] ss:$2 sm:$0xff]
    %s6383 = scalar_lea.vmem [#allocation7], 1
    %v6384 = vld [vmem:[%s6383] ss:$2 sm:$0xff]
    %s6385 = scalar_lea.vmem [#allocation7], 17
    %v6386 = vld [vmem:[%s6385] ss:$2 sm:$0xff]
    %s6387 = scalar_lea.vmem [#allocation7], 33
    %v6388 = vld [vmem:[%s6387] ss:$2 sm:$0xff]
    %s6389 = scalar_lea.vmem [#allocation7], 49
    %v6390 = vld [vmem:[%s6389] ss:$2 sm:$0xff]
    %s6391 = scalar_lea.vmem [#allocation7], 65
    %v6392 = vld [vmem:[%s6391] ss:$2 sm:$0xff]
    %s6393 = scalar_lea.vmem [#allocation7], 81
    %v6394 = vld [vmem:[%s6393] ss:$2 sm:$0xff]
    %s6395 = scalar_lea.vmem [#allocation7], 97
    %v6396 = vld [vmem:[%s6395] ss:$2 sm:$0xff]
    %s6397 = scalar_lea.vmem [#allocation7], 113
    %v6398 = vld [vmem:[%s6397] ss:$2 sm:$0xff]
    %v6399 = vmax.f32 %v6368, %v6384
    %v6400 = vmax.f32 %v6370, %v6386
    %v6401 = vmax.f32 %v6372, %v6388
    %v6402 = vmax.f32 %v6374, %v6390
    %v6403 = vmax.f32 %v6376, %v6392
    %v6404 = vmax.f32 %v6378, %v6394
    %v6405 = vmax.f32 %v6380, %v6396
    %v6406 = vmax.f32 %v6382, %v6398
    %v6415 = vrot.slane %v6399, 4
    %v6416 = vrot.slane %v6400, 4
    %v6417 = vrot.slane %v6401, 4
    %v6418 = vrot.slane %v6402, 4
    %v6419 = vrot.slane %v6403, 4
    %v6420 = vrot.slane %v6404, 4
    %v6421 = vrot.slane %v6405, 4
    %v6422 = vrot.slane %v6406, 4
    %v6431 = vmax.f32 %v6399, %v6415
    %v6432 = vmax.f32 %v6400, %v6416
    %v6433 = vmax.f32 %v6401, %v6417
    %v6434 = vmax.f32 %v6402, %v6418
    %v6435 = vmax.f32 %v6403, %v6419
    %v6436 = vmax.f32 %v6404, %v6420
    %v6437 = vmax.f32 %v6405, %v6421
    %v6438 = vmax.f32 %v6406, %v6422
    %v6442 = vunpack.c.l.s4 1983009808
    %v6443 = vunpack.c.0.s8 %v6442
    %v6444 = vlaneseq
    %v6445 = vshrl.u32 %v6444, 7
    %v6446 = vsub.s32 %v6443, %v6445
    %v6447 = vrot.slane %v6431, %v6446
    %v6449 = vunpack.c.l.s4 1983009808
    %v6450 = vunpack.c.0.s8 %v6449
    %v6451 = vlaneseq
    %v6452 = vshrl.u32 %v6451, 7
    %v6453 = vsub.s32 %v6450, %v6452
    %v6454 = vrot.slane %v6435, %v6453
    %vm6455 = vcmask 1044484
    %v6456 = vsel %vm6455, %v6447, %v6447
    %vm6457 = vcmask 1046534
    %v6458 = vsel %vm6457, %v6447, %v6456
    %v6459 = vrot.slane %v6454, 7
    %vm6460 = vcmask 1041409
    %v6461 = vsel %vm6460, %v6459, %v6458
    %vm6462 = vcmask 1043459
    %v6463 = vsel %vm6462, %v6459, %v6461
    %vm6464 = vcmask 1045509
    %v6465 = vsel %vm6464, %v6459, %v6463
    %vm6466 = vcmask 1047559
    %v6467 = vsel %vm6466, %v6459, %v6465
    %vm6469 = vcmask 123904
    %6470 = vst.msk [vmem:[#allocation8] sm:$0x3] %vm6469, %v6467
    %v6471 = vrot.slane %v6447, 1
    %v6472 = vsel %vm6455, %v6471, %v6471
    %v6473 = vsel %vm6457, %v6471, %v6472
    %v6474 = vsel %vm6460, %v6454, %v6473
    %v6475 = vsel %vm6462, %v6454, %v6474
    %v6476 = vsel %vm6464, %v6454, %v6475
    %v6477 = vsel %vm6466, %v6454, %v6476
    %6478 = vrot.lane.b32.xlu0 %v6477, 16
    %v6479 = vpop.permute.xlu0 %6478
    %vm6481 = vcmask 255104
    %6482 = vst.msk [vmem:[#allocation8] sm:$0x3] %vm6481, %v6479
    %v6483 = vcombine.high %v6447, %v6447
    %v6484 = vcombine.high %v6454, %v6454
    %v6485 = vsel %vm6455, %v6483, %v6483
    %v6486 = vsel %vm6457, %v6483, %v6485
    %v6487 = vrot.slane %v6484, 7
    %v6488 = vsel %vm6460, %v6487, %v6486
    %v6489 = vsel %vm6462, %v6487, %v6488
    %v6490 = vsel %vm6464, %v6487, %v6489
    %v6491 = vsel %vm6466, %v6487, %v6490
    %6492 = vrot.lane.b32.xlu0 %v6491, 32
    %v6493 = vpop.permute.xlu0 %6492
    %vm6495 = vcmask 386304
    %6496 = vst.msk [vmem:[#allocation8] sm:$0x3] %vm6495, %v6493
    %v6497 = vrot.slane %v6483, 1
    %v6498 = vsel %vm6455, %v6497, %v6497
    %v6499 = vsel %vm6457, %v6497, %v6498
    %v6500 = vsel %vm6460, %v6484, %v6499
    %v6501 = vsel %vm6462, %v6484, %v6500
    %v6502 = vsel %vm6464, %v6484, %v6501
    %v6503 = vsel %vm6466, %v6484, %v6502
    %6504 = vrot.lane.b32.xlu0 %v6503, 48
    %v6505 = vpop.permute.xlu0 %6504
    %vm6507 = vcmask 517504
    %6508 = vst.msk [vmem:[#allocation8] sm:$0x3] %vm6507, %v6505
    %v6512 = vunpack.c.l.s4 1983009808
    %v6513 = vunpack.c.0.s8 %v6512
    %v6514 = vlaneseq
    %v6515 = vshrl.u32 %v6514, 7
    %v6516 = vsub.s32 %v6513, %v6515
    %v6517 = vrot.slane %v6432, %v6516
    %v6519 = vunpack.c.l.s4 1983009808
    %v6520 = vunpack.c.0.s8 %v6519
    %v6521 = vlaneseq
    %v6522 = vshrl.u32 %v6521, 7
    %v6523 = vsub.s32 %v6520, %v6522
    %v6524 = vrot.slane %v6436, %v6523
    %v6525 = vsel %vm6455, %v6517, %v6517
    %v6526 = vsel %vm6457, %v6517, %v6525
    %v6527 = vrot.slane %v6524, 7
    %v6528 = vsel %vm6460, %v6527, %v6526
    %v6529 = vsel %vm6462, %v6527, %v6528
    %v6530 = vsel %vm6464, %v6527, %v6529
    %v6531 = vsel %vm6466, %v6527, %v6530
    %6532 = vrot.lane.b32.xlu0 %v6531, 64
    %v6533 = vpop.permute.xlu0 %6532
    %vm6535 = vcmask 648704
    %6536 = vst.msk [vmem:[#allocation8] sm:$0x3] %vm6535, %v6533
    %v6537 = vrot.slane %v6517, 1
    %v6538 = vsel %vm6455, %v6537, %v6537
    %v6539 = vsel %vm6457, %v6537, %v6538
    %v6540 = vsel %vm6460, %v6524, %v6539
    %v6541 = vsel %vm6462, %v6524, %v6540
    %v6542 = vsel %vm6464, %v6524, %v6541
    %v6543 = vsel %vm6466, %v6524, %v6542
    %6544 = vrot.lane.b32.xlu0 %v6543, 80
    %v6545 = vpop.permute.xlu0 %6544
    %vm6547 = vcmask 779904
    %6548 = vst.msk [vmem:[#allocation8] sm:$0x3] %vm6547, %v6545
    %v6549 = vcombine.high %v6517, %v6517
    %v6550 = vcombine.high %v6524, %v6524
    %v6551 = vsel %vm6455, %v6549, %v6549
    %v6552 = vsel %vm6457, %v6549, %v6551
    %v6553 = vrot.slane %v6550, 7
    %v6554 = vsel %vm6460, %v6553, %v6552
    %v6555 = vsel %vm6462, %v6553, %v6554
    %v6556 = vsel %vm6464, %v6553, %v6555
    %v6557 = vsel %vm6466, %v6553, %v6556
    %6558 = vrot.lane.b32.xlu0 %v6557, 96
    %v6559 = vpop.permute.xlu0 %6558
    %vm6561 = vcmask 911104
    %6562 = vst.msk [vmem:[#allocation8] sm:$0x3] %vm6561, %v6559
    %v6563 = vrot.slane %v6549, 1
    %v6564 = vsel %vm6455, %v6563, %v6563
    %v6565 = vsel %vm6457, %v6563, %v6564
    %v6566 = vsel %vm6460, %v6550, %v6565
    %v6567 = vsel %vm6462, %v6550, %v6566
    %v6568 = vsel %vm6464, %v6550, %v6567
    %v6569 = vsel %vm6466, %v6550, %v6568
    %6570 = vrot.lane.b32.xlu0 %v6569, 112
    %v6571 = vpop.permute.xlu0 %6570
    %vm6573 = vcmask 1042304
    %6574 = vst.msk [vmem:[#allocation8] sm:$0x3] %vm6573, %v6571
    %v6578 = vunpack.c.l.s4 1983009808
    %v6579 = vunpack.c.0.s8 %v6578
    %v6580 = vlaneseq
    %v6581 = vshrl.u32 %v6580, 7
    %v6582 = vsub.s32 %v6579, %v6581
    %v6583 = vrot.slane %v6433, %v6582
    %v6585 = vunpack.c.l.s4 1983009808
    %v6586 = vunpack.c.0.s8 %v6585
    %v6587 = vlaneseq
    %v6588 = vshrl.u32 %v6587, 7
    %v6589 = vsub.s32 %v6586, %v6588
    %v6590 = vrot.slane %v6437, %v6589
    %v6591 = vsel %vm6455, %v6583, %v6583
    %v6592 = vsel %vm6457, %v6583, %v6591
    %v6593 = vrot.slane %v6590, 7
    %v6594 = vsel %vm6460, %v6593, %v6592
    %v6595 = vsel %vm6462, %v6593, %v6594
    %v6596 = vsel %vm6464, %v6593, %v6595
    %v6597 = vsel %vm6466, %v6593, %v6596
    %6599 = vst.msk [vmem:[#allocation8 + $0x2] sm:$0x3] %vm6469, %v6597
    %v6600 = vrot.slane %v6583, 1
    %v6601 = vsel %vm6455, %v6600, %v6600
    %v6602 = vsel %vm6457, %v6600, %v6601
    %v6603 = vsel %vm6460, %v6590, %v6602
    %v6604 = vsel %vm6462, %v6590, %v6603
    %v6605 = vsel %vm6464, %v6590, %v6604
    %v6606 = vsel %vm6466, %v6590, %v6605
    %6607 = vrot.lane.b32.xlu0 %v6606, 16
    %v6608 = vpop.permute.xlu0 %6607
    %6610 = vst.msk [vmem:[#allocation8 + $0x2] sm:$0x3] %vm6481, %v6608
    %v6611 = vcombine.high %v6583, %v6583
    %v6612 = vcombine.high %v6590, %v6590
    %v6613 = vsel %vm6455, %v6611, %v6611
    %v6614 = vsel %vm6457, %v6611, %v6613
    %v6615 = vrot.slane %v6612, 7
    %v6616 = vsel %vm6460, %v6615, %v6614
    %v6617 = vsel %vm6462, %v6615, %v6616
    %v6618 = vsel %vm6464, %v6615, %v6617
    %v6619 = vsel %vm6466, %v6615, %v6618
    %6620 = vrot.lane.b32.xlu0 %v6619, 32
    %v6621 = vpop.permute.xlu0 %6620
    %6623 = vst.msk [vmem:[#allocation8 + $0x2] sm:$0x3] %vm6495, %v6621
    %v6624 = vrot.slane %v6611, 1
    %v6625 = vsel %vm6455, %v6624, %v6624
    %v6626 = vsel %vm6457, %v6624, %v6625
    %v6627 = vsel %vm6460, %v6612, %v6626
    %v6628 = vsel %vm6462, %v6612, %v6627
    %v6629 = vsel %vm6464, %v6612, %v6628
    %v6630 = vsel %vm6466, %v6612, %v6629
    %6631 = vrot.lane.b32.xlu0 %v6630, 48
    %v6632 = vpop.permute.xlu0 %6631
    %6634 = vst.msk [vmem:[#allocation8 + $0x2] sm:$0x3] %vm6507, %v6632
    %v6638 = vunpack.c.l.s4 1983009808
    %v6639 = vunpack.c.0.s8 %v6638
    %v6640 = vlaneseq
    %v6641 = vshrl.u32 %v6640, 7
    %v6642 = vsub.s32 %v6639, %v6641
    %v6643 = vrot.slane %v6434, %v6642
    %v6645 = vunpack.c.l.s4 1983009808
    %v6646 = vunpack.c.0.s8 %v6645
    %v6647 = vlaneseq
    %v6648 = vshrl.u32 %v6647, 7
    %v6649 = vsub.s32 %v6646, %v6648
    %v6650 = vrot.slane %v6438, %v6649
    %v6651 = vsel %vm6455, %v6643, %v6643
    %v6652 = vsel %vm6457, %v6643, %v6651
    %v6653 = vrot.slane %v6650, 7
    %v6654 = vsel %vm6460, %v6653, %v6652
    %v6655 = vsel %vm6462, %v6653, %v6654
    %v6656 = vsel %vm6464, %v6653, %v6655
    %v6657 = vsel %vm6466, %v6653, %v6656
    %6658 = vrot.lane.b32.xlu0 %v6657, 64
    %v6659 = vpop.permute.xlu0 %6658
    %6661 = vst.msk [vmem:[#allocation8 + $0x2] sm:$0x3] %vm6535, %v6659
    %v6662 = vrot.slane %v6643, 1
    %v6663 = vsel %vm6455, %v6662, %v6662
    %v6664 = vsel %vm6457, %v6662, %v6663
    %v6665 = vsel %vm6460, %v6650, %v6664
    %v6666 = vsel %vm6462, %v6650, %v6665
    %v6667 = vsel %vm6464, %v6650, %v6666
    %v6668 = vsel %vm6466, %v6650, %v6667
    %6669 = vrot.lane.b32.xlu0 %v6668, 80
    %v6670 = vpop.permute.xlu0 %6669
    %6672 = vst.msk [vmem:[#allocation8 + $0x2] sm:$0x3] %vm6547, %v6670
    %v6673 = vcombine.high %v6643, %v6643
    %v6674 = vcombine.high %v6650, %v6650
    %v6675 = vsel %vm6455, %v6673, %v6673
    %v6676 = vsel %vm6457, %v6673, %v6675
    %v6677 = vrot.slane %v6674, 7
    %v6678 = vsel %vm6460, %v6677, %v6676
    %v6679 = vsel %vm6462, %v6677, %v6678
    %v6680 = vsel %vm6464, %v6677, %v6679
    %v6681 = vsel %vm6466, %v6677, %v6680
    %6682 = vrot.lane.b32.xlu0 %v6681, 96
    %v6683 = vpop.permute.xlu0 %6682
    %6685 = vst.msk [vmem:[#allocation8 + $0x2] sm:$0x3] %vm6561, %v6683
    %v6686 = vrot.slane %v6673, 1
    %v6687 = vsel %vm6455, %v6686, %v6686
    %v6688 = vsel %vm6457, %v6686, %v6687
    %v6689 = vsel %vm6460, %v6674, %v6688
    %v6690 = vsel %vm6462, %v6674, %v6689
    %v6691 = vsel %vm6464, %v6674, %v6690
    %v6692 = vsel %vm6466, %v6674, %v6691
    %6693 = vrot.lane.b32.xlu0 %v6692, 112
    %v6694 = vpop.permute.xlu0 %6693
    %6696 = vst.msk [vmem:[#allocation8 + $0x2] sm:$0x3] %vm6573, %v6694
    %v6697 = vld [vmem:[#allocation8] sm:$0xf]
    %v6698 = vld [vmem:[%s9] sm:$0xff]
    %v6699 = vld [vmem:[%s9 + $0x8] sm:$0xff]
    %v6700 = vld [vmem:[%s9 + $0x10] sm:$0xff]
    %v6701 = vld [vmem:[%s9 + $0x18] sm:$0xff]
    %v6702 = vld [vmem:[%s9 + $0x20] sm:$0xff]
    %v6703 = vld [vmem:[%s9 + $0x28] sm:$0xff]
    %v6704 = vld [vmem:[%s9 + $0x30] sm:$0xff]
    %v6705 = vld [vmem:[%s9 + $0x38] sm:$0xff]
    %v6706 = vld [vmem:[%s9 + $0x40] sm:$0xff]
    %v6707 = vld [vmem:[%s9 + $0x48] sm:$0xff]
    %v6708 = vld [vmem:[%s9 + $0x50] sm:$0xff]
    %v6709 = vld [vmem:[%s9 + $0x58] sm:$0xff]
    %v6710 = vld [vmem:[%s9 + $0x60] sm:$0xff]
    %v6711 = vld [vmem:[%s9 + $0x68] sm:$0xff]
    %v6712 = vld [vmem:[%s9 + $0x70] sm:$0xff]
    %v6713 = vld [vmem:[%s9 + $0x78] sm:$0xff]
    %v6714 = vld [vmem:[%s9 + $0x80] sm:$0xff]
    %v6715 = vld [vmem:[%s9 + $0x88] sm:$0xff]
    %v6716 = vld [vmem:[%s9 + $0x90] sm:$0xff]
    %v6717 = vld [vmem:[%s9 + $0x98] sm:$0xff]
    %v6718 = vld [vmem:[%s9 + $0xa0] sm:$0xff]
    %v6719 = vld [vmem:[%s9 + $0xa8] sm:$0xff]
    %v6720 = vld [vmem:[%s9 + $0xb0] sm:$0xff]
    %v6721 = vld [vmem:[%s9 + $0xb8] sm:$0xff]
    %v6722 = vld [vmem:[%s9 + $0xc0] sm:$0xff]
    %v6723 = vld [vmem:[%s9 + $0xc8] sm:$0xff]
    %v6724 = vld [vmem:[%s9 + $0xd0] sm:$0xff]
    %v6725 = vld [vmem:[%s9 + $0xd8] sm:$0xff]
    %v6726 = vld [vmem:[%s9 + $0xe0] sm:$0xff]
    %v6727 = vld [vmem:[%s9 + $0xe8] sm:$0xff]
    %v6728 = vld [vmem:[%s9 + $0xf0] sm:$0xff]
    %v6729 = vld [vmem:[%s9 + $0xf8] sm:$0xff]
    %v6730 = vld [vmem:[%s10] sm:$0x1]
    %v6732 = vlaneseq
    %v6733 = vshrl.u32 %v6732, 7
    %v6734 = vsub.s32 0, %v6733
    %v6735 = vrot.slane %v6730, %v6734
    %v6739 = vunpack.c.l.s4 1983009808
    %v6740 = vunpack.c.0.s8 %v6739
    %v6741 = vlaneseq
    %v6742 = vshrl.u32 %v6741, 7
    %v6743 = vsub.s32 %v6740, %v6742
    %v6744 = vrot.slane %v6697, %v6743
    %v6745 = vcombine.high %v6744, %v6744
    %6748 = vmatprep.subr.mxu0 0.0
    %6749 = vmatpush1.msra.mxu0 %v6698
    %6750 = vmatprep.subr.mxu0 0.0
    %6751 = vmatpush1.msra.mxu0 %v6699
    %6752 = vmatprep.subr.mxu0 0.0
    %6753 = vmatpush1.msra.mxu0 %v6700
    %6754 = vmatprep.subr.mxu0 0.0
    %6755 = vmatpush1.msra.mxu0 %v6701
    %6756 = vmatprep.subr.mxu0 0.0
    %6757 = vmatpush1.msra.mxu0 %v6702
    %6758 = vmatprep.subr.mxu0 0.0
    %6759 = vmatpush1.msra.mxu0 %v6703
    %6760 = vmatprep.subr.mxu0 0.0
    %6761 = vmatpush1.msra.mxu0 %v6704
    %6762 = vmatprep.subr.mxu0 0.0
    %6763 = vmatpush1.msra.mxu0 %v6705
    %6764 = vmatprep.subr.mxu0 0.0
    %6765 = vmatpush1.msra.mxu0 %v6706
    %6766 = vmatprep.subr.mxu0 0.0
    %6767 = vmatpush1.msra.mxu0 %v6707
    %6768 = vmatprep.subr.mxu0 0.0
    %6769 = vmatpush1.msra.mxu0 %v6708
    %6770 = vmatprep.subr.mxu0 0.0
    %6771 = vmatpush1.msra.mxu0 %v6709
    %6772 = vmatprep.subr.mxu0 0.0
    %6773 = vmatpush1.msra.mxu0 %v6710
    %6774 = vmatprep.subr.mxu0 0.0
    %6775 = vmatpush1.msra.mxu0 %v6711
    %6776 = vmatprep.subr.mxu0 0.0
    %6777 = vmatpush1.msra.mxu0 %v6712
    %6778 = vmatprep.subr.mxu0 0.0
    %6779 = vmatpush1.msra.mxu0 %v6713
    %6780 = vmatprep.subr.mxu0 0.0
    %6781 = vmatpush1.msra.mxu0 %v6714
    %6782 = vmatprep.subr.mxu0 0.0
    %6783 = vmatpush1.msra.mxu0 %v6715
    %6784 = vmatprep.subr.mxu0 0.0
    %6785 = vmatpush1.msra.mxu0 %v6716
    %6786 = vmatprep.subr.mxu0 0.0
    %6787 = vmatpush1.msra.mxu0 %v6717
    %6788 = vmatprep.subr.mxu0 0.0
    %6789 = vmatpush1.msra.mxu0 %v6718
    %6790 = vmatprep.subr.mxu0 0.0
    %6791 = vmatpush1.msra.mxu0 %v6719
    %6792 = vmatprep.subr.mxu0 0.0
    %6793 = vmatpush1.msra.mxu0 %v6720
    %6794 = vmatprep.subr.mxu0 0.0
    %6795 = vmatpush1.msra.mxu0 %v6721
    %6796 = vmatprep.subr.mxu0 0.0
    %6797 = vmatpush1.msra.mxu0 %v6722
    %6798 = vmatprep.subr.mxu0 0.0
    %6799 = vmatpush1.msra.mxu0 %v6723
    %6800 = vmatprep.subr.mxu0 0.0
    %6801 = vmatpush1.msra.mxu0 %v6724
    %6802 = vmatprep.subr.mxu0 0.0
    %6803 = vmatpush1.msra.mxu0 %v6725
    %6804 = vmatprep.subr.mxu0 0.0
    %6805 = vmatpush1.msra.mxu0 %v6726
    %6806 = vmatprep.subr.mxu0 0.0
    %6807 = vmatpush1.msra.mxu0 %v6727
    %6808 = vmatprep.subr.mxu0 0.0
    %6809 = vmatpush1.msra.mxu0 %v6728
    %6810 = vmatprep.subr.mxu0 0.0
    %6811 = vmatpush1.msra.mxu0 %v6729
    %6812 = vmatprep.mubr.f32.mxu0 %v6745
    %6813 = vmatmul.mubr.f32.gmra.mrb[0].mxu0 %v6744
    %v6814 = vpop.f32.mrb[0].mxu0
    %v6815 = vadd.f32 %v6735, %v6814
    %v6816 = vpop.f32.mrb[0].mxu0
    %6817 = vdwg.mxu0
    %vm6818 = vcmp.ge.f32.partialorder %v6815, 0.0
    %v6819 = vmul.f32 %v6815, 0.01
    %v6820 = vsel %vm6818, %v6815, %v6819
    %v6821 = vld [vmem:[%s11] sm:$0xff]
    %v6822 = vld [vmem:[%s11 + $0x8] sm:$0xff]
    %v6823 = vld [vmem:[%s11 + $0x10] sm:$0xff]
    %v6824 = vld [vmem:[%s11 + $0x18] sm:$0xff]
    %v6825 = vld [vmem:[%s12] sm:$0x1]
    %v6827 = vlaneseq
    %v6828 = vshrl.u32 %v6827, 7
    %v6829 = vsub.s32 0, %v6828
    %v6830 = vrot.slane %v6825, %v6829
    %vm6832 = vcmask 261120
    %v6834 = vsel %vm6832, %v6820, 0
    %6836 = vmatprep.subr.mxu0 0.0
    %6837 = vmatpush1.msra.mxu0 %v6821
    %6838 = vmatprep.subr.mxu0 0.0
    %6839 = vmatpush1.msra.mxu0 %v6822
    %6840 = vmatprep.subr.mxu0 0.0
    %6841 = vmatpush1.msra.mxu0 %v6823
    %6842 = vmatprep.subr.mxu0 0.0
    %6843 = vmatpush1.msra.mxu0 %v6824
    %6844 = vmatprep.subr.mxu0 0.0
    %6845 = vmatpush1.msra.mxu0 0.0
    %6846 = vmatprep.subr.mxu0 0.0
    %6847 = vmatpush1.msra.mxu0 0.0
    %6848 = vmatprep.subr.mxu0 0.0
    %6849 = vmatpush1.msra.mxu0 0.0
    %6850 = vmatprep.subr.mxu0 0.0
    %6851 = vmatpush1.msra.mxu0 0.0
    %6852 = vmatprep.subr.mxu0 0.0
    %6853 = vmatpush1.msra.mxu0 0.0
    %6854 = vmatprep.subr.mxu0 0.0
    %6855 = vmatpush1.msra.mxu0 0.0
    %6856 = vmatprep.subr.mxu0 0.0
    %6857 = vmatpush1.msra.mxu0 0.0
    %6858 = vmatprep.subr.mxu0 0.0
    %6859 = vmatpush1.msra.mxu0 0.0
    %6860 = vmatprep.subr.mxu0 0.0
    %6861 = vmatpush1.msra.mxu0 0.0
    %6862 = vmatprep.subr.mxu0 0.0
    %6863 = vmatpush1.msra.mxu0 0.0
    %6864 = vmatprep.subr.mxu0 0.0
    %6865 = vmatpush1.msra.mxu0 0.0
    %6866 = vmatprep.subr.mxu0 0.0
    %6867 = vmatpush1.msra.mxu0 0.0
    %6868 = vmatprep.subr.mxu0 0.0
    %6869 = vmatpush1.msra.mxu0 0.0
    %6870 = vmatprep.subr.mxu0 0.0
    %6871 = vmatpush1.msra.mxu0 0.0
    %6872 = vmatprep.subr.mxu0 0.0
    %6873 = vmatpush1.msra.mxu0 0.0
    %6874 = vmatprep.subr.mxu0 0.0
    %6875 = vmatpush1.msra.mxu0 0.0
    %6876 = vmatprep.subr.mxu0 0.0
    %6877 = vmatpush1.msra.mxu0 0.0
    %6878 = vmatprep.subr.mxu0 0.0
    %6879 = vmatpush1.msra.mxu0 0.0
    %6880 = vmatprep.subr.mxu0 0.0
    %6881 = vmatpush1.msra.mxu0 0.0
    %6882 = vmatprep.subr.mxu0 0.0
    %6883 = vmatpush1.msra.mxu0 0.0
    %6884 = vmatprep.subr.mxu0 0.0
    %6885 = vmatpush1.msra.mxu0 0.0
    %6886 = vmatprep.subr.mxu0 0.0
    %6887 = vmatpush1.msra.mxu0 0.0
    %6888 = vmatprep.subr.mxu0 0.0
    %6889 = vmatpush1.msra.mxu0 0.0
    %6890 = vmatprep.subr.mxu0 0.0
    %6891 = vmatpush1.msra.mxu0 0.0
    %6892 = vmatprep.subr.mxu0 0.0
    %6893 = vmatpush1.msra.mxu0 0.0
    %6894 = vmatprep.subr.mxu0 0.0
    %6895 = vmatpush1.msra.mxu0 0.0
    %6896 = vmatprep.subr.mxu0 0.0
    %6897 = vmatpush1.msra.mxu0 0.0
    %6898 = vmatprep.subr.mxu0 0.0
    %6899 = vmatpush1.msra.mxu0 0.0
    %6900 = vmatprep.mubr.f32.mxu0 0.0
    %6901 = vmatmul.mubr.f32.gmra.mrb[0].mxu0 %v6834
    %v6902 = vpop.f32.mrb[0].mxu0
    %v6903 = vadd.f32 %v6830, %v6902
    %v6904 = vpop.f32.mrb[0].mxu0
    %6905 = vdwg.mxu0
    %6906 = vst.msk [vmem:[#allocation9] sm:$0x3] %vm5068, %v6903
    %6908 = vrot.lane.b32.xlu0 %v6903, 120
    %v6909 = vpop.permute.xlu0 %6908
    %6911 = vst.msk [vmem:[#allocation11] sm:$0x3] %vm5068, %v6909
    // Predicated region
    $region54: #{forward.1} parent=1 // pred_check
      _
    $region55: #{forward.1} parent=1 // pred_check_branch
      %6913 = sbr.rel (0) target = $region57
    $region56: #{forward.1} parent=1 // pred_region
      %s6915 = ssub.s32 32, 32
      %6916 = vsyncadd [#allocation10], %s6915
      %s6918 = sshll.u32 [#allocation9], 4
      %s6919 = int_to_ptr.vmem [resolvable:$true] %s6918
      %6921 = dma.vmem_to_hbm [thread:$0]  %s6919, 32, %s13, [#allocation10]
    $region57: #{forward.1} parent=1 // pred_fallthru
      _
    // Predicated region
    $region58: #{forward.1} parent=1 // pred_check
      _
    $region59: #{forward.1} parent=1 // pred_check_branch
      %6923 = sbr.rel (0) target = $region61
    $region60: #{forward.1} parent=1 // pred_region
      %s6925 = ssub.s32 32, 32
      %6926 = vsyncadd [#allocation12], %s6925
      %s6928 = sshll.u32 [#allocation11], 4
      %s6929 = int_to_ptr.vmem [resolvable:$true] %s6928
      %6931 = dma.vmem_to_hbm [thread:$0]  %s6929, 32, %s14, [#allocation12]
    $region61: #{forward.1} parent=1 // pred_fallthru
      _
    // Predicated region
    $region62: #{forward.1} parent=1 // pred_check
      _
    $region63: #{forward.1} parent=1 // pred_check_branch
      %6933 = sbr.rel (0) target = $region65
    $region64: #{forward.1} parent=1 // pred_region
      _
    $region65: #{forward.1} parent=1 // pred_fallthru
      _
    // Predicated region
    $region66: #{forward.1} parent=1 // pred_check
      _
    $region67: #{forward.1} parent=1 // pred_check_branch
      %6935 = sbr.rel (0) target = $region69
    $region68: #{forward.1} parent=1 // pred_region
      %s6937 = ssub.s32 2048, 2048
      %6938 = vsyncadd [#allocation12], %s6937
      %s6939 = sshll.u32 [#allocation13], 4
      %s6940 = int_to_ptr.vmem [resolvable:$true] %s6939
      %6945 = dma.vmem_to_hbm [thread:$0]  %s6940, 2048, %s16, [#allocation12], 128, 128, 8
    $region69: #{forward.1} parent=1 // pred_fallthru
      _
    // Predicated region
    $region70: #{forward.1} parent=1 // pred_check
      _
    $region71: #{forward.1} parent=1 // pred_check_branch
      %6947 = sbr.rel (0) target = $region73
    $region72: #{forward.1} parent=1 // pred_region
      %6948 = dma.done [#allocation10], 32
    $region73: #{forward.1} parent=1 // pred_fallthru
      _
    // Predicated region
    $region74: #{forward.1} parent=1 // pred_check
      _
    $region75: #{forward.1} parent=1 // pred_check_branch
      %6950 = sbr.rel (0) target = $region77
    $region76: #{forward.1} parent=1 // pred_region
      %6951 = dma.done [#allocation12], 32
    $region77: #{forward.1} parent=1 // pred_fallthru
      _
    // Predicated region
    $region78: #{forward.1} parent=1 // pred_check
      _
    $region79: #{forward.1} parent=1 // pred_check_branch
      %6953 = sbr.rel (0) target = $region81
    $region80: #{forward.1} parent=1 // pred_region
      _
    $region81: #{forward.1} parent=1 // pred_fallthru
      _
    // Predicated region
    $region82: #{forward.1} parent=1 // pred_check
      _
    $region83: #{forward.1} parent=1 // pred_check_branch
      %6955 = sbr.rel (0) target = $region85
    $region84: #{forward.1} parent=1 // pred_region
      %6956 = dma.done [#allocation12], 2048
    $region85: #{forward.1} parent=1 // pred_fallthru
      _
    %6957 = vsyncpa [#allocation10], 1
    %6958 = vsyncpa [#allocation12], 1

</llo_original>
